<compile_context>
chip_gen: v7x
topology: tpu7x:2x2x1
jax: 0.10.0
libtpu: 0.0.40
codegen_flags: <defaults>
</compile_context>

<pallas_src>
import jax
import jax.numpy as jnp
from jax.experimental import pallas as pl
from jax.experimental.pallas import tpu as pltpu


# ----------------------------------------------------------------------------
# In-kernel building blocks
# ----------------------------------------------------------------------------
def _unflatten_rows(y, oh, ow):
    """(oh*ow, C) -> (oh, ow, C) via contiguous sublane slices + one
    leading-dim stack (avoids a layout-changing reshape)."""
    return jnp.stack([y[h * ow:(h + 1) * ow] for h in range(oh)], axis=0)


def _im2col(src_ref, kh, kw):
    """Bulk im2col: src_ref (B, H, W, C) -> (B*OH*OW, kw*kh*C) bf16 patches.
    Column order (dx, dy, c) matches _weight_matrix on the host."""
    B, H, W, C = src_ref.shape
    OH, OW = H - kh + 1, W - kw + 1
    x = src_ref[...].astype(jnp.bfloat16)
    # kh vertical taps -> lane axis (outer-dim slices, one bulk concat).
    z = jnp.concatenate([x[:, dy:dy + OH] for dy in range(kh)], axis=-1)
    # kw horizontal taps -> lane axis (sublane-shifted slices, one bulk concat).
    p = jnp.concatenate([z[:, :, dx:dx + OW, :] for dx in range(kw)], axis=-1)
    # Flatten (B, OH, OW, K) -> (B*OH*OW, K) rows with one sublane concat.
    return jnp.concatenate([p[b, h] for b in range(B) for h in range(OH)], axis=0)


def _maxpool3x3s2(src_ref, dst_ref):
    """MaxPool2d(kernel=3, stride=2, floor): (B, OH, OW, C) -> (B, POH, POW, C).
    Window-3 maxima are whole-plane VPU ops over shifted slices; the stride-2
    selections are cheap slice+concat gathers; a single dense store."""
    B, OH, OW, C = src_ref.shape
    _, POH, POW, _ = dst_ref.shape
    s = src_ref[...]
    # H direction (outer dim): window-3 max, then keep every other row.
    h3 = jnp.maximum(jnp.maximum(s[:, 0:OH - 2], s[:, 1:OH - 1]), s[:, 2:OH])
    hs = jnp.concatenate([h3[:, 2 * i:2 * i + 1] for i in range(POH)], axis=1)
    # W direction (sublane dim): window-3 max, then keep every other column.
    w3 = jnp.maximum(jnp.maximum(hs[:, :, 0:OW - 2], hs[:, :, 1:OW - 1]),
                     hs[:, :, 2:OW])
    dst_ref[...] = jnp.concatenate(
        [w3[:, :, 2 * j:2 * j + 1, :] for j in range(POW)], axis=2)


def _feature_kernel(p1_ref, w1_ref, b1_ref, w2_ref, b2_ref, w3_ref, b3_ref,
                    out_ref, c1_ref, x2_ref, c2_ref, x3_ref):
    B, OH1, OW1, _ = c1_ref.shape
    _, OH2, OW2, _ = c2_ref.shape
    _, OH3, OW3, _ = out_ref.shape
    w1, w2, w3 = w1_ref[...], w2_ref[...], w3_ref[...]
    b1, b2, b3 = b1_ref[...], b2_ref[...], b3_ref[...]

    # Block 1: Conv(4x4) + folded BN + ReLU.  One (841, 128)x(128, 64) MXU
    # matmul per image (the im2col operand arrives pre-built and lane-dense).
    for b in range(B):
        y1 = jnp.dot(p1_ref[b], w1, preferred_element_type=jnp.float32)
        y1 = jnp.maximum(y1 + b1, 0.0)                       # (OH1*OW1, 64)
        c1_ref[b] = _unflatten_rows(y1, OH1, OW1)
    _maxpool3x3s2(c1_ref, x2_ref)

    # Block 2: Conv(5x5) + folded BN + (eval Dropout2d == id) + ReLU.
    # One (B*100, 1600)x(1600, 64) MXU matmul for the whole image block.
    p2 = _im2col(x2_ref, 5, 5)
    y2 = jnp.maximum(
        jnp.dot(p2, w2, preferred_element_type=jnp.float32) + b2, 0.0)
    for b in range(B):
        c2_ref[b] = _unflatten_rows(
            y2[b * OH2 * OW2:(b + 1) * OH2 * OW2], OH2, OW2)
    _maxpool3x3s2(c2_ref, x3_ref)

    # Block 3: Conv(3x3) + bias, straight into the lane-dense (.., 128) output.
    p3 = _im2col(x3_ref, 3, 3)
    y3 = jnp.dot(p3, w3, preferred_element_type=jnp.float32) + b3
    for b in range(B):
        out_ref[b] = _unflatten_rows(
            y3[b * OH3 * OW3:(b + 1) * OH3 * OW3], OH3, OW3)


# ----------------------------------------------------------------------------
# Host-side parameter / input prep + wrapper
# ----------------------------------------------------------------------------
def _fold_bn(conv_bias, gamma, beta, mean, var, eps=1e-5):
    s = gamma / jnp.sqrt(var + eps)
    return s, (conv_bias - mean) * s + beta


def _weight_matrix(w_oihw, scale=None):
    """(Cout, Cin, KH, KW) -> (KW*KH*Cin, Cout) bf16 with column order
    (dx, dy, cin), matching the patch construction.  Optionally folds a
    per-output-channel BatchNorm scale into the columns."""
    cout = w_oihw.shape[0]
    wm = jnp.transpose(w_oihw, (3, 2, 1, 0)).reshape(-1, cout)
    if scale is not None:
        wm = wm * scale[None, :]
    return wm.astype(jnp.bfloat16)


def _im2col_host(x, kh, kw):
    """Host-side im2col for conv1: (N, H, W, C) -> (N, OH*OW, kw*kh*C)."""
    N, H, W, C = x.shape
    OH, OW = H - kh + 1, W - kw + 1
    taps = [x[:, dy:dy + OH, dx:dx + OW, :]
            for dx in range(kw) for dy in range(kh)]
    p = jnp.concatenate(taps, axis=-1)
    return p.reshape(N, OH * OW, kw * kh * C)


def _pick_block_batch(n, max_b=8):
    """Largest B dividing n with n // B >= 2 (keeps the v7x grid length even
    whenever possible; v5e/v6e just amortize per-step pipeline overhead)."""
    best = 1
    for b in range(1, min(n, max_b) + 1):
        if n % b == 0 and n // b >= 2:
            best = b
    return best


def feature_extractor_forward(x_nchw, params):
    N, cin, H, W = x_nchw.shape
    x = jnp.transpose(x_nchw, (0, 2, 3, 1)).astype(jnp.float32)      # NHWC
    # Pad Cin 3 -> 8 so conv1's contraction is lane-dense (K = 4*4*8 = 128);
    # matching zero weight rows keep the math identical.
    cpad = (-cin) % 8
    c8 = cin + cpad
    x = jnp.pad(x, ((0, 0), (0, 0), (0, 0), (0, cpad)))
    w1p = jnp.pad(params["w1"], ((0, 0), (0, cpad), (0, 0), (0, 0)))

    # Fold BN (eval-mode running stats) into weights/bias.
    s1, bb1 = _fold_bn(params["b1"], params["g1"], params["be1"],
                       params["m1"], params["v1"])
    s2, bb2 = _fold_bn(params["b2"], params["g2"], params["be2"],
                       params["m2"], params["v2"])
    w1m = _weight_matrix(w1p, s1)                     # (128, 64)   bf16
    w2m = _weight_matrix(params["w2"], s2)            # (1600, 64)  bf16
    w3m = _weight_matrix(params["w3"])                # (576, 128)  bf16
    b1r = bb1.reshape(1, -1).astype(jnp.float32)
    b2r = bb2.reshape(1, -1).astype(jnp.float32)
    b3r = params["b3"].reshape(1, -1).astype(jnp.float32)

    # Layer geometry (valid convs, floor-mode 3x3/stride-2 pooling).
    oh1, ow1 = H - 3, W - 3                            # 29, 29
    p1h, p1w = (oh1 - 3) // 2 + 1, (ow1 - 3) // 2 + 1  # 14, 14
    oh2, ow2 = p1h - 4, p1w - 4                        # 10, 10
    p2h, p2w = (oh2 - 3) // 2 + 1, (ow2 - 3) // 2 + 1  # 4, 4
    oh3, ow3 = p2h - 2, p2w - 2                        # 2, 2

    k1 = 4 * 4 * c8
    patches1 = _im2col_host(x, 4, 4).astype(jnp.bfloat16)   # (N, 841, 128)

    B = _pick_block_batch(N)
    const2 = lambda n: (0, 0)
    out = pl.pallas_call(
        _feature_kernel,
        out_shape=jax.ShapeDtypeStruct((N, oh3, ow3, 128), jnp.float32),
        grid=(N // B,),
        in_specs=[
            pl.BlockSpec((B, oh1 * ow1, k1), lambda n: (n, 0, 0)),  # conv1 patches
            pl.BlockSpec((k1, 64), const2),                         # conv1 W (BN folded)
            pl.BlockSpec((1, 64), const2),                          # conv1 bias
            pl.BlockSpec((5 * 5 * 64, 64), const2),                 # conv2 W (BN folded)
            pl.BlockSpec((1, 64), const2),                          # conv2 bias
            pl.BlockSpec((3 * 3 * 64, 128), const2),                # conv3 W
            pl.BlockSpec((1, 128), const2),                         # conv3 bias
        ],
        out_specs=pl.BlockSpec((B, oh3, ow3, 128), lambda n: (n, 0, 0, 0)),
        scratch_shapes=[                                            # ~0.6 MiB total
            pltpu.VMEM((B, oh1, ow1, 64), jnp.float32),   # conv1 output plane
            pltpu.VMEM((B, p1h, p1w, 64), jnp.float32),   # pool1 out / conv2 in
            pltpu.VMEM((B, oh2, ow2, 64), jnp.float32),   # conv2 output plane
            pltpu.VMEM((B, p2h, p2w, 64), jnp.float32),   # pool2 out / conv3 in
        ],
        compiler_params=pltpu.CompilerParams(dimension_semantics=("parallel",)),
    )(patches1, w1m, b1r, w2m, b2r, w3m, b3r)

    # Match torch exactly: NCHW flatten then reshape(-1, 128) (tiny tensor).
    out = jnp.transpose(out, (0, 3, 1, 2))
    return out.reshape(-1, 128)


# ----------------------------------------------------------------------------
# Pure-JAX reference (for correctness), params, main
# ----------------------------------------------------------------------------
def _reference_forward(x_nchw, params, eps=1e-5):
    def conv(x, w, b):
        y = jax.lax.conv_general_dilated(
            x, w, window_strides=(1, 1), padding="VALID",
            dimension_numbers=("NCHW", "OIHW", "NCHW"),
            precision=jax.lax.Precision.HIGHEST)
        return y + b[None, :, None, None]

    def bn(x, g, be, m, v):
        return ((x - m[None, :, None, None])
                / jnp.sqrt(v[None, :, None, None] + eps)
                * g[None, :, None, None] + be[None, :, None, None])

    def pool(x):
        return jax.lax.reduce_window(x, -jnp.inf, jax.lax.max,
                                     (1, 1, 3, 3), (1, 1, 2, 2), "VALID")

    x = conv(x_nchw, params["w1"], params["b1"])
    x = pool(jnp.maximum(bn(x, params["g1"], params["be1"],
                            params["m1"], params["v1"]), 0.0))
    x = conv(x, params["w2"], params["b2"])
    x = pool(jnp.maximum(bn(x, params["g2"], params["be2"],
                            params["m2"], params["v2"]), 0.0))
    x = conv(x, params["w3"], params["b3"])
    return x.reshape(-1, 128)


def init_params(key, in_chans=3):
    ks = jax.random.split(key, 16)
    p = {}
    # Conv2d(in_chans, 64, k=4) + BatchNorm2d(64)
    p["w1"] = 0.1 * jax.random.normal(ks[0], (64, in_chans, 4, 4), jnp.float32)
    p["b1"] = 0.01 * jax.random.normal(ks[1], (64,), jnp.float32)
    p["g1"] = 1.0 + 0.1 * jax.random.normal(ks[2], (64,), jnp.float32)
    p["be1"] = 0.01 * jax.random.normal(ks[3], (64,), jnp.float32)
    p["m1"] = 0.01 * jax.random.normal(ks[4], (64,), jnp.float32)
    p["v1"] = 1.0 + 0.1 * jax.random.uniform(ks[5], (64,), jnp.float32)
    # Conv2d(64, 64, k=5) + BatchNorm2d(64)
    p["w2"] = 0.05 * jax.random.normal(ks[6], (64, 64, 5, 5), jnp.float32)
    p["b2"] = 0.01 * jax.random.normal(ks[7], (64,), jnp.float32)
    p["g2"] = 1.0 + 0.1 * jax.random.normal(ks[8], (64,), jnp.float32)
    p["be2"] = 0.01 * jax.random.normal(ks[9], (64,), jnp.float32)
    p["m2"] = 0.01 * jax.random.normal(ks[10], (64,), jnp.float32)
    p["v2"] = 1.0 + 0.1 * jax.random.uniform(ks[11], (64,), jnp.float32)
    # Conv2d(64, 128, k=3)
    p["w3"] = 0.05 * jax.random.normal(ks[12], (128, 64, 3, 3), jnp.float32)
    p["b3"] = 0.01 * jax.random.normal(ks[13], (128,), jnp.float32)
    return p


if __name__ == "__main__":
    key = jax.random.PRNGKey(0)
    pkey, xkey = jax.random.split(key)
    params = init_params(pkey, in_chans=3)
    # N=4 exercises batch blocking (B=2 images/grid step, grid length 2).
    x = jax.random.normal(xkey, (4, 3, 32, 32), jnp.float32)

    fwd = jax.jit(feature_extractor_forward)
    out = jax.block_until_ready(fwd(x, params))

    assert out.shape == (4 * 2 * 2, 128), out.shape
    assert bool(jnp.all(jnp.isfinite(out)))

    # Correctness vs. pure-JAX f32 reference of the same (eval-mode) module.
    # bf16 MXU operands -> use a relative tolerance.
    ref = jax.block_until_ready(jax.jit(_reference_forward)(x, params))
    max_err = float(jnp.max(jnp.abs(out - ref)))
    scale = float(jnp.max(jnp.abs(ref))) + 1e-6
    assert max_err <= 5e-2 * scale + 2e-2, (max_err, scale)

    print("KERNEL_OK")
</pallas_src>

<mosaic_0001>
module attributes {stable_mosaic.version = 11 : i64} {
  func.func @_feature_kernel(%arg0: i32, %arg1: memref<2x841x128xbf16, #tpu.memory_space<vmem>>, %arg2: memref<128x64xbf16, #tpu.memory_space<vmem>>, %arg3: memref<1x64xf32, #tpu.memory_space<vmem>>, %arg4: memref<1600x64xbf16, #tpu.memory_space<vmem>>, %arg5: memref<1x64xf32, #tpu.memory_space<vmem>>, %arg6: memref<576x128xbf16, #tpu.memory_space<vmem>>, %arg7: memref<1x128xf32, #tpu.memory_space<vmem>>, %arg8: memref<2x2x2x128xf32, #tpu.memory_space<vmem>>, %arg9: memref<2x29x29x64xf32, #tpu.memory_space<vmem>>, %arg10: memref<2x14x14x64xf32, #tpu.memory_space<vmem>>, %arg11: memref<2x10x10x64xf32, #tpu.memory_space<vmem>>, %arg12: memref<2x4x4x64xf32, #tpu.memory_space<vmem>>) attributes {dimension_semantics = [#tpu.dimension_semantics<parallel>], iteration_bounds = array<i64: 2>, scalar_prefetch = 0 : i64, scratch_operands = 4 : i64, tpu.core_type = #tpu.core_type<tc>, window_params = [{transform_indices = @transform_0, window_bounds = array<i64: 2, 841, 128>}, {pipeline_mode = #tpu.pipeline_mode<synchronous>, transform_indices = @transform_1, window_bounds = array<i64: 128, 64>}, {pipeline_mode = #tpu.pipeline_mode<synchronous>, transform_indices = @transform_2, window_bounds = array<i64: 1, 64>}, {pipeline_mode = #tpu.pipeline_mode<synchronous>, transform_indices = @transform_3, window_bounds = array<i64: 1600, 64>}, {pipeline_mode = #tpu.pipeline_mode<synchronous>, transform_indices = @transform_4, window_bounds = array<i64: 1, 64>}, {pipeline_mode = #tpu.pipeline_mode<synchronous>, transform_indices = @transform_5, window_bounds = array<i64: 576, 128>}, {pipeline_mode = #tpu.pipeline_mode<synchronous>, transform_indices = @transform_6, window_bounds = array<i64: 1, 128>}, {transform_indices = @transform_7, window_bounds = array<i64: 2, 2, 2, 128>}]} {
    %c0 = arith.constant 0 : index
    %c0_0 = arith.constant 0 : index
    %0 = vector.load %arg2[%c0, %c0_0] : memref<128x64xbf16, #tpu.memory_space<vmem>>, vector<128x64xbf16>
    %c0_1 = arith.constant 0 : index
    %c0_2 = arith.constant 0 : index
    %1 = vector.load %arg4[%c0_1, %c0_2] : memref<1600x64xbf16, #tpu.memory_space<vmem>>, vector<1600x64xbf16>
    %c0_3 = arith.constant 0 : index
    %c0_4 = arith.constant 0 : index
    %2 = vector.load %arg6[%c0_3, %c0_4] : memref<576x128xbf16, #tpu.memory_space<vmem>>, vector<576x128xbf16>
    %c0_5 = arith.constant 0 : index
    %c0_6 = arith.constant 0 : index
    %3 = vector.load %arg3[%c0_5, %c0_6] : memref<1x64xf32, #tpu.memory_space<vmem>>, vector<1x64xf32>
    %c0_7 = arith.constant 0 : index
    %c0_8 = arith.constant 0 : index
    %4 = vector.load %arg5[%c0_7, %c0_8] : memref<1x64xf32, #tpu.memory_space<vmem>>, vector<1x64xf32>
    %c0_9 = arith.constant 0 : index
    %c0_10 = arith.constant 0 : index
    %5 = vector.load %arg7[%c0_9, %c0_10] : memref<1x128xf32, #tpu.memory_space<vmem>>, vector<1x128xf32>
    %c0_11 = arith.constant 0 : index
    %c0_12 = arith.constant 0 : index
    %c0_13 = arith.constant 0 : index
    %6 = vector.load %arg1[%c0_11, %c0_12, %c0_13] : memref<2x841x128xbf16, #tpu.memory_space<vmem>>, vector<1x841x128xbf16>
    %7 = vector.shape_cast %6 : vector<1x841x128xbf16> to vector<841x128xbf16>
    %cst = arith.constant dense<0.000000e+00> : vector<841x64xf32>
    %8 = tpu.matmul %7, %0, %cst {dimension_numbers = #tpu.dot_dimension_numbers<[1], [0], [0], [1], [0, 0, 1, 1], [], []>} : vector<841x128xbf16>, vector<128x64xbf16>, vector<841x64xf32> -> vector<841x64xf32>
    %9 = vector.broadcast %3 : vector<1x64xf32> to vector<841x64xf32>
    %10 = arith.addf %8, %9 : vector<841x64xf32>
    %cst_14 = arith.constant 0.000000e+00 : f32
    %11 = vector.broadcast %cst_14 : f32 to vector<841x64xf32>
    %12 = arith.maximumf %10, %11 : vector<841x64xf32>
    %13 = vector.extract_strided_slice %12 {offsets = [0, 0], sizes = [29, 64], strides = [1, 1]} : vector<841x64xf32> to vector<29x64xf32>
    %14 = vector.extract_strided_slice %12 {offsets = [29, 0], sizes = [29, 64], strides = [1, 1]} : vector<841x64xf32> to vector<29x64xf32>
    %15 = vector.extract_strided_slice %12 {offsets = [58, 0], sizes = [29, 64], strides = [1, 1]} : vector<841x64xf32> to vector<29x64xf32>
    %16 = vector.extract_strided_slice %12 {offsets = [87, 0], sizes = [29, 64], strides = [1, 1]} : vector<841x64xf32> to vector<29x64xf32>
    %17 = vector.extract_strided_slice %12 {offsets = [116, 0], sizes = [29, 64], strides = [1, 1]} : vector<841x64xf32> to vector<29x64xf32>
    %18 = vector.extract_strided_slice %12 {offsets = [145, 0], sizes = [29, 64], strides = [1, 1]} : vector<841x64xf32> to vector<29x64xf32>
    %19 = vector.extract_strided_slice %12 {offsets = [174, 0], sizes = [29, 64], strides = [1, 1]} : vector<841x64xf32> to vector<29x64xf32>
    %20 = vector.extract_strided_slice %12 {offsets = [203, 0], sizes = [29, 64], strides = [1, 1]} : vector<841x64xf32> to vector<29x64xf32>
    %21 = vector.extract_strided_slice %12 {offsets = [232, 0], sizes = [29, 64], strides = [1, 1]} : vector<841x64xf32> to vector<29x64xf32>
    %22 = vector.extract_strided_slice %12 {offsets = [261, 0], sizes = [29, 64], strides = [1, 1]} : vector<841x64xf32> to vector<29x64xf32>
    %23 = vector.extract_strided_slice %12 {offsets = [290, 0], sizes = [29, 64], strides = [1, 1]} : vector<841x64xf32> to vector<29x64xf32>
    %24 = vector.extract_strided_slice %12 {offsets = [319, 0], sizes = [29, 64], strides = [1, 1]} : vector<841x64xf32> to vector<29x64xf32>
    %25 = vector.extract_strided_slice %12 {offsets = [348, 0], sizes = [29, 64], strides = [1, 1]} : vector<841x64xf32> to vector<29x64xf32>
    %26 = vector.extract_strided_slice %12 {offsets = [377, 0], sizes = [29, 64], strides = [1, 1]} : vector<841x64xf32> to vector<29x64xf32>
    %27 = vector.extract_strided_slice %12 {offsets = [406, 0], sizes = [29, 64], strides = [1, 1]} : vector<841x64xf32> to vector<29x64xf32>
    %28 = vector.extract_strided_slice %12 {offsets = [435, 0], sizes = [29, 64], strides = [1, 1]} : vector<841x64xf32> to vector<29x64xf32>
    %29 = vector.extract_strided_slice %12 {offsets = [464, 0], sizes = [29, 64], strides = [1, 1]} : vector<841x64xf32> to vector<29x64xf32>
    %30 = vector.extract_strided_slice %12 {offsets = [493, 0], sizes = [29, 64], strides = [1, 1]} : vector<841x64xf32> to vector<29x64xf32>
    %31 = vector.extract_strided_slice %12 {offsets = [522, 0], sizes = [29, 64], strides = [1, 1]} : vector<841x64xf32> to vector<29x64xf32>
    %32 = vector.extract_strided_slice %12 {offsets = [551, 0], sizes = [29, 64], strides = [1, 1]} : vector<841x64xf32> to vector<29x64xf32>
    %33 = vector.extract_strided_slice %12 {offsets = [580, 0], sizes = [29, 64], strides = [1, 1]} : vector<841x64xf32> to vector<29x64xf32>
    %34 = vector.extract_strided_slice %12 {offsets = [609, 0], sizes = [29, 64], strides = [1, 1]} : vector<841x64xf32> to vector<29x64xf32>
    %35 = vector.extract_strided_slice %12 {offsets = [638, 0], sizes = [29, 64], strides = [1, 1]} : vector<841x64xf32> to vector<29x64xf32>
    %36 = vector.extract_strided_slice %12 {offsets = [667, 0], sizes = [29, 64], strides = [1, 1]} : vector<841x64xf32> to vector<29x64xf32>
    %37 = vector.extract_strided_slice %12 {offsets = [696, 0], sizes = [29, 64], strides = [1, 1]} : vector<841x64xf32> to vector<29x64xf32>
    %38 = vector.extract_strided_slice %12 {offsets = [725, 0], sizes = [29, 64], strides = [1, 1]} : vector<841x64xf32> to vector<29x64xf32>
    %39 = vector.extract_strided_slice %12 {offsets = [754, 0], sizes = [29, 64], strides = [1, 1]} : vector<841x64xf32> to vector<29x64xf32>
    %40 = vector.extract_strided_slice %12 {offsets = [783, 0], sizes = [29, 64], strides = [1, 1]} : vector<841x64xf32> to vector<29x64xf32>
    %41 = vector.extract_strided_slice %12 {offsets = [812, 0], sizes = [29, 64], strides = [1, 1]} : vector<841x64xf32> to vector<29x64xf32>
    %42 = vector.shape_cast %13 : vector<29x64xf32> to vector<1x29x64xf32>
    %43 = vector.shape_cast %14 : vector<29x64xf32> to vector<1x29x64xf32>
    %44 = vector.shape_cast %15 : vector<29x64xf32> to vector<1x29x64xf32>
    %45 = vector.shape_cast %16 : vector<29x64xf32> to vector<1x29x64xf32>
    %46 = vector.shape_cast %17 : vector<29x64xf32> to vector<1x29x64xf32>
    %47 = vector.shape_cast %18 : vector<29x64xf32> to vector<1x29x64xf32>
    %48 = vector.shape_cast %19 : vector<29x64xf32> to vector<1x29x64xf32>
    %49 = vector.shape_cast %20 : vector<29x64xf32> to vector<1x29x64xf32>
    %50 = vector.shape_cast %21 : vector<29x64xf32> to vector<1x29x64xf32>
    %51 = vector.shape_cast %22 : vector<29x64xf32> to vector<1x29x64xf32>
    %52 = vector.shape_cast %23 : vector<29x64xf32> to vector<1x29x64xf32>
    %53 = vector.shape_cast %24 : vector<29x64xf32> to vector<1x29x64xf32>
    %54 = vector.shape_cast %25 : vector<29x64xf32> to vector<1x29x64xf32>
    %55 = vector.shape_cast %26 : vector<29x64xf32> to vector<1x29x64xf32>
    %56 = vector.shape_cast %27 : vector<29x64xf32> to vector<1x29x64xf32>
    %57 = vector.shape_cast %28 : vector<29x64xf32> to vector<1x29x64xf32>
    %58 = vector.shape_cast %29 : vector<29x64xf32> to vector<1x29x64xf32>
    %59 = vector.shape_cast %30 : vector<29x64xf32> to vector<1x29x64xf32>
    %60 = vector.shape_cast %31 : vector<29x64xf32> to vector<1x29x64xf32>
    %61 = vector.shape_cast %32 : vector<29x64xf32> to vector<1x29x64xf32>
    %62 = vector.shape_cast %33 : vector<29x64xf32> to vector<1x29x64xf32>
    %63 = vector.shape_cast %34 : vector<29x64xf32> to vector<1x29x64xf32>
    %64 = vector.shape_cast %35 : vector<29x64xf32> to vector<1x29x64xf32>
    %65 = vector.shape_cast %36 : vector<29x64xf32> to vector<1x29x64xf32>
    %66 = vector.shape_cast %37 : vector<29x64xf32> to vector<1x29x64xf32>
    %67 = vector.shape_cast %38 : vector<29x64xf32> to vector<1x29x64xf32>
    %68 = vector.shape_cast %39 : vector<29x64xf32> to vector<1x29x64xf32>
    %69 = vector.shape_cast %40 : vector<29x64xf32> to vector<1x29x64xf32>
    %70 = vector.shape_cast %41 : vector<29x64xf32> to vector<1x29x64xf32>
    %71 = tpu.concatenate %42, %43, %44, %45, %46, %47, %48, %49, %50, %51, %52, %53, %54, %55, %56, %57 in 0 : vector<1x29x64xf32>, vector<1x29x64xf32>, vector<1x29x64xf32>, vector<1x29x64xf32>, vector<1x29x64xf32>, vector<1x29x64xf32>, vector<1x29x64xf32>, vector<1x29x64xf32>, vector<1x29x64xf32>, vector<1x29x64xf32>, vector<1x29x64xf32>, vector<1x29x64xf32>, vector<1x29x64xf32>, vector<1x29x64xf32>, vector<1x29x64xf32>, vector<1x29x64xf32> -> vector<16x29x64xf32>
    %72 = tpu.concatenate %58, %59, %60, %61, %62, %63, %64, %65, %66, %67, %68, %69, %70 in 0 : vector<1x29x64xf32>, vector<1x29x64xf32>, vector<1x29x64xf32>, vector<1x29x64xf32>, vector<1x29x64xf32>, vector<1x29x64xf32>, vector<1x29x64xf32>, vector<1x29x64xf32>, vector<1x29x64xf32>, vector<1x29x64xf32>, vector<1x29x64xf32>, vector<1x29x64xf32>, vector<1x29x64xf32> -> vector<13x29x64xf32>
    %73 = tpu.concatenate %71, %72 in 0 : vector<16x29x64xf32>, vector<13x29x64xf32> -> vector<29x29x64xf32>
    %c0_15 = arith.constant 0 : index
    %c0_16 = arith.constant 0 : index
    %c0_17 = arith.constant 0 : index
    %c0_18 = arith.constant 0 : index
    %74 = vector.load %arg9[%c0_15, %c0_16, %c0_17, %c0_18] : memref<2x29x29x64xf32, #tpu.memory_space<vmem>>, vector<1x29x29x64xf32>
    %75 = vector.shape_cast %74 : vector<1x29x29x64xf32> to vector<29x29x64xf32>
    %76 = vector.shape_cast %73 : vector<29x29x64xf32> to vector<1x29x29x64xf32>
    tpu.vector_store %arg9[%c0_15, %c0_16, %c0_17, %c0_18], %76 {strides = array<i32>} : memref<2x29x29x64xf32, #tpu.memory_space<vmem>>, vector<1x29x29x64xf32>,
    %c1 = arith.constant 1 : index
    %c0_19 = arith.constant 0 : index
    %c0_20 = arith.constant 0 : index
    %77 = vector.load %arg1[%c1, %c0_19, %c0_20] : memref<2x841x128xbf16, #tpu.memory_space<vmem>>, vector<1x841x128xbf16>
    %78 = vector.shape_cast %77 : vector<1x841x128xbf16> to vector<841x128xbf16>
    %cst_21 = arith.constant dense<0.000000e+00> : vector<841x64xf32>
    %79 = tpu.matmul %78, %0, %cst_21 {dimension_numbers = #tpu.dot_dimension_numbers<[1], [0], [0], [1], [0, 0, 1, 1], [], []>} : vector<841x128xbf16>, vector<128x64xbf16>, vector<841x64xf32> -> vector<841x64xf32>
    %80 = vector.broadcast %3 : vector<1x64xf32> to vector<841x64xf32>
    %81 = arith.addf %79, %80 : vector<841x64xf32>
    %cst_22 = arith.constant 0.000000e+00 : f32
    %82 = vector.broadcast %cst_22 : f32 to vector<841x64xf32>
    %83 = arith.maximumf %81, %82 : vector<841x64xf32>
    %84 = vector.extract_strided_slice %83 {offsets = [0, 0], sizes = [29, 64], strides = [1, 1]} : vector<841x64xf32> to vector<29x64xf32>
    %85 = vector.extract_strided_slice %83 {offsets = [29, 0], sizes = [29, 64], strides = [1, 1]} : vector<841x64xf32> to vector<29x64xf32>
    %86 = vector.extract_strided_slice %83 {offsets = [58, 0], sizes = [29, 64], strides = [1, 1]} : vector<841x64xf32> to vector<29x64xf32>
    %87 = vector.extract_strided_slice %83 {offsets = [87, 0], sizes = [29, 64], strides = [1, 1]} : vector<841x64xf32> to vector<29x64xf32>
    %88 = vector.extract_strided_slice %83 {offsets = [116, 0], sizes = [29, 64], strides = [1, 1]} : vector<841x64xf32> to vector<29x64xf32>
    %89 = vector.extract_strided_slice %83 {offsets = [145, 0], sizes = [29, 64], strides = [1, 1]} : vector<841x64xf32> to vector<29x64xf32>
    %90 = vector.extract_strided_slice %83 {offsets = [174, 0], sizes = [29, 64], strides = [1, 1]} : vector<841x64xf32> to vector<29x64xf32>
    %91 = vector.extract_strided_slice %83 {offsets = [203, 0], sizes = [29, 64], strides = [1, 1]} : vector<841x64xf32> to vector<29x64xf32>
    %92 = vector.extract_strided_slice %83 {offsets = [232, 0], sizes = [29, 64], strides = [1, 1]} : vector<841x64xf32> to vector<29x64xf32>
    %93 = vector.extract_strided_slice %83 {offsets = [261, 0], sizes = [29, 64], strides = [1, 1]} : vector<841x64xf32> to vector<29x64xf32>
    %94 = vector.extract_strided_slice %83 {offsets = [290, 0], sizes = [29, 64], strides = [1, 1]} : vector<841x64xf32> to vector<29x64xf32>
    %95 = vector.extract_strided_slice %83 {offsets = [319, 0], sizes = [29, 64], strides = [1, 1]} : vector<841x64xf32> to vector<29x64xf32>
    %96 = vector.extract_strided_slice %83 {offsets = [348, 0], sizes = [29, 64], strides = [1, 1]} : vector<841x64xf32> to vector<29x64xf32>
    %97 = vector.extract_strided_slice %83 {offsets = [377, 0], sizes = [29, 64], strides = [1, 1]} : vector<841x64xf32> to vector<29x64xf32>
    %98 = vector.extract_strided_slice %83 {offsets = [406, 0], sizes = [29, 64], strides = [1, 1]} : vector<841x64xf32> to vector<29x64xf32>
    %99 = vector.extract_strided_slice %83 {offsets = [435, 0], sizes = [29, 64], strides = [1, 1]} : vector<841x64xf32> to vector<29x64xf32>
    %100 = vector.extract_strided_slice %83 {offsets = [464, 0], sizes = [29, 64], strides = [1, 1]} : vector<841x64xf32> to vector<29x64xf32>
    %101 = vector.extract_strided_slice %83 {offsets = [493, 0], sizes = [29, 64], strides = [1, 1]} : vector<841x64xf32> to vector<29x64xf32>
    %102 = vector.extract_strided_slice %83 {offsets = [522, 0], sizes = [29, 64], strides = [1, 1]} : vector<841x64xf32> to vector<29x64xf32>
    %103 = vector.extract_strided_slice %83 {offsets = [551, 0], sizes = [29, 64], strides = [1, 1]} : vector<841x64xf32> to vector<29x64xf32>
    %104 = vector.extract_strided_slice %83 {offsets = [580, 0], sizes = [29, 64], strides = [1, 1]} : vector<841x64xf32> to vector<29x64xf32>
    %105 = vector.extract_strided_slice %83 {offsets = [609, 0], sizes = [29, 64], strides = [1, 1]} : vector<841x64xf32> to vector<29x64xf32>
    %106 = vector.extract_strided_slice %83 {offsets = [638, 0], sizes = [29, 64], strides = [1, 1]} : vector<841x64xf32> to vector<29x64xf32>
    %107 = vector.extract_strided_slice %83 {offsets = [667, 0], sizes = [29, 64], strides = [1, 1]} : vector<841x64xf32> to vector<29x64xf32>
    %108 = vector.extract_strided_slice %83 {offsets = [696, 0], sizes = [29, 64], strides = [1, 1]} : vector<841x64xf32> to vector<29x64xf32>
    %109 = vector.extract_strided_slice %83 {offsets = [725, 0], sizes = [29, 64], strides = [1, 1]} : vector<841x64xf32> to vector<29x64xf32>
    %110 = vector.extract_strided_slice %83 {offsets = [754, 0], sizes = [29, 64], strides = [1, 1]} : vector<841x64xf32> to vector<29x64xf32>
    %111 = vector.extract_strided_slice %83 {offsets = [783, 0], sizes = [29, 64], strides = [1, 1]} : vector<841x64xf32> to vector<29x64xf32>
    %112 = vector.extract_strided_slice %83 {offsets = [812, 0], sizes = [29, 64], strides = [1, 1]} : vector<841x64xf32> to vector<29x64xf32>
    %113 = vector.shape_cast %84 : vector<29x64xf32> to vector<1x29x64xf32>
    %114 = vector.shape_cast %85 : vector<29x64xf32> to vector<1x29x64xf32>
    %115 = vector.shape_cast %86 : vector<29x64xf32> to vector<1x29x64xf32>
    %116 = vector.shape_cast %87 : vector<29x64xf32> to vector<1x29x64xf32>
    %117 = vector.shape_cast %88 : vector<29x64xf32> to vector<1x29x64xf32>
    %118 = vector.shape_cast %89 : vector<29x64xf32> to vector<1x29x64xf32>
    %119 = vector.shape_cast %90 : vector<29x64xf32> to vector<1x29x64xf32>
    %120 = vector.shape_cast %91 : vector<29x64xf32> to vector<1x29x64xf32>
    %121 = vector.shape_cast %92 : vector<29x64xf32> to vector<1x29x64xf32>
    %122 = vector.shape_cast %93 : vector<29x64xf32> to vector<1x29x64xf32>
    %123 = vector.shape_cast %94 : vector<29x64xf32> to vector<1x29x64xf32>
    %124 = vector.shape_cast %95 : vector<29x64xf32> to vector<1x29x64xf32>
    %125 = vector.shape_cast %96 : vector<29x64xf32> to vector<1x29x64xf32>
    %126 = vector.shape_cast %97 : vector<29x64xf32> to vector<1x29x64xf32>
    %127 = vector.shape_cast %98 : vector<29x64xf32> to vector<1x29x64xf32>
    %128 = vector.shape_cast %99 : vector<29x64xf32> to vector<1x29x64xf32>
    %129 = vector.shape_cast %100 : vector<29x64xf32> to vector<1x29x64xf32>
    %130 = vector.shape_cast %101 : vector<29x64xf32> to vector<1x29x64xf32>
    %131 = vector.shape_cast %102 : vector<29x64xf32> to vector<1x29x64xf32>
    %132 = vector.shape_cast %103 : vector<29x64xf32> to vector<1x29x64xf32>
    %133 = vector.shape_cast %104 : vector<29x64xf32> to vector<1x29x64xf32>
    %134 = vector.shape_cast %105 : vector<29x64xf32> to vector<1x29x64xf32>
    %135 = vector.shape_cast %106 : vector<29x64xf32> to vector<1x29x64xf32>
    %136 = vector.shape_cast %107 : vector<29x64xf32> to vector<1x29x64xf32>
    %137 = vector.shape_cast %108 : vector<29x64xf32> to vector<1x29x64xf32>
    %138 = vector.shape_cast %109 : vector<29x64xf32> to vector<1x29x64xf32>
    %139 = vector.shape_cast %110 : vector<29x64xf32> to vector<1x29x64xf32>
    %140 = vector.shape_cast %111 : vector<29x64xf32> to vector<1x29x64xf32>
    %141 = vector.shape_cast %112 : vector<29x64xf32> to vector<1x29x64xf32>
    %142 = tpu.concatenate %113, %114, %115, %116, %117, %118, %119, %120, %121, %122, %123, %124, %125, %126, %127, %128 in 0 : vector<1x29x64xf32>, vector<1x29x64xf32>, vector<1x29x64xf32>, vector<1x29x64xf32>, vector<1x29x64xf32>, vector<1x29x64xf32>, vector<1x29x64xf32>, vector<1x29x64xf32>, vector<1x29x64xf32>, vector<1x29x64xf32>, vector<1x29x64xf32>, vector<1x29x64xf32>, vector<1x29x64xf32>, vector<1x29x64xf32>, vector<1x29x64xf32>, vector<1x29x64xf32> -> vector<16x29x64xf32>
    %143 = tpu.concatenate %129, %130, %131, %132, %133, %134, %135, %136, %137, %138, %139, %140, %141 in 0 : vector<1x29x64xf32>, vector<1x29x64xf32>, vector<1x29x64xf32>, vector<1x29x64xf32>, vector<1x29x64xf32>, vector<1x29x64xf32>, vector<1x29x64xf32>, vector<1x29x64xf32>, vector<1x29x64xf32>, vector<1x29x64xf32>, vector<1x29x64xf32>, vector<1x29x64xf32>, vector<1x29x64xf32> -> vector<13x29x64xf32>
    %144 = tpu.concatenate %142, %143 in 0 : vector<16x29x64xf32>, vector<13x29x64xf32> -> vector<29x29x64xf32>
    %c1_23 = arith.constant 1 : index
    %c0_24 = arith.constant 0 : index
    %c0_25 = arith.constant 0 : index
    %c0_26 = arith.constant 0 : index
    %145 = vector.load %arg9[%c1_23, %c0_24, %c0_25, %c0_26] : memref<2x29x29x64xf32, #tpu.memory_space<vmem>>, vector<1x29x29x64xf32>
    %146 = vector.shape_cast %145 : vector<1x29x29x64xf32> to vector<29x29x64xf32>
    %147 = vector.shape_cast %144 : vector<29x29x64xf32> to vector<1x29x29x64xf32>
    tpu.vector_store %arg9[%c1_23, %c0_24, %c0_25, %c0_26], %147 {strides = array<i32>} : memref<2x29x29x64xf32, #tpu.memory_space<vmem>>, vector<1x29x29x64xf32>,
    %c0_27 = arith.constant 0 : index
    %c0_28 = arith.constant 0 : index
    %c0_29 = arith.constant 0 : index
    %c0_30 = arith.constant 0 : index
    %148 = vector.load %arg9[%c0_27, %c0_28, %c0_29, %c0_30] : memref<2x29x29x64xf32, #tpu.memory_space<vmem>>, vector<2x29x29x64xf32>
    %149 = vector.extract_strided_slice %148 {offsets = [0, 0, 0, 0], sizes = [2, 27, 29, 64], strides = [1, 1, 1, 1]} : vector<2x29x29x64xf32> to vector<2x27x29x64xf32>
    %150 = vector.extract_strided_slice %148 {offsets = [0, 1, 0, 0], sizes = [2, 27, 29, 64], strides = [1, 1, 1, 1]} : vector<2x29x29x64xf32> to vector<2x27x29x64xf32>
    %151 = arith.maximumf %149, %150 : vector<2x27x29x64xf32>
    %152 = vector.extract_strided_slice %148 {offsets = [0, 2, 0, 0], sizes = [2, 27, 29, 64], strides = [1, 1, 1, 1]} : vector<2x29x29x64xf32> to vector<2x27x29x64xf32>
    %153 = arith.maximumf %151, %152 : vector<2x27x29x64xf32>
    %154 = vector.extract_strided_slice %153 {offsets = [0, 0, 0, 0], sizes = [2, 1, 29, 64], strides = [1, 1, 1, 1]} : vector<2x27x29x64xf32> to vector<2x1x29x64xf32>
    %155 = vector.extract_strided_slice %153 {offsets = [0, 2, 0, 0], sizes = [2, 1, 29, 64], strides = [1, 1, 1, 1]} : vector<2x27x29x64xf32> to vector<2x1x29x64xf32>
    %156 = vector.extract_strided_slice %153 {offsets = [0, 4, 0, 0], sizes = [2, 1, 29, 64], strides = [1, 1, 1, 1]} : vector<2x27x29x64xf32> to vector<2x1x29x64xf32>
    %157 = vector.extract_strided_slice %153 {offsets = [0, 6, 0, 0], sizes = [2, 1, 29, 64], strides = [1, 1, 1, 1]} : vector<2x27x29x64xf32> to vector<2x1x29x64xf32>
    %158 = vector.extract_strided_slice %153 {offsets = [0, 8, 0, 0], sizes = [2, 1, 29, 64], strides = [1, 1, 1, 1]} : vector<2x27x29x64xf32> to vector<2x1x29x64xf32>
    %159 = vector.extract_strided_slice %153 {offsets = [0, 10, 0, 0], sizes = [2, 1, 29, 64], strides = [1, 1, 1, 1]} : vector<2x27x29x64xf32> to vector<2x1x29x64xf32>
    %160 = vector.extract_strided_slice %153 {offsets = [0, 12, 0, 0], sizes = [2, 1, 29, 64], strides = [1, 1, 1, 1]} : vector<2x27x29x64xf32> to vector<2x1x29x64xf32>
    %161 = vector.extract_strided_slice %153 {offsets = [0, 14, 0, 0], sizes = [2, 1, 29, 64], strides = [1, 1, 1, 1]} : vector<2x27x29x64xf32> to vector<2x1x29x64xf32>
    %162 = vector.extract_strided_slice %153 {offsets = [0, 16, 0, 0], sizes = [2, 1, 29, 64], strides = [1, 1, 1, 1]} : vector<2x27x29x64xf32> to vector<2x1x29x64xf32>
    %163 = vector.extract_strided_slice %153 {offsets = [0, 18, 0, 0], sizes = [2, 1, 29, 64], strides = [1, 1, 1, 1]} : vector<2x27x29x64xf32> to vector<2x1x29x64xf32>
    %164 = vector.extract_strided_slice %153 {offsets = [0, 20, 0, 0], sizes = [2, 1, 29, 64], strides = [1, 1, 1, 1]} : vector<2x27x29x64xf32> to vector<2x1x29x64xf32>
    %165 = vector.extract_strided_slice %153 {offsets = [0, 22, 0, 0], sizes = [2, 1, 29, 64], strides = [1, 1, 1, 1]} : vector<2x27x29x64xf32> to vector<2x1x29x64xf32>
    %166 = vector.extract_strided_slice %153 {offsets = [0, 24, 0, 0], sizes = [2, 1, 29, 64], strides = [1, 1, 1, 1]} : vector<2x27x29x64xf32> to vector<2x1x29x64xf32>
    %167 = vector.extract_strided_slice %153 {offsets = [0, 26, 0, 0], sizes = [2, 1, 29, 64], strides = [1, 1, 1, 1]} : vector<2x27x29x64xf32> to vector<2x1x29x64xf32>
    %168 = tpu.concatenate %154, %155, %156, %157, %158, %159, %160, %161, %162, %163, %164, %165, %166, %167 in 1 : vector<2x1x29x64xf32>, vector<2x1x29x64xf32>, vector<2x1x29x64xf32>, vector<2x1x29x64xf32>, vector<2x1x29x64xf32>, vector<2x1x29x64xf32>, vector<2x1x29x64xf32>, vector<2x1x29x64xf32>, vector<2x1x29x64xf32>, vector<2x1x29x64xf32>, vector<2x1x29x64xf32>, vector<2x1x29x64xf32>, vector<2x1x29x64xf32>, vector<2x1x29x64xf32> -> vector<2x14x29x64xf32>
    %169 = vector.extract_strided_slice %168 {offsets = [0, 0, 0, 0], sizes = [2, 14, 27, 64], strides = [1, 1, 1, 1]} : vector<2x14x29x64xf32> to vector<2x14x27x64xf32>
    %170 = vector.extract_strided_slice %168 {offsets = [0, 0, 1, 0], sizes = [2, 14, 27, 64], strides = [1, 1, 1, 1]} : vector<2x14x29x64xf32> to vector<2x14x27x64xf32>
    %171 = arith.maximumf %169, %170 : vector<2x14x27x64xf32>
    %172 = vector.extract_strided_slice %168 {offsets = [0, 0, 2, 0], sizes = [2, 14, 27, 64], strides = [1, 1, 1, 1]} : vector<2x14x29x64xf32> to vector<2x14x27x64xf32>
    %173 = arith.maximumf %171, %172 : vector<2x14x27x64xf32>
    %174 = vector.extract_strided_slice %173 {offsets = [0, 0, 0, 0], sizes = [2, 14, 1, 64], strides = [1, 1, 1, 1]} : vector<2x14x27x64xf32> to vector<2x14x1x64xf32>
    %175 = vector.extract_strided_slice %173 {offsets = [0, 0, 2, 0], sizes = [2, 14, 1, 64], strides = [1, 1, 1, 1]} : vector<2x14x27x64xf32> to vector<2x14x1x64xf32>
    %176 = vector.extract_strided_slice %173 {offsets = [0, 0, 4, 0], sizes = [2, 14, 1, 64], strides = [1, 1, 1, 1]} : vector<2x14x27x64xf32> to vector<2x14x1x64xf32>
    %177 = vector.extract_strided_slice %173 {offsets = [0, 0, 6, 0], sizes = [2, 14, 1, 64], strides = [1, 1, 1, 1]} : vector<2x14x27x64xf32> to vector<2x14x1x64xf32>
    %178 = vector.extract_strided_slice %173 {offsets = [0, 0, 8, 0], sizes = [2, 14, 1, 64], strides = [1, 1, 1, 1]} : vector<2x14x27x64xf32> to vector<2x14x1x64xf32>
    %179 = vector.extract_strided_slice %173 {offsets = [0, 0, 10, 0], sizes = [2, 14, 1, 64], strides = [1, 1, 1, 1]} : vector<2x14x27x64xf32> to vector<2x14x1x64xf32>
    %180 = vector.extract_strided_slice %173 {offsets = [0, 0, 12, 0], sizes = [2, 14, 1, 64], strides = [1, 1, 1, 1]} : vector<2x14x27x64xf32> to vector<2x14x1x64xf32>
    %181 = vector.extract_strided_slice %173 {offsets = [0, 0, 14, 0], sizes = [2, 14, 1, 64], strides = [1, 1, 1, 1]} : vector<2x14x27x64xf32> to vector<2x14x1x64xf32>
    %182 = vector.extract_strided_slice %173 {offsets = [0, 0, 16, 0], sizes = [2, 14, 1, 64], strides = [1, 1, 1, 1]} : vector<2x14x27x64xf32> to vector<2x14x1x64xf32>
    %183 = vector.extract_strided_slice %173 {offsets = [0, 0, 18, 0], sizes = [2, 14, 1, 64], strides = [1, 1, 1, 1]} : vector<2x14x27x64xf32> to vector<2x14x1x64xf32>
    %184 = vector.extract_strided_slice %173 {offsets = [0, 0, 20, 0], sizes = [2, 14, 1, 64], strides = [1, 1, 1, 1]} : vector<2x14x27x64xf32> to vector<2x14x1x64xf32>
    %185 = vector.extract_strided_slice %173 {offsets = [0, 0, 22, 0], sizes = [2, 14, 1, 64], strides = [1, 1, 1, 1]} : vector<2x14x27x64xf32> to vector<2x14x1x64xf32>
    %186 = vector.extract_strided_slice %173 {offsets = [0, 0, 24, 0], sizes = [2, 14, 1, 64], strides = [1, 1, 1, 1]} : vector<2x14x27x64xf32> to vector<2x14x1x64xf32>
    %187 = vector.extract_strided_slice %173 {offsets = [0, 0, 26, 0], sizes = [2, 14, 1, 64], strides = [1, 1, 1, 1]} : vector<2x14x27x64xf32> to vector<2x14x1x64xf32>
    %188 = tpu.concatenate %174, %175, %176, %177, %178, %179, %180, %181, %182, %183, %184, %185, %186, %187 in 2 : vector<2x14x1x64xf32>, vector<2x14x1x64xf32>, vector<2x14x1x64xf32>, vector<2x14x1x64xf32>, vector<2x14x1x64xf32>, vector<2x14x1x64xf32>, vector<2x14x1x64xf32>, vector<2x14x1x64xf32>, vector<2x14x1x64xf32>, vector<2x14x1x64xf32>, vector<2x14x1x64xf32>, vector<2x14x1x64xf32>, vector<2x14x1x64xf32>, vector<2x14x1x64xf32> -> vector<2x14x14x64xf32>
    %c0_31 = arith.constant 0 : index
    %c0_32 = arith.constant 0 : index
    %c0_33 = arith.constant 0 : index
    %c0_34 = arith.constant 0 : index
    %189 = vector.load %arg10[%c0_31, %c0_32, %c0_33, %c0_34] : memref<2x14x14x64xf32, #tpu.memory_space<vmem>>, vector<2x14x14x64xf32>
    tpu.vector_store %arg10[%c0_31, %c0_32, %c0_33, %c0_34], %188 {strides = array<i32>} : memref<2x14x14x64xf32, #tpu.memory_space<vmem>>, vector<2x14x14x64xf32>,
    %c0_35 = arith.constant 0 : index
    %c0_36 = arith.constant 0 : index
    %c0_37 = arith.constant 0 : index
    %c0_38 = arith.constant 0 : index
    %190 = vector.load %arg10[%c0_35, %c0_36, %c0_37, %c0_38] : memref<2x14x14x64xf32, #tpu.memory_space<vmem>>, vector<2x14x14x64xf32>
    %191 = arith.truncf %190 : vector<2x14x14x64xf32> to vector<2x14x14x64xbf16>
    %192 = vector.extract_strided_slice %191 {offsets = [0, 0, 0, 0], sizes = [2, 10, 14, 64], strides = [1, 1, 1, 1]} : vector<2x14x14x64xbf16> to vector<2x10x14x64xbf16>
    %193 = vector.extract_strided_slice %191 {offsets = [0, 1, 0, 0], sizes = [2, 10, 14, 64], strides = [1, 1, 1, 1]} : vector<2x14x14x64xbf16> to vector<2x10x14x64xbf16>
    %194 = vector.extract_strided_slice %191 {offsets = [0, 2, 0, 0], sizes = [2, 10, 14, 64], strides = [1, 1, 1, 1]} : vector<2x14x14x64xbf16> to vector<2x10x14x64xbf16>
    %195 = vector.extract_strided_slice %191 {offsets = [0, 3, 0, 0], sizes = [2, 10, 14, 64], strides = [1, 1, 1, 1]} : vector<2x14x14x64xbf16> to vector<2x10x14x64xbf16>
    %196 = vector.extract_strided_slice %191 {offsets = [0, 4, 0, 0], sizes = [2, 10, 14, 64], strides = [1, 1, 1, 1]} : vector<2x14x14x64xbf16> to vector<2x10x14x64xbf16>
    %197 = tpu.concatenate %192, %193, %194, %195, %196 in 3 : vector<2x10x14x64xbf16>, vector<2x10x14x64xbf16>, vector<2x10x14x64xbf16>, vector<2x10x14x64xbf16>, vector<2x10x14x64xbf16> -> vector<2x10x14x320xbf16>
    %198 = vector.extract_strided_slice %197 {offsets = [0, 0, 0, 0], sizes = [2, 10, 10, 320], strides = [1, 1, 1, 1]} : vector<2x10x14x320xbf16> to vector<2x10x10x320xbf16>
    %199 = vector.extract_strided_slice %197 {offsets = [0, 0, 1, 0], sizes = [2, 10, 10, 320], strides = [1, 1, 1, 1]} : vector<2x10x14x320xbf16> to vector<2x10x10x320xbf16>
    %200 = vector.extract_strided_slice %197 {offsets = [0, 0, 2, 0], sizes = [2, 10, 10, 320], strides = [1, 1, 1, 1]} : vector<2x10x14x320xbf16> to vector<2x10x10x320xbf16>
    %201 = vector.extract_strided_slice %197 {offsets = [0, 0, 3, 0], sizes = [2, 10, 10, 320], strides = [1, 1, 1, 1]} : vector<2x10x14x320xbf16> to vector<2x10x10x320xbf16>
    %202 = vector.extract_strided_slice %197 {offsets = [0, 0, 4, 0], sizes = [2, 10, 10, 320], strides = [1, 1, 1, 1]} : vector<2x10x14x320xbf16> to vector<2x10x10x320xbf16>
    %203 = tpu.concatenate %198, %199, %200, %201, %202 in 3 : vector<2x10x10x320xbf16>, vector<2x10x10x320xbf16>, vector<2x10x10x320xbf16>, vector<2x10x10x320xbf16>, vector<2x10x10x320xbf16> -> vector<2x10x10x1600xbf16>
    %204 = vector.extract_strided_slice %203 {offsets = [0, 0, 0, 0], sizes = [1, 1, 10, 1600], strides = [1, 1, 1, 1]} : vector<2x10x10x1600xbf16> to vector<1x1x10x1600xbf16>
    %205 = vector.shape_cast %204 : vector<1x1x10x1600xbf16> to vector<10x1600xbf16>
    %206 = vector.extract_strided_slice %203 {offsets = [0, 1, 0, 0], sizes = [1, 1, 10, 1600], strides = [1, 1, 1, 1]} : vector<2x10x10x1600xbf16> to vector<1x1x10x1600xbf16>
    %207 = vector.shape_cast %206 : vector<1x1x10x1600xbf16> to vector<10x1600xbf16>
    %208 = vector.extract_strided_slice %203 {offsets = [0, 2, 0, 0], sizes = [1, 1, 10, 1600], strides = [1, 1, 1, 1]} : vector<2x10x10x1600xbf16> to vector<1x1x10x1600xbf16>
    %209 = vector.shape_cast %208 : vector<1x1x10x1600xbf16> to vector<10x1600xbf16>
    %210 = vector.extract_strided_slice %203 {offsets = [0, 3, 0, 0], sizes = [1, 1, 10, 1600], strides = [1, 1, 1, 1]} : vector<2x10x10x1600xbf16> to vector<1x1x10x1600xbf16>
    %211 = vector.shape_cast %210 : vector<1x1x10x1600xbf16> to vector<10x1600xbf16>
    %212 = vector.extract_strided_slice %203 {offsets = [0, 4, 0, 0], sizes = [1, 1, 10, 1600], strides = [1, 1, 1, 1]} : vector<2x10x10x1600xbf16> to vector<1x1x10x1600xbf16>
    %213 = vector.shape_cast %212 : vector<1x1x10x1600xbf16> to vector<10x1600xbf16>
    %214 = vector.extract_strided_slice %203 {offsets = [0, 5, 0, 0], sizes = [1, 1, 10, 1600], strides = [1, 1, 1, 1]} : vector<2x10x10x1600xbf16> to vector<1x1x10x1600xbf16>
    %215 = vector.shape_cast %214 : vector<1x1x10x1600xbf16> to vector<10x1600xbf16>
    %216 = vector.extract_strided_slice %203 {offsets = [0, 6, 0, 0], sizes = [1, 1, 10, 1600], strides = [1, 1, 1, 1]} : vector<2x10x10x1600xbf16> to vector<1x1x10x1600xbf16>
    %217 = vector.shape_cast %216 : vector<1x1x10x1600xbf16> to vector<10x1600xbf16>
    %218 = vector.extract_strided_slice %203 {offsets = [0, 7, 0, 0], sizes = [1, 1, 10, 1600], strides = [1, 1, 1, 1]} : vector<2x10x10x1600xbf16> to vector<1x1x10x1600xbf16>
    %219 = vector.shape_cast %218 : vector<1x1x10x1600xbf16> to vector<10x1600xbf16>
    %220 = vector.extract_strided_slice %203 {offsets = [0, 8, 0, 0], sizes = [1, 1, 10, 1600], strides = [1, 1, 1, 1]} : vector<2x10x10x1600xbf16> to vector<1x1x10x1600xbf16>
    %221 = vector.shape_cast %220 : vector<1x1x10x1600xbf16> to vector<10x1600xbf16>
    %222 = vector.extract_strided_slice %203 {offsets = [0, 9, 0, 0], sizes = [1, 1, 10, 1600], strides = [1, 1, 1, 1]} : vector<2x10x10x1600xbf16> to vector<1x1x10x1600xbf16>
    %223 = vector.shape_cast %222 : vector<1x1x10x1600xbf16> to vector<10x1600xbf16>
    %224 = vector.extract_strided_slice %203 {offsets = [1, 0, 0, 0], sizes = [1, 1, 10, 1600], strides = [1, 1, 1, 1]} : vector<2x10x10x1600xbf16> to vector<1x1x10x1600xbf16>
    %225 = vector.shape_cast %224 : vector<1x1x10x1600xbf16> to vector<10x1600xbf16>
    %226 = vector.extract_strided_slice %203 {offsets = [1, 1, 0, 0], sizes = [1, 1, 10, 1600], strides = [1, 1, 1, 1]} : vector<2x10x10x1600xbf16> to vector<1x1x10x1600xbf16>
    %227 = vector.shape_cast %226 : vector<1x1x10x1600xbf16> to vector<10x1600xbf16>
    %228 = vector.extract_strided_slice %203 {offsets = [1, 2, 0, 0], sizes = [1, 1, 10, 1600], strides = [1, 1, 1, 1]} : vector<2x10x10x1600xbf16> to vector<1x1x10x1600xbf16>
    %229 = vector.shape_cast %228 : vector<1x1x10x1600xbf16> to vector<10x1600xbf16>
    %230 = vector.extract_strided_slice %203 {offsets = [1, 3, 0, 0], sizes = [1, 1, 10, 1600], strides = [1, 1, 1, 1]} : vector<2x10x10x1600xbf16> to vector<1x1x10x1600xbf16>
    %231 = vector.shape_cast %230 : vector<1x1x10x1600xbf16> to vector<10x1600xbf16>
    %232 = vector.extract_strided_slice %203 {offsets = [1, 4, 0, 0], sizes = [1, 1, 10, 1600], strides = [1, 1, 1, 1]} : vector<2x10x10x1600xbf16> to vector<1x1x10x1600xbf16>
    %233 = vector.shape_cast %232 : vector<1x1x10x1600xbf16> to vector<10x1600xbf16>
    %234 = vector.extract_strided_slice %203 {offsets = [1, 5, 0, 0], sizes = [1, 1, 10, 1600], strides = [1, 1, 1, 1]} : vector<2x10x10x1600xbf16> to vector<1x1x10x1600xbf16>
    %235 = vector.shape_cast %234 : vector<1x1x10x1600xbf16> to vector<10x1600xbf16>
    %236 = vector.extract_strided_slice %203 {offsets = [1, 6, 0, 0], sizes = [1, 1, 10, 1600], strides = [1, 1, 1, 1]} : vector<2x10x10x1600xbf16> to vector<1x1x10x1600xbf16>
    %237 = vector.shape_cast %236 : vector<1x1x10x1600xbf16> to vector<10x1600xbf16>
    %238 = vector.extract_strided_slice %203 {offsets = [1, 7, 0, 0], sizes = [1, 1, 10, 1600], strides = [1, 1, 1, 1]} : vector<2x10x10x1600xbf16> to vector<1x1x10x1600xbf16>
    %239 = vector.shape_cast %238 : vector<1x1x10x1600xbf16> to vector<10x1600xbf16>
    %240 = vector.extract_strided_slice %203 {offsets = [1, 8, 0, 0], sizes = [1, 1, 10, 1600], strides = [1, 1, 1, 1]} : vector<2x10x10x1600xbf16> to vector<1x1x10x1600xbf16>
    %241 = vector.shape_cast %240 : vector<1x1x10x1600xbf16> to vector<10x1600xbf16>
    %242 = vector.extract_strided_slice %203 {offsets = [1, 9, 0, 0], sizes = [1, 1, 10, 1600], strides = [1, 1, 1, 1]} : vector<2x10x10x1600xbf16> to vector<1x1x10x1600xbf16>
    %243 = vector.shape_cast %242 : vector<1x1x10x1600xbf16> to vector<10x1600xbf16>
    %244 = tpu.concatenate %205, %207, %209, %211, %213, %215, %217, %219, %221, %223, %225, %227, %229, %231, %233, %235 in 0 : vector<10x1600xbf16>, vector<10x1600xbf16>, vector<10x1600xbf16>, vector<10x1600xbf16>, vector<10x1600xbf16>, vector<10x1600xbf16>, vector<10x1600xbf16>, vector<10x1600xbf16>, vector<10x1600xbf16>, vector<10x1600xbf16>, vector<10x1600xbf16>, vector<10x1600xbf16>, vector<10x1600xbf16>, vector<10x1600xbf16>, vector<10x1600xbf16>, vector<10x1600xbf16> -> vector<160x1600xbf16>
    %245 = tpu.concatenate %237, %239, %241, %243 in 0 : vector<10x1600xbf16>, vector<10x1600xbf16>, vector<10x1600xbf16>, vector<10x1600xbf16> -> vector<40x1600xbf16>
    %246 = tpu.concatenate %244, %245 in 0 : vector<160x1600xbf16>, vector<40x1600xbf16> -> vector<200x1600xbf16>
    %cst_39 = arith.constant dense<0.000000e+00> : vector<200x64xf32>
    %247 = tpu.matmul %246, %1, %cst_39 {dimension_numbers = #tpu.dot_dimension_numbers<[1], [0], [0], [1], [0, 0, 1, 1], [], []>} : vector<200x1600xbf16>, vector<1600x64xbf16>, vector<200x64xf32> -> vector<200x64xf32>
    %248 = vector.broadcast %4 : vector<1x64xf32> to vector<200x64xf32>
    %249 = arith.addf %247, %248 : vector<200x64xf32>
    %cst_40 = arith.constant 0.000000e+00 : f32
    %250 = vector.broadcast %cst_40 : f32 to vector<200x64xf32>
    %251 = arith.maximumf %249, %250 : vector<200x64xf32>
    %252 = vector.extract_strided_slice %251 {offsets = [0, 0], sizes = [100, 64], strides = [1, 1]} : vector<200x64xf32> to vector<100x64xf32>
    %253 = vector.extract_strided_slice %252 {offsets = [0, 0], sizes = [10, 64], strides = [1, 1]} : vector<100x64xf32> to vector<10x64xf32>
    %254 = vector.extract_strided_slice %252 {offsets = [10, 0], sizes = [10, 64], strides = [1, 1]} : vector<100x64xf32> to vector<10x64xf32>
    %255 = vector.extract_strided_slice %252 {offsets = [20, 0], sizes = [10, 64], strides = [1, 1]} : vector<100x64xf32> to vector<10x64xf32>
    %256 = vector.extract_strided_slice %252 {offsets = [30, 0], sizes = [10, 64], strides = [1, 1]} : vector<100x64xf32> to vector<10x64xf32>
    %257 = vector.extract_strided_slice %252 {offsets = [40, 0], sizes = [10, 64], strides = [1, 1]} : vector<100x64xf32> to vector<10x64xf32>
    %258 = vector.extract_strided_slice %252 {offsets = [50, 0], sizes = [10, 64], strides = [1, 1]} : vector<100x64xf32> to vector<10x64xf32>
    %259 = vector.extract_strided_slice %252 {offsets = [60, 0], sizes = [10, 64], strides = [1, 1]} : vector<100x64xf32> to vector<10x64xf32>
    %260 = vector.extract_strided_slice %252 {offsets = [70, 0], sizes = [10, 64], strides = [1, 1]} : vector<100x64xf32> to vector<10x64xf32>
    %261 = vector.extract_strided_slice %252 {offsets = [80, 0], sizes = [10, 64], strides = [1, 1]} : vector<100x64xf32> to vector<10x64xf32>
    %262 = vector.extract_strided_slice %252 {offsets = [90, 0], sizes = [10, 64], strides = [1, 1]} : vector<100x64xf32> to vector<10x64xf32>
    %263 = vector.shape_cast %253 : vector<10x64xf32> to vector<1x10x64xf32>
    %264 = vector.shape_cast %254 : vector<10x64xf32> to vector<1x10x64xf32>
    %265 = vector.shape_cast %255 : vector<10x64xf32> to vector<1x10x64xf32>
    %266 = vector.shape_cast %256 : vector<10x64xf32> to vector<1x10x64xf32>
    %267 = vector.shape_cast %257 : vector<10x64xf32> to vector<1x10x64xf32>
    %268 = vector.shape_cast %258 : vector<10x64xf32> to vector<1x10x64xf32>
    %269 = vector.shape_cast %259 : vector<10x64xf32> to vector<1x10x64xf32>
    %270 = vector.shape_cast %260 : vector<10x64xf32> to vector<1x10x64xf32>
    %271 = vector.shape_cast %261 : vector<10x64xf32> to vector<1x10x64xf32>
    %272 = vector.shape_cast %262 : vector<10x64xf32> to vector<1x10x64xf32>
    %273 = tpu.concatenate %263, %264, %265, %266, %267, %268, %269, %270, %271, %272 in 0 : vector<1x10x64xf32>, vector<1x10x64xf32>, vector<1x10x64xf32>, vector<1x10x64xf32>, vector<1x10x64xf32>, vector<1x10x64xf32>, vector<1x10x64xf32>, vector<1x10x64xf32>, vector<1x10x64xf32>, vector<1x10x64xf32> -> vector<10x10x64xf32>
    %c0_41 = arith.constant 0 : index
    %c0_42 = arith.constant 0 : index
    %c0_43 = arith.constant 0 : index
    %c0_44 = arith.constant 0 : index
    %274 = vector.load %arg11[%c0_41, %c0_42, %c0_43, %c0_44] : memref<2x10x10x64xf32, #tpu.memory_space<vmem>>, vector<1x10x10x64xf32>
    %275 = vector.shape_cast %274 : vector<1x10x10x64xf32> to vector<10x10x64xf32>
    %276 = vector.shape_cast %273 : vector<10x10x64xf32> to vector<1x10x10x64xf32>
    tpu.vector_store %arg11[%c0_41, %c0_42, %c0_43, %c0_44], %276 {strides = array<i32>} : memref<2x10x10x64xf32, #tpu.memory_space<vmem>>, vector<1x10x10x64xf32>,
    %277 = vector.extract_strided_slice %251 {offsets = [100, 0], sizes = [100, 64], strides = [1, 1]} : vector<200x64xf32> to vector<100x64xf32>
    %278 = vector.extract_strided_slice %277 {offsets = [0, 0], sizes = [10, 64], strides = [1, 1]} : vector<100x64xf32> to vector<10x64xf32>
    %279 = vector.extract_strided_slice %277 {offsets = [10, 0], sizes = [10, 64], strides = [1, 1]} : vector<100x64xf32> to vector<10x64xf32>
    %280 = vector.extract_strided_slice %277 {offsets = [20, 0], sizes = [10, 64], strides = [1, 1]} : vector<100x64xf32> to vector<10x64xf32>
    %281 = vector.extract_strided_slice %277 {offsets = [30, 0], sizes = [10, 64], strides = [1, 1]} : vector<100x64xf32> to vector<10x64xf32>
    %282 = vector.extract_strided_slice %277 {offsets = [40, 0], sizes = [10, 64], strides = [1, 1]} : vector<100x64xf32> to vector<10x64xf32>
    %283 = vector.extract_strided_slice %277 {offsets = [50, 0], sizes = [10, 64], strides = [1, 1]} : vector<100x64xf32> to vector<10x64xf32>
    %284 = vector.extract_strided_slice %277 {offsets = [60, 0], sizes = [10, 64], strides = [1, 1]} : vector<100x64xf32> to vector<10x64xf32>
    %285 = vector.extract_strided_slice %277 {offsets = [70, 0], sizes = [10, 64], strides = [1, 1]} : vector<100x64xf32> to vector<10x64xf32>
    %286 = vector.extract_strided_slice %277 {offsets = [80, 0], sizes = [10, 64], strides = [1, 1]} : vector<100x64xf32> to vector<10x64xf32>
    %287 = vector.extract_strided_slice %277 {offsets = [90, 0], sizes = [10, 64], strides = [1, 1]} : vector<100x64xf32> to vector<10x64xf32>
    %288 = vector.shape_cast %278 : vector<10x64xf32> to vector<1x10x64xf32>
    %289 = vector.shape_cast %279 : vector<10x64xf32> to vector<1x10x64xf32>
    %290 = vector.shape_cast %280 : vector<10x64xf32> to vector<1x10x64xf32>
    %291 = vector.shape_cast %281 : vector<10x64xf32> to vector<1x10x64xf32>
    %292 = vector.shape_cast %282 : vector<10x64xf32> to vector<1x10x64xf32>
    %293 = vector.shape_cast %283 : vector<10x64xf32> to vector<1x10x64xf32>
    %294 = vector.shape_cast %284 : vector<10x64xf32> to vector<1x10x64xf32>
    %295 = vector.shape_cast %285 : vector<10x64xf32> to vector<1x10x64xf32>
    %296 = vector.shape_cast %286 : vector<10x64xf32> to vector<1x10x64xf32>
    %297 = vector.shape_cast %287 : vector<10x64xf32> to vector<1x10x64xf32>
    %298 = tpu.concatenate %288, %289, %290, %291, %292, %293, %294, %295, %296, %297 in 0 : vector<1x10x64xf32>, vector<1x10x64xf32>, vector<1x10x64xf32>, vector<1x10x64xf32>, vector<1x10x64xf32>, vector<1x10x64xf32>, vector<1x10x64xf32>, vector<1x10x64xf32>, vector<1x10x64xf32>, vector<1x10x64xf32> -> vector<10x10x64xf32>
    %c1_45 = arith.constant 1 : index
    %c0_46 = arith.constant 0 : index
    %c0_47 = arith.constant 0 : index
    %c0_48 = arith.constant 0 : index
    %299 = vector.load %arg11[%c1_45, %c0_46, %c0_47, %c0_48] : memref<2x10x10x64xf32, #tpu.memory_space<vmem>>, vector<1x10x10x64xf32>
    %300 = vector.shape_cast %299 : vector<1x10x10x64xf32> to vector<10x10x64xf32>
    %301 = vector.shape_cast %298 : vector<10x10x64xf32> to vector<1x10x10x64xf32>
    tpu.vector_store %arg11[%c1_45, %c0_46, %c0_47, %c0_48], %301 {strides = array<i32>} : memref<2x10x10x64xf32, #tpu.memory_space<vmem>>, vector<1x10x10x64xf32>,
    %c0_49 = arith.constant 0 : index
    %c0_50 = arith.constant 0 : index
    %c0_51 = arith.constant 0 : index
    %c0_52 = arith.constant 0 : index
    %302 = vector.load %arg11[%c0_49, %c0_50, %c0_51, %c0_52] : memref<2x10x10x64xf32, #tpu.memory_space<vmem>>, vector<2x10x10x64xf32>
    %303 = vector.extract_strided_slice %302 {offsets = [0, 0, 0, 0], sizes = [2, 8, 10, 64], strides = [1, 1, 1, 1]} : vector<2x10x10x64xf32> to vector<2x8x10x64xf32>
    %304 = vector.extract_strided_slice %302 {offsets = [0, 1, 0, 0], sizes = [2, 8, 10, 64], strides = [1, 1, 1, 1]} : vector<2x10x10x64xf32> to vector<2x8x10x64xf32>
    %305 = arith.maximumf %303, %304 : vector<2x8x10x64xf32>
    %306 = vector.extract_strided_slice %302 {offsets = [0, 2, 0, 0], sizes = [2, 8, 10, 64], strides = [1, 1, 1, 1]} : vector<2x10x10x64xf32> to vector<2x8x10x64xf32>
    %307 = arith.maximumf %305, %306 : vector<2x8x10x64xf32>
    %308 = vector.extract_strided_slice %307 {offsets = [0, 0, 0, 0], sizes = [2, 1, 10, 64], strides = [1, 1, 1, 1]} : vector<2x8x10x64xf32> to vector<2x1x10x64xf32>
    %309 = vector.extract_strided_slice %307 {offsets = [0, 2, 0, 0], sizes = [2, 1, 10, 64], strides = [1, 1, 1, 1]} : vector<2x8x10x64xf32> to vector<2x1x10x64xf32>
    %310 = vector.extract_strided_slice %307 {offsets = [0, 4, 0, 0], sizes = [2, 1, 10, 64], strides = [1, 1, 1, 1]} : vector<2x8x10x64xf32> to vector<2x1x10x64xf32>
    %311 = vector.extract_strided_slice %307 {offsets = [0, 6, 0, 0], sizes = [2, 1, 10, 64], strides = [1, 1, 1, 1]} : vector<2x8x10x64xf32> to vector<2x1x10x64xf32>
    %312 = tpu.concatenate %308, %309, %310, %311 in 1 : vector<2x1x10x64xf32>, vector<2x1x10x64xf32>, vector<2x1x10x64xf32>, vector<2x1x10x64xf32> -> vector<2x4x10x64xf32>
    %313 = vector.extract_strided_slice %312 {offsets = [0, 0, 0, 0], sizes = [2, 4, 8, 64], strides = [1, 1, 1, 1]} : vector<2x4x10x64xf32> to vector<2x4x8x64xf32>
    %314 = vector.extract_strided_slice %312 {offsets = [0, 0, 1, 0], sizes = [2, 4, 8, 64], strides = [1, 1, 1, 1]} : vector<2x4x10x64xf32> to vector<2x4x8x64xf32>
    %315 = arith.maximumf %313, %314 : vector<2x4x8x64xf32>
    %316 = vector.extract_strided_slice %312 {offsets = [0, 0, 2, 0], sizes = [2, 4, 8, 64], strides = [1, 1, 1, 1]} : vector<2x4x10x64xf32> to vector<2x4x8x64xf32>
    %317 = arith.maximumf %315, %316 : vector<2x4x8x64xf32>
    %318 = vector.extract_strided_slice %317 {offsets = [0, 0, 0, 0], sizes = [2, 4, 1, 64], strides = [1, 1, 1, 1]} : vector<2x4x8x64xf32> to vector<2x4x1x64xf32>
    %319 = vector.extract_strided_slice %317 {offsets = [0, 0, 2, 0], sizes = [2, 4, 1, 64], strides = [1, 1, 1, 1]} : vector<2x4x8x64xf32> to vector<2x4x1x64xf32>
    %320 = vector.extract_strided_slice %317 {offsets = [0, 0, 4, 0], sizes = [2, 4, 1, 64], strides = [1, 1, 1, 1]} : vector<2x4x8x64xf32> to vector<2x4x1x64xf32>
    %321 = vector.extract_strided_slice %317 {offsets = [0, 0, 6, 0], sizes = [2, 4, 1, 64], strides = [1, 1, 1, 1]} : vector<2x4x8x64xf32> to vector<2x4x1x64xf32>
    %322 = tpu.concatenate %318, %319, %320, %321 in 2 : vector<2x4x1x64xf32>, vector<2x4x1x64xf32>, vector<2x4x1x64xf32>, vector<2x4x1x64xf32> -> vector<2x4x4x64xf32>
    %c0_53 = arith.constant 0 : index
    %c0_54 = arith.constant 0 : index
    %c0_55 = arith.constant 0 : index
    %c0_56 = arith.constant 0 : index
    %323 = vector.load %arg12[%c0_53, %c0_54, %c0_55, %c0_56] : memref<2x4x4x64xf32, #tpu.memory_space<vmem>>, vector<2x4x4x64xf32>
    tpu.vector_store %arg12[%c0_53, %c0_54, %c0_55, %c0_56], %322 {strides = array<i32>} : memref<2x4x4x64xf32, #tpu.memory_space<vmem>>, vector<2x4x4x64xf32>,
    %c0_57 = arith.constant 0 : index
    %c0_58 = arith.constant 0 : index
    %c0_59 = arith.constant 0 : index
    %c0_60 = arith.constant 0 : index
    %324 = vector.load %arg12[%c0_57, %c0_58, %c0_59, %c0_60] : memref<2x4x4x64xf32, #tpu.memory_space<vmem>>, vector<2x4x4x64xf32>
    %325 = arith.truncf %324 : vector<2x4x4x64xf32> to vector<2x4x4x64xbf16>
    %326 = vector.extract_strided_slice %325 {offsets = [0, 0, 0, 0], sizes = [2, 2, 4, 64], strides = [1, 1, 1, 1]} : vector<2x4x4x64xbf16> to vector<2x2x4x64xbf16>
    %327 = vector.extract_strided_slice %325 {offsets = [0, 1, 0, 0], sizes = [2, 2, 4, 64], strides = [1, 1, 1, 1]} : vector<2x4x4x64xbf16> to vector<2x2x4x64xbf16>
    %328 = vector.extract_strided_slice %325 {offsets = [0, 2, 0, 0], sizes = [2, 2, 4, 64], strides = [1, 1, 1, 1]} : vector<2x4x4x64xbf16> to vector<2x2x4x64xbf16>
    %329 = tpu.concatenate %326, %327, %328 in 3 : vector<2x2x4x64xbf16>, vector<2x2x4x64xbf16>, vector<2x2x4x64xbf16> -> vector<2x2x4x192xbf16>
    %330 = vector.extract_strided_slice %329 {offsets = [0, 0, 0, 0], sizes = [2, 2, 2, 192], strides = [1, 1, 1, 1]} : vector<2x2x4x192xbf16> to vector<2x2x2x192xbf16>
    %331 = vector.extract_strided_slice %329 {offsets = [0, 0, 1, 0], sizes = [2, 2, 2, 192], strides = [1, 1, 1, 1]} : vector<2x2x4x192xbf16> to vector<2x2x2x192xbf16>
    %332 = vector.extract_strided_slice %329 {offsets = [0, 0, 2, 0], sizes = [2, 2, 2, 192], strides = [1, 1, 1, 1]} : vector<2x2x4x192xbf16> to vector<2x2x2x192xbf16>
    %333 = tpu.concatenate %330, %331, %332 in 3 : vector<2x2x2x192xbf16>, vector<2x2x2x192xbf16>, vector<2x2x2x192xbf16> -> vector<2x2x2x576xbf16>
    %334 = vector.extract_strided_slice %333 {offsets = [0, 0, 0, 0], sizes = [1, 1, 2, 576], strides = [1, 1, 1, 1]} : vector<2x2x2x576xbf16> to vector<1x1x2x576xbf16>
    %335 = vector.shape_cast %334 : vector<1x1x2x576xbf16> to vector<2x576xbf16>
    %336 = vector.extract_strided_slice %333 {offsets = [0, 1, 0, 0], sizes = [1, 1, 2, 576], strides = [1, 1, 1, 1]} : vector<2x2x2x576xbf16> to vector<1x1x2x576xbf16>
    %337 = vector.shape_cast %336 : vector<1x1x2x576xbf16> to vector<2x576xbf16>
    %338 = vector.extract_strided_slice %333 {offsets = [1, 0, 0, 0], sizes = [1, 1, 2, 576], strides = [1, 1, 1, 1]} : vector<2x2x2x576xbf16> to vector<1x1x2x576xbf16>
    %339 = vector.shape_cast %338 : vector<1x1x2x576xbf16> to vector<2x576xbf16>
    %340 = vector.extract_strided_slice %333 {offsets = [1, 1, 0, 0], sizes = [1, 1, 2, 576], strides = [1, 1, 1, 1]} : vector<2x2x2x576xbf16> to vector<1x1x2x576xbf16>
    %341 = vector.shape_cast %340 : vector<1x1x2x576xbf16> to vector<2x576xbf16>
    %342 = tpu.concatenate %335, %337, %339, %341 in 0 : vector<2x576xbf16>, vector<2x576xbf16>, vector<2x576xbf16>, vector<2x576xbf16> -> vector<8x576xbf16>
    %cst_61 = arith.constant dense<0.000000e+00> : vector<8x128xf32>
    %343 = tpu.matmul %342, %2, %cst_61 {dimension_numbers = #tpu.dot_dimension_numbers<[1], [0], [0], [1], [0, 0, 1, 1], [], []>} : vector<8x576xbf16>, vector<576x128xbf16>, vector<8x128xf32> -> vector<8x128xf32>
    %344 = vector.broadcast %5 : vector<1x128xf32> to vector<8x128xf32>
    %345 = arith.addf %343, %344 : vector<8x128xf32>
    %346 = vector.extract_strided_slice %345 {offsets = [0, 0], sizes = [4, 128], strides = [1, 1]} : vector<8x128xf32> to vector<4x128xf32>
    %347 = vector.extract_strided_slice %346 {offsets = [0, 0], sizes = [2, 128], strides = [1, 1]} : vector<4x128xf32> to vector<2x128xf32>
    %348 = vector.extract_strided_slice %346 {offsets = [2, 0], sizes = [2, 128], strides = [1, 1]} : vector<4x128xf32> to vector<2x128xf32>
    %349 = vector.shape_cast %347 : vector<2x128xf32> to vector<1x2x128xf32>
    %350 = vector.shape_cast %348 : vector<2x128xf32> to vector<1x2x128xf32>
    %351 = tpu.concatenate %349, %350 in 0 : vector<1x2x128xf32>, vector<1x2x128xf32> -> vector<2x2x128xf32>
    %c0_62 = arith.constant 0 : index
    %c0_63 = arith.constant 0 : index
    %c0_64 = arith.constant 0 : index
    %c0_65 = arith.constant 0 : index
    %352 = vector.load %arg8[%c0_62, %c0_63, %c0_64, %c0_65] : memref<2x2x2x128xf32, #tpu.memory_space<vmem>>, vector<1x2x2x128xf32>
    %353 = vector.shape_cast %352 : vector<1x2x2x128xf32> to vector<2x2x128xf32>
    %354 = vector.shape_cast %351 : vector<2x2x128xf32> to vector<1x2x2x128xf32>
    tpu.vector_store %arg8[%c0_62, %c0_63, %c0_64, %c0_65], %354 {strides = array<i32>} : memref<2x2x2x128xf32, #tpu.memory_space<vmem>>, vector<1x2x2x128xf32>,
    %355 = vector.extract_strided_slice %345 {offsets = [4, 0], sizes = [4, 128], strides = [1, 1]} : vector<8x128xf32> to vector<4x128xf32>
    %356 = vector.extract_strided_slice %355 {offsets = [0, 0], sizes = [2, 128], strides = [1, 1]} : vector<4x128xf32> to vector<2x128xf32>
    %357 = vector.extract_strided_slice %355 {offsets = [2, 0], sizes = [2, 128], strides = [1, 1]} : vector<4x128xf32> to vector<2x128xf32>
    %358 = vector.shape_cast %356 : vector<2x128xf32> to vector<1x2x128xf32>
    %359 = vector.shape_cast %357 : vector<2x128xf32> to vector<1x2x128xf32>
    %360 = tpu.concatenate %358, %359 in 0 : vector<1x2x128xf32>, vector<1x2x128xf32> -> vector<2x2x128xf32>
    %c1_66 = arith.constant 1 : index
    %c0_67 = arith.constant 0 : index
    %c0_68 = arith.constant 0 : index
    %c0_69 = arith.constant 0 : index
    %361 = vector.load %arg8[%c1_66, %c0_67, %c0_68, %c0_69] : memref<2x2x2x128xf32, #tpu.memory_space<vmem>>, vector<1x2x2x128xf32>
    %362 = vector.shape_cast %361 : vector<1x2x2x128xf32> to vector<2x2x128xf32>
    %363 = vector.shape_cast %360 : vector<2x2x128xf32> to vector<1x2x2x128xf32>
    tpu.vector_store %arg8[%c1_66, %c0_67, %c0_68, %c0_69], %363 {strides = array<i32>} : memref<2x2x2x128xf32, #tpu.memory_space<vmem>>, vector<1x2x2x128xf32>,
    return
  }
  func.func @transform_0(%arg0: i32) -> (i32, i32, i32) {
    %c0_i32 = arith.constant 0 : i32
    %c0_i32_0 = arith.constant 0 : i32
    %c0_i32_1 = arith.constant 0 : i32
    return %arg0, %c0_i32, %c0_i32_0 : i32, i32, i32
  }
  func.func @transform_1(%arg0: i32) -> (i32, i32) {
    %c0_i32 = arith.constant 0 : i32
    %c0_i32_0 = arith.constant 0 : i32
    %c0_i32_1 = arith.constant 0 : i32
    return %c0_i32, %c0_i32_0 : i32, i32
  }
  func.func @transform_2(%arg0: i32) -> (i32, i32) {
    %c0_i32 = arith.constant 0 : i32
    %c0_i32_0 = arith.constant 0 : i32
    %c0_i32_1 = arith.constant 0 : i32
    return %c0_i32, %c0_i32_0 : i32, i32
  }
  func.func @transform_3(%arg0: i32) -> (i32, i32) {
    %c0_i32 = arith.constant 0 : i32
    %c0_i32_0 = arith.constant 0 : i32
    %c0_i32_1 = arith.constant 0 : i32
    return %c0_i32, %c0_i32_0 : i32, i32
  }
  func.func @transform_4(%arg0: i32) -> (i32, i32) {
    %c0_i32 = arith.constant 0 : i32
    %c0_i32_0 = arith.constant 0 : i32
    %c0_i32_1 = arith.constant 0 : i32
    return %c0_i32, %c0_i32_0 : i32, i32
  }
  func.func @transform_5(%arg0: i32) -> (i32, i32) {
    %c0_i32 = arith.constant 0 : i32
    %c0_i32_0 = arith.constant 0 : i32
    %c0_i32_1 = arith.constant 0 : i32
    return %c0_i32, %c0_i32_0 : i32, i32
  }
  func.func @transform_6(%arg0: i32) -> (i32, i32) {
    %c0_i32 = arith.constant 0 : i32
    %c0_i32_0 = arith.constant 0 : i32
    %c0_i32_1 = arith.constant 0 : i32
    return %c0_i32, %c0_i32_0 : i32, i32
  }
  func.func @transform_7(%arg0: i32) -> (i32, i32, i32, i32) {
    %c0_i32 = arith.constant 0 : i32
    %c0_i32_0 = arith.constant 0 : i32
    %c0_i32_1 = arith.constant 0 : i32
    %c0_i32_2 = arith.constant 0 : i32
    return %arg0, %c0_i32, %c0_i32_0, %c0_i32_1 : i32, i32, i32, i32
  }
}

</mosaic_0001>

<llo_original>
// kernel: feature_extractor_forward.1
$region0: #{feature_extractor_forward.1}
  #allocation0 [shape = 'u32[]', space=smem, size = 0x4, offset = 0x4, fixed_abs, tag = 'smem constant byte address 0x4 - core index']
  #allocation1 [shape = 'u32[144,128]{1,0:T(1,128)}', space=vmem, size = 0x12000, scoped, tag = 'internal scratch']
  #allocation2 [shape = 'f32[2,29,29,64]{3,2,1,0:T(8,128)}', space=vmem, size = 0xe8000, scoped, tag = 'scratch operand']
  #allocation3 [shape = 'f32[2,14,14,64]{3,2,1,0:T(8,128)}', space=vmem, size = 0x38000, scoped, tag = 'scratch operand']
  #allocation4 [shape = 'f32[2,10,10,64]{3,2,1,0:T(8,128)}', space=vmem, size = 0x28000, scoped, tag = 'scratch operand']
  #allocation5 [shape = 'f32[2,4,4,64]{3,2,1,0:T(4,128)}', space=vmem, size = 0x4000, scoped, tag = 'scratch operand']
  %s0 = inlined_call_operand.vmem [shape: bf16[4,841,128], index: 0, kind: input, shape index: {}]
  %s1 = inlined_call_operand.vmem [shape: bf16[128,64], index: 1, kind: input, shape index: {}]
  %s2 = inlined_call_operand.vmem [shape: f32[1,64], index: 2, kind: input, shape index: {}]
  %s3 = inlined_call_operand.vmem [shape: bf16[1600,64], index: 3, kind: input, shape index: {}]
  %s4 = inlined_call_operand.vmem [shape: f32[1,64], index: 4, kind: input, shape index: {}]
  %s5 = inlined_call_operand.vmem [shape: bf16[576,128], index: 5, kind: input, shape index: {}]
  %s6 = inlined_call_operand.vmem [shape: f32[1,128], index: 6, kind: input, shape index: {}]
  %s7 = inlined_call_operand.vmem [shape: f32[4,2,2,128], index: 7, kind: output, shape index: {}]
  %s8 = sld [smem:[#allocation0]]
  $region61: #{feature_extractor_forward.1} parent=0
    _
  %s10 = ssub.s32 1, %s8
  %s11 = scalar_select 0, %s10, %s8
  loop: start=0, step=1, limit=4
  $region2: #{feature_extractor_forward.1} parent=0 // loop_pre_header
    _
  $region3: #{feature_extractor_forward.1} parent=0 // loop_header
    %s13 = sphi 0, %s17
    %p14 = scmp.ge.s32.totalorder %s13, 4
    %s23 = sphi 0, %s25
    %s26 = sphi 0, %s23
    %s27 = sphi 0, %s26
    %s43 = sphi 0, %s27
    %s47 = sphi 0, %s47
    %s49 = sphi 0, %s47
    %s50 = sphi 0, %s49
    %s64 = sphi 0, %s50
    %s68 = sphi 0, %s68
    %s70 = sphi 0, %s68
    %s71 = sphi 0, %s70
    %s85 = sphi 0, %s71
    %s89 = sphi 0, %s89
    %s91 = sphi 0, %s89
    %s92 = sphi 0, %s91
    %s106 = sphi 0, %s92
    %s110 = sphi 0, %s110
    %s112 = sphi 0, %s110
    %s113 = sphi 0, %s112
    %s127 = sphi 0, %s113
    %s131 = sphi 0, %s131
    %s133 = sphi 0, %s131
    %s134 = sphi 0, %s133
    %s148 = sphi 0, %s134
    %s152 = sphi 0, %s152
    %s154 = sphi 0, %s152
    %s155 = sphi 0, %s154
    %s169 = sphi 0, %s155
    %s175 = sphi 0, %s177
    %s178 = sphi 0, %s175
    %s179 = sphi 0, %s178
    %s195 = sphi 0, %s179
  $region4: #{feature_extractor_forward.1} parent=0 // loop_header_branch
    %16 = sbr.rel (%p14) target = $region8
  $region5: #{feature_extractor_forward.1} parent=0 // loop_body
    %s18 = ssub.s32 %s13, 1
    %s19 = ssub.s32 %s13, 2
    %s20 = sadd.s32 %s13, 1
    %s21 = ssub.s32 %s13, %s20
    %p22 = scmp.eq.s32.totalorder %s21, 0
    %s24 = sadd.s32 %s23, 1
    %s25 = scalar_select %p22, %s23, %s24
    %p28 = pneg %p22
    %p29 = scmp.eq.s32.totalorder %s13, 1
    %p30 = por %p28, %p29
    %p31 = scmp.ne.s32.totalorder %s23, %s26
    %p32 = scmp.eq.s32.totalorder %s13, 0
    %p33 = por %p31, %p32
    %p34 = scmp.ne.s32.totalorder %s23, %s26
    %p35 = scmp.eq.s32.totalorder %s18, 1
    %p36 = por %p34, %p35
    %p37 = scmp.ne.s32.totalorder %s26, %s27
    %p38 = scmp.eq.s32.totalorder %s18, 0
    %p39 = por %p37, %p38
    %p40 = scmp.ne.s32.totalorder %s26, %s27
    %p41 = scmp.eq.s32.totalorder %s19, 1
    %p42 = por %p40, %p41
    %p44 = scmp.ne.s32.totalorder %s27, %s43
    %p45 = scmp.eq.s32.totalorder %s19, 0
    %p46 = por %p44, %p45
    %s48 = sadd.s32 %s47, 1
    %p51 = scmp.eq.s32.totalorder %s13, 1
    %p52 = scmp.ne.s32.totalorder %s47, %s49
    %p53 = scmp.eq.s32.totalorder %s13, 0
    %p54 = por %p52, %p53
    %p55 = scmp.ne.s32.totalorder %s47, %s49
    %p56 = scmp.eq.s32.totalorder %s18, 1
    %p57 = por %p55, %p56
    %p58 = scmp.ne.s32.totalorder %s49, %s50
    %p59 = scmp.eq.s32.totalorder %s18, 0
    %p60 = por %p58, %p59
    %p61 = scmp.ne.s32.totalorder %s49, %s50
    %p62 = scmp.eq.s32.totalorder %s19, 1
    %p63 = por %p61, %p62
    %p65 = scmp.ne.s32.totalorder %s50, %s64
    %p66 = scmp.eq.s32.totalorder %s19, 0
    %p67 = por %p65, %p66
    %s69 = sadd.s32 %s68, 1
    %p72 = scmp.eq.s32.totalorder %s13, 1
    %p73 = scmp.ne.s32.totalorder %s68, %s70
    %p74 = scmp.eq.s32.totalorder %s13, 0
    %p75 = por %p73, %p74
    %p76 = scmp.ne.s32.totalorder %s68, %s70
    %p77 = scmp.eq.s32.totalorder %s18, 1
    %p78 = por %p76, %p77
    %p79 = scmp.ne.s32.totalorder %s70, %s71
    %p80 = scmp.eq.s32.totalorder %s18, 0
    %p81 = por %p79, %p80
    %p82 = scmp.ne.s32.totalorder %s70, %s71
    %p83 = scmp.eq.s32.totalorder %s19, 1
    %p84 = por %p82, %p83
    %p86 = scmp.ne.s32.totalorder %s71, %s85
    %p87 = scmp.eq.s32.totalorder %s19, 0
    %p88 = por %p86, %p87
    %s90 = sadd.s32 %s89, 1
    %p93 = scmp.eq.s32.totalorder %s13, 1
    %p94 = scmp.ne.s32.totalorder %s89, %s91
    %p95 = scmp.eq.s32.totalorder %s13, 0
    %p96 = por %p94, %p95
    %p97 = scmp.ne.s32.totalorder %s89, %s91
    %p98 = scmp.eq.s32.totalorder %s18, 1
    %p99 = por %p97, %p98
    %p100 = scmp.ne.s32.totalorder %s91, %s92
    %p101 = scmp.eq.s32.totalorder %s18, 0
    %p102 = por %p100, %p101
    %p103 = scmp.ne.s32.totalorder %s91, %s92
    %p104 = scmp.eq.s32.totalorder %s19, 1
    %p105 = por %p103, %p104
    %p107 = scmp.ne.s32.totalorder %s92, %s106
    %p108 = scmp.eq.s32.totalorder %s19, 0
    %p109 = por %p107, %p108
    %s111 = sadd.s32 %s110, 1
    %p114 = scmp.eq.s32.totalorder %s13, 1
    %p115 = scmp.ne.s32.totalorder %s110, %s112
    %p116 = scmp.eq.s32.totalorder %s13, 0
    %p117 = por %p115, %p116
    %p118 = scmp.ne.s32.totalorder %s110, %s112
    %p119 = scmp.eq.s32.totalorder %s18, 1
    %p120 = por %p118, %p119
    %p121 = scmp.ne.s32.totalorder %s112, %s113
    %p122 = scmp.eq.s32.totalorder %s18, 0
    %p123 = por %p121, %p122
    %p124 = scmp.ne.s32.totalorder %s112, %s113
    %p125 = scmp.eq.s32.totalorder %s19, 1
    %p126 = por %p124, %p125
    %p128 = scmp.ne.s32.totalorder %s113, %s127
    %p129 = scmp.eq.s32.totalorder %s19, 0
    %p130 = por %p128, %p129
    %s132 = sadd.s32 %s131, 1
    %p135 = scmp.eq.s32.totalorder %s13, 1
    %p136 = scmp.ne.s32.totalorder %s131, %s133
    %p137 = scmp.eq.s32.totalorder %s13, 0
    %p138 = por %p136, %p137
    %p139 = scmp.ne.s32.totalorder %s131, %s133
    %p140 = scmp.eq.s32.totalorder %s18, 1
    %p141 = por %p139, %p140
    %p142 = scmp.ne.s32.totalorder %s133, %s134
    %p143 = scmp.eq.s32.totalorder %s18, 0
    %p144 = por %p142, %p143
    %p145 = scmp.ne.s32.totalorder %s133, %s134
    %p146 = scmp.eq.s32.totalorder %s19, 1
    %p147 = por %p145, %p146
    %p149 = scmp.ne.s32.totalorder %s134, %s148
    %p150 = scmp.eq.s32.totalorder %s19, 0
    %p151 = por %p149, %p150
    %s153 = sadd.s32 %s152, 1
    %p156 = scmp.eq.s32.totalorder %s13, 1
    %p157 = scmp.ne.s32.totalorder %s152, %s154
    %p158 = scmp.eq.s32.totalorder %s13, 0
    %p159 = por %p157, %p158
    %p160 = scmp.ne.s32.totalorder %s152, %s154
    %p161 = scmp.eq.s32.totalorder %s18, 1
    %p162 = por %p160, %p161
    %p163 = scmp.ne.s32.totalorder %s154, %s155
    %p164 = scmp.eq.s32.totalorder %s18, 0
    %p165 = por %p163, %p164
    %p166 = scmp.ne.s32.totalorder %s154, %s155
    %p167 = scmp.eq.s32.totalorder %s19, 1
    %p168 = por %p166, %p167
    %p170 = scmp.ne.s32.totalorder %s155, %s169
    %p171 = scmp.eq.s32.totalorder %s19, 0
    %p172 = por %p170, %p171
    %s173 = ssub.s32 %s13, %s20
    %p174 = scmp.eq.s32.totalorder %s173, 0
    %s176 = sadd.s32 %s175, 1
    %s177 = scalar_select %p174, %s175, %s176
    %p180 = pneg %p174
    %p181 = scmp.eq.s32.totalorder %s13, 1
    %p182 = por %p180, %p181
    %p183 = scmp.ne.s32.totalorder %s175, %s178
    %p184 = scmp.eq.s32.totalorder %s13, 0
    %p185 = por %p183, %p184
    %p186 = scmp.ne.s32.totalorder %s175, %s178
    %p187 = scmp.eq.s32.totalorder %s18, 1
    %p188 = por %p186, %p187
    %p189 = scmp.ne.s32.totalorder %s178, %s179
    %p190 = scmp.eq.s32.totalorder %s18, 0
    %p191 = por %p189, %p190
    %p192 = scmp.ne.s32.totalorder %s178, %s179
    %p193 = scmp.eq.s32.totalorder %s19, 1
    %p194 = por %p192, %p193
    %p196 = scmp.ne.s32.totalorder %s179, %s195
    %p197 = scmp.eq.s32.totalorder %s19, 0
    %p198 = por %p196, %p197
    %p199 = scmp.le.s32.totalorder 1, %s13
    %p200 = scmp.lt.s32.totalorder %s13, 3
    %p201 = pnand %p199, %p200
    %p202 = pneg %p201
    // Predicated region
    $region9: #{feature_extractor_forward.1} parent=5 // pred_check
      _
    $region10: #{feature_extractor_forward.1} parent=5 // pred_check_branch
      %204 = sbr.rel (%p201) target = $region12
    $region11: #{feature_extractor_forward.1} parent=5 // pred_region
      %s205 = ssub.s32 %s13, 1
      // Predicated region
      $region13: #{feature_extractor_forward.1} parent=11 // pred_check
        %p206 = pneg %p60
      $region14: #{feature_extractor_forward.1} parent=11 // pred_check_branch
        %208 = sbr.rel (%p206) target = $region16
      $region15: #{feature_extractor_forward.1} parent=11 // pred_region
        _
      $region16: #{feature_extractor_forward.1} parent=11 // pred_fallthru
        _
      // Predicated region
      $region17: #{feature_extractor_forward.1} parent=11 // pred_check
        %p209 = pneg %p81
      $region18: #{feature_extractor_forward.1} parent=11 // pred_check_branch
        %211 = sbr.rel (%p209) target = $region20
      $region19: #{feature_extractor_forward.1} parent=11 // pred_region
        _
      $region20: #{feature_extractor_forward.1} parent=11 // pred_fallthru
        _
      // Predicated region
      $region21: #{feature_extractor_forward.1} parent=11 // pred_check
        %p212 = pneg %p102
      $region22: #{feature_extractor_forward.1} parent=11 // pred_check_branch
        %214 = sbr.rel (%p212) target = $region24
      $region23: #{feature_extractor_forward.1} parent=11 // pred_region
        _
      $region24: #{feature_extractor_forward.1} parent=11 // pred_fallthru
        _
      // Predicated region
      $region25: #{feature_extractor_forward.1} parent=11 // pred_check
        %p215 = pneg %p123
      $region26: #{feature_extractor_forward.1} parent=11 // pred_check_branch
        %217 = sbr.rel (%p215) target = $region28
      $region27: #{feature_extractor_forward.1} parent=11 // pred_region
        _
      $region28: #{feature_extractor_forward.1} parent=11 // pred_fallthru
        _
      // Predicated region
      $region29: #{feature_extractor_forward.1} parent=11 // pred_check
        %p218 = pneg %p144
      $region30: #{feature_extractor_forward.1} parent=11 // pred_check_branch
        %220 = sbr.rel (%p218) target = $region32
      $region31: #{feature_extractor_forward.1} parent=11 // pred_region
        _
      $region32: #{feature_extractor_forward.1} parent=11 // pred_fallthru
        _
      // Predicated region
      $region33: #{feature_extractor_forward.1} parent=11 // pred_check
        %p221 = pneg %p165
      $region34: #{feature_extractor_forward.1} parent=11 // pred_check_branch
        %223 = sbr.rel (%p221) target = $region36
      $region35: #{feature_extractor_forward.1} parent=11 // pred_region
        _
      $region36: #{feature_extractor_forward.1} parent=11 // pred_fallthru
        _
    $region12: #{feature_extractor_forward.1} parent=5 // pred_fallthru
      _
    %p224 = scmp.lt.s32.totalorder %s13, 2
    // Predicated region
    $region37: #{feature_extractor_forward.1} parent=5 // pred_check
      %p225 = pneg %p224
    $region38: #{feature_extractor_forward.1} parent=5 // pred_check_branch
      %227 = sbr.rel (%p225) target = $region40
    $region39: #{feature_extractor_forward.1} parent=5 // pred_region
      // Predicated region
      $region41: #{feature_extractor_forward.1} parent=39 // pred_check
        %p228 = pneg %p33
      $region42: #{feature_extractor_forward.1} parent=39 // pred_check_branch
        %230 = sbr.rel (%p228) target = $region44
      $region43: #{feature_extractor_forward.1} parent=39 // pred_region
        %s231 = smul.u32 2, %s13
        %p232 = scmp.lt.s32.totalorder %s231, 3
        %s233 = scalar_select %p232, %s231, 3
        %s234 = smul.addr %s233, 106
        %s235 = smul.addr %s234, 4
        %s236 = scalar_lea.vmem %s0, %s235
        %s237 = smul.u32 2, %s13
      $region44: #{feature_extractor_forward.1} parent=39 // pred_fallthru
        _
    $region40: #{feature_extractor_forward.1} parent=5 // pred_fallthru
      _
    %p238 = scmp.le.s32.totalorder 1, %s13
    %p239 = scmp.lt.s32.totalorder %s13, 3
    %p240 = pnand %p238, %p239
    %p241 = pneg %p240
    // Predicated region
    $region45: #{feature_extractor_forward.1} parent=5 // pred_check
      _
    $region46: #{feature_extractor_forward.1} parent=5 // pred_check_branch
      %243 = sbr.rel (%p240) target = $region48
    $region47: #{feature_extractor_forward.1} parent=5 // pred_region
      %s244 = ssub.s32 %s13, 1
      %s245 = smul.u32 2, %s18
      %p246 = scmp.lt.s32.totalorder %s245, 3
      %s247 = scalar_select %p246, %s245, 3
      %s248 = smul.addr %s247, 106
      %s249 = smul.addr %s248, 4
      %s250 = scalar_lea.vmem %s0, %s249
      %p251 = pneg %p39
      %p252 = pneg %p36
      %p253 = pneg %p60
      %p254 = pneg %p57
      %p255 = pneg %p81
      %p256 = pneg %p78
      %p257 = pneg %p102
      %p258 = pneg %p99
      %p259 = pneg %p123
      %p260 = pneg %p120
      %p261 = pneg %p144
      %p262 = pneg %p141
      %p263 = pneg %p165
      %p264 = pneg %p162
      %p265 = pneg %p191
      %p266 = pneg %p188
      %s267 = smul.u32 2, %s18
      %p268 = scmp.lt.s32.totalorder %s267, 3
      %s269 = scalar_select %p268, %s267, 3
      %s270 = smul.addr %s269, 2
      %s271 = smul.addr %s270, 2
      %s272 = scalar_lea.vmem %s7, %s271
      %s273 = smul.u32 2, %s18
      %p274 = scmp.lt.s32.totalorder %s273, 3
      %s275 = scalar_select %p274, %s273, 3
      %s276 = smul.addr %s275, 106
      %s277 = smul.addr %s276, 4
      %s278 = scalar_lea.vmem %s0, %s277
      %s279 = smul.u32 2, %s18
      %s280 = smul.u32 2, %s18
      %p281 = scmp.lt.s32.totalorder %s280, 3
      %s282 = scalar_select %p281, %s280, 3
      %s283 = smul.addr %s282, 2
      %s284 = smul.addr %s283, 2
      %s285 = scalar_lea.vmem %s7, %s284
      %s286 = smul.u32 2, %s18
      %v288 = vld [vmem:[%s1] sm:$0xf]
      %v289 = vld [vmem:[%s1 + $0x4] sm:$0xf]
      %v290 = vld [vmem:[%s1 + $0x8] sm:$0xf]
      %v291 = vld [vmem:[%s1 + $0xc] sm:$0xf]
      %v292 = vld [vmem:[%s1 + $0x10] sm:$0xf]
      %v293 = vld [vmem:[%s1 + $0x14] sm:$0xf]
      %v294 = vld [vmem:[%s1 + $0x18] sm:$0xf]
      %v295 = vld [vmem:[%s1 + $0x1c] sm:$0xf]
      %v296 = vld [vmem:[%s1 + $0x20] sm:$0xf]
      %v297 = vld [vmem:[%s1 + $0x24] sm:$0xf]
      %v298 = vld [vmem:[%s1 + $0x28] sm:$0xf]
      %v299 = vld [vmem:[%s1 + $0x2c] sm:$0xf]
      %v300 = vld [vmem:[%s1 + $0x30] sm:$0xf]
      %v301 = vld [vmem:[%s1 + $0x34] sm:$0xf]
      %v302 = vld [vmem:[%s1 + $0x38] sm:$0xf]
      %v303 = vld [vmem:[%s1 + $0x3c] sm:$0xf]
      %v304 = vld [vmem:[%s3] sm:$0xf]
      %v305 = vld [vmem:[%s3 + $0x4] sm:$0xf]
      %v306 = vld [vmem:[%s3 + $0x8] sm:$0xf]
      %v307 = vld [vmem:[%s3 + $0xc] sm:$0xf]
      %v308 = vld [vmem:[%s3 + $0x10] sm:$0xf]
      %v309 = vld [vmem:[%s3 + $0x14] sm:$0xf]
      %v310 = vld [vmem:[%s3 + $0x18] sm:$0xf]
      %v311 = vld [vmem:[%s3 + $0x1c] sm:$0xf]
      %v312 = vld [vmem:[%s3 + $0x20] sm:$0xf]
      %v313 = vld [vmem:[%s3 + $0x24] sm:$0xf]
      %v314 = vld [vmem:[%s3 + $0x28] sm:$0xf]
      %v315 = vld [vmem:[%s3 + $0x2c] sm:$0xf]
      %v316 = vld [vmem:[%s3 + $0x30] sm:$0xf]
      %v317 = vld [vmem:[%s3 + $0x34] sm:$0xf]
      %v318 = vld [vmem:[%s3 + $0x38] sm:$0xf]
      %v319 = vld [vmem:[%s3 + $0x3c] sm:$0xf]
      %v320 = vld [vmem:[%s3 + $0x40] sm:$0xf]
      %v321 = vld [vmem:[%s3 + $0x44] sm:$0xf]
      %v322 = vld [vmem:[%s3 + $0x48] sm:$0xf]
      %v323 = vld [vmem:[%s3 + $0x4c] sm:$0xf]
      %v324 = vld [vmem:[%s3 + $0x50] sm:$0xf]
      %v325 = vld [vmem:[%s3 + $0x54] sm:$0xf]
      %v326 = vld [vmem:[%s3 + $0x58] sm:$0xf]
      %v327 = vld [vmem:[%s3 + $0x5c] sm:$0xf]
      %v328 = vld [vmem:[%s3 + $0x60] sm:$0xf]
      %v329 = vld [vmem:[%s3 + $0x64] sm:$0xf]
      %v330 = vld [vmem:[%s3 + $0x68] sm:$0xf]
      %v331 = vld [vmem:[%s3 + $0x6c] sm:$0xf]
      %v332 = vld [vmem:[%s3 + $0x70] sm:$0xf]
      %v333 = vld [vmem:[%s3 + $0x74] sm:$0xf]
      %v334 = vld [vmem:[%s3 + $0x78] sm:$0xf]
      %v335 = vld [vmem:[%s3 + $0x7c] sm:$0xf]
      %v336 = vld [vmem:[%s3 + $0x80] sm:$0xf]
      %v337 = vld [vmem:[%s3 + $0x84] sm:$0xf]
      %v338 = vld [vmem:[%s3 + $0x88] sm:$0xf]
      %v339 = vld [vmem:[%s3 + $0x8c] sm:$0xf]
      %v340 = vld [vmem:[%s3 + $0x90] sm:$0xf]
      %v341 = vld [vmem:[%s3 + $0x94] sm:$0xf]
      %v342 = vld [vmem:[%s3 + $0x98] sm:$0xf]
      %v343 = vld [vmem:[%s3 + $0x9c] sm:$0xf]
      %v344 = vld [vmem:[%s3 + $0xa0] sm:$0xf]
      %v345 = vld [vmem:[%s3 + $0xa4] sm:$0xf]
      %v346 = vld [vmem:[%s3 + $0xa8] sm:$0xf]
      %v347 = vld [vmem:[%s3 + $0xac] sm:$0xf]
      %v348 = vld [vmem:[%s3 + $0xb0] sm:$0xf]
      %v349 = vld [vmem:[%s3 + $0xb4] sm:$0xf]
      %v350 = vld [vmem:[%s3 + $0xb8] sm:$0xf]
      %v351 = vld [vmem:[%s3 + $0xbc] sm:$0xf]
      %v352 = vld [vmem:[%s3 + $0xc0] sm:$0xf]
      %v353 = vld [vmem:[%s3 + $0xc4] sm:$0xf]
      %v354 = vld [vmem:[%s3 + $0xc8] sm:$0xf]
      %v355 = vld [vmem:[%s3 + $0xcc] sm:$0xf]
      %v356 = vld [vmem:[%s3 + $0xd0] sm:$0xf]
      %v357 = vld [vmem:[%s3 + $0xd4] sm:$0xf]
      %v358 = vld [vmem:[%s3 + $0xd8] sm:$0xf]
      %v359 = vld [vmem:[%s3 + $0xdc] sm:$0xf]
      %v360 = vld [vmem:[%s3 + $0xe0] sm:$0xf]
      %v361 = vld [vmem:[%s3 + $0xe4] sm:$0xf]
      %v362 = vld [vmem:[%s3 + $0xe8] sm:$0xf]
      %v363 = vld [vmem:[%s3 + $0xec] sm:$0xf]
      %v364 = vld [vmem:[%s3 + $0xf0] sm:$0xf]
      %v365 = vld [vmem:[%s3 + $0xf4] sm:$0xf]
      %v366 = vld [vmem:[%s3 + $0xf8] sm:$0xf]
      %v367 = vld [vmem:[%s3 + $0xfc] sm:$0xf]
      %v368 = vld [vmem:[%s3 + $0x100] sm:$0xf]
      %v369 = vld [vmem:[%s3 + $0x104] sm:$0xf]
      %v370 = vld [vmem:[%s3 + $0x108] sm:$0xf]
      %v371 = vld [vmem:[%s3 + $0x10c] sm:$0xf]
      %v372 = vld [vmem:[%s3 + $0x110] sm:$0xf]
      %v373 = vld [vmem:[%s3 + $0x114] sm:$0xf]
      %v374 = vld [vmem:[%s3 + $0x118] sm:$0xf]
      %v375 = vld [vmem:[%s3 + $0x11c] sm:$0xf]
      %v376 = vld [vmem:[%s3 + $0x120] sm:$0xf]
      %v377 = vld [vmem:[%s3 + $0x124] sm:$0xf]
      %v378 = vld [vmem:[%s3 + $0x128] sm:$0xf]
      %v379 = vld [vmem:[%s3 + $0x12c] sm:$0xf]
      %v380 = vld [vmem:[%s3 + $0x130] sm:$0xf]
      %v381 = vld [vmem:[%s3 + $0x134] sm:$0xf]
      %v382 = vld [vmem:[%s3 + $0x138] sm:$0xf]
      %v383 = vld [vmem:[%s3 + $0x13c] sm:$0xf]
      %v384 = vld [vmem:[%s3 + $0x140] sm:$0xf]
      %v385 = vld [vmem:[%s3 + $0x144] sm:$0xf]
      %v386 = vld [vmem:[%s3 + $0x148] sm:$0xf]
      %v387 = vld [vmem:[%s3 + $0x14c] sm:$0xf]
      %v388 = vld [vmem:[%s3 + $0x150] sm:$0xf]
      %v389 = vld [vmem:[%s3 + $0x154] sm:$0xf]
      %v390 = vld [vmem:[%s3 + $0x158] sm:$0xf]
      %v391 = vld [vmem:[%s3 + $0x15c] sm:$0xf]
      %v392 = vld [vmem:[%s3 + $0x160] sm:$0xf]
      %v393 = vld [vmem:[%s3 + $0x164] sm:$0xf]
      %v394 = vld [vmem:[%s3 + $0x168] sm:$0xf]
      %v395 = vld [vmem:[%s3 + $0x16c] sm:$0xf]
      %v396 = vld [vmem:[%s3 + $0x170] sm:$0xf]
      %v397 = vld [vmem:[%s3 + $0x174] sm:$0xf]
      %v398 = vld [vmem:[%s3 + $0x178] sm:$0xf]
      %v399 = vld [vmem:[%s3 + $0x17c] sm:$0xf]
      %v400 = vld [vmem:[%s3 + $0x180] sm:$0xf]
      %v401 = vld [vmem:[%s3 + $0x184] sm:$0xf]
      %v402 = vld [vmem:[%s3 + $0x188] sm:$0xf]
      %v403 = vld [vmem:[%s3 + $0x18c] sm:$0xf]
      %v404 = vld [vmem:[%s3 + $0x190] sm:$0xf]
      %v405 = vld [vmem:[%s3 + $0x194] sm:$0xf]
      %v406 = vld [vmem:[%s3 + $0x198] sm:$0xf]
      %v407 = vld [vmem:[%s3 + $0x19c] sm:$0xf]
      %v408 = vld [vmem:[%s3 + $0x1a0] sm:$0xf]
      %v409 = vld [vmem:[%s3 + $0x1a4] sm:$0xf]
      %v410 = vld [vmem:[%s3 + $0x1a8] sm:$0xf]
      %v411 = vld [vmem:[%s3 + $0x1ac] sm:$0xf]
      %v412 = vld [vmem:[%s3 + $0x1b0] sm:$0xf]
      %v413 = vld [vmem:[%s3 + $0x1b4] sm:$0xf]
      %v414 = vld [vmem:[%s3 + $0x1b8] sm:$0xf]
      %v415 = vld [vmem:[%s3 + $0x1bc] sm:$0xf]
      %v416 = vld [vmem:[%s3 + $0x1c0] sm:$0xf]
      %v417 = vld [vmem:[%s3 + $0x1c4] sm:$0xf]
      %v418 = vld [vmem:[%s3 + $0x1c8] sm:$0xf]
      %v419 = vld [vmem:[%s3 + $0x1cc] sm:$0xf]
      %v420 = vld [vmem:[%s3 + $0x1d0] sm:$0xf]
      %v421 = vld [vmem:[%s3 + $0x1d4] sm:$0xf]
      %v422 = vld [vmem:[%s3 + $0x1d8] sm:$0xf]
      %v423 = vld [vmem:[%s3 + $0x1dc] sm:$0xf]
      %v424 = vld [vmem:[%s3 + $0x1e0] sm:$0xf]
      %v425 = vld [vmem:[%s3 + $0x1e4] sm:$0xf]
      %v426 = vld [vmem:[%s3 + $0x1e8] sm:$0xf]
      %v427 = vld [vmem:[%s3 + $0x1ec] sm:$0xf]
      %v428 = vld [vmem:[%s3 + $0x1f0] sm:$0xf]
      %v429 = vld [vmem:[%s3 + $0x1f4] sm:$0xf]
      %v430 = vld [vmem:[%s3 + $0x1f8] sm:$0xf]
      %v431 = vld [vmem:[%s3 + $0x1fc] sm:$0xf]
      %v432 = vld [vmem:[%s3 + $0x200] sm:$0xf]
      %v433 = vld [vmem:[%s3 + $0x204] sm:$0xf]
      %v434 = vld [vmem:[%s3 + $0x208] sm:$0xf]
      %v435 = vld [vmem:[%s3 + $0x20c] sm:$0xf]
      %v436 = vld [vmem:[%s3 + $0x210] sm:$0xf]
      %v437 = vld [vmem:[%s3 + $0x214] sm:$0xf]
      %v438 = vld [vmem:[%s3 + $0x218] sm:$0xf]
      %v439 = vld [vmem:[%s3 + $0x21c] sm:$0xf]
      %v440 = vld [vmem:[%s3 + $0x220] sm:$0xf]
      %v441 = vld [vmem:[%s3 + $0x224] sm:$0xf]
      %v442 = vld [vmem:[%s3 + $0x228] sm:$0xf]
      %v443 = vld [vmem:[%s3 + $0x22c] sm:$0xf]
      %v444 = vld [vmem:[%s3 + $0x230] sm:$0xf]
      %v445 = vld [vmem:[%s3 + $0x234] sm:$0xf]
      %v446 = vld [vmem:[%s3 + $0x238] sm:$0xf]
      %v447 = vld [vmem:[%s3 + $0x23c] sm:$0xf]
      %v448 = vld [vmem:[%s3 + $0x240] sm:$0xf]
      %v449 = vld [vmem:[%s3 + $0x244] sm:$0xf]
      %v450 = vld [vmem:[%s3 + $0x248] sm:$0xf]
      %v451 = vld [vmem:[%s3 + $0x24c] sm:$0xf]
      %v452 = vld [vmem:[%s3 + $0x250] sm:$0xf]
      %v453 = vld [vmem:[%s3 + $0x254] sm:$0xf]
      %v454 = vld [vmem:[%s3 + $0x258] sm:$0xf]
      %v455 = vld [vmem:[%s3 + $0x25c] sm:$0xf]
      %v456 = vld [vmem:[%s3 + $0x260] sm:$0xf]
      %v457 = vld [vmem:[%s3 + $0x264] sm:$0xf]
      %v458 = vld [vmem:[%s3 + $0x268] sm:$0xf]
      %v459 = vld [vmem:[%s3 + $0x26c] sm:$0xf]
      %v460 = vld [vmem:[%s3 + $0x270] sm:$0xf]
      %v461 = vld [vmem:[%s3 + $0x274] sm:$0xf]
      %v462 = vld [vmem:[%s3 + $0x278] sm:$0xf]
      %v463 = vld [vmem:[%s3 + $0x27c] sm:$0xf]
      %v464 = vld [vmem:[%s3 + $0x280] sm:$0xf]
      %v465 = vld [vmem:[%s3 + $0x284] sm:$0xf]
      %v466 = vld [vmem:[%s3 + $0x288] sm:$0xf]
      %v467 = vld [vmem:[%s3 + $0x28c] sm:$0xf]
      %v468 = vld [vmem:[%s3 + $0x290] sm:$0xf]
      %v469 = vld [vmem:[%s3 + $0x294] sm:$0xf]
      %v470 = vld [vmem:[%s3 + $0x298] sm:$0xf]
      %v471 = vld [vmem:[%s3 + $0x29c] sm:$0xf]
      %v472 = vld [vmem:[%s3 + $0x2a0] sm:$0xf]
      %v473 = vld [vmem:[%s3 + $0x2a4] sm:$0xf]
      %v474 = vld [vmem:[%s3 + $0x2a8] sm:$0xf]
      %v475 = vld [vmem:[%s3 + $0x2ac] sm:$0xf]
      %v476 = vld [vmem:[%s3 + $0x2b0] sm:$0xf]
      %v477 = vld [vmem:[%s3 + $0x2b4] sm:$0xf]
      %v478 = vld [vmem:[%s3 + $0x2b8] sm:$0xf]
      %v479 = vld [vmem:[%s3 + $0x2bc] sm:$0xf]
      %v480 = vld [vmem:[%s3 + $0x2c0] sm:$0xf]
      %v481 = vld [vmem:[%s3 + $0x2c4] sm:$0xf]
      %v482 = vld [vmem:[%s3 + $0x2c8] sm:$0xf]
      %v483 = vld [vmem:[%s3 + $0x2cc] sm:$0xf]
      %v484 = vld [vmem:[%s3 + $0x2d0] sm:$0xf]
      %v485 = vld [vmem:[%s3 + $0x2d4] sm:$0xf]
      %v486 = vld [vmem:[%s3 + $0x2d8] sm:$0xf]
      %v487 = vld [vmem:[%s3 + $0x2dc] sm:$0xf]
      %v488 = vld [vmem:[%s3 + $0x2e0] sm:$0xf]
      %v489 = vld [vmem:[%s3 + $0x2e4] sm:$0xf]
      %v490 = vld [vmem:[%s3 + $0x2e8] sm:$0xf]
      %v491 = vld [vmem:[%s3 + $0x2ec] sm:$0xf]
      %v492 = vld [vmem:[%s3 + $0x2f0] sm:$0xf]
      %v493 = vld [vmem:[%s3 + $0x2f4] sm:$0xf]
      %v494 = vld [vmem:[%s3 + $0x2f8] sm:$0xf]
      %v495 = vld [vmem:[%s3 + $0x2fc] sm:$0xf]
      %v496 = vld [vmem:[%s3 + $0x300] sm:$0xf]
      %v497 = vld [vmem:[%s3 + $0x304] sm:$0xf]
      %v498 = vld [vmem:[%s3 + $0x308] sm:$0xf]
      %v499 = vld [vmem:[%s3 + $0x30c] sm:$0xf]
      %v500 = vld [vmem:[%s3 + $0x310] sm:$0xf]
      %v501 = vld [vmem:[%s3 + $0x314] sm:$0xf]
      %v502 = vld [vmem:[%s3 + $0x318] sm:$0xf]
      %v503 = vld [vmem:[%s3 + $0x31c] sm:$0xf]
      %v504 = vld [vmem:[%s5] sm:$0xf]
      %v505 = vld [vmem:[%s5 + $0x4] sm:$0xf]
      %v506 = vld [vmem:[%s5 + $0x8] sm:$0xf]
      %v507 = vld [vmem:[%s5 + $0xc] sm:$0xf]
      %v508 = vld [vmem:[%s5 + $0x10] sm:$0xf]
      %v509 = vld [vmem:[%s5 + $0x14] sm:$0xf]
      %v510 = vld [vmem:[%s5 + $0x18] sm:$0xf]
      %v511 = vld [vmem:[%s5 + $0x1c] sm:$0xf]
      %v512 = vld [vmem:[%s5 + $0x20] sm:$0xf]
      %v513 = vld [vmem:[%s5 + $0x24] sm:$0xf]
      %v514 = vld [vmem:[%s5 + $0x28] sm:$0xf]
      %v515 = vld [vmem:[%s5 + $0x2c] sm:$0xf]
      %v516 = vld [vmem:[%s5 + $0x30] sm:$0xf]
      %v517 = vld [vmem:[%s5 + $0x34] sm:$0xf]
      %v518 = vld [vmem:[%s5 + $0x38] sm:$0xf]
      %v519 = vld [vmem:[%s5 + $0x3c] sm:$0xf]
      %v520 = vld [vmem:[%s5 + $0x40] sm:$0xf]
      %v521 = vld [vmem:[%s5 + $0x44] sm:$0xf]
      %v522 = vld [vmem:[%s5 + $0x48] sm:$0xf]
      %v523 = vld [vmem:[%s5 + $0x4c] sm:$0xf]
      %v524 = vld [vmem:[%s5 + $0x50] sm:$0xf]
      %v525 = vld [vmem:[%s5 + $0x54] sm:$0xf]
      %v526 = vld [vmem:[%s5 + $0x58] sm:$0xf]
      %v527 = vld [vmem:[%s5 + $0x5c] sm:$0xf]
      %v528 = vld [vmem:[%s5 + $0x60] sm:$0xf]
      %v529 = vld [vmem:[%s5 + $0x64] sm:$0xf]
      %v530 = vld [vmem:[%s5 + $0x68] sm:$0xf]
      %v531 = vld [vmem:[%s5 + $0x6c] sm:$0xf]
      %v532 = vld [vmem:[%s5 + $0x70] sm:$0xf]
      %v533 = vld [vmem:[%s5 + $0x74] sm:$0xf]
      %v534 = vld [vmem:[%s5 + $0x78] sm:$0xf]
      %v535 = vld [vmem:[%s5 + $0x7c] sm:$0xf]
      %v536 = vld [vmem:[%s5 + $0x80] sm:$0xf]
      %v537 = vld [vmem:[%s5 + $0x84] sm:$0xf]
      %v538 = vld [vmem:[%s5 + $0x88] sm:$0xf]
      %v539 = vld [vmem:[%s5 + $0x8c] sm:$0xf]
      %v540 = vld [vmem:[%s5 + $0x90] sm:$0xf]
      %v541 = vld [vmem:[%s5 + $0x94] sm:$0xf]
      %v542 = vld [vmem:[%s5 + $0x98] sm:$0xf]
      %v543 = vld [vmem:[%s5 + $0x9c] sm:$0xf]
      %v544 = vld [vmem:[%s5 + $0xa0] sm:$0xf]
      %v545 = vld [vmem:[%s5 + $0xa4] sm:$0xf]
      %v546 = vld [vmem:[%s5 + $0xa8] sm:$0xf]
      %v547 = vld [vmem:[%s5 + $0xac] sm:$0xf]
      %v548 = vld [vmem:[%s5 + $0xb0] sm:$0xf]
      %v549 = vld [vmem:[%s5 + $0xb4] sm:$0xf]
      %v550 = vld [vmem:[%s5 + $0xb8] sm:$0xf]
      %v551 = vld [vmem:[%s5 + $0xbc] sm:$0xf]
      %v552 = vld [vmem:[%s5 + $0xc0] sm:$0xf]
      %v553 = vld [vmem:[%s5 + $0xc4] sm:$0xf]
      %v554 = vld [vmem:[%s5 + $0xc8] sm:$0xf]
      %v555 = vld [vmem:[%s5 + $0xcc] sm:$0xf]
      %v556 = vld [vmem:[%s5 + $0xd0] sm:$0xf]
      %v557 = vld [vmem:[%s5 + $0xd4] sm:$0xf]
      %v558 = vld [vmem:[%s5 + $0xd8] sm:$0xf]
      %v559 = vld [vmem:[%s5 + $0xdc] sm:$0xf]
      %v560 = vld [vmem:[%s5 + $0xe0] sm:$0xf]
      %v561 = vld [vmem:[%s5 + $0xe4] sm:$0xf]
      %v562 = vld [vmem:[%s5 + $0xe8] sm:$0xf]
      %v563 = vld [vmem:[%s5 + $0xec] sm:$0xf]
      %v564 = vld [vmem:[%s5 + $0xf0] sm:$0xf]
      %v565 = vld [vmem:[%s5 + $0xf4] sm:$0xf]
      %v566 = vld [vmem:[%s5 + $0xf8] sm:$0xf]
      %v567 = vld [vmem:[%s5 + $0xfc] sm:$0xf]
      %v568 = vld [vmem:[%s5 + $0x100] sm:$0xf]
      %v569 = vld [vmem:[%s5 + $0x104] sm:$0xf]
      %v570 = vld [vmem:[%s5 + $0x108] sm:$0xf]
      %v571 = vld [vmem:[%s5 + $0x10c] sm:$0xf]
      %v572 = vld [vmem:[%s5 + $0x110] sm:$0xf]
      %v573 = vld [vmem:[%s5 + $0x114] sm:$0xf]
      %v574 = vld [vmem:[%s5 + $0x118] sm:$0xf]
      %v575 = vld [vmem:[%s5 + $0x11c] sm:$0xf]
      %v576 = vld [vmem:[%s2] sm:$0x1]
      %v577 = vld [vmem:[%s4] sm:$0x1]
      %v578 = vld [vmem:[%s6] sm:$0x1]
      %v579 = vld [vmem:[%s278] sm:$0xf]
      %v580 = vld [vmem:[%s278 + $0x4] sm:$0xf]
      %v581 = vld [vmem:[%s278 + $0x8] sm:$0xf]
      %v582 = vld [vmem:[%s278 + $0xc] sm:$0xf]
      %v583 = vld [vmem:[%s278 + $0x10] sm:$0xf]
      %v584 = vld [vmem:[%s278 + $0x14] sm:$0xf]
      %v585 = vld [vmem:[%s278 + $0x18] sm:$0xf]
      %v586 = vld [vmem:[%s278 + $0x1c] sm:$0xf]
      %v587 = vld [vmem:[%s278 + $0x20] sm:$0xf]
      %v588 = vld [vmem:[%s278 + $0x24] sm:$0xf]
      %v589 = vld [vmem:[%s278 + $0x28] sm:$0xf]
      %v590 = vld [vmem:[%s278 + $0x2c] sm:$0xf]
      %v591 = vld [vmem:[%s278 + $0x30] sm:$0xf]
      %v592 = vld [vmem:[%s278 + $0x34] sm:$0xf]
      %v593 = vld [vmem:[%s278 + $0x38] sm:$0xf]
      %v594 = vld [vmem:[%s278 + $0x3c] sm:$0xf]
      %v595 = vld [vmem:[%s278 + $0x40] sm:$0xf]
      %v596 = vld [vmem:[%s278 + $0x44] sm:$0xf]
      %v597 = vld [vmem:[%s278 + $0x48] sm:$0xf]
      %v598 = vld [vmem:[%s278 + $0x4c] sm:$0xf]
      %v599 = vld [vmem:[%s278 + $0x50] sm:$0xf]
      %v600 = vld [vmem:[%s278 + $0x54] sm:$0xf]
      %v601 = vld [vmem:[%s278 + $0x58] sm:$0xf]
      %v602 = vld [vmem:[%s278 + $0x5c] sm:$0xf]
      %v603 = vld [vmem:[%s278 + $0x60] sm:$0xf]
      %v604 = vld [vmem:[%s278 + $0x64] sm:$0xf]
      %v605 = vld [vmem:[%s278 + $0x68] sm:$0xf]
      %v606 = vld [vmem:[%s278 + $0x6c] sm:$0xf]
      %v607 = vld [vmem:[%s278 + $0x70] sm:$0xf]
      %v608 = vld [vmem:[%s278 + $0x74] sm:$0xf]
      %v609 = vld [vmem:[%s278 + $0x78] sm:$0xf]
      %v610 = vld [vmem:[%s278 + $0x7c] sm:$0xf]
      %v611 = vld [vmem:[%s278 + $0x80] sm:$0xf]
      %v612 = vld [vmem:[%s278 + $0x84] sm:$0xf]
      %v613 = vld [vmem:[%s278 + $0x88] sm:$0xf]
      %v614 = vld [vmem:[%s278 + $0x8c] sm:$0xf]
      %v615 = vld [vmem:[%s278 + $0x90] sm:$0xf]
      %v616 = vld [vmem:[%s278 + $0x94] sm:$0xf]
      %v617 = vld [vmem:[%s278 + $0x98] sm:$0xf]
      %v618 = vld [vmem:[%s278 + $0x9c] sm:$0xf]
      %v619 = vld [vmem:[%s278 + $0xa0] sm:$0xf]
      %v620 = vld [vmem:[%s278 + $0xa4] sm:$0xf]
      %v621 = vld [vmem:[%s278 + $0xa8] sm:$0xf]
      %v622 = vld [vmem:[%s278 + $0xac] sm:$0xf]
      %v623 = vld [vmem:[%s278 + $0xb0] sm:$0xf]
      %v624 = vld [vmem:[%s278 + $0xb4] sm:$0xf]
      %v625 = vld [vmem:[%s278 + $0xb8] sm:$0xf]
      %v626 = vld [vmem:[%s278 + $0xbc] sm:$0xf]
      %v627 = vld [vmem:[%s278 + $0xc0] sm:$0xf]
      %v628 = vld [vmem:[%s278 + $0xc4] sm:$0xf]
      %v629 = vld [vmem:[%s278 + $0xc8] sm:$0xf]
      %v630 = vld [vmem:[%s278 + $0xcc] sm:$0xf]
      %v631 = vld [vmem:[%s278 + $0xd0] sm:$0xf]
      %v632 = vld [vmem:[%s278 + $0xd4] sm:$0xf]
      %v633 = vld [vmem:[%s278 + $0xd8] sm:$0xf]
      %v634 = vld [vmem:[%s278 + $0xdc] sm:$0xf]
      %v635 = vld [vmem:[%s278 + $0xe0] sm:$0xf]
      %v636 = vld [vmem:[%s278 + $0xe4] sm:$0xf]
      %v637 = vld [vmem:[%s278 + $0xe8] sm:$0xf]
      %v638 = vld [vmem:[%s278 + $0xec] sm:$0xf]
      %v639 = vld [vmem:[%s278 + $0xf0] sm:$0xf]
      %v640 = vld [vmem:[%s278 + $0xf4] sm:$0xf]
      %v641 = vld [vmem:[%s278 + $0xf8] sm:$0xf]
      %v642 = vld [vmem:[%s278 + $0xfc] sm:$0xf]
      %v643 = vld [vmem:[%s278 + $0x100] sm:$0xf]
      %v644 = vld [vmem:[%s278 + $0x104] sm:$0xf]
      %v645 = vld [vmem:[%s278 + $0x108] sm:$0xf]
      %v646 = vld [vmem:[%s278 + $0x10c] sm:$0xf]
      %v647 = vld [vmem:[%s278 + $0x110] sm:$0xf]
      %v648 = vld [vmem:[%s278 + $0x114] sm:$0xf]
      %v649 = vld [vmem:[%s278 + $0x118] sm:$0xf]
      %v650 = vld [vmem:[%s278 + $0x11c] sm:$0xf]
      %v651 = vld [vmem:[%s278 + $0x120] sm:$0xf]
      %v652 = vld [vmem:[%s278 + $0x124] sm:$0xf]
      %v653 = vld [vmem:[%s278 + $0x128] sm:$0xf]
      %v654 = vld [vmem:[%s278 + $0x12c] sm:$0xf]
      %v655 = vld [vmem:[%s278 + $0x130] sm:$0xf]
      %v656 = vld [vmem:[%s278 + $0x134] sm:$0xf]
      %v657 = vld [vmem:[%s278 + $0x138] sm:$0xf]
      %v658 = vld [vmem:[%s278 + $0x13c] sm:$0xf]
      %v659 = vld [vmem:[%s278 + $0x140] sm:$0xf]
      %v660 = vld [vmem:[%s278 + $0x144] sm:$0xf]
      %v661 = vld [vmem:[%s278 + $0x148] sm:$0xf]
      %v662 = vld [vmem:[%s278 + $0x14c] sm:$0xf]
      %v663 = vld [vmem:[%s278 + $0x150] sm:$0xf]
      %v664 = vld [vmem:[%s278 + $0x154] sm:$0xf]
      %v665 = vld [vmem:[%s278 + $0x158] sm:$0xf]
      %v666 = vld [vmem:[%s278 + $0x15c] sm:$0xf]
      %v667 = vld [vmem:[%s278 + $0x160] sm:$0xf]
      %v668 = vld [vmem:[%s278 + $0x164] sm:$0xf]
      %v669 = vld [vmem:[%s278 + $0x168] sm:$0xf]
      %v670 = vld [vmem:[%s278 + $0x16c] sm:$0xf]
      %v671 = vld [vmem:[%s278 + $0x170] sm:$0xf]
      %v672 = vld [vmem:[%s278 + $0x174] sm:$0xf]
      %v673 = vld [vmem:[%s278 + $0x178] sm:$0xf]
      %v674 = vld [vmem:[%s278 + $0x17c] sm:$0xf]
      %v675 = vld [vmem:[%s278 + $0x180] sm:$0xf]
      %v676 = vld [vmem:[%s278 + $0x184] sm:$0xf]
      %v677 = vld [vmem:[%s278 + $0x188] sm:$0xf]
      %v678 = vld [vmem:[%s278 + $0x18c] sm:$0xf]
      %v679 = vld [vmem:[%s278 + $0x190] sm:$0xf]
      %v680 = vld [vmem:[%s278 + $0x194] sm:$0xf]
      %v681 = vld [vmem:[%s278 + $0x198] sm:$0xf]
      %v682 = vld [vmem:[%s278 + $0x19c] sm:$0xf]
      %v683 = vld [vmem:[%s278 + $0x1a0] sm:$0xf]
      %v684 = vld [vmem:[%s278 + $0x1a4] sm:$0x1]
      %v686 = vlaneseq
      %v687 = vshrl.u32 %v686, 7
      %v688 = vsub.s32 0, %v687
      %v689 = vrot.slane %v576, %v688
      %v797 = vunpack.c.l.b16 %v579
      %v798 = vunpack.c.l.b16 %v580
      %v799 = vunpack.c.l.b16 %v581
      %v800 = vunpack.c.l.b16 %v582
      %v801 = vunpack.c.l.b16 %v583
      %v802 = vunpack.c.l.b16 %v584
      %v803 = vunpack.c.l.b16 %v585
      %v804 = vunpack.c.l.b16 %v586
      %v805 = vunpack.c.l.b16 %v587
      %v806 = vunpack.c.l.b16 %v588
      %v807 = vunpack.c.l.b16 %v589
      %v808 = vunpack.c.l.b16 %v590
      %v809 = vunpack.c.l.b16 %v591
      %v810 = vunpack.c.l.b16 %v592
      %v811 = vunpack.c.l.b16 %v593
      %v812 = vunpack.c.l.b16 %v594
      %v813 = vunpack.c.l.b16 %v595
      %v814 = vunpack.c.l.b16 %v596
      %v815 = vunpack.c.l.b16 %v597
      %v816 = vunpack.c.l.b16 %v598
      %v817 = vunpack.c.l.b16 %v599
      %v818 = vunpack.c.l.b16 %v600
      %v819 = vunpack.c.l.b16 %v601
      %v820 = vunpack.c.l.b16 %v602
      %v821 = vunpack.c.l.b16 %v603
      %v822 = vunpack.c.l.b16 %v604
      %v823 = vunpack.c.l.b16 %v605
      %v824 = vunpack.c.l.b16 %v606
      %v825 = vunpack.c.l.b16 %v607
      %v826 = vunpack.c.l.b16 %v608
      %v827 = vunpack.c.l.b16 %v609
      %v828 = vunpack.c.l.b16 %v610
      %v829 = vunpack.c.l.b16 %v611
      %v830 = vunpack.c.l.b16 %v612
      %v831 = vunpack.c.l.b16 %v613
      %v832 = vunpack.c.l.b16 %v614
      %v833 = vunpack.c.l.b16 %v615
      %v834 = vunpack.c.l.b16 %v616
      %v835 = vunpack.c.l.b16 %v617
      %v836 = vunpack.c.l.b16 %v618
      %v837 = vunpack.c.l.b16 %v619
      %v838 = vunpack.c.l.b16 %v620
      %v839 = vunpack.c.l.b16 %v621
      %v840 = vunpack.c.l.b16 %v622
      %v841 = vunpack.c.l.b16 %v623
      %v842 = vunpack.c.l.b16 %v624
      %v843 = vunpack.c.l.b16 %v625
      %v844 = vunpack.c.l.b16 %v626
      %v845 = vunpack.c.l.b16 %v627
      %v846 = vunpack.c.l.b16 %v628
      %v847 = vunpack.c.l.b16 %v629
      %v848 = vunpack.c.l.b16 %v630
      %v849 = vunpack.c.l.b16 %v631
      %v850 = vunpack.c.l.b16 %v632
      %v851 = vunpack.c.l.b16 %v633
      %v852 = vunpack.c.l.b16 %v634
      %v853 = vunpack.c.l.b16 %v635
      %v854 = vunpack.c.l.b16 %v636
      %v855 = vunpack.c.l.b16 %v637
      %v856 = vunpack.c.l.b16 %v638
      %v857 = vunpack.c.l.b16 %v639
      %v858 = vunpack.c.l.b16 %v640
      %v859 = vunpack.c.l.b16 %v641
      %v860 = vunpack.c.l.b16 %v642
      %v861 = vunpack.c.l.b16 %v643
      %v862 = vunpack.c.l.b16 %v644
      %v863 = vunpack.c.l.b16 %v645
      %v864 = vunpack.c.l.b16 %v646
      %v865 = vunpack.c.l.b16 %v647
      %v866 = vunpack.c.l.b16 %v648
      %v867 = vunpack.c.l.b16 %v649
      %v868 = vunpack.c.l.b16 %v650
      %v869 = vunpack.c.l.b16 %v651
      %v870 = vunpack.c.l.b16 %v652
      %v871 = vunpack.c.l.b16 %v653
      %v872 = vunpack.c.l.b16 %v654
      %v873 = vunpack.c.l.b16 %v655
      %v874 = vunpack.c.l.b16 %v656
      %v875 = vunpack.c.l.b16 %v657
      %v876 = vunpack.c.l.b16 %v658
      %v877 = vunpack.c.l.b16 %v659
      %v878 = vunpack.c.l.b16 %v660
      %v879 = vunpack.c.l.b16 %v661
      %v880 = vunpack.c.l.b16 %v662
      %v881 = vunpack.c.l.b16 %v663
      %v882 = vunpack.c.l.b16 %v664
      %v883 = vunpack.c.l.b16 %v665
      %v884 = vunpack.c.l.b16 %v666
      %v885 = vunpack.c.l.b16 %v667
      %v886 = vunpack.c.l.b16 %v668
      %v887 = vunpack.c.l.b16 %v669
      %v888 = vunpack.c.l.b16 %v670
      %v889 = vunpack.c.l.b16 %v671
      %v890 = vunpack.c.l.b16 %v672
      %v891 = vunpack.c.l.b16 %v673
      %v892 = vunpack.c.l.b16 %v674
      %v893 = vunpack.c.l.b16 %v675
      %v894 = vunpack.c.l.b16 %v676
      %v895 = vunpack.c.l.b16 %v677
      %v896 = vunpack.c.l.b16 %v678
      %v897 = vunpack.c.l.b16 %v679
      %v898 = vunpack.c.l.b16 %v680
      %v899 = vunpack.c.l.b16 %v681
      %v900 = vunpack.c.l.b16 %v682
      %v901 = vunpack.c.l.b16 %v683
      %v902 = vunpack.c.l.b16 %v684
      %v903 = vpack.c.b16 %v798, %v797
      %v904 = vpack.c.b16 %v800, %v799
      %v905 = vpack.c.b16 %v802, %v801
      %v906 = vpack.c.b16 %v804, %v803
      %v907 = vpack.c.b16 %v806, %v805
      %v908 = vpack.c.b16 %v808, %v807
      %v909 = vpack.c.b16 %v810, %v809
      %v910 = vpack.c.b16 %v812, %v811
      %v911 = vpack.c.b16 %v814, %v813
      %v912 = vpack.c.b16 %v816, %v815
      %v913 = vpack.c.b16 %v818, %v817
      %v914 = vpack.c.b16 %v820, %v819
      %v915 = vpack.c.b16 %v822, %v821
      %v916 = vpack.c.b16 %v824, %v823
      %v917 = vpack.c.b16 %v826, %v825
      %v918 = vpack.c.b16 %v828, %v827
      %v919 = vpack.c.b16 %v830, %v829
      %v920 = vpack.c.b16 %v832, %v831
      %v921 = vpack.c.b16 %v834, %v833
      %v922 = vpack.c.b16 %v836, %v835
      %v923 = vpack.c.b16 %v838, %v837
      %v924 = vpack.c.b16 %v840, %v839
      %v925 = vpack.c.b16 %v842, %v841
      %v926 = vpack.c.b16 %v844, %v843
      %v927 = vpack.c.b16 %v846, %v845
      %v928 = vpack.c.b16 %v848, %v847
      %v929 = vpack.c.b16 %v850, %v849
      %v930 = vpack.c.b16 %v852, %v851
      %v931 = vpack.c.b16 %v854, %v853
      %v932 = vpack.c.b16 %v856, %v855
      %v933 = vpack.c.b16 %v858, %v857
      %v934 = vpack.c.b16 %v860, %v859
      %v935 = vpack.c.b16 %v862, %v861
      %v936 = vpack.c.b16 %v864, %v863
      %v937 = vpack.c.b16 %v866, %v865
      %v938 = vpack.c.b16 %v868, %v867
      %v939 = vpack.c.b16 %v870, %v869
      %v940 = vpack.c.b16 %v872, %v871
      %v941 = vpack.c.b16 %v874, %v873
      %v942 = vpack.c.b16 %v876, %v875
      %v943 = vpack.c.b16 %v878, %v877
      %v944 = vpack.c.b16 %v880, %v879
      %v945 = vpack.c.b16 %v882, %v881
      %v946 = vpack.c.b16 %v884, %v883
      %v947 = vpack.c.b16 %v886, %v885
      %v948 = vpack.c.b16 %v888, %v887
      %v949 = vpack.c.b16 %v890, %v889
      %v950 = vpack.c.b16 %v892, %v891
      %v951 = vpack.c.b16 %v894, %v893
      %v952 = vpack.c.b16 %v896, %v895
      %v953 = vpack.c.b16 %v898, %v897
      %v954 = vpack.c.b16 %v900, %v899
      %v955 = vpack.c.b16 %v902, %v901
      %v1025 = vunpack.c.l.b16 %v288
      %v1026 = vunpack.c.l.b16 %v289
      %v1027 = vunpack.c.l.b16 %v290
      %v1028 = vunpack.c.l.b16 %v291
      %v1029 = vunpack.c.l.b16 %v292
      %v1030 = vunpack.c.l.b16 %v293
      %v1031 = vunpack.c.l.b16 %v294
      %v1032 = vunpack.c.l.b16 %v295
      %v1033 = vunpack.c.l.b16 %v296
      %v1034 = vunpack.c.l.b16 %v297
      %v1035 = vunpack.c.l.b16 %v298
      %v1036 = vunpack.c.l.b16 %v299
      %v1037 = vunpack.c.l.b16 %v300
      %v1038 = vunpack.c.l.b16 %v301
      %v1039 = vunpack.c.l.b16 %v302
      %v1040 = vunpack.c.l.b16 %v303
      %v1041 = vpack.c.b16 %v1026, %v1025
      %v1042 = vpack.c.b16 %v1028, %v1027
      %v1043 = vpack.c.b16 %v1030, %v1029
      %v1044 = vpack.c.b16 %v1032, %v1031
      %v1045 = vpack.c.b16 %v1034, %v1033
      %v1046 = vpack.c.b16 %v1036, %v1035
      %v1047 = vpack.c.b16 %v1038, %v1037
      %v1048 = vpack.c.b16 %v1040, %v1039
      %1057 = vmatprep.subr.bf16.mxu0 0
      %1058 = vmatpush1.bf16.msra.mxu0 %v1041
      %1059 = vmatprep.subr.bf16.mxu0 0
      %1060 = vmatpush1.bf16.msra.mxu0 %v1042
      %1061 = vmatprep.subr.bf16.mxu0 0
      %1062 = vmatpush1.bf16.msra.mxu0 %v1043
      %1063 = vmatprep.subr.bf16.mxu0 0
      %1064 = vmatpush1.bf16.msra.mxu0 %v1044
      %1065 = vmatprep.subr.bf16.mxu0 0
      %1066 = vmatpush1.bf16.msra.mxu0 %v1045
      %1067 = vmatprep.subr.bf16.mxu0 0
      %1068 = vmatpush1.bf16.msra.mxu0 %v1046
      %1069 = vmatprep.subr.bf16.mxu0 0
      %1070 = vmatpush1.bf16.msra.mxu0 %v1047
      %1071 = vmatprep.subr.bf16.mxu0 0
      %1072 = vmatpush1.bf16.msra.mxu0 %v1048
      %1073 = vmatprep.subr.bf16.mxu0 0
      %1074 = vmatpush1.bf16.msra.mxu0 0
      %1075 = vmatprep.subr.bf16.mxu0 0
      %1076 = vmatpush1.bf16.msra.mxu0 0
      %1077 = vmatprep.subr.bf16.mxu0 0
      %1078 = vmatpush1.bf16.msra.mxu0 0
      %1079 = vmatprep.subr.bf16.mxu0 0
      %1080 = vmatpush1.bf16.msra.mxu0 0
      %1081 = vmatprep.subr.bf16.mxu0 0
      %1082 = vmatpush1.bf16.msra.mxu0 0
      %1083 = vmatprep.subr.bf16.mxu0 0
      %1084 = vmatpush1.bf16.msra.mxu0 0
      %1085 = vmatprep.subr.bf16.mxu0 0
      %1086 = vmatpush1.bf16.msra.mxu0 0
      %1087 = vmatprep.subr.bf16.mxu0 0
      %1088 = vmatpush1.bf16.msra.mxu0 0
      %1089 = vmatprep.mubr.bf16.mxu0 0
      %1090 = vmatmul.mubr.bf16.gmra.mrb[0].mxu0 %v903
      %v1091 = vpop.f32.mrb[0].mxu0
      %v1092 = vadd.f32 %v689, %v1091
      %v1093 = vpop.f32.mrb[0].mxu0
      %v1094 = vpop.f32.mrb[0].mxu0
      %v1095 = vadd.f32 %v689, %v1094
      %v1096 = vpop.f32.mrb[0].mxu0
      %1097 = vmatprep.mubr.bf16.mxu0 0
      %1098 = vmatmul.mubr.bf16.gmra.mrb[0].mxu0 %v904
      %v1099 = vpop.f32.mrb[0].mxu0
      %v1100 = vadd.f32 %v689, %v1099
      %v1101 = vpop.f32.mrb[0].mxu0
      %v1102 = vpop.f32.mrb[0].mxu0
      %v1103 = vadd.f32 %v689, %v1102
      %v1104 = vpop.f32.mrb[0].mxu0
      %1105 = vmatprep.mubr.bf16.mxu0 0
      %1106 = vmatmul.mubr.bf16.gmra.mrb[0].mxu0 %v905
      %v1107 = vpop.f32.mrb[0].mxu0
      %v1108 = vadd.f32 %v689, %v1107
      %v1109 = vpop.f32.mrb[0].mxu0
      %v1110 = vpop.f32.mrb[0].mxu0
      %v1111 = vadd.f32 %v689, %v1110
      %v1112 = vpop.f32.mrb[0].mxu0
      %1113 = vmatprep.mubr.bf16.mxu0 0
      %1114 = vmatmul.mubr.bf16.gmra.mrb[0].mxu0 %v906
      %v1115 = vpop.f32.mrb[0].mxu0
      %v1116 = vadd.f32 %v689, %v1115
      %v1117 = vpop.f32.mrb[0].mxu0
      %v1118 = vpop.f32.mrb[0].mxu0
      %v1119 = vadd.f32 %v689, %v1118
      %v1120 = vpop.f32.mrb[0].mxu0
      %1121 = vmatprep.mubr.bf16.mxu0 0
      %1122 = vmatmul.mubr.bf16.gmra.mrb[0].mxu0 %v907
      %v1123 = vpop.f32.mrb[0].mxu0
      %v1124 = vadd.f32 %v689, %v1123
      %v1125 = vpop.f32.mrb[0].mxu0
      %v1126 = vpop.f32.mrb[0].mxu0
      %v1127 = vadd.f32 %v689, %v1126
      %v1128 = vpop.f32.mrb[0].mxu0
      %1129 = vmatprep.mubr.bf16.mxu0 0
      %1130 = vmatmul.mubr.bf16.gmra.mrb[0].mxu0 %v908
      %v1131 = vpop.f32.mrb[0].mxu0
      %v1132 = vadd.f32 %v689, %v1131
      %v1133 = vpop.f32.mrb[0].mxu0
      %v1134 = vpop.f32.mrb[0].mxu0
      %v1135 = vadd.f32 %v689, %v1134
      %v1136 = vpop.f32.mrb[0].mxu0
      %1137 = vmatprep.mubr.bf16.mxu0 0
      %1138 = vmatmul.mubr.bf16.gmra.mrb[0].mxu0 %v909
      %v1139 = vpop.f32.mrb[0].mxu0
      %v1140 = vadd.f32 %v689, %v1139
      %v1141 = vpop.f32.mrb[0].mxu0
      %v1142 = vpop.f32.mrb[0].mxu0
      %v1143 = vadd.f32 %v689, %v1142
      %v1144 = vpop.f32.mrb[0].mxu0
      %1145 = vmatprep.mubr.bf16.mxu0 0
      %1146 = vmatmul.mubr.bf16.gmra.mrb[0].mxu0 %v910
      %v1147 = vpop.f32.mrb[0].mxu0
      %v1148 = vadd.f32 %v689, %v1147
      %v1149 = vpop.f32.mrb[0].mxu0
      %v1150 = vpop.f32.mrb[0].mxu0
      %v1151 = vadd.f32 %v689, %v1150
      %v1152 = vpop.f32.mrb[0].mxu0
      %1153 = vmatprep.mubr.bf16.mxu0 0
      %1154 = vmatmul.mubr.bf16.gmra.mrb[0].mxu0 %v911
      %v1155 = vpop.f32.mrb[0].mxu0
      %v1156 = vadd.f32 %v689, %v1155
      %v1157 = vpop.f32.mrb[0].mxu0
      %v1158 = vpop.f32.mrb[0].mxu0
      %v1159 = vadd.f32 %v689, %v1158
      %v1160 = vpop.f32.mrb[0].mxu0
      %1161 = vmatprep.mubr.bf16.mxu0 0
      %1162 = vmatmul.mubr.bf16.gmra.mrb[0].mxu0 %v912
      %v1163 = vpop.f32.mrb[0].mxu0
      %v1164 = vadd.f32 %v689, %v1163
      %v1165 = vpop.f32.mrb[0].mxu0
      %v1166 = vpop.f32.mrb[0].mxu0
      %v1167 = vadd.f32 %v689, %v1166
      %v1168 = vpop.f32.mrb[0].mxu0
      %1169 = vmatprep.mubr.bf16.mxu0 0
      %1170 = vmatmul.mubr.bf16.gmra.mrb[0].mxu0 %v913
      %v1171 = vpop.f32.mrb[0].mxu0
      %v1172 = vadd.f32 %v689, %v1171
      %v1173 = vpop.f32.mrb[0].mxu0
      %v1174 = vpop.f32.mrb[0].mxu0
      %v1175 = vadd.f32 %v689, %v1174
      %v1176 = vpop.f32.mrb[0].mxu0
      %1177 = vmatprep.mubr.bf16.mxu0 0
      %1178 = vmatmul.mubr.bf16.gmra.mrb[0].mxu0 %v914
      %v1179 = vpop.f32.mrb[0].mxu0
      %v1180 = vadd.f32 %v689, %v1179
      %v1181 = vpop.f32.mrb[0].mxu0
      %v1182 = vpop.f32.mrb[0].mxu0
      %v1183 = vadd.f32 %v689, %v1182
      %v1184 = vpop.f32.mrb[0].mxu0
      %1185 = vmatprep.mubr.bf16.mxu0 0
      %1186 = vmatmul.mubr.bf16.gmra.mrb[0].mxu0 %v915
      %v1187 = vpop.f32.mrb[0].mxu0
      %v1188 = vadd.f32 %v689, %v1187
      %v1189 = vpop.f32.mrb[0].mxu0
      %v1190 = vpop.f32.mrb[0].mxu0
      %v1191 = vadd.f32 %v689, %v1190
      %v1192 = vpop.f32.mrb[0].mxu0
      %1193 = vmatprep.mubr.bf16.mxu0 0
      %1194 = vmatmul.mubr.bf16.gmra.mrb[0].mxu0 %v916
      %v1195 = vpop.f32.mrb[0].mxu0
      %v1196 = vadd.f32 %v689, %v1195
      %v1197 = vpop.f32.mrb[0].mxu0
      %v1198 = vpop.f32.mrb[0].mxu0
      %v1199 = vadd.f32 %v689, %v1198
      %v1200 = vpop.f32.mrb[0].mxu0
      %1201 = vmatprep.mubr.bf16.mxu0 0
      %1202 = vmatmul.mubr.bf16.gmra.mrb[0].mxu0 %v917
      %v1203 = vpop.f32.mrb[0].mxu0
      %v1204 = vadd.f32 %v689, %v1203
      %v1205 = vpop.f32.mrb[0].mxu0
      %v1206 = vpop.f32.mrb[0].mxu0
      %v1207 = vadd.f32 %v689, %v1206
      %v1208 = vpop.f32.mrb[0].mxu0
      %1209 = vmatprep.mubr.bf16.mxu0 0
      %1210 = vmatmul.mubr.bf16.gmra.mrb[0].mxu0 %v918
      %v1211 = vpop.f32.mrb[0].mxu0
      %v1212 = vadd.f32 %v689, %v1211
      %v1213 = vpop.f32.mrb[0].mxu0
      %v1214 = vpop.f32.mrb[0].mxu0
      %v1215 = vadd.f32 %v689, %v1214
      %v1216 = vpop.f32.mrb[0].mxu0
      %1217 = vmatprep.mubr.bf16.mxu0 0
      %1218 = vmatmul.mubr.bf16.gmra.mrb[0].mxu0 %v919
      %v1219 = vpop.f32.mrb[0].mxu0
      %v1220 = vadd.f32 %v689, %v1219
      %v1221 = vpop.f32.mrb[0].mxu0
      %v1222 = vpop.f32.mrb[0].mxu0
      %v1223 = vadd.f32 %v689, %v1222
      %v1224 = vpop.f32.mrb[0].mxu0
      %1225 = vmatprep.mubr.bf16.mxu0 0
      %1226 = vmatmul.mubr.bf16.gmra.mrb[0].mxu0 %v920
      %v1227 = vpop.f32.mrb[0].mxu0
      %v1228 = vadd.f32 %v689, %v1227
      %v1229 = vpop.f32.mrb[0].mxu0
      %v1230 = vpop.f32.mrb[0].mxu0
      %v1231 = vadd.f32 %v689, %v1230
      %v1232 = vpop.f32.mrb[0].mxu0
      %1233 = vmatprep.mubr.bf16.mxu0 0
      %1234 = vmatmul.mubr.bf16.gmra.mrb[0].mxu0 %v921
      %v1235 = vpop.f32.mrb[0].mxu0
      %v1236 = vadd.f32 %v689, %v1235
      %v1237 = vpop.f32.mrb[0].mxu0
      %v1238 = vpop.f32.mrb[0].mxu0
      %v1239 = vadd.f32 %v689, %v1238
      %v1240 = vpop.f32.mrb[0].mxu0
      %1241 = vmatprep.mubr.bf16.mxu0 0
      %1242 = vmatmul.mubr.bf16.gmra.mrb[0].mxu0 %v922
      %v1243 = vpop.f32.mrb[0].mxu0
      %v1244 = vadd.f32 %v689, %v1243
      %v1245 = vpop.f32.mrb[0].mxu0
      %v1246 = vpop.f32.mrb[0].mxu0
      %v1247 = vadd.f32 %v689, %v1246
      %v1248 = vpop.f32.mrb[0].mxu0
      %1249 = vmatprep.mubr.bf16.mxu0 0
      %1250 = vmatmul.mubr.bf16.gmra.mrb[0].mxu0 %v923
      %v1251 = vpop.f32.mrb[0].mxu0
      %v1252 = vadd.f32 %v689, %v1251
      %v1253 = vpop.f32.mrb[0].mxu0
      %v1254 = vpop.f32.mrb[0].mxu0
      %v1255 = vadd.f32 %v689, %v1254
      %v1256 = vpop.f32.mrb[0].mxu0
      %1257 = vmatprep.mubr.bf16.mxu0 0
      %1258 = vmatmul.mubr.bf16.gmra.mrb[0].mxu0 %v924
      %v1259 = vpop.f32.mrb[0].mxu0
      %v1260 = vadd.f32 %v689, %v1259
      %v1261 = vpop.f32.mrb[0].mxu0
      %v1262 = vpop.f32.mrb[0].mxu0
      %v1263 = vadd.f32 %v689, %v1262
      %v1264 = vpop.f32.mrb[0].mxu0
      %1265 = vmatprep.mubr.bf16.mxu0 0
      %1266 = vmatmul.mubr.bf16.gmra.mrb[0].mxu0 %v925
      %v1267 = vpop.f32.mrb[0].mxu0
      %v1268 = vadd.f32 %v689, %v1267
      %v1269 = vpop.f32.mrb[0].mxu0
      %v1270 = vpop.f32.mrb[0].mxu0
      %v1271 = vadd.f32 %v689, %v1270
      %v1272 = vpop.f32.mrb[0].mxu0
      %1273 = vmatprep.mubr.bf16.mxu0 0
      %1274 = vmatmul.mubr.bf16.gmra.mrb[0].mxu0 %v926
      %v1275 = vpop.f32.mrb[0].mxu0
      %v1276 = vadd.f32 %v689, %v1275
      %v1277 = vpop.f32.mrb[0].mxu0
      %v1278 = vpop.f32.mrb[0].mxu0
      %v1279 = vadd.f32 %v689, %v1278
      %v1280 = vpop.f32.mrb[0].mxu0
      %1281 = vmatprep.mubr.bf16.mxu0 0
      %1282 = vmatmul.mubr.bf16.gmra.mrb[0].mxu0 %v927
      %v1283 = vpop.f32.mrb[0].mxu0
      %v1284 = vadd.f32 %v689, %v1283
      %v1285 = vpop.f32.mrb[0].mxu0
      %v1286 = vpop.f32.mrb[0].mxu0
      %v1287 = vadd.f32 %v689, %v1286
      %v1288 = vpop.f32.mrb[0].mxu0
      %1289 = vmatprep.mubr.bf16.mxu0 0
      %1290 = vmatmul.mubr.bf16.gmra.mrb[0].mxu0 %v928
      %v1291 = vpop.f32.mrb[0].mxu0
      %v1292 = vadd.f32 %v689, %v1291
      %v1293 = vpop.f32.mrb[0].mxu0
      %v1294 = vpop.f32.mrb[0].mxu0
      %v1295 = vadd.f32 %v689, %v1294
      %v1296 = vpop.f32.mrb[0].mxu0
      %1297 = vmatprep.mubr.bf16.mxu0 0
      %1298 = vmatmul.mubr.bf16.gmra.mrb[0].mxu0 %v929
      %v1299 = vpop.f32.mrb[0].mxu0
      %v1300 = vadd.f32 %v689, %v1299
      %v1301 = vpop.f32.mrb[0].mxu0
      %v1302 = vpop.f32.mrb[0].mxu0
      %v1303 = vadd.f32 %v689, %v1302
      %v1304 = vpop.f32.mrb[0].mxu0
      %1305 = vmatprep.mubr.bf16.mxu0 0
      %1306 = vmatmul.mubr.bf16.gmra.mrb[0].mxu0 %v930
      %v1307 = vpop.f32.mrb[0].mxu0
      %v1308 = vadd.f32 %v689, %v1307
      %v1309 = vpop.f32.mrb[0].mxu0
      %v1310 = vpop.f32.mrb[0].mxu0
      %v1311 = vadd.f32 %v689, %v1310
      %v1312 = vpop.f32.mrb[0].mxu0
      %1313 = vmatprep.mubr.bf16.mxu0 0
      %1314 = vmatmul.mubr.bf16.gmra.mrb[0].mxu0 %v931
      %v1315 = vpop.f32.mrb[0].mxu0
      %v1316 = vadd.f32 %v689, %v1315
      %v1317 = vpop.f32.mrb[0].mxu0
      %v1318 = vpop.f32.mrb[0].mxu0
      %v1319 = vadd.f32 %v689, %v1318
      %v1320 = vpop.f32.mrb[0].mxu0
      %1321 = vmatprep.mubr.bf16.mxu0 0
      %1322 = vmatmul.mubr.bf16.gmra.mrb[0].mxu0 %v932
      %v1323 = vpop.f32.mrb[0].mxu0
      %v1324 = vadd.f32 %v689, %v1323
      %v1325 = vpop.f32.mrb[0].mxu0
      %v1326 = vpop.f32.mrb[0].mxu0
      %v1327 = vadd.f32 %v689, %v1326
      %v1328 = vpop.f32.mrb[0].mxu0
      %1329 = vmatprep.mubr.bf16.mxu0 0
      %1330 = vmatmul.mubr.bf16.gmra.mrb[0].mxu0 %v933
      %v1331 = vpop.f32.mrb[0].mxu0
      %v1332 = vadd.f32 %v689, %v1331
      %v1333 = vpop.f32.mrb[0].mxu0
      %v1334 = vpop.f32.mrb[0].mxu0
      %v1335 = vadd.f32 %v689, %v1334
      %v1336 = vpop.f32.mrb[0].mxu0
      %1337 = vmatprep.mubr.bf16.mxu0 0
      %1338 = vmatmul.mubr.bf16.gmra.mrb[0].mxu0 %v934
      %v1339 = vpop.f32.mrb[0].mxu0
      %v1340 = vadd.f32 %v689, %v1339
      %v1341 = vpop.f32.mrb[0].mxu0
      %v1342 = vpop.f32.mrb[0].mxu0
      %v1343 = vadd.f32 %v689, %v1342
      %v1344 = vpop.f32.mrb[0].mxu0
      %1345 = vmatprep.mubr.bf16.mxu0 0
      %1346 = vmatmul.mubr.bf16.gmra.mrb[0].mxu0 %v935
      %v1347 = vpop.f32.mrb[0].mxu0
      %v1348 = vadd.f32 %v689, %v1347
      %v1349 = vpop.f32.mrb[0].mxu0
      %v1350 = vpop.f32.mrb[0].mxu0
      %v1351 = vadd.f32 %v689, %v1350
      %v1352 = vpop.f32.mrb[0].mxu0
      %1353 = vmatprep.mubr.bf16.mxu0 0
      %1354 = vmatmul.mubr.bf16.gmra.mrb[0].mxu0 %v936
      %v1355 = vpop.f32.mrb[0].mxu0
      %v1356 = vadd.f32 %v689, %v1355
      %v1357 = vpop.f32.mrb[0].mxu0
      %v1358 = vpop.f32.mrb[0].mxu0
      %v1359 = vadd.f32 %v689, %v1358
      %v1360 = vpop.f32.mrb[0].mxu0
      %1361 = vmatprep.mubr.bf16.mxu0 0
      %1362 = vmatmul.mubr.bf16.gmra.mrb[0].mxu0 %v937
      %v1363 = vpop.f32.mrb[0].mxu0
      %v1364 = vadd.f32 %v689, %v1363
      %v1365 = vpop.f32.mrb[0].mxu0
      %v1366 = vpop.f32.mrb[0].mxu0
      %v1367 = vadd.f32 %v689, %v1366
      %v1368 = vpop.f32.mrb[0].mxu0
      %1369 = vmatprep.mubr.bf16.mxu0 0
      %1370 = vmatmul.mubr.bf16.gmra.mrb[0].mxu0 %v938
      %v1371 = vpop.f32.mrb[0].mxu0
      %v1372 = vadd.f32 %v689, %v1371
      %v1373 = vpop.f32.mrb[0].mxu0
      %v1374 = vpop.f32.mrb[0].mxu0
      %v1375 = vadd.f32 %v689, %v1374
      %v1376 = vpop.f32.mrb[0].mxu0
      %1377 = vmatprep.mubr.bf16.mxu0 0
      %1378 = vmatmul.mubr.bf16.gmra.mrb[0].mxu0 %v939
      %v1379 = vpop.f32.mrb[0].mxu0
      %v1380 = vadd.f32 %v689, %v1379
      %v1381 = vpop.f32.mrb[0].mxu0
      %v1382 = vpop.f32.mrb[0].mxu0
      %v1383 = vadd.f32 %v689, %v1382
      %v1384 = vpop.f32.mrb[0].mxu0
      %1385 = vmatprep.mubr.bf16.mxu0 0
      %1386 = vmatmul.mubr.bf16.gmra.mrb[0].mxu0 %v940
      %v1387 = vpop.f32.mrb[0].mxu0
      %v1388 = vadd.f32 %v689, %v1387
      %v1389 = vpop.f32.mrb[0].mxu0
      %v1390 = vpop.f32.mrb[0].mxu0
      %v1391 = vadd.f32 %v689, %v1390
      %v1392 = vpop.f32.mrb[0].mxu0
      %1393 = vmatprep.mubr.bf16.mxu0 0
      %1394 = vmatmul.mubr.bf16.gmra.mrb[0].mxu0 %v941
      %v1395 = vpop.f32.mrb[0].mxu0
      %v1396 = vadd.f32 %v689, %v1395
      %v1397 = vpop.f32.mrb[0].mxu0
      %v1398 = vpop.f32.mrb[0].mxu0
      %v1399 = vadd.f32 %v689, %v1398
      %v1400 = vpop.f32.mrb[0].mxu0
      %1401 = vmatprep.mubr.bf16.mxu0 0
      %1402 = vmatmul.mubr.bf16.gmra.mrb[0].mxu0 %v942
      %v1403 = vpop.f32.mrb[0].mxu0
      %v1404 = vadd.f32 %v689, %v1403
      %v1405 = vpop.f32.mrb[0].mxu0
      %v1406 = vpop.f32.mrb[0].mxu0
      %v1407 = vadd.f32 %v689, %v1406
      %v1408 = vpop.f32.mrb[0].mxu0
      %1409 = vmatprep.mubr.bf16.mxu0 0
      %1410 = vmatmul.mubr.bf16.gmra.mrb[0].mxu0 %v943
      %v1411 = vpop.f32.mrb[0].mxu0
      %v1412 = vadd.f32 %v689, %v1411
      %v1413 = vpop.f32.mrb[0].mxu0
      %v1414 = vpop.f32.mrb[0].mxu0
      %v1415 = vadd.f32 %v689, %v1414
      %v1416 = vpop.f32.mrb[0].mxu0
      %1417 = vmatprep.mubr.bf16.mxu0 0
      %1418 = vmatmul.mubr.bf16.gmra.mrb[0].mxu0 %v944
      %v1419 = vpop.f32.mrb[0].mxu0
      %v1420 = vadd.f32 %v689, %v1419
      %v1421 = vpop.f32.mrb[0].mxu0
      %v1422 = vpop.f32.mrb[0].mxu0
      %v1423 = vadd.f32 %v689, %v1422
      %v1424 = vpop.f32.mrb[0].mxu0
      %1425 = vmatprep.mubr.bf16.mxu0 0
      %1426 = vmatmul.mubr.bf16.gmra.mrb[0].mxu0 %v945
      %v1427 = vpop.f32.mrb[0].mxu0
      %v1428 = vadd.f32 %v689, %v1427
      %v1429 = vpop.f32.mrb[0].mxu0
      %v1430 = vpop.f32.mrb[0].mxu0
      %v1431 = vadd.f32 %v689, %v1430
      %v1432 = vpop.f32.mrb[0].mxu0
      %1433 = vmatprep.mubr.bf16.mxu0 0
      %1434 = vmatmul.mubr.bf16.gmra.mrb[0].mxu0 %v946
      %v1435 = vpop.f32.mrb[0].mxu0
      %v1436 = vadd.f32 %v689, %v1435
      %v1437 = vpop.f32.mrb[0].mxu0
      %v1438 = vpop.f32.mrb[0].mxu0
      %v1439 = vadd.f32 %v689, %v1438
      %v1440 = vpop.f32.mrb[0].mxu0
      %1441 = vmatprep.mubr.bf16.mxu0 0
      %1442 = vmatmul.mubr.bf16.gmra.mrb[0].mxu0 %v947
      %v1443 = vpop.f32.mrb[0].mxu0
      %v1444 = vadd.f32 %v689, %v1443
      %v1445 = vpop.f32.mrb[0].mxu0
      %v1446 = vpop.f32.mrb[0].mxu0
      %v1447 = vadd.f32 %v689, %v1446
      %v1448 = vpop.f32.mrb[0].mxu0
      %1449 = vmatprep.mubr.bf16.mxu0 0
      %1450 = vmatmul.mubr.bf16.gmra.mrb[0].mxu0 %v948
      %v1451 = vpop.f32.mrb[0].mxu0
      %v1452 = vadd.f32 %v689, %v1451
      %v1453 = vpop.f32.mrb[0].mxu0
      %v1454 = vpop.f32.mrb[0].mxu0
      %v1455 = vadd.f32 %v689, %v1454
      %v1456 = vpop.f32.mrb[0].mxu0
      %1457 = vmatprep.mubr.bf16.mxu0 0
      %1458 = vmatmul.mubr.bf16.gmra.mrb[0].mxu0 %v949
      %v1459 = vpop.f32.mrb[0].mxu0
      %v1460 = vadd.f32 %v689, %v1459
      %v1461 = vpop.f32.mrb[0].mxu0
      %v1462 = vpop.f32.mrb[0].mxu0
      %v1463 = vadd.f32 %v689, %v1462
      %v1464 = vpop.f32.mrb[0].mxu0
      %1465 = vmatprep.mubr.bf16.mxu0 0
      %1466 = vmatmul.mubr.bf16.gmra.mrb[0].mxu0 %v950
      %v1467 = vpop.f32.mrb[0].mxu0
      %v1468 = vadd.f32 %v689, %v1467
      %v1469 = vpop.f32.mrb[0].mxu0
      %v1470 = vpop.f32.mrb[0].mxu0
      %v1471 = vadd.f32 %v689, %v1470
      %v1472 = vpop.f32.mrb[0].mxu0
      %1473 = vmatprep.mubr.bf16.mxu0 0
      %1474 = vmatmul.mubr.bf16.gmra.mrb[0].mxu0 %v951
      %v1475 = vpop.f32.mrb[0].mxu0
      %v1476 = vadd.f32 %v689, %v1475
      %v1477 = vpop.f32.mrb[0].mxu0
      %v1478 = vpop.f32.mrb[0].mxu0
      %v1479 = vadd.f32 %v689, %v1478
      %v1480 = vpop.f32.mrb[0].mxu0
      %1481 = vmatprep.mubr.bf16.mxu0 0
      %1482 = vmatmul.mubr.bf16.gmra.mrb[0].mxu0 %v952
      %v1483 = vpop.f32.mrb[0].mxu0
      %v1484 = vadd.f32 %v689, %v1483
      %v1485 = vpop.f32.mrb[0].mxu0
      %v1486 = vpop.f32.mrb[0].mxu0
      %v1487 = vadd.f32 %v689, %v1486
      %v1488 = vpop.f32.mrb[0].mxu0
      %1489 = vmatprep.mubr.bf16.mxu0 0
      %1490 = vmatmul.mubr.bf16.gmra.mrb[0].mxu0 %v953
      %v1491 = vpop.f32.mrb[0].mxu0
      %v1492 = vadd.f32 %v689, %v1491
      %v1493 = vpop.f32.mrb[0].mxu0
      %v1494 = vpop.f32.mrb[0].mxu0
      %v1495 = vadd.f32 %v689, %v1494
      %v1496 = vpop.f32.mrb[0].mxu0
      %1497 = vmatprep.mubr.bf16.mxu0 0
      %1498 = vmatmul.mubr.bf16.gmra.mrb[0].mxu0 %v954
      %v1499 = vpop.f32.mrb[0].mxu0
      %v1500 = vadd.f32 %v689, %v1499
      %v1501 = vpop.f32.mrb[0].mxu0
      %v1502 = vpop.f32.mrb[0].mxu0
      %v1503 = vadd.f32 %v689, %v1502
      %v1504 = vpop.f32.mrb[0].mxu0
      %1505 = vmatprep.mubr.bf16.mxu0 0
      %1506 = vmatmul.mubr.bf16.gmra.mrb[0].mxu0 %v955
      %v1507 = vpop.f32.mrb[0].mxu0
      %v1508 = vadd.f32 %v689, %v1507
      %v1509 = vpop.f32.mrb[0].mxu0
      %v1510 = vpop.f32.mrb[0].mxu0
      %v1511 = vadd.f32 %v689, %v1510
      %v1512 = vpop.f32.mrb[0].mxu0
      %1513 = vdwg.mxu0
      %v1514 = vmax.f32 %v1092, 0.0
      %v1515 = vmax.f32 %v1095, 0.0
      %v1516 = vmax.f32 %v1100, 0.0
      %v1517 = vmax.f32 %v1103, 0.0
      %v1518 = vmax.f32 %v1108, 0.0
      %v1519 = vmax.f32 %v1111, 0.0
      %v1520 = vmax.f32 %v1116, 0.0
      %v1521 = vmax.f32 %v1119, 0.0
      %v1522 = vmax.f32 %v1124, 0.0
      %v1523 = vmax.f32 %v1127, 0.0
      %v1524 = vmax.f32 %v1132, 0.0
      %v1525 = vmax.f32 %v1135, 0.0
      %v1526 = vmax.f32 %v1140, 0.0
      %v1527 = vmax.f32 %v1143, 0.0
      %v1528 = vmax.f32 %v1148, 0.0
      %v1529 = vmax.f32 %v1151, 0.0
      %v1530 = vmax.f32 %v1156, 0.0
      %v1531 = vmax.f32 %v1159, 0.0
      %v1532 = vmax.f32 %v1164, 0.0
      %v1533 = vmax.f32 %v1167, 0.0
      %v1534 = vmax.f32 %v1172, 0.0
      %v1535 = vmax.f32 %v1175, 0.0
      %v1536 = vmax.f32 %v1180, 0.0
      %v1537 = vmax.f32 %v1183, 0.0
      %v1538 = vmax.f32 %v1188, 0.0
      %v1539 = vmax.f32 %v1191, 0.0
      %v1540 = vmax.f32 %v1196, 0.0
      %v1541 = vmax.f32 %v1199, 0.0
      %v1542 = vmax.f32 %v1204, 0.0
      %v1543 = vmax.f32 %v1207, 0.0
      %v1544 = vmax.f32 %v1212, 0.0
      %v1545 = vmax.f32 %v1215, 0.0
      %v1546 = vmax.f32 %v1220, 0.0
      %v1547 = vmax.f32 %v1223, 0.0
      %v1548 = vmax.f32 %v1228, 0.0
      %v1549 = vmax.f32 %v1231, 0.0
      %v1550 = vmax.f32 %v1236, 0.0
      %v1551 = vmax.f32 %v1239, 0.0
      %v1552 = vmax.f32 %v1244, 0.0
      %v1553 = vmax.f32 %v1247, 0.0
      %v1554 = vmax.f32 %v1252, 0.0
      %v1555 = vmax.f32 %v1255, 0.0
      %v1556 = vmax.f32 %v1260, 0.0
      %v1557 = vmax.f32 %v1263, 0.0
      %v1558 = vmax.f32 %v1268, 0.0
      %v1559 = vmax.f32 %v1271, 0.0
      %v1560 = vmax.f32 %v1276, 0.0
      %v1561 = vmax.f32 %v1279, 0.0
      %v1562 = vmax.f32 %v1284, 0.0
      %v1563 = vmax.f32 %v1287, 0.0
      %v1564 = vmax.f32 %v1292, 0.0
      %v1565 = vmax.f32 %v1295, 0.0
      %v1566 = vmax.f32 %v1300, 0.0
      %v1567 = vmax.f32 %v1303, 0.0
      %v1568 = vmax.f32 %v1308, 0.0
      %v1569 = vmax.f32 %v1311, 0.0
      %v1570 = vmax.f32 %v1316, 0.0
      %v1571 = vmax.f32 %v1319, 0.0
      %v1572 = vmax.f32 %v1324, 0.0
      %v1573 = vmax.f32 %v1327, 0.0
      %v1574 = vmax.f32 %v1332, 0.0
      %v1575 = vmax.f32 %v1335, 0.0
      %v1576 = vmax.f32 %v1340, 0.0
      %v1577 = vmax.f32 %v1343, 0.0
      %v1578 = vmax.f32 %v1348, 0.0
      %v1579 = vmax.f32 %v1351, 0.0
      %v1580 = vmax.f32 %v1356, 0.0
      %v1581 = vmax.f32 %v1359, 0.0
      %v1582 = vmax.f32 %v1364, 0.0
      %v1583 = vmax.f32 %v1367, 0.0
      %v1584 = vmax.f32 %v1372, 0.0
      %v1585 = vmax.f32 %v1375, 0.0
      %v1586 = vmax.f32 %v1380, 0.0
      %v1587 = vmax.f32 %v1383, 0.0
      %v1588 = vmax.f32 %v1388, 0.0
      %v1589 = vmax.f32 %v1391, 0.0
      %v1590 = vmax.f32 %v1396, 0.0
      %v1591 = vmax.f32 %v1399, 0.0
      %v1592 = vmax.f32 %v1404, 0.0
      %v1593 = vmax.f32 %v1407, 0.0
      %v1594 = vmax.f32 %v1412, 0.0
      %v1595 = vmax.f32 %v1415, 0.0
      %v1596 = vmax.f32 %v1420, 0.0
      %v1597 = vmax.f32 %v1423, 0.0
      %v1598 = vmax.f32 %v1428, 0.0
      %v1599 = vmax.f32 %v1431, 0.0
      %v1600 = vmax.f32 %v1436, 0.0
      %v1601 = vmax.f32 %v1439, 0.0
      %v1602 = vmax.f32 %v1444, 0.0
      %v1603 = vmax.f32 %v1447, 0.0
      %v1604 = vmax.f32 %v1452, 0.0
      %v1605 = vmax.f32 %v1455, 0.0
      %v1606 = vmax.f32 %v1460, 0.0
      %v1607 = vmax.f32 %v1463, 0.0
      %v1608 = vmax.f32 %v1468, 0.0
      %v1609 = vmax.f32 %v1471, 0.0
      %v1610 = vmax.f32 %v1476, 0.0
      %v1611 = vmax.f32 %v1479, 0.0
      %v1612 = vmax.f32 %v1484, 0.0
      %v1613 = vmax.f32 %v1487, 0.0
      %v1614 = vmax.f32 %v1492, 0.0
      %v1615 = vmax.f32 %v1495, 0.0
      %v1616 = vmax.f32 %v1500, 0.0
      %v1617 = vmax.f32 %v1503, 0.0
      %v1618 = vmax.f32 %v1508, 0.0
      %v1619 = vmax.f32 %v1511, 0.0
      %vm1625 = vcmask 1042432
      %v1626 = vrot.slane %v1517, 5
      %v1627 = vrot.slane %v1518, 5
      %v1628 = vsel %vm1625, %v1626, %v1627
      %v1629 = vrot.slane %v1519, 5
      %v1630 = vsel %vm1625, %v1627, %v1629
      %v1631 = vrot.slane %v1520, 5
      %v1632 = vsel %vm1625, %v1629, %v1631
      %v1633 = vrot.slane %v1521, 5
      %v1634 = vsel %vm1625, %v1631, %v1633
      %vm1642 = vcmask 1045504
      %v1643 = vrot.slane %v1521, 2
      %v1644 = vrot.slane %v1522, 2
      %v1645 = vsel %vm1642, %v1643, %v1644
      %v1646 = vrot.slane %v1523, 2
      %v1647 = vsel %vm1642, %v1644, %v1646
      %v1648 = vrot.slane %v1524, 2
      %v1649 = vsel %vm1642, %v1646, %v1648
      %vm1658 = vcmask 1040384
      %v1659 = vrot.slane %v1524, 7
      %v1660 = vrot.slane %v1525, 7
      %v1661 = vsel %vm1658, %v1659, %v1660
      %v1662 = vrot.slane %v1526, 7
      %v1663 = vsel %vm1658, %v1660, %v1662
      %v1664 = vrot.slane %v1527, 7
      %v1665 = vsel %vm1658, %v1662, %v1664
      %v1666 = vrot.slane %v1528, 7
      %v1667 = vsel %vm1658, %v1664, %v1666
      %vm1676 = vcmask 1043456
      %v1677 = vrot.slane %v1528, 4
      %v1678 = vrot.slane %v1529, 4
      %v1679 = vsel %vm1676, %v1677, %v1678
      %v1680 = vrot.slane %v1530, 4
      %v1681 = vsel %vm1676, %v1678, %v1680
      %v1682 = vrot.slane %v1531, 4
      %v1683 = vsel %vm1676, %v1680, %v1682
      %v1684 = vrot.slane %v1532, 4
      %v1685 = vsel %vm1676, %v1682, %v1684
      %vm1693 = vcmask 1046528
      %v1694 = vrot.slane %v1532, 1
      %v1695 = vrot.slane %v1533, 1
      %v1696 = vsel %vm1693, %v1694, %v1695
      %v1697 = vrot.slane %v1534, 1
      %v1698 = vsel %vm1693, %v1695, %v1697
      %v1699 = vrot.slane %v1535, 1
      %v1700 = vsel %vm1693, %v1697, %v1699
      %vm1709 = vcmask 1041408
      %v1710 = vrot.slane %v1535, 6
      %v1711 = vrot.slane %v1536, 6
      %v1712 = vsel %vm1709, %v1710, %v1711
      %v1713 = vrot.slane %v1537, 6
      %v1714 = vsel %vm1709, %v1711, %v1713
      %v1715 = vrot.slane %v1538, 6
      %v1716 = vsel %vm1709, %v1713, %v1715
      %v1717 = vrot.slane %v1539, 6
      %v1718 = vsel %vm1709, %v1715, %v1717
      %vm1726 = vcmask 1044480
      %v1727 = vrot.slane %v1539, 3
      %v1728 = vrot.slane %v1540, 3
      %v1729 = vsel %vm1726, %v1727, %v1728
      %v1730 = vrot.slane %v1541, 3
      %v1731 = vsel %vm1726, %v1728, %v1730
      %v1732 = vrot.slane %v1542, 3
      %v1733 = vsel %vm1726, %v1730, %v1732
      %v1743 = vrot.slane %v1546, 5
      %v1744 = vrot.slane %v1547, 5
      %v1745 = vsel %vm1625, %v1743, %v1744
      %v1746 = vrot.slane %v1548, 5
      %v1747 = vsel %vm1625, %v1744, %v1746
      %v1748 = vrot.slane %v1549, 5
      %v1749 = vsel %vm1625, %v1746, %v1748
      %v1750 = vrot.slane %v1550, 5
      %v1751 = vsel %vm1625, %v1748, %v1750
      %v1759 = vrot.slane %v1550, 2
      %v1760 = vrot.slane %v1551, 2
      %v1761 = vsel %vm1642, %v1759, %v1760
      %v1762 = vrot.slane %v1552, 2
      %v1763 = vsel %vm1642, %v1760, %v1762
      %v1764 = vrot.slane %v1553, 2
      %v1765 = vsel %vm1642, %v1762, %v1764
      %v1774 = vrot.slane %v1553, 7
      %v1775 = vrot.slane %v1554, 7
      %v1776 = vsel %vm1658, %v1774, %v1775
      %v1777 = vrot.slane %v1555, 7
      %v1778 = vsel %vm1658, %v1775, %v1777
      %v1779 = vrot.slane %v1556, 7
      %v1780 = vsel %vm1658, %v1777, %v1779
      %v1781 = vrot.slane %v1557, 7
      %v1782 = vsel %vm1658, %v1779, %v1781
      %v1791 = vrot.slane %v1557, 4
      %v1792 = vrot.slane %v1558, 4
      %v1793 = vsel %vm1676, %v1791, %v1792
      %v1794 = vrot.slane %v1559, 4
      %v1795 = vsel %vm1676, %v1792, %v1794
      %v1796 = vrot.slane %v1560, 4
      %v1797 = vsel %vm1676, %v1794, %v1796
      %v1798 = vrot.slane %v1561, 4
      %v1799 = vsel %vm1676, %v1796, %v1798
      %v1807 = vrot.slane %v1561, 1
      %v1808 = vrot.slane %v1562, 1
      %v1809 = vsel %vm1693, %v1807, %v1808
      %v1810 = vrot.slane %v1563, 1
      %v1811 = vsel %vm1693, %v1808, %v1810
      %v1812 = vrot.slane %v1564, 1
      %v1813 = vsel %vm1693, %v1810, %v1812
      %v1822 = vrot.slane %v1564, 6
      %v1823 = vrot.slane %v1565, 6
      %v1824 = vsel %vm1709, %v1822, %v1823
      %v1825 = vrot.slane %v1566, 6
      %v1826 = vsel %vm1709, %v1823, %v1825
      %v1827 = vrot.slane %v1567, 6
      %v1828 = vsel %vm1709, %v1825, %v1827
      %v1829 = vrot.slane %v1568, 6
      %v1830 = vsel %vm1709, %v1827, %v1829
      %v1838 = vrot.slane %v1568, 3
      %v1839 = vrot.slane %v1569, 3
      %v1840 = vsel %vm1726, %v1838, %v1839
      %v1841 = vrot.slane %v1570, 3
      %v1842 = vsel %vm1726, %v1839, %v1841
      %v1843 = vrot.slane %v1571, 3
      %v1844 = vsel %vm1726, %v1841, %v1843
      %v1854 = vrot.slane %v1575, 5
      %v1855 = vrot.slane %v1576, 5
      %v1856 = vsel %vm1625, %v1854, %v1855
      %v1857 = vrot.slane %v1577, 5
      %v1858 = vsel %vm1625, %v1855, %v1857
      %v1859 = vrot.slane %v1578, 5
      %v1860 = vsel %vm1625, %v1857, %v1859
      %v1861 = vrot.slane %v1579, 5
      %v1862 = vsel %vm1625, %v1859, %v1861
      %v1870 = vrot.slane %v1579, 2
      %v1871 = vrot.slane %v1580, 2
      %v1872 = vsel %vm1642, %v1870, %v1871
      %v1873 = vrot.slane %v1581, 2
      %v1874 = vsel %vm1642, %v1871, %v1873
      %v1875 = vrot.slane %v1582, 2
      %v1876 = vsel %vm1642, %v1873, %v1875
      %v1885 = vrot.slane %v1582, 7
      %v1886 = vrot.slane %v1583, 7
      %v1887 = vsel %vm1658, %v1885, %v1886
      %v1888 = vrot.slane %v1584, 7
      %v1889 = vsel %vm1658, %v1886, %v1888
      %v1890 = vrot.slane %v1585, 7
      %v1891 = vsel %vm1658, %v1888, %v1890
      %v1892 = vrot.slane %v1586, 7
      %v1893 = vsel %vm1658, %v1890, %v1892
      %v1902 = vrot.slane %v1586, 4
      %v1903 = vrot.slane %v1587, 4
      %v1904 = vsel %vm1676, %v1902, %v1903
      %v1905 = vrot.slane %v1588, 4
      %v1906 = vsel %vm1676, %v1903, %v1905
      %v1907 = vrot.slane %v1589, 4
      %v1908 = vsel %vm1676, %v1905, %v1907
      %v1909 = vrot.slane %v1590, 4
      %v1910 = vsel %vm1676, %v1907, %v1909
      %v1918 = vrot.slane %v1590, 1
      %v1919 = vrot.slane %v1591, 1
      %v1920 = vsel %vm1693, %v1918, %v1919
      %v1921 = vrot.slane %v1592, 1
      %v1922 = vsel %vm1693, %v1919, %v1921
      %v1923 = vrot.slane %v1593, 1
      %v1924 = vsel %vm1693, %v1921, %v1923
      %v1933 = vrot.slane %v1593, 6
      %v1934 = vrot.slane %v1594, 6
      %v1935 = vsel %vm1709, %v1933, %v1934
      %v1936 = vrot.slane %v1595, 6
      %v1937 = vsel %vm1709, %v1934, %v1936
      %v1938 = vrot.slane %v1596, 6
      %v1939 = vsel %vm1709, %v1936, %v1938
      %v1940 = vrot.slane %v1597, 6
      %v1941 = vsel %vm1709, %v1938, %v1940
      %v1949 = vrot.slane %v1597, 3
      %v1950 = vrot.slane %v1598, 3
      %v1951 = vsel %vm1726, %v1949, %v1950
      %v1952 = vrot.slane %v1599, 3
      %v1953 = vsel %vm1726, %v1950, %v1952
      %v1954 = vrot.slane %v1600, 3
      %v1955 = vsel %vm1726, %v1952, %v1954
      %v1965 = vrot.slane %v1604, 5
      %v1966 = vrot.slane %v1605, 5
      %v1967 = vsel %vm1625, %v1965, %v1966
      %v1968 = vrot.slane %v1606, 5
      %v1969 = vsel %vm1625, %v1966, %v1968
      %v1970 = vrot.slane %v1607, 5
      %v1971 = vsel %vm1625, %v1968, %v1970
      %v1972 = vrot.slane %v1608, 5
      %v1973 = vsel %vm1625, %v1970, %v1972
      %v1981 = vrot.slane %v1608, 2
      %v1982 = vrot.slane %v1609, 2
      %v1983 = vsel %vm1642, %v1981, %v1982
      %v1984 = vrot.slane %v1610, 2
      %v1985 = vsel %vm1642, %v1982, %v1984
      %v1986 = vrot.slane %v1611, 2
      %v1987 = vsel %vm1642, %v1984, %v1986
      %v1996 = vrot.slane %v1611, 7
      %v1997 = vrot.slane %v1612, 7
      %v1998 = vsel %vm1658, %v1996, %v1997
      %v1999 = vrot.slane %v1613, 7
      %v2000 = vsel %vm1658, %v1997, %v1999
      %v2001 = vrot.slane %v1614, 7
      %v2002 = vsel %vm1658, %v1999, %v2001
      %v2003 = vrot.slane %v1615, 7
      %v2004 = vsel %vm1658, %v2001, %v2003
      %v2013 = vrot.slane %v1615, 4
      %v2014 = vrot.slane %v1616, 4
      %v2015 = vsel %vm1676, %v2013, %v2014
      %v2016 = vrot.slane %v1617, 4
      %v2017 = vsel %vm1676, %v2014, %v2016
      %v2018 = vrot.slane %v1618, 4
      %v2019 = vsel %vm1676, %v2016, %v2018
      %v2020 = vrot.slane %v1619, 4
      %v2021 = vsel %vm1676, %v2018, %v2020
      %vm2026 = vcmask 523264
      %2027 = vst.msk [vmem:[#allocation2] sm:$0xff] %vm2026, %v1514
      %2028 = vst.msk [vmem:[#allocation2 + $0x8] sm:$0xff] %vm2026, %v1515
      %2029 = vst.msk [vmem:[#allocation2 + $0x10] sm:$0xff] %vm2026, %v1516
      %vm2030 = vcmask 520192
      %2031 = vst.msk [vmem:[#allocation2 + $0x18] sm:$0x1f] %vm2030, %v1517
      %2032 = vst.msk [vmem:[#allocation2 + $0x20] sm:$0xff] %vm2026, %v1628
      %2033 = vst.msk [vmem:[#allocation2 + $0x28] sm:$0xff] %vm2026, %v1630
      %2034 = vst.msk [vmem:[#allocation2 + $0x30] sm:$0xff] %vm2026, %v1632
      %2035 = vst.msk [vmem:[#allocation2 + $0x38] sm:$0x1f] %vm2030, %v1634
      %2036 = vst.msk [vmem:[#allocation2 + $0x40] sm:$0xff] %vm2026, %v1645
      %2037 = vst.msk [vmem:[#allocation2 + $0x48] sm:$0xff] %vm2026, %v1647
      %2038 = vst.msk [vmem:[#allocation2 + $0x50] sm:$0xff] %vm2026, %v1649
      %2039 = vst.msk [vmem:[#allocation2 + $0x58] sm:$0x1f] %vm2030, %v1648
      %2040 = vst.msk [vmem:[#allocation2 + $0x60] sm:$0xff] %vm2026, %v1661
      %2041 = vst.msk [vmem:[#allocation2 + $0x68] sm:$0xff] %vm2026, %v1663
      %2042 = vst.msk [vmem:[#allocation2 + $0x70] sm:$0xff] %vm2026, %v1665
      %2043 = vst.msk [vmem:[#allocation2 + $0x78] sm:$0x1f] %vm2030, %v1667
      %2044 = vst.msk [vmem:[#allocation2 + $0x80] sm:$0xff] %vm2026, %v1679
      %2045 = vst.msk [vmem:[#allocation2 + $0x88] sm:$0xff] %vm2026, %v1681
      %2046 = vst.msk [vmem:[#allocation2 + $0x90] sm:$0xff] %vm2026, %v1683
      %2047 = vst.msk [vmem:[#allocation2 + $0x98] sm:$0x1f] %vm2030, %v1685
      %2048 = vst.msk [vmem:[#allocation2 + $0xa0] sm:$0xff] %vm2026, %v1696
      %2049 = vst.msk [vmem:[#allocation2 + $0xa8] sm:$0xff] %vm2026, %v1698
      %2050 = vst.msk [vmem:[#allocation2 + $0xb0] sm:$0xff] %vm2026, %v1700
      %2051 = vst.msk [vmem:[#allocation2 + $0xb8] sm:$0x1f] %vm2030, %v1699
      %2052 = vst.msk [vmem:[#allocation2 + $0xc0] sm:$0xff] %vm2026, %v1712
      %2053 = vst.msk [vmem:[#allocation2 + $0xc8] sm:$0xff] %vm2026, %v1714
      %2054 = vst.msk [vmem:[#allocation2 + $0xd0] sm:$0xff] %vm2026, %v1716
      %2055 = vst.msk [vmem:[#allocation2 + $0xd8] sm:$0x1f] %vm2030, %v1718
      %2056 = vst.msk [vmem:[#allocation2 + $0xe0] sm:$0xff] %vm2026, %v1729
      %2057 = vst.msk [vmem:[#allocation2 + $0xe8] sm:$0xff] %vm2026, %v1731
      %2058 = vst.msk [vmem:[#allocation2 + $0xf0] sm:$0xff] %vm2026, %v1733
      %2059 = vst.msk [vmem:[#allocation2 + $0xf8] sm:$0x1f] %vm2030, %v1732
      %2060 = vst.msk [vmem:[#allocation2 + $0x100] sm:$0xff] %vm2026, %v1543
      %2061 = vst.msk [vmem:[#allocation2 + $0x108] sm:$0xff] %vm2026, %v1544
      %2062 = vst.msk [vmem:[#allocation2 + $0x110] sm:$0xff] %vm2026, %v1545
      %2063 = vst.msk [vmem:[#allocation2 + $0x118] sm:$0x1f] %vm2030, %v1546
      %2064 = vst.msk [vmem:[#allocation2 + $0x120] sm:$0xff] %vm2026, %v1745
      %2065 = vst.msk [vmem:[#allocation2 + $0x128] sm:$0xff] %vm2026, %v1747
      %2066 = vst.msk [vmem:[#allocation2 + $0x130] sm:$0xff] %vm2026, %v1749
      %2067 = vst.msk [vmem:[#allocation2 + $0x138] sm:$0x1f] %vm2030, %v1751
      %2068 = vst.msk [vmem:[#allocation2 + $0x140] sm:$0xff] %vm2026, %v1761
      %2069 = vst.msk [vmem:[#allocation2 + $0x148] sm:$0xff] %vm2026, %v1763
      %2070 = vst.msk [vmem:[#allocation2 + $0x150] sm:$0xff] %vm2026, %v1765
      %2071 = vst.msk [vmem:[#allocation2 + $0x158] sm:$0x1f] %vm2030, %v1764
      %2072 = vst.msk [vmem:[#allocation2 + $0x160] sm:$0xff] %vm2026, %v1776
      %2073 = vst.msk [vmem:[#allocation2 + $0x168] sm:$0xff] %vm2026, %v1778
      %2074 = vst.msk [vmem:[#allocation2 + $0x170] sm:$0xff] %vm2026, %v1780
      %2075 = vst.msk [vmem:[#allocation2 + $0x178] sm:$0x1f] %vm2030, %v1782
      %2076 = vst.msk [vmem:[#allocation2 + $0x180] sm:$0xff] %vm2026, %v1793
      %2077 = vst.msk [vmem:[#allocation2 + $0x188] sm:$0xff] %vm2026, %v1795
      %2078 = vst.msk [vmem:[#allocation2 + $0x190] sm:$0xff] %vm2026, %v1797
      %2079 = vst.msk [vmem:[#allocation2 + $0x198] sm:$0x1f] %vm2030, %v1799
      %2080 = vst.msk [vmem:[#allocation2 + $0x1a0] sm:$0xff] %vm2026, %v1809
      %2081 = vst.msk [vmem:[#allocation2 + $0x1a8] sm:$0xff] %vm2026, %v1811
      %2082 = vst.msk [vmem:[#allocation2 + $0x1b0] sm:$0xff] %vm2026, %v1813
      %2083 = vst.msk [vmem:[#allocation2 + $0x1b8] sm:$0x1f] %vm2030, %v1812
      %2084 = vst.msk [vmem:[#allocation2 + $0x1c0] sm:$0xff] %vm2026, %v1824
      %2085 = vst.msk [vmem:[#allocation2 + $0x1c8] sm:$0xff] %vm2026, %v1826
      %2086 = vst.msk [vmem:[#allocation2 + $0x1d0] sm:$0xff] %vm2026, %v1828
      %2087 = vst.msk [vmem:[#allocation2 + $0x1d8] sm:$0x1f] %vm2030, %v1830
      %2088 = vst.msk [vmem:[#allocation2 + $0x1e0] sm:$0xff] %vm2026, %v1840
      %2089 = vst.msk [vmem:[#allocation2 + $0x1e8] sm:$0xff] %vm2026, %v1842
      %2090 = vst.msk [vmem:[#allocation2 + $0x1f0] sm:$0xff] %vm2026, %v1844
      %2091 = vst.msk [vmem:[#allocation2 + $0x1f8] sm:$0x1f] %vm2030, %v1843
      %2092 = vst.msk [vmem:[#allocation2 + $0x200] sm:$0xff] %vm2026, %v1572
      %2093 = vst.msk [vmem:[#allocation2 + $0x208] sm:$0xff] %vm2026, %v1573
      %2094 = vst.msk [vmem:[#allocation2 + $0x210] sm:$0xff] %vm2026, %v1574
      %2095 = vst.msk [vmem:[#allocation2 + $0x218] sm:$0x1f] %vm2030, %v1575
      %2096 = vst.msk [vmem:[#allocation2 + $0x220] sm:$0xff] %vm2026, %v1856
      %2097 = vst.msk [vmem:[#allocation2 + $0x228] sm:$0xff] %vm2026, %v1858
      %2098 = vst.msk [vmem:[#allocation2 + $0x230] sm:$0xff] %vm2026, %v1860
      %2099 = vst.msk [vmem:[#allocation2 + $0x238] sm:$0x1f] %vm2030, %v1862
      %2100 = vst.msk [vmem:[#allocation2 + $0x240] sm:$0xff] %vm2026, %v1872
      %2101 = vst.msk [vmem:[#allocation2 + $0x248] sm:$0xff] %vm2026, %v1874
      %2102 = vst.msk [vmem:[#allocation2 + $0x250] sm:$0xff] %vm2026, %v1876
      %2103 = vst.msk [vmem:[#allocation2 + $0x258] sm:$0x1f] %vm2030, %v1875
      %2104 = vst.msk [vmem:[#allocation2 + $0x260] sm:$0xff] %vm2026, %v1887
      %2105 = vst.msk [vmem:[#allocation2 + $0x268] sm:$0xff] %vm2026, %v1889
      %2106 = vst.msk [vmem:[#allocation2 + $0x270] sm:$0xff] %vm2026, %v1891
      %2107 = vst.msk [vmem:[#allocation2 + $0x278] sm:$0x1f] %vm2030, %v1893
      %2108 = vst.msk [vmem:[#allocation2 + $0x280] sm:$0xff] %vm2026, %v1904
      %2109 = vst.msk [vmem:[#allocation2 + $0x288] sm:$0xff] %vm2026, %v1906
      %2110 = vst.msk [vmem:[#allocation2 + $0x290] sm:$0xff] %vm2026, %v1908
      %2111 = vst.msk [vmem:[#allocation2 + $0x298] sm:$0x1f] %vm2030, %v1910
      %2112 = vst.msk [vmem:[#allocation2 + $0x2a0] sm:$0xff] %vm2026, %v1920
      %2113 = vst.msk [vmem:[#allocation2 + $0x2a8] sm:$0xff] %vm2026, %v1922
      %2114 = vst.msk [vmem:[#allocation2 + $0x2b0] sm:$0xff] %vm2026, %v1924
      %2115 = vst.msk [vmem:[#allocation2 + $0x2b8] sm:$0x1f] %vm2030, %v1923
      %2116 = vst.msk [vmem:[#allocation2 + $0x2c0] sm:$0xff] %vm2026, %v1935
      %2117 = vst.msk [vmem:[#allocation2 + $0x2c8] sm:$0xff] %vm2026, %v1937
      %2118 = vst.msk [vmem:[#allocation2 + $0x2d0] sm:$0xff] %vm2026, %v1939
      %2119 = vst.msk [vmem:[#allocation2 + $0x2d8] sm:$0x1f] %vm2030, %v1941
      %2120 = vst.msk [vmem:[#allocation2 + $0x2e0] sm:$0xff] %vm2026, %v1951
      %2121 = vst.msk [vmem:[#allocation2 + $0x2e8] sm:$0xff] %vm2026, %v1953
      %2122 = vst.msk [vmem:[#allocation2 + $0x2f0] sm:$0xff] %vm2026, %v1955
      %2123 = vst.msk [vmem:[#allocation2 + $0x2f8] sm:$0x1f] %vm2030, %v1954
      %2124 = vst.msk [vmem:[#allocation2 + $0x300] sm:$0xff] %vm2026, %v1601
      %2125 = vst.msk [vmem:[#allocation2 + $0x308] sm:$0xff] %vm2026, %v1602
      %2126 = vst.msk [vmem:[#allocation2 + $0x310] sm:$0xff] %vm2026, %v1603
      %2127 = vst.msk [vmem:[#allocation2 + $0x318] sm:$0x1f] %vm2030, %v1604
      %2128 = vst.msk [vmem:[#allocation2 + $0x320] sm:$0xff] %vm2026, %v1967
      %2129 = vst.msk [vmem:[#allocation2 + $0x328] sm:$0xff] %vm2026, %v1969
      %2130 = vst.msk [vmem:[#allocation2 + $0x330] sm:$0xff] %vm2026, %v1971
      %2131 = vst.msk [vmem:[#allocation2 + $0x338] sm:$0x1f] %vm2030, %v1973
      %2132 = vst.msk [vmem:[#allocation2 + $0x340] sm:$0xff] %vm2026, %v1983
      %2133 = vst.msk [vmem:[#allocation2 + $0x348] sm:$0xff] %vm2026, %v1985
      %2134 = vst.msk [vmem:[#allocation2 + $0x350] sm:$0xff] %vm2026, %v1987
      %2135 = vst.msk [vmem:[#allocation2 + $0x358] sm:$0x1f] %vm2030, %v1986
      %2136 = vst.msk [vmem:[#allocation2 + $0x360] sm:$0xff] %vm2026, %v1998
      %2137 = vst.msk [vmem:[#allocation2 + $0x368] sm:$0xff] %vm2026, %v2000
      %2138 = vst.msk [vmem:[#allocation2 + $0x370] sm:$0xff] %vm2026, %v2002
      %2139 = vst.msk [vmem:[#allocation2 + $0x378] sm:$0x1f] %vm2030, %v2004
      %2140 = vst.msk [vmem:[#allocation2 + $0x380] sm:$0xff] %vm2026, %v2015
      %2141 = vst.msk [vmem:[#allocation2 + $0x388] sm:$0xff] %vm2026, %v2017
      %2142 = vst.msk [vmem:[#allocation2 + $0x390] sm:$0xff] %vm2026, %v2019
      %2143 = vst.msk [vmem:[#allocation2 + $0x398] sm:$0x1f] %vm2030, %v2021
      %s2144 = scalar_lea.vmem %s278, 424
      %v2145 = vld [vmem:[%s2144] sm:$0xf]
      %v2146 = vld [vmem:[%s2144 + $0x4] sm:$0xf]
      %v2147 = vld [vmem:[%s2144 + $0x8] sm:$0xf]
      %v2148 = vld [vmem:[%s2144 + $0xc] sm:$0xf]
      %v2149 = vld [vmem:[%s2144 + $0x10] sm:$0xf]
      %v2150 = vld [vmem:[%s2144 + $0x14] sm:$0xf]
      %v2151 = vld [vmem:[%s2144 + $0x18] sm:$0xf]
      %v2152 = vld [vmem:[%s2144 + $0x1c] sm:$0xf]
      %v2153 = vld [vmem:[%s2144 + $0x20] sm:$0xf]
      %v2154 = vld [vmem:[%s2144 + $0x24] sm:$0xf]
      %v2155 = vld [vmem:[%s2144 + $0x28] sm:$0xf]
      %v2156 = vld [vmem:[%s2144 + $0x2c] sm:$0xf]
      %v2157 = vld [vmem:[%s2144 + $0x30] sm:$0xf]
      %v2158 = vld [vmem:[%s2144 + $0x34] sm:$0xf]
      %v2159 = vld [vmem:[%s2144 + $0x38] sm:$0xf]
      %v2160 = vld [vmem:[%s2144 + $0x3c] sm:$0xf]
      %v2161 = vld [vmem:[%s2144 + $0x40] sm:$0xf]
      %v2162 = vld [vmem:[%s2144 + $0x44] sm:$0xf]
      %v2163 = vld [vmem:[%s2144 + $0x48] sm:$0xf]
      %v2164 = vld [vmem:[%s2144 + $0x4c] sm:$0xf]
      %v2165 = vld [vmem:[%s2144 + $0x50] sm:$0xf]
      %v2166 = vld [vmem:[%s2144 + $0x54] sm:$0xf]
      %v2167 = vld [vmem:[%s2144 + $0x58] sm:$0xf]
      %v2168 = vld [vmem:[%s2144 + $0x5c] sm:$0xf]
      %v2169 = vld [vmem:[%s2144 + $0x60] sm:$0xf]
      %v2170 = vld [vmem:[%s2144 + $0x64] sm:$0xf]
      %v2171 = vld [vmem:[%s2144 + $0x68] sm:$0xf]
      %v2172 = vld [vmem:[%s2144 + $0x6c] sm:$0xf]
      %v2173 = vld [vmem:[%s2144 + $0x70] sm:$0xf]
      %v2174 = vld [vmem:[%s2144 + $0x74] sm:$0xf]
      %v2175 = vld [vmem:[%s2144 + $0x78] sm:$0xf]
      %v2176 = vld [vmem:[%s2144 + $0x7c] sm:$0xf]
      %v2177 = vld [vmem:[%s2144 + $0x80] sm:$0xf]
      %v2178 = vld [vmem:[%s2144 + $0x84] sm:$0xf]
      %v2179 = vld [vmem:[%s2144 + $0x88] sm:$0xf]
      %v2180 = vld [vmem:[%s2144 + $0x8c] sm:$0xf]
      %v2181 = vld [vmem:[%s2144 + $0x90] sm:$0xf]
      %v2182 = vld [vmem:[%s2144 + $0x94] sm:$0xf]
      %v2183 = vld [vmem:[%s2144 + $0x98] sm:$0xf]
      %v2184 = vld [vmem:[%s2144 + $0x9c] sm:$0xf]
      %v2185 = vld [vmem:[%s2144 + $0xa0] sm:$0xf]
      %v2186 = vld [vmem:[%s2144 + $0xa4] sm:$0xf]
      %v2187 = vld [vmem:[%s2144 + $0xa8] sm:$0xf]
      %v2188 = vld [vmem:[%s2144 + $0xac] sm:$0xf]
      %v2189 = vld [vmem:[%s2144 + $0xb0] sm:$0xf]
      %v2190 = vld [vmem:[%s2144 + $0xb4] sm:$0xf]
      %v2191 = vld [vmem:[%s2144 + $0xb8] sm:$0xf]
      %v2192 = vld [vmem:[%s2144 + $0xbc] sm:$0xf]
      %v2193 = vld [vmem:[%s2144 + $0xc0] sm:$0xf]
      %v2194 = vld [vmem:[%s2144 + $0xc4] sm:$0xf]
      %v2195 = vld [vmem:[%s2144 + $0xc8] sm:$0xf]
      %v2196 = vld [vmem:[%s2144 + $0xcc] sm:$0xf]
      %v2197 = vld [vmem:[%s2144 + $0xd0] sm:$0xf]
      %v2198 = vld [vmem:[%s2144 + $0xd4] sm:$0xf]
      %v2199 = vld [vmem:[%s2144 + $0xd8] sm:$0xf]
      %v2200 = vld [vmem:[%s2144 + $0xdc] sm:$0xf]
      %v2201 = vld [vmem:[%s2144 + $0xe0] sm:$0xf]
      %v2202 = vld [vmem:[%s2144 + $0xe4] sm:$0xf]
      %v2203 = vld [vmem:[%s2144 + $0xe8] sm:$0xf]
      %v2204 = vld [vmem:[%s2144 + $0xec] sm:$0xf]
      %v2205 = vld [vmem:[%s2144 + $0xf0] sm:$0xf]
      %v2206 = vld [vmem:[%s2144 + $0xf4] sm:$0xf]
      %v2207 = vld [vmem:[%s2144 + $0xf8] sm:$0xf]
      %v2208 = vld [vmem:[%s2144 + $0xfc] sm:$0xf]
      %v2209 = vld [vmem:[%s2144 + $0x100] sm:$0xf]
      %v2210 = vld [vmem:[%s2144 + $0x104] sm:$0xf]
      %v2211 = vld [vmem:[%s2144 + $0x108] sm:$0xf]
      %v2212 = vld [vmem:[%s2144 + $0x10c] sm:$0xf]
      %v2213 = vld [vmem:[%s2144 + $0x110] sm:$0xf]
      %v2214 = vld [vmem:[%s2144 + $0x114] sm:$0xf]
      %v2215 = vld [vmem:[%s2144 + $0x118] sm:$0xf]
      %v2216 = vld [vmem:[%s2144 + $0x11c] sm:$0xf]
      %v2217 = vld [vmem:[%s2144 + $0x120] sm:$0xf]
      %v2218 = vld [vmem:[%s2144 + $0x124] sm:$0xf]
      %v2219 = vld [vmem:[%s2144 + $0x128] sm:$0xf]
      %v2220 = vld [vmem:[%s2144 + $0x12c] sm:$0xf]
      %v2221 = vld [vmem:[%s2144 + $0x130] sm:$0xf]
      %v2222 = vld [vmem:[%s2144 + $0x134] sm:$0xf]
      %v2223 = vld [vmem:[%s2144 + $0x138] sm:$0xf]
      %v2224 = vld [vmem:[%s2144 + $0x13c] sm:$0xf]
      %v2225 = vld [vmem:[%s2144 + $0x140] sm:$0xf]
      %v2226 = vld [vmem:[%s2144 + $0x144] sm:$0xf]
      %v2227 = vld [vmem:[%s2144 + $0x148] sm:$0xf]
      %v2228 = vld [vmem:[%s2144 + $0x14c] sm:$0xf]
      %v2229 = vld [vmem:[%s2144 + $0x150] sm:$0xf]
      %v2230 = vld [vmem:[%s2144 + $0x154] sm:$0xf]
      %v2231 = vld [vmem:[%s2144 + $0x158] sm:$0xf]
      %v2232 = vld [vmem:[%s2144 + $0x15c] sm:$0xf]
      %v2233 = vld [vmem:[%s2144 + $0x160] sm:$0xf]
      %v2234 = vld [vmem:[%s2144 + $0x164] sm:$0xf]
      %v2235 = vld [vmem:[%s2144 + $0x168] sm:$0xf]
      %v2236 = vld [vmem:[%s2144 + $0x16c] sm:$0xf]
      %v2237 = vld [vmem:[%s2144 + $0x170] sm:$0xf]
      %v2238 = vld [vmem:[%s2144 + $0x174] sm:$0xf]
      %v2239 = vld [vmem:[%s2144 + $0x178] sm:$0xf]
      %v2240 = vld [vmem:[%s2144 + $0x17c] sm:$0xf]
      %v2241 = vld [vmem:[%s2144 + $0x180] sm:$0xf]
      %v2242 = vld [vmem:[%s2144 + $0x184] sm:$0xf]
      %v2243 = vld [vmem:[%s2144 + $0x188] sm:$0xf]
      %v2244 = vld [vmem:[%s2144 + $0x18c] sm:$0xf]
      %v2245 = vld [vmem:[%s2144 + $0x190] sm:$0xf]
      %v2246 = vld [vmem:[%s2144 + $0x194] sm:$0xf]
      %v2247 = vld [vmem:[%s2144 + $0x198] sm:$0xf]
      %v2248 = vld [vmem:[%s2144 + $0x19c] sm:$0xf]
      %v2249 = vld [vmem:[%s2144 + $0x1a0] sm:$0xf]
      %v2250 = vld [vmem:[%s2144 + $0x1a4] sm:$0x1]
      %v2357 = vunpack.c.l.b16 %v2145
      %v2358 = vunpack.c.l.b16 %v2146
      %v2359 = vunpack.c.l.b16 %v2147
      %v2360 = vunpack.c.l.b16 %v2148
      %v2361 = vunpack.c.l.b16 %v2149
      %v2362 = vunpack.c.l.b16 %v2150
      %v2363 = vunpack.c.l.b16 %v2151
      %v2364 = vunpack.c.l.b16 %v2152
      %v2365 = vunpack.c.l.b16 %v2153
      %v2366 = vunpack.c.l.b16 %v2154
      %v2367 = vunpack.c.l.b16 %v2155
      %v2368 = vunpack.c.l.b16 %v2156
      %v2369 = vunpack.c.l.b16 %v2157
      %v2370 = vunpack.c.l.b16 %v2158
      %v2371 = vunpack.c.l.b16 %v2159
      %v2372 = vunpack.c.l.b16 %v2160
      %v2373 = vunpack.c.l.b16 %v2161
      %v2374 = vunpack.c.l.b16 %v2162
      %v2375 = vunpack.c.l.b16 %v2163
      %v2376 = vunpack.c.l.b16 %v2164
      %v2377 = vunpack.c.l.b16 %v2165
      %v2378 = vunpack.c.l.b16 %v2166
      %v2379 = vunpack.c.l.b16 %v2167
      %v2380 = vunpack.c.l.b16 %v2168
      %v2381 = vunpack.c.l.b16 %v2169
      %v2382 = vunpack.c.l.b16 %v2170
      %v2383 = vunpack.c.l.b16 %v2171
      %v2384 = vunpack.c.l.b16 %v2172
      %v2385 = vunpack.c.l.b16 %v2173
      %v2386 = vunpack.c.l.b16 %v2174
      %v2387 = vunpack.c.l.b16 %v2175
      %v2388 = vunpack.c.l.b16 %v2176
      %v2389 = vunpack.c.l.b16 %v2177
      %v2390 = vunpack.c.l.b16 %v2178
      %v2391 = vunpack.c.l.b16 %v2179
      %v2392 = vunpack.c.l.b16 %v2180
      %v2393 = vunpack.c.l.b16 %v2181
      %v2394 = vunpack.c.l.b16 %v2182
      %v2395 = vunpack.c.l.b16 %v2183
      %v2396 = vunpack.c.l.b16 %v2184
      %v2397 = vunpack.c.l.b16 %v2185
      %v2398 = vunpack.c.l.b16 %v2186
      %v2399 = vunpack.c.l.b16 %v2187
      %v2400 = vunpack.c.l.b16 %v2188
      %v2401 = vunpack.c.l.b16 %v2189
      %v2402 = vunpack.c.l.b16 %v2190
      %v2403 = vunpack.c.l.b16 %v2191
      %v2404 = vunpack.c.l.b16 %v2192
      %v2405 = vunpack.c.l.b16 %v2193
      %v2406 = vunpack.c.l.b16 %v2194
      %v2407 = vunpack.c.l.b16 %v2195
      %v2408 = vunpack.c.l.b16 %v2196
      %v2409 = vunpack.c.l.b16 %v2197
      %v2410 = vunpack.c.l.b16 %v2198
      %v2411 = vunpack.c.l.b16 %v2199
      %v2412 = vunpack.c.l.b16 %v2200
      %v2413 = vunpack.c.l.b16 %v2201
      %v2414 = vunpack.c.l.b16 %v2202
      %v2415 = vunpack.c.l.b16 %v2203
      %v2416 = vunpack.c.l.b16 %v2204
      %v2417 = vunpack.c.l.b16 %v2205
      %v2418 = vunpack.c.l.b16 %v2206
      %v2419 = vunpack.c.l.b16 %v2207
      %v2420 = vunpack.c.l.b16 %v2208
      %v2421 = vunpack.c.l.b16 %v2209
      %v2422 = vunpack.c.l.b16 %v2210
      %v2423 = vunpack.c.l.b16 %v2211
      %v2424 = vunpack.c.l.b16 %v2212
      %v2425 = vunpack.c.l.b16 %v2213
      %v2426 = vunpack.c.l.b16 %v2214
      %v2427 = vunpack.c.l.b16 %v2215
      %v2428 = vunpack.c.l.b16 %v2216
      %v2429 = vunpack.c.l.b16 %v2217
      %v2430 = vunpack.c.l.b16 %v2218
      %v2431 = vunpack.c.l.b16 %v2219
      %v2432 = vunpack.c.l.b16 %v2220
      %v2433 = vunpack.c.l.b16 %v2221
      %v2434 = vunpack.c.l.b16 %v2222
      %v2435 = vunpack.c.l.b16 %v2223
      %v2436 = vunpack.c.l.b16 %v2224
      %v2437 = vunpack.c.l.b16 %v2225
      %v2438 = vunpack.c.l.b16 %v2226
      %v2439 = vunpack.c.l.b16 %v2227
      %v2440 = vunpack.c.l.b16 %v2228
      %v2441 = vunpack.c.l.b16 %v2229
      %v2442 = vunpack.c.l.b16 %v2230
      %v2443 = vunpack.c.l.b16 %v2231
      %v2444 = vunpack.c.l.b16 %v2232
      %v2445 = vunpack.c.l.b16 %v2233
      %v2446 = vunpack.c.l.b16 %v2234
      %v2447 = vunpack.c.l.b16 %v2235
      %v2448 = vunpack.c.l.b16 %v2236
      %v2449 = vunpack.c.l.b16 %v2237
      %v2450 = vunpack.c.l.b16 %v2238
      %v2451 = vunpack.c.l.b16 %v2239
      %v2452 = vunpack.c.l.b16 %v2240
      %v2453 = vunpack.c.l.b16 %v2241
      %v2454 = vunpack.c.l.b16 %v2242
      %v2455 = vunpack.c.l.b16 %v2243
      %v2456 = vunpack.c.l.b16 %v2244
      %v2457 = vunpack.c.l.b16 %v2245
      %v2458 = vunpack.c.l.b16 %v2246
      %v2459 = vunpack.c.l.b16 %v2247
      %v2460 = vunpack.c.l.b16 %v2248
      %v2461 = vunpack.c.l.b16 %v2249
      %v2462 = vunpack.c.l.b16 %v2250
      %v2463 = vpack.c.b16 %v2358, %v2357
      %v2464 = vpack.c.b16 %v2360, %v2359
      %v2465 = vpack.c.b16 %v2362, %v2361
      %v2466 = vpack.c.b16 %v2364, %v2363
      %v2467 = vpack.c.b16 %v2366, %v2365
      %v2468 = vpack.c.b16 %v2368, %v2367
      %v2469 = vpack.c.b16 %v2370, %v2369
      %v2470 = vpack.c.b16 %v2372, %v2371
      %v2471 = vpack.c.b16 %v2374, %v2373
      %v2472 = vpack.c.b16 %v2376, %v2375
      %v2473 = vpack.c.b16 %v2378, %v2377
      %v2474 = vpack.c.b16 %v2380, %v2379
      %v2475 = vpack.c.b16 %v2382, %v2381
      %v2476 = vpack.c.b16 %v2384, %v2383
      %v2477 = vpack.c.b16 %v2386, %v2385
      %v2478 = vpack.c.b16 %v2388, %v2387
      %v2479 = vpack.c.b16 %v2390, %v2389
      %v2480 = vpack.c.b16 %v2392, %v2391
      %v2481 = vpack.c.b16 %v2394, %v2393
      %v2482 = vpack.c.b16 %v2396, %v2395
      %v2483 = vpack.c.b16 %v2398, %v2397
      %v2484 = vpack.c.b16 %v2400, %v2399
      %v2485 = vpack.c.b16 %v2402, %v2401
      %v2486 = vpack.c.b16 %v2404, %v2403
      %v2487 = vpack.c.b16 %v2406, %v2405
      %v2488 = vpack.c.b16 %v2408, %v2407
      %v2489 = vpack.c.b16 %v2410, %v2409
      %v2490 = vpack.c.b16 %v2412, %v2411
      %v2491 = vpack.c.b16 %v2414, %v2413
      %v2492 = vpack.c.b16 %v2416, %v2415
      %v2493 = vpack.c.b16 %v2418, %v2417
      %v2494 = vpack.c.b16 %v2420, %v2419
      %v2495 = vpack.c.b16 %v2422, %v2421
      %v2496 = vpack.c.b16 %v2424, %v2423
      %v2497 = vpack.c.b16 %v2426, %v2425
      %v2498 = vpack.c.b16 %v2428, %v2427
      %v2499 = vpack.c.b16 %v2430, %v2429
      %v2500 = vpack.c.b16 %v2432, %v2431
      %v2501 = vpack.c.b16 %v2434, %v2433
      %v2502 = vpack.c.b16 %v2436, %v2435
      %v2503 = vpack.c.b16 %v2438, %v2437
      %v2504 = vpack.c.b16 %v2440, %v2439
      %v2505 = vpack.c.b16 %v2442, %v2441
      %v2506 = vpack.c.b16 %v2444, %v2443
      %v2507 = vpack.c.b16 %v2446, %v2445
      %v2508 = vpack.c.b16 %v2448, %v2447
      %v2509 = vpack.c.b16 %v2450, %v2449
      %v2510 = vpack.c.b16 %v2452, %v2451
      %v2511 = vpack.c.b16 %v2454, %v2453
      %v2512 = vpack.c.b16 %v2456, %v2455
      %v2513 = vpack.c.b16 %v2458, %v2457
      %v2514 = vpack.c.b16 %v2460, %v2459
      %v2515 = vpack.c.b16 %v2462, %v2461
      %2569 = vmatprep.subr.bf16.mxu0 0
      %2570 = vmatpush1.bf16.msra.mxu0 %v1041
      %2571 = vmatprep.subr.bf16.mxu0 0
      %2572 = vmatpush1.bf16.msra.mxu0 %v1042
      %2573 = vmatprep.subr.bf16.mxu0 0
      %2574 = vmatpush1.bf16.msra.mxu0 %v1043
      %2575 = vmatprep.subr.bf16.mxu0 0
      %2576 = vmatpush1.bf16.msra.mxu0 %v1044
      %2577 = vmatprep.subr.bf16.mxu0 0
      %2578 = vmatpush1.bf16.msra.mxu0 %v1045
      %2579 = vmatprep.subr.bf16.mxu0 0
      %2580 = vmatpush1.bf16.msra.mxu0 %v1046
      %2581 = vmatprep.subr.bf16.mxu0 0
      %2582 = vmatpush1.bf16.msra.mxu0 %v1047
      %2583 = vmatprep.subr.bf16.mxu0 0
      %2584 = vmatpush1.bf16.msra.mxu0 %v1048
      %2585 = vmatprep.subr.bf16.mxu0 0
      %2586 = vmatpush1.bf16.msra.mxu0 0
      %2587 = vmatprep.subr.bf16.mxu0 0
      %2588 = vmatpush1.bf16.msra.mxu0 0
      %2589 = vmatprep.subr.bf16.mxu0 0
      %2590 = vmatpush1.bf16.msra.mxu0 0
      %2591 = vmatprep.subr.bf16.mxu0 0
      %2592 = vmatpush1.bf16.msra.mxu0 0
      %2593 = vmatprep.subr.bf16.mxu0 0
      %2594 = vmatpush1.bf16.msra.mxu0 0
      %2595 = vmatprep.subr.bf16.mxu0 0
      %2596 = vmatpush1.bf16.msra.mxu0 0
      %2597 = vmatprep.subr.bf16.mxu0 0
      %2598 = vmatpush1.bf16.msra.mxu0 0
      %2599 = vmatprep.subr.bf16.mxu0 0
      %2600 = vmatpush1.bf16.msra.mxu0 0
      %2601 = vmatprep.mubr.bf16.mxu0 0
      %2602 = vmatmul.mubr.bf16.gmra.mrb[0].mxu0 %v2463
      %v2603 = vpop.f32.mrb[0].mxu0
      %v2604 = vadd.f32 %v689, %v2603
      %v2605 = vpop.f32.mrb[0].mxu0
      %v2606 = vpop.f32.mrb[0].mxu0
      %v2607 = vadd.f32 %v689, %v2606
      %v2608 = vpop.f32.mrb[0].mxu0
      %2609 = vmatprep.mubr.bf16.mxu0 0
      %2610 = vmatmul.mubr.bf16.gmra.mrb[0].mxu0 %v2464
      %v2611 = vpop.f32.mrb[0].mxu0
      %v2612 = vadd.f32 %v689, %v2611
      %v2613 = vpop.f32.mrb[0].mxu0
      %v2614 = vpop.f32.mrb[0].mxu0
      %v2615 = vadd.f32 %v689, %v2614
      %v2616 = vpop.f32.mrb[0].mxu0
      %2617 = vmatprep.mubr.bf16.mxu0 0
      %2618 = vmatmul.mubr.bf16.gmra.mrb[0].mxu0 %v2465
      %v2619 = vpop.f32.mrb[0].mxu0
      %v2620 = vadd.f32 %v689, %v2619
      %v2621 = vpop.f32.mrb[0].mxu0
      %v2622 = vpop.f32.mrb[0].mxu0
      %v2623 = vadd.f32 %v689, %v2622
      %v2624 = vpop.f32.mrb[0].mxu0
      %2625 = vmatprep.mubr.bf16.mxu0 0
      %2626 = vmatmul.mubr.bf16.gmra.mrb[0].mxu0 %v2466
      %v2627 = vpop.f32.mrb[0].mxu0
      %v2628 = vadd.f32 %v689, %v2627
      %v2629 = vpop.f32.mrb[0].mxu0
      %v2630 = vpop.f32.mrb[0].mxu0
      %v2631 = vadd.f32 %v689, %v2630
      %v2632 = vpop.f32.mrb[0].mxu0
      %2633 = vmatprep.mubr.bf16.mxu0 0
      %2634 = vmatmul.mubr.bf16.gmra.mrb[0].mxu0 %v2467
      %v2635 = vpop.f32.mrb[0].mxu0
      %v2636 = vadd.f32 %v689, %v2635
      %v2637 = vpop.f32.mrb[0].mxu0
      %v2638 = vpop.f32.mrb[0].mxu0
      %v2639 = vadd.f32 %v689, %v2638
      %v2640 = vpop.f32.mrb[0].mxu0
      %2641 = vmatprep.mubr.bf16.mxu0 0
      %2642 = vmatmul.mubr.bf16.gmra.mrb[0].mxu0 %v2468
      %v2643 = vpop.f32.mrb[0].mxu0
      %v2644 = vadd.f32 %v689, %v2643
      %v2645 = vpop.f32.mrb[0].mxu0
      %v2646 = vpop.f32.mrb[0].mxu0
      %v2647 = vadd.f32 %v689, %v2646
      %v2648 = vpop.f32.mrb[0].mxu0
      %2649 = vmatprep.mubr.bf16.mxu0 0
      %2650 = vmatmul.mubr.bf16.gmra.mrb[0].mxu0 %v2469
      %v2651 = vpop.f32.mrb[0].mxu0
      %v2652 = vadd.f32 %v689, %v2651
      %v2653 = vpop.f32.mrb[0].mxu0
      %v2654 = vpop.f32.mrb[0].mxu0
      %v2655 = vadd.f32 %v689, %v2654
      %v2656 = vpop.f32.mrb[0].mxu0
      %2657 = vmatprep.mubr.bf16.mxu0 0
      %2658 = vmatmul.mubr.bf16.gmra.mrb[0].mxu0 %v2470
      %v2659 = vpop.f32.mrb[0].mxu0
      %v2660 = vadd.f32 %v689, %v2659
      %v2661 = vpop.f32.mrb[0].mxu0
      %v2662 = vpop.f32.mrb[0].mxu0
      %v2663 = vadd.f32 %v689, %v2662
      %v2664 = vpop.f32.mrb[0].mxu0
      %2665 = vmatprep.mubr.bf16.mxu0 0
      %2666 = vmatmul.mubr.bf16.gmra.mrb[0].mxu0 %v2471
      %v2667 = vpop.f32.mrb[0].mxu0
      %v2668 = vadd.f32 %v689, %v2667
      %v2669 = vpop.f32.mrb[0].mxu0
      %v2670 = vpop.f32.mrb[0].mxu0
      %v2671 = vadd.f32 %v689, %v2670
      %v2672 = vpop.f32.mrb[0].mxu0
      %2673 = vmatprep.mubr.bf16.mxu0 0
      %2674 = vmatmul.mubr.bf16.gmra.mrb[0].mxu0 %v2472
      %v2675 = vpop.f32.mrb[0].mxu0
      %v2676 = vadd.f32 %v689, %v2675
      %v2677 = vpop.f32.mrb[0].mxu0
      %v2678 = vpop.f32.mrb[0].mxu0
      %v2679 = vadd.f32 %v689, %v2678
      %v2680 = vpop.f32.mrb[0].mxu0
      %2681 = vmatprep.mubr.bf16.mxu0 0
      %2682 = vmatmul.mubr.bf16.gmra.mrb[0].mxu0 %v2473
      %v2683 = vpop.f32.mrb[0].mxu0
      %v2684 = vadd.f32 %v689, %v2683
      %v2685 = vpop.f32.mrb[0].mxu0
      %v2686 = vpop.f32.mrb[0].mxu0
      %v2687 = vadd.f32 %v689, %v2686
      %v2688 = vpop.f32.mrb[0].mxu0
      %2689 = vmatprep.mubr.bf16.mxu0 0
      %2690 = vmatmul.mubr.bf16.gmra.mrb[0].mxu0 %v2474
      %v2691 = vpop.f32.mrb[0].mxu0
      %v2692 = vadd.f32 %v689, %v2691
      %v2693 = vpop.f32.mrb[0].mxu0
      %v2694 = vpop.f32.mrb[0].mxu0
      %v2695 = vadd.f32 %v689, %v2694
      %v2696 = vpop.f32.mrb[0].mxu0
      %2697 = vmatprep.mubr.bf16.mxu0 0
      %2698 = vmatmul.mubr.bf16.gmra.mrb[0].mxu0 %v2475
      %v2699 = vpop.f32.mrb[0].mxu0
      %v2700 = vadd.f32 %v689, %v2699
      %v2701 = vpop.f32.mrb[0].mxu0
      %v2702 = vpop.f32.mrb[0].mxu0
      %v2703 = vadd.f32 %v689, %v2702
      %v2704 = vpop.f32.mrb[0].mxu0
      %2705 = vmatprep.mubr.bf16.mxu0 0
      %2706 = vmatmul.mubr.bf16.gmra.mrb[0].mxu0 %v2476
      %v2707 = vpop.f32.mrb[0].mxu0
      %v2708 = vadd.f32 %v689, %v2707
      %v2709 = vpop.f32.mrb[0].mxu0
      %v2710 = vpop.f32.mrb[0].mxu0
      %v2711 = vadd.f32 %v689, %v2710
      %v2712 = vpop.f32.mrb[0].mxu0
      %2713 = vmatprep.mubr.bf16.mxu0 0
      %2714 = vmatmul.mubr.bf16.gmra.mrb[0].mxu0 %v2477
      %v2715 = vpop.f32.mrb[0].mxu0
      %v2716 = vadd.f32 %v689, %v2715
      %v2717 = vpop.f32.mrb[0].mxu0
      %v2718 = vpop.f32.mrb[0].mxu0
      %v2719 = vadd.f32 %v689, %v2718
      %v2720 = vpop.f32.mrb[0].mxu0
      %2721 = vmatprep.mubr.bf16.mxu0 0
      %2722 = vmatmul.mubr.bf16.gmra.mrb[0].mxu0 %v2478
      %v2723 = vpop.f32.mrb[0].mxu0
      %v2724 = vadd.f32 %v689, %v2723
      %v2725 = vpop.f32.mrb[0].mxu0
      %v2726 = vpop.f32.mrb[0].mxu0
      %v2727 = vadd.f32 %v689, %v2726
      %v2728 = vpop.f32.mrb[0].mxu0
      %2729 = vmatprep.mubr.bf16.mxu0 0
      %2730 = vmatmul.mubr.bf16.gmra.mrb[0].mxu0 %v2479
      %v2731 = vpop.f32.mrb[0].mxu0
      %v2732 = vadd.f32 %v689, %v2731
      %v2733 = vpop.f32.mrb[0].mxu0
      %v2734 = vpop.f32.mrb[0].mxu0
      %v2735 = vadd.f32 %v689, %v2734
      %v2736 = vpop.f32.mrb[0].mxu0
      %2737 = vmatprep.mubr.bf16.mxu0 0
      %2738 = vmatmul.mubr.bf16.gmra.mrb[0].mxu0 %v2480
      %v2739 = vpop.f32.mrb[0].mxu0
      %v2740 = vadd.f32 %v689, %v2739
      %v2741 = vpop.f32.mrb[0].mxu0
      %v2742 = vpop.f32.mrb[0].mxu0
      %v2743 = vadd.f32 %v689, %v2742
      %v2744 = vpop.f32.mrb[0].mxu0
      %2745 = vmatprep.mubr.bf16.mxu0 0
      %2746 = vmatmul.mubr.bf16.gmra.mrb[0].mxu0 %v2481
      %v2747 = vpop.f32.mrb[0].mxu0
      %v2748 = vadd.f32 %v689, %v2747
      %v2749 = vpop.f32.mrb[0].mxu0
      %v2750 = vpop.f32.mrb[0].mxu0
      %v2751 = vadd.f32 %v689, %v2750
      %v2752 = vpop.f32.mrb[0].mxu0
      %2753 = vmatprep.mubr.bf16.mxu0 0
      %2754 = vmatmul.mubr.bf16.gmra.mrb[0].mxu0 %v2482
      %v2755 = vpop.f32.mrb[0].mxu0
      %v2756 = vadd.f32 %v689, %v2755
      %v2757 = vpop.f32.mrb[0].mxu0
      %v2758 = vpop.f32.mrb[0].mxu0
      %v2759 = vadd.f32 %v689, %v2758
      %v2760 = vpop.f32.mrb[0].mxu0
      %2761 = vmatprep.mubr.bf16.mxu0 0
      %2762 = vmatmul.mubr.bf16.gmra.mrb[0].mxu0 %v2483
      %v2763 = vpop.f32.mrb[0].mxu0
      %v2764 = vadd.f32 %v689, %v2763
      %v2765 = vpop.f32.mrb[0].mxu0
      %v2766 = vpop.f32.mrb[0].mxu0
      %v2767 = vadd.f32 %v689, %v2766
      %v2768 = vpop.f32.mrb[0].mxu0
      %2769 = vmatprep.mubr.bf16.mxu0 0
      %2770 = vmatmul.mubr.bf16.gmra.mrb[0].mxu0 %v2484
      %v2771 = vpop.f32.mrb[0].mxu0
      %v2772 = vadd.f32 %v689, %v2771
      %v2773 = vpop.f32.mrb[0].mxu0
      %v2774 = vpop.f32.mrb[0].mxu0
      %v2775 = vadd.f32 %v689, %v2774
      %v2776 = vpop.f32.mrb[0].mxu0
      %2777 = vmatprep.mubr.bf16.mxu0 0
      %2778 = vmatmul.mubr.bf16.gmra.mrb[0].mxu0 %v2485
      %v2779 = vpop.f32.mrb[0].mxu0
      %v2780 = vadd.f32 %v689, %v2779
      %v2781 = vpop.f32.mrb[0].mxu0
      %v2782 = vpop.f32.mrb[0].mxu0
      %v2783 = vadd.f32 %v689, %v2782
      %v2784 = vpop.f32.mrb[0].mxu0
      %2785 = vmatprep.mubr.bf16.mxu0 0
      %2786 = vmatmul.mubr.bf16.gmra.mrb[0].mxu0 %v2486
      %v2787 = vpop.f32.mrb[0].mxu0
      %v2788 = vadd.f32 %v689, %v2787
      %v2789 = vpop.f32.mrb[0].mxu0
      %v2790 = vpop.f32.mrb[0].mxu0
      %v2791 = vadd.f32 %v689, %v2790
      %v2792 = vpop.f32.mrb[0].mxu0
      %2793 = vmatprep.mubr.bf16.mxu0 0
      %2794 = vmatmul.mubr.bf16.gmra.mrb[0].mxu0 %v2487
      %v2795 = vpop.f32.mrb[0].mxu0
      %v2796 = vadd.f32 %v689, %v2795
      %v2797 = vpop.f32.mrb[0].mxu0
      %v2798 = vpop.f32.mrb[0].mxu0
      %v2799 = vadd.f32 %v689, %v2798
      %v2800 = vpop.f32.mrb[0].mxu0
      %2801 = vmatprep.mubr.bf16.mxu0 0
      %2802 = vmatmul.mubr.bf16.gmra.mrb[0].mxu0 %v2488
      %v2803 = vpop.f32.mrb[0].mxu0
      %v2804 = vadd.f32 %v689, %v2803
      %v2805 = vpop.f32.mrb[0].mxu0
      %v2806 = vpop.f32.mrb[0].mxu0
      %v2807 = vadd.f32 %v689, %v2806
      %v2808 = vpop.f32.mrb[0].mxu0
      %2809 = vmatprep.mubr.bf16.mxu0 0
      %2810 = vmatmul.mubr.bf16.gmra.mrb[0].mxu0 %v2489
      %v2811 = vpop.f32.mrb[0].mxu0
      %v2812 = vadd.f32 %v689, %v2811
      %v2813 = vpop.f32.mrb[0].mxu0
      %v2814 = vpop.f32.mrb[0].mxu0
      %v2815 = vadd.f32 %v689, %v2814
      %v2816 = vpop.f32.mrb[0].mxu0
      %2817 = vmatprep.mubr.bf16.mxu0 0
      %2818 = vmatmul.mubr.bf16.gmra.mrb[0].mxu0 %v2490
      %v2819 = vpop.f32.mrb[0].mxu0
      %v2820 = vadd.f32 %v689, %v2819
      %v2821 = vpop.f32.mrb[0].mxu0
      %v2822 = vpop.f32.mrb[0].mxu0
      %v2823 = vadd.f32 %v689, %v2822
      %v2824 = vpop.f32.mrb[0].mxu0
      %2825 = vmatprep.mubr.bf16.mxu0 0
      %2826 = vmatmul.mubr.bf16.gmra.mrb[0].mxu0 %v2491
      %v2827 = vpop.f32.mrb[0].mxu0
      %v2828 = vadd.f32 %v689, %v2827
      %v2829 = vpop.f32.mrb[0].mxu0
      %v2830 = vpop.f32.mrb[0].mxu0
      %v2831 = vadd.f32 %v689, %v2830
      %v2832 = vpop.f32.mrb[0].mxu0
      %2833 = vmatprep.mubr.bf16.mxu0 0
      %2834 = vmatmul.mubr.bf16.gmra.mrb[0].mxu0 %v2492
      %v2835 = vpop.f32.mrb[0].mxu0
      %v2836 = vadd.f32 %v689, %v2835
      %v2837 = vpop.f32.mrb[0].mxu0
      %v2838 = vpop.f32.mrb[0].mxu0
      %v2839 = vadd.f32 %v689, %v2838
      %v2840 = vpop.f32.mrb[0].mxu0
      %2841 = vmatprep.mubr.bf16.mxu0 0
      %2842 = vmatmul.mubr.bf16.gmra.mrb[0].mxu0 %v2493
      %v2843 = vpop.f32.mrb[0].mxu0
      %v2844 = vadd.f32 %v689, %v2843
      %v2845 = vpop.f32.mrb[0].mxu0
      %v2846 = vpop.f32.mrb[0].mxu0
      %v2847 = vadd.f32 %v689, %v2846
      %v2848 = vpop.f32.mrb[0].mxu0
      %2849 = vmatprep.mubr.bf16.mxu0 0
      %2850 = vmatmul.mubr.bf16.gmra.mrb[0].mxu0 %v2494
      %v2851 = vpop.f32.mrb[0].mxu0
      %v2852 = vadd.f32 %v689, %v2851
      %v2853 = vpop.f32.mrb[0].mxu0
      %v2854 = vpop.f32.mrb[0].mxu0
      %v2855 = vadd.f32 %v689, %v2854
      %v2856 = vpop.f32.mrb[0].mxu0
      %2857 = vmatprep.mubr.bf16.mxu0 0
      %2858 = vmatmul.mubr.bf16.gmra.mrb[0].mxu0 %v2495
      %v2859 = vpop.f32.mrb[0].mxu0
      %v2860 = vadd.f32 %v689, %v2859
      %v2861 = vpop.f32.mrb[0].mxu0
      %v2862 = vpop.f32.mrb[0].mxu0
      %v2863 = vadd.f32 %v689, %v2862
      %v2864 = vpop.f32.mrb[0].mxu0
      %2865 = vmatprep.mubr.bf16.mxu0 0
      %2866 = vmatmul.mubr.bf16.gmra.mrb[0].mxu0 %v2496
      %v2867 = vpop.f32.mrb[0].mxu0
      %v2868 = vadd.f32 %v689, %v2867
      %v2869 = vpop.f32.mrb[0].mxu0
      %v2870 = vpop.f32.mrb[0].mxu0
      %v2871 = vadd.f32 %v689, %v2870
      %v2872 = vpop.f32.mrb[0].mxu0
      %2873 = vmatprep.mubr.bf16.mxu0 0
      %2874 = vmatmul.mubr.bf16.gmra.mrb[0].mxu0 %v2497
      %v2875 = vpop.f32.mrb[0].mxu0
      %v2876 = vadd.f32 %v689, %v2875
      %v2877 = vpop.f32.mrb[0].mxu0
      %v2878 = vpop.f32.mrb[0].mxu0
      %v2879 = vadd.f32 %v689, %v2878
      %v2880 = vpop.f32.mrb[0].mxu0
      %2881 = vmatprep.mubr.bf16.mxu0 0
      %2882 = vmatmul.mubr.bf16.gmra.mrb[0].mxu0 %v2498
      %v2883 = vpop.f32.mrb[0].mxu0
      %v2884 = vadd.f32 %v689, %v2883
      %v2885 = vpop.f32.mrb[0].mxu0
      %v2886 = vpop.f32.mrb[0].mxu0
      %v2887 = vadd.f32 %v689, %v2886
      %v2888 = vpop.f32.mrb[0].mxu0
      %2889 = vmatprep.mubr.bf16.mxu0 0
      %2890 = vmatmul.mubr.bf16.gmra.mrb[0].mxu0 %v2499
      %v2891 = vpop.f32.mrb[0].mxu0
      %v2892 = vadd.f32 %v689, %v2891
      %v2893 = vpop.f32.mrb[0].mxu0
      %v2894 = vpop.f32.mrb[0].mxu0
      %v2895 = vadd.f32 %v689, %v2894
      %v2896 = vpop.f32.mrb[0].mxu0
      %2897 = vmatprep.mubr.bf16.mxu0 0
      %2898 = vmatmul.mubr.bf16.gmra.mrb[0].mxu0 %v2500
      %v2899 = vpop.f32.mrb[0].mxu0
      %v2900 = vadd.f32 %v689, %v2899
      %v2901 = vpop.f32.mrb[0].mxu0
      %v2902 = vpop.f32.mrb[0].mxu0
      %v2903 = vadd.f32 %v689, %v2902
      %v2904 = vpop.f32.mrb[0].mxu0
      %2905 = vmatprep.mubr.bf16.mxu0 0
      %2906 = vmatmul.mubr.bf16.gmra.mrb[0].mxu0 %v2501
      %v2907 = vpop.f32.mrb[0].mxu0
      %v2908 = vadd.f32 %v689, %v2907
      %v2909 = vpop.f32.mrb[0].mxu0
      %v2910 = vpop.f32.mrb[0].mxu0
      %v2911 = vadd.f32 %v689, %v2910
      %v2912 = vpop.f32.mrb[0].mxu0
      %2913 = vmatprep.mubr.bf16.mxu0 0
      %2914 = vmatmul.mubr.bf16.gmra.mrb[0].mxu0 %v2502
      %v2915 = vpop.f32.mrb[0].mxu0
      %v2916 = vadd.f32 %v689, %v2915
      %v2917 = vpop.f32.mrb[0].mxu0
      %v2918 = vpop.f32.mrb[0].mxu0
      %v2919 = vadd.f32 %v689, %v2918
      %v2920 = vpop.f32.mrb[0].mxu0
      %2921 = vmatprep.mubr.bf16.mxu0 0
      %2922 = vmatmul.mubr.bf16.gmra.mrb[0].mxu0 %v2503
      %v2923 = vpop.f32.mrb[0].mxu0
      %v2924 = vadd.f32 %v689, %v2923
      %v2925 = vpop.f32.mrb[0].mxu0
      %v2926 = vpop.f32.mrb[0].mxu0
      %v2927 = vadd.f32 %v689, %v2926
      %v2928 = vpop.f32.mrb[0].mxu0
      %2929 = vmatprep.mubr.bf16.mxu0 0
      %2930 = vmatmul.mubr.bf16.gmra.mrb[0].mxu0 %v2504
      %v2931 = vpop.f32.mrb[0].mxu0
      %v2932 = vadd.f32 %v689, %v2931
      %v2933 = vpop.f32.mrb[0].mxu0
      %v2934 = vpop.f32.mrb[0].mxu0
      %v2935 = vadd.f32 %v689, %v2934
      %v2936 = vpop.f32.mrb[0].mxu0
      %2937 = vmatprep.mubr.bf16.mxu0 0
      %2938 = vmatmul.mubr.bf16.gmra.mrb[0].mxu0 %v2505
      %v2939 = vpop.f32.mrb[0].mxu0
      %v2940 = vadd.f32 %v689, %v2939
      %v2941 = vpop.f32.mrb[0].mxu0
      %v2942 = vpop.f32.mrb[0].mxu0
      %v2943 = vadd.f32 %v689, %v2942
      %v2944 = vpop.f32.mrb[0].mxu0
      %2945 = vmatprep.mubr.bf16.mxu0 0
      %2946 = vmatmul.mubr.bf16.gmra.mrb[0].mxu0 %v2506
      %v2947 = vpop.f32.mrb[0].mxu0
      %v2948 = vadd.f32 %v689, %v2947
      %v2949 = vpop.f32.mrb[0].mxu0
      %v2950 = vpop.f32.mrb[0].mxu0
      %v2951 = vadd.f32 %v689, %v2950
      %v2952 = vpop.f32.mrb[0].mxu0
      %2953 = vmatprep.mubr.bf16.mxu0 0
      %2954 = vmatmul.mubr.bf16.gmra.mrb[0].mxu0 %v2507
      %v2955 = vpop.f32.mrb[0].mxu0
      %v2956 = vadd.f32 %v689, %v2955
      %v2957 = vpop.f32.mrb[0].mxu0
      %v2958 = vpop.f32.mrb[0].mxu0
      %v2959 = vadd.f32 %v689, %v2958
      %v2960 = vpop.f32.mrb[0].mxu0
      %2961 = vmatprep.mubr.bf16.mxu0 0
      %2962 = vmatmul.mubr.bf16.gmra.mrb[0].mxu0 %v2508
      %v2963 = vpop.f32.mrb[0].mxu0
      %v2964 = vadd.f32 %v689, %v2963
      %v2965 = vpop.f32.mrb[0].mxu0
      %v2966 = vpop.f32.mrb[0].mxu0
      %v2967 = vadd.f32 %v689, %v2966
      %v2968 = vpop.f32.mrb[0].mxu0
      %2969 = vmatprep.mubr.bf16.mxu0 0
      %2970 = vmatmul.mubr.bf16.gmra.mrb[0].mxu0 %v2509
      %v2971 = vpop.f32.mrb[0].mxu0
      %v2972 = vadd.f32 %v689, %v2971
      %v2973 = vpop.f32.mrb[0].mxu0
      %v2974 = vpop.f32.mrb[0].mxu0
      %v2975 = vadd.f32 %v689, %v2974
      %v2976 = vpop.f32.mrb[0].mxu0
      %2977 = vmatprep.mubr.bf16.mxu0 0
      %2978 = vmatmul.mubr.bf16.gmra.mrb[0].mxu0 %v2510
      %v2979 = vpop.f32.mrb[0].mxu0
      %v2980 = vadd.f32 %v689, %v2979
      %v2981 = vpop.f32.mrb[0].mxu0
      %v2982 = vpop.f32.mrb[0].mxu0
      %v2983 = vadd.f32 %v689, %v2982
      %v2984 = vpop.f32.mrb[0].mxu0
      %2985 = vmatprep.mubr.bf16.mxu0 0
      %2986 = vmatmul.mubr.bf16.gmra.mrb[0].mxu0 %v2511
      %v2987 = vpop.f32.mrb[0].mxu0
      %v2988 = vadd.f32 %v689, %v2987
      %v2989 = vpop.f32.mrb[0].mxu0
      %v2990 = vpop.f32.mrb[0].mxu0
      %v2991 = vadd.f32 %v689, %v2990
      %v2992 = vpop.f32.mrb[0].mxu0
      %2993 = vmatprep.mubr.bf16.mxu0 0
      %2994 = vmatmul.mubr.bf16.gmra.mrb[0].mxu0 %v2512
      %v2995 = vpop.f32.mrb[0].mxu0
      %v2996 = vadd.f32 %v689, %v2995
      %v2997 = vpop.f32.mrb[0].mxu0
      %v2998 = vpop.f32.mrb[0].mxu0
      %v2999 = vadd.f32 %v689, %v2998
      %v3000 = vpop.f32.mrb[0].mxu0
      %3001 = vmatprep.mubr.bf16.mxu0 0
      %3002 = vmatmul.mubr.bf16.gmra.mrb[0].mxu0 %v2513
      %v3003 = vpop.f32.mrb[0].mxu0
      %v3004 = vadd.f32 %v689, %v3003
      %v3005 = vpop.f32.mrb[0].mxu0
      %v3006 = vpop.f32.mrb[0].mxu0
      %v3007 = vadd.f32 %v689, %v3006
      %v3008 = vpop.f32.mrb[0].mxu0
      %3009 = vmatprep.mubr.bf16.mxu0 0
      %3010 = vmatmul.mubr.bf16.gmra.mrb[0].mxu0 %v2514
      %v3011 = vpop.f32.mrb[0].mxu0
      %v3012 = vadd.f32 %v689, %v3011
      %v3013 = vpop.f32.mrb[0].mxu0
      %v3014 = vpop.f32.mrb[0].mxu0
      %v3015 = vadd.f32 %v689, %v3014
      %v3016 = vpop.f32.mrb[0].mxu0
      %3017 = vmatprep.mubr.bf16.mxu0 0
      %3018 = vmatmul.mubr.bf16.gmra.mrb[0].mxu0 %v2515
      %v3019 = vpop.f32.mrb[0].mxu0
      %v3020 = vadd.f32 %v689, %v3019
      %v3021 = vpop.f32.mrb[0].mxu0
      %v3022 = vpop.f32.mrb[0].mxu0
      %v3023 = vadd.f32 %v689, %v3022
      %v3024 = vpop.f32.mrb[0].mxu0
      %3025 = vdwg.mxu0
      %v3026 = vmax.f32 %v2604, 0.0
      %v3027 = vmax.f32 %v2607, 0.0
      %v3028 = vmax.f32 %v2612, 0.0
      %v3029 = vmax.f32 %v2615, 0.0
      %v3030 = vmax.f32 %v2620, 0.0
      %v3031 = vmax.f32 %v2623, 0.0
      %v3032 = vmax.f32 %v2628, 0.0
      %v3033 = vmax.f32 %v2631, 0.0
      %v3034 = vmax.f32 %v2636, 0.0
      %v3035 = vmax.f32 %v2639, 0.0
      %v3036 = vmax.f32 %v2644, 0.0
      %v3037 = vmax.f32 %v2647, 0.0
      %v3038 = vmax.f32 %v2652, 0.0
      %v3039 = vmax.f32 %v2655, 0.0
      %v3040 = vmax.f32 %v2660, 0.0
      %v3041 = vmax.f32 %v2663, 0.0
      %v3042 = vmax.f32 %v2668, 0.0
      %v3043 = vmax.f32 %v2671, 0.0
      %v3044 = vmax.f32 %v2676, 0.0
      %v3045 = vmax.f32 %v2679, 0.0
      %v3046 = vmax.f32 %v2684, 0.0
      %v3047 = vmax.f32 %v2687, 0.0
      %v3048 = vmax.f32 %v2692, 0.0
      %v3049 = vmax.f32 %v2695, 0.0
      %v3050 = vmax.f32 %v2700, 0.0
      %v3051 = vmax.f32 %v2703, 0.0
      %v3052 = vmax.f32 %v2708, 0.0
      %v3053 = vmax.f32 %v2711, 0.0
      %v3054 = vmax.f32 %v2716, 0.0
      %v3055 = vmax.f32 %v2719, 0.0
      %v3056 = vmax.f32 %v2724, 0.0
      %v3057 = vmax.f32 %v2727, 0.0
      %v3058 = vmax.f32 %v2732, 0.0
      %v3059 = vmax.f32 %v2735, 0.0
      %v3060 = vmax.f32 %v2740, 0.0
      %v3061 = vmax.f32 %v2743, 0.0
      %v3062 = vmax.f32 %v2748, 0.0
      %v3063 = vmax.f32 %v2751, 0.0
      %v3064 = vmax.f32 %v2756, 0.0
      %v3065 = vmax.f32 %v2759, 0.0
      %v3066 = vmax.f32 %v2764, 0.0
      %v3067 = vmax.f32 %v2767, 0.0
      %v3068 = vmax.f32 %v2772, 0.0
      %v3069 = vmax.f32 %v2775, 0.0
      %v3070 = vmax.f32 %v2780, 0.0
      %v3071 = vmax.f32 %v2783, 0.0
      %v3072 = vmax.f32 %v2788, 0.0
      %v3073 = vmax.f32 %v2791, 0.0
      %v3074 = vmax.f32 %v2796, 0.0
      %v3075 = vmax.f32 %v2799, 0.0
      %v3076 = vmax.f32 %v2804, 0.0
      %v3077 = vmax.f32 %v2807, 0.0
      %v3078 = vmax.f32 %v2812, 0.0
      %v3079 = vmax.f32 %v2815, 0.0
      %v3080 = vmax.f32 %v2820, 0.0
      %v3081 = vmax.f32 %v2823, 0.0
      %v3082 = vmax.f32 %v2828, 0.0
      %v3083 = vmax.f32 %v2831, 0.0
      %v3084 = vmax.f32 %v2836, 0.0
      %v3085 = vmax.f32 %v2839, 0.0
      %v3086 = vmax.f32 %v2844, 0.0
      %v3087 = vmax.f32 %v2847, 0.0
      %v3088 = vmax.f32 %v2852, 0.0
      %v3089 = vmax.f32 %v2855, 0.0
      %v3090 = vmax.f32 %v2860, 0.0
      %v3091 = vmax.f32 %v2863, 0.0
      %v3092 = vmax.f32 %v2868, 0.0
      %v3093 = vmax.f32 %v2871, 0.0
      %v3094 = vmax.f32 %v2876, 0.0
      %v3095 = vmax.f32 %v2879, 0.0
      %v3096 = vmax.f32 %v2884, 0.0
      %v3097 = vmax.f32 %v2887, 0.0
      %v3098 = vmax.f32 %v2892, 0.0
      %v3099 = vmax.f32 %v2895, 0.0
      %v3100 = vmax.f32 %v2900, 0.0
      %v3101 = vmax.f32 %v2903, 0.0
      %v3102 = vmax.f32 %v2908, 0.0
      %v3103 = vmax.f32 %v2911, 0.0
      %v3104 = vmax.f32 %v2916, 0.0
      %v3105 = vmax.f32 %v2919, 0.0
      %v3106 = vmax.f32 %v2924, 0.0
      %v3107 = vmax.f32 %v2927, 0.0
      %v3108 = vmax.f32 %v2932, 0.0
      %v3109 = vmax.f32 %v2935, 0.0
      %v3110 = vmax.f32 %v2940, 0.0
      %v3111 = vmax.f32 %v2943, 0.0
      %v3112 = vmax.f32 %v2948, 0.0
      %v3113 = vmax.f32 %v2951, 0.0
      %v3114 = vmax.f32 %v2956, 0.0
      %v3115 = vmax.f32 %v2959, 0.0
      %v3116 = vmax.f32 %v2964, 0.0
      %v3117 = vmax.f32 %v2967, 0.0
      %v3118 = vmax.f32 %v2972, 0.0
      %v3119 = vmax.f32 %v2975, 0.0
      %v3120 = vmax.f32 %v2980, 0.0
      %v3121 = vmax.f32 %v2983, 0.0
      %v3122 = vmax.f32 %v2988, 0.0
      %v3123 = vmax.f32 %v2991, 0.0
      %v3124 = vmax.f32 %v2996, 0.0
      %v3125 = vmax.f32 %v2999, 0.0
      %v3126 = vmax.f32 %v3004, 0.0
      %v3127 = vmax.f32 %v3007, 0.0
      %v3128 = vmax.f32 %v3012, 0.0
      %v3129 = vmax.f32 %v3015, 0.0
      %v3130 = vmax.f32 %v3020, 0.0
      %v3131 = vmax.f32 %v3023, 0.0
      %v3137 = vrot.slane %v3029, 5
      %v3138 = vrot.slane %v3030, 5
      %v3139 = vsel %vm1625, %v3137, %v3138
      %v3140 = vrot.slane %v3031, 5
      %v3141 = vsel %vm1625, %v3138, %v3140
      %v3142 = vrot.slane %v3032, 5
      %v3143 = vsel %vm1625, %v3140, %v3142
      %v3144 = vrot.slane %v3033, 5
      %v3145 = vsel %vm1625, %v3142, %v3144
      %v3153 = vrot.slane %v3033, 2
      %v3154 = vrot.slane %v3034, 2
      %v3155 = vsel %vm1642, %v3153, %v3154
      %v3156 = vrot.slane %v3035, 2
      %v3157 = vsel %vm1642, %v3154, %v3156
      %v3158 = vrot.slane %v3036, 2
      %v3159 = vsel %vm1642, %v3156, %v3158
      %v3168 = vrot.slane %v3036, 7
      %v3169 = vrot.slane %v3037, 7
      %v3170 = vsel %vm1658, %v3168, %v3169
      %v3171 = vrot.slane %v3038, 7
      %v3172 = vsel %vm1658, %v3169, %v3171
      %v3173 = vrot.slane %v3039, 7
      %v3174 = vsel %vm1658, %v3171, %v3173
      %v3175 = vrot.slane %v3040, 7
      %v3176 = vsel %vm1658, %v3173, %v3175
      %v3185 = vrot.slane %v3040, 4
      %v3186 = vrot.slane %v3041, 4
      %v3187 = vsel %vm1676, %v3185, %v3186
      %v3188 = vrot.slane %v3042, 4
      %v3189 = vsel %vm1676, %v3186, %v3188
      %v3190 = vrot.slane %v3043, 4
      %v3191 = vsel %vm1676, %v3188, %v3190
      %v3192 = vrot.slane %v3044, 4
      %v3193 = vsel %vm1676, %v3190, %v3192
      %v3201 = vrot.slane %v3044, 1
      %v3202 = vrot.slane %v3045, 1
      %v3203 = vsel %vm1693, %v3201, %v3202
      %v3204 = vrot.slane %v3046, 1
      %v3205 = vsel %vm1693, %v3202, %v3204
      %v3206 = vrot.slane %v3047, 1
      %v3207 = vsel %vm1693, %v3204, %v3206
      %v3216 = vrot.slane %v3047, 6
      %v3217 = vrot.slane %v3048, 6
      %v3218 = vsel %vm1709, %v3216, %v3217
      %v3219 = vrot.slane %v3049, 6
      %v3220 = vsel %vm1709, %v3217, %v3219
      %v3221 = vrot.slane %v3050, 6
      %v3222 = vsel %vm1709, %v3219, %v3221
      %v3223 = vrot.slane %v3051, 6
      %v3224 = vsel %vm1709, %v3221, %v3223
      %v3232 = vrot.slane %v3051, 3
      %v3233 = vrot.slane %v3052, 3
      %v3234 = vsel %vm1726, %v3232, %v3233
      %v3235 = vrot.slane %v3053, 3
      %v3236 = vsel %vm1726, %v3233, %v3235
      %v3237 = vrot.slane %v3054, 3
      %v3238 = vsel %vm1726, %v3235, %v3237
      %v3248 = vrot.slane %v3058, 5
      %v3249 = vrot.slane %v3059, 5
      %v3250 = vsel %vm1625, %v3248, %v3249
      %v3251 = vrot.slane %v3060, 5
      %v3252 = vsel %vm1625, %v3249, %v3251
      %v3253 = vrot.slane %v3061, 5
      %v3254 = vsel %vm1625, %v3251, %v3253
      %v3255 = vrot.slane %v3062, 5
      %v3256 = vsel %vm1625, %v3253, %v3255
      %v3264 = vrot.slane %v3062, 2
      %v3265 = vrot.slane %v3063, 2
      %v3266 = vsel %vm1642, %v3264, %v3265
      %v3267 = vrot.slane %v3064, 2
      %v3268 = vsel %vm1642, %v3265, %v3267
      %v3269 = vrot.slane %v3065, 2
      %v3270 = vsel %vm1642, %v3267, %v3269
      %v3279 = vrot.slane %v3065, 7
      %v3280 = vrot.slane %v3066, 7
      %v3281 = vsel %vm1658, %v3279, %v3280
      %v3282 = vrot.slane %v3067, 7
      %v3283 = vsel %vm1658, %v3280, %v3282
      %v3284 = vrot.slane %v3068, 7
      %v3285 = vsel %vm1658, %v3282, %v3284
      %v3286 = vrot.slane %v3069, 7
      %v3287 = vsel %vm1658, %v3284, %v3286
      %v3296 = vrot.slane %v3069, 4
      %v3297 = vrot.slane %v3070, 4
      %v3298 = vsel %vm1676, %v3296, %v3297
      %v3299 = vrot.slane %v3071, 4
      %v3300 = vsel %vm1676, %v3297, %v3299
      %v3301 = vrot.slane %v3072, 4
      %v3302 = vsel %vm1676, %v3299, %v3301
      %v3303 = vrot.slane %v3073, 4
      %v3304 = vsel %vm1676, %v3301, %v3303
      %v3312 = vrot.slane %v3073, 1
      %v3313 = vrot.slane %v3074, 1
      %v3314 = vsel %vm1693, %v3312, %v3313
      %v3315 = vrot.slane %v3075, 1
      %v3316 = vsel %vm1693, %v3313, %v3315
      %v3317 = vrot.slane %v3076, 1
      %v3318 = vsel %vm1693, %v3315, %v3317
      %v3327 = vrot.slane %v3076, 6
      %v3328 = vrot.slane %v3077, 6
      %v3329 = vsel %vm1709, %v3327, %v3328
      %v3330 = vrot.slane %v3078, 6
      %v3331 = vsel %vm1709, %v3328, %v3330
      %v3332 = vrot.slane %v3079, 6
      %v3333 = vsel %vm1709, %v3330, %v3332
      %v3334 = vrot.slane %v3080, 6
      %v3335 = vsel %vm1709, %v3332, %v3334
      %v3343 = vrot.slane %v3080, 3
      %v3344 = vrot.slane %v3081, 3
      %v3345 = vsel %vm1726, %v3343, %v3344
      %v3346 = vrot.slane %v3082, 3
      %v3347 = vsel %vm1726, %v3344, %v3346
      %v3348 = vrot.slane %v3083, 3
      %v3349 = vsel %vm1726, %v3346, %v3348
      %v3359 = vrot.slane %v3087, 5
      %v3360 = vrot.slane %v3088, 5
      %v3361 = vsel %vm1625, %v3359, %v3360
      %v3362 = vrot.slane %v3089, 5
      %v3363 = vsel %vm1625, %v3360, %v3362
      %v3364 = vrot.slane %v3090, 5
      %v3365 = vsel %vm1625, %v3362, %v3364
      %v3366 = vrot.slane %v3091, 5
      %v3367 = vsel %vm1625, %v3364, %v3366
      %v3375 = vrot.slane %v3091, 2
      %v3376 = vrot.slane %v3092, 2
      %v3377 = vsel %vm1642, %v3375, %v3376
      %v3378 = vrot.slane %v3093, 2
      %v3379 = vsel %vm1642, %v3376, %v3378
      %v3380 = vrot.slane %v3094, 2
      %v3381 = vsel %vm1642, %v3378, %v3380
      %v3390 = vrot.slane %v3094, 7
      %v3391 = vrot.slane %v3095, 7
      %v3392 = vsel %vm1658, %v3390, %v3391
      %v3393 = vrot.slane %v3096, 7
      %v3394 = vsel %vm1658, %v3391, %v3393
      %v3395 = vrot.slane %v3097, 7
      %v3396 = vsel %vm1658, %v3393, %v3395
      %v3397 = vrot.slane %v3098, 7
      %v3398 = vsel %vm1658, %v3395, %v3397
      %v3407 = vrot.slane %v3098, 4
      %v3408 = vrot.slane %v3099, 4
      %v3409 = vsel %vm1676, %v3407, %v3408
      %v3410 = vrot.slane %v3100, 4
      %v3411 = vsel %vm1676, %v3408, %v3410
      %v3412 = vrot.slane %v3101, 4
      %v3413 = vsel %vm1676, %v3410, %v3412
      %v3414 = vrot.slane %v3102, 4
      %v3415 = vsel %vm1676, %v3412, %v3414
      %v3423 = vrot.slane %v3102, 1
      %v3424 = vrot.slane %v3103, 1
      %v3425 = vsel %vm1693, %v3423, %v3424
      %v3426 = vrot.slane %v3104, 1
      %v3427 = vsel %vm1693, %v3424, %v3426
      %v3428 = vrot.slane %v3105, 1
      %v3429 = vsel %vm1693, %v3426, %v3428
      %v3438 = vrot.slane %v3105, 6
      %v3439 = vrot.slane %v3106, 6
      %v3440 = vsel %vm1709, %v3438, %v3439
      %v3441 = vrot.slane %v3107, 6
      %v3442 = vsel %vm1709, %v3439, %v3441
      %v3443 = vrot.slane %v3108, 6
      %v3444 = vsel %vm1709, %v3441, %v3443
      %v3445 = vrot.slane %v3109, 6
      %v3446 = vsel %vm1709, %v3443, %v3445
      %v3454 = vrot.slane %v3109, 3
      %v3455 = vrot.slane %v3110, 3
      %v3456 = vsel %vm1726, %v3454, %v3455
      %v3457 = vrot.slane %v3111, 3
      %v3458 = vsel %vm1726, %v3455, %v3457
      %v3459 = vrot.slane %v3112, 3
      %v3460 = vsel %vm1726, %v3457, %v3459
      %v3470 = vrot.slane %v3116, 5
      %v3471 = vrot.slane %v3117, 5
      %v3472 = vsel %vm1625, %v3470, %v3471
      %v3473 = vrot.slane %v3118, 5
      %v3474 = vsel %vm1625, %v3471, %v3473
      %v3475 = vrot.slane %v3119, 5
      %v3476 = vsel %vm1625, %v3473, %v3475
      %v3477 = vrot.slane %v3120, 5
      %v3478 = vsel %vm1625, %v3475, %v3477
      %v3486 = vrot.slane %v3120, 2
      %v3487 = vrot.slane %v3121, 2
      %v3488 = vsel %vm1642, %v3486, %v3487
      %v3489 = vrot.slane %v3122, 2
      %v3490 = vsel %vm1642, %v3487, %v3489
      %v3491 = vrot.slane %v3123, 2
      %v3492 = vsel %vm1642, %v3489, %v3491
      %v3501 = vrot.slane %v3123, 7
      %v3502 = vrot.slane %v3124, 7
      %v3503 = vsel %vm1658, %v3501, %v3502
      %v3504 = vrot.slane %v3125, 7
      %v3505 = vsel %vm1658, %v3502, %v3504
      %v3506 = vrot.slane %v3126, 7
      %v3507 = vsel %vm1658, %v3504, %v3506
      %v3508 = vrot.slane %v3127, 7
      %v3509 = vsel %vm1658, %v3506, %v3508
      %v3518 = vrot.slane %v3127, 4
      %v3519 = vrot.slane %v3128, 4
      %v3520 = vsel %vm1676, %v3518, %v3519
      %v3521 = vrot.slane %v3129, 4
      %v3522 = vsel %vm1676, %v3519, %v3521
      %v3523 = vrot.slane %v3130, 4
      %v3524 = vsel %vm1676, %v3521, %v3523
      %v3525 = vrot.slane %v3131, 4
      %v3526 = vsel %vm1676, %v3523, %v3525
      %s3531 = scalar_lea.vmem [#allocation2], 928
      %3532 = vst.msk [vmem:[%s3531] sm:$0xff] %vm2026, %v3026
      %3533 = vst.msk [vmem:[%s3531 + $0x8] sm:$0xff] %vm2026, %v3027
      %3534 = vst.msk [vmem:[%s3531 + $0x10] sm:$0xff] %vm2026, %v3028
      %3535 = vst.msk [vmem:[%s3531 + $0x18] sm:$0x1f] %vm2030, %v3029
      %3536 = vst.msk [vmem:[%s3531 + $0x20] sm:$0xff] %vm2026, %v3139
      %3537 = vst.msk [vmem:[%s3531 + $0x28] sm:$0xff] %vm2026, %v3141
      %3538 = vst.msk [vmem:[%s3531 + $0x30] sm:$0xff] %vm2026, %v3143
      %3539 = vst.msk [vmem:[%s3531 + $0x38] sm:$0x1f] %vm2030, %v3145
      %3540 = vst.msk [vmem:[%s3531 + $0x40] sm:$0xff] %vm2026, %v3155
      %3541 = vst.msk [vmem:[%s3531 + $0x48] sm:$0xff] %vm2026, %v3157
      %3542 = vst.msk [vmem:[%s3531 + $0x50] sm:$0xff] %vm2026, %v3159
      %3543 = vst.msk [vmem:[%s3531 + $0x58] sm:$0x1f] %vm2030, %v3158
      %3544 = vst.msk [vmem:[%s3531 + $0x60] sm:$0xff] %vm2026, %v3170
      %3545 = vst.msk [vmem:[%s3531 + $0x68] sm:$0xff] %vm2026, %v3172
      %3546 = vst.msk [vmem:[%s3531 + $0x70] sm:$0xff] %vm2026, %v3174
      %3547 = vst.msk [vmem:[%s3531 + $0x78] sm:$0x1f] %vm2030, %v3176
      %3548 = vst.msk [vmem:[%s3531 + $0x80] sm:$0xff] %vm2026, %v3187
      %3549 = vst.msk [vmem:[%s3531 + $0x88] sm:$0xff] %vm2026, %v3189
      %3550 = vst.msk [vmem:[%s3531 + $0x90] sm:$0xff] %vm2026, %v3191
      %3551 = vst.msk [vmem:[%s3531 + $0x98] sm:$0x1f] %vm2030, %v3193
      %3552 = vst.msk [vmem:[%s3531 + $0xa0] sm:$0xff] %vm2026, %v3203
      %3553 = vst.msk [vmem:[%s3531 + $0xa8] sm:$0xff] %vm2026, %v3205
      %3554 = vst.msk [vmem:[%s3531 + $0xb0] sm:$0xff] %vm2026, %v3207
      %3555 = vst.msk [vmem:[%s3531 + $0xb8] sm:$0x1f] %vm2030, %v3206
      %3556 = vst.msk [vmem:[%s3531 + $0xc0] sm:$0xff] %vm2026, %v3218
      %3557 = vst.msk [vmem:[%s3531 + $0xc8] sm:$0xff] %vm2026, %v3220
      %3558 = vst.msk [vmem:[%s3531 + $0xd0] sm:$0xff] %vm2026, %v3222
      %3559 = vst.msk [vmem:[%s3531 + $0xd8] sm:$0x1f] %vm2030, %v3224
      %3560 = vst.msk [vmem:[%s3531 + $0xe0] sm:$0xff] %vm2026, %v3234
      %3561 = vst.msk [vmem:[%s3531 + $0xe8] sm:$0xff] %vm2026, %v3236
      %3562 = vst.msk [vmem:[%s3531 + $0xf0] sm:$0xff] %vm2026, %v3238
      %3563 = vst.msk [vmem:[%s3531 + $0xf8] sm:$0x1f] %vm2030, %v3237
      %3564 = vst.msk [vmem:[%s3531 + $0x100] sm:$0xff] %vm2026, %v3055
      %3565 = vst.msk [vmem:[%s3531 + $0x108] sm:$0xff] %vm2026, %v3056
      %3566 = vst.msk [vmem:[%s3531 + $0x110] sm:$0xff] %vm2026, %v3057
      %3567 = vst.msk [vmem:[%s3531 + $0x118] sm:$0x1f] %vm2030, %v3058
      %3568 = vst.msk [vmem:[%s3531 + $0x120] sm:$0xff] %vm2026, %v3250
      %3569 = vst.msk [vmem:[%s3531 + $0x128] sm:$0xff] %vm2026, %v3252
      %3570 = vst.msk [vmem:[%s3531 + $0x130] sm:$0xff] %vm2026, %v3254
      %3571 = vst.msk [vmem:[%s3531 + $0x138] sm:$0x1f] %vm2030, %v3256
      %3572 = vst.msk [vmem:[%s3531 + $0x140] sm:$0xff] %vm2026, %v3266
      %3573 = vst.msk [vmem:[%s3531 + $0x148] sm:$0xff] %vm2026, %v3268
      %3574 = vst.msk [vmem:[%s3531 + $0x150] sm:$0xff] %vm2026, %v3270
      %3575 = vst.msk [vmem:[%s3531 + $0x158] sm:$0x1f] %vm2030, %v3269
      %3576 = vst.msk [vmem:[%s3531 + $0x160] sm:$0xff] %vm2026, %v3281
      %3577 = vst.msk [vmem:[%s3531 + $0x168] sm:$0xff] %vm2026, %v3283
      %3578 = vst.msk [vmem:[%s3531 + $0x170] sm:$0xff] %vm2026, %v3285
      %3579 = vst.msk [vmem:[%s3531 + $0x178] sm:$0x1f] %vm2030, %v3287
      %3580 = vst.msk [vmem:[%s3531 + $0x180] sm:$0xff] %vm2026, %v3298
      %3581 = vst.msk [vmem:[%s3531 + $0x188] sm:$0xff] %vm2026, %v3300
      %3582 = vst.msk [vmem:[%s3531 + $0x190] sm:$0xff] %vm2026, %v3302
      %3583 = vst.msk [vmem:[%s3531 + $0x198] sm:$0x1f] %vm2030, %v3304
      %3584 = vst.msk [vmem:[%s3531 + $0x1a0] sm:$0xff] %vm2026, %v3314
      %3585 = vst.msk [vmem:[%s3531 + $0x1a8] sm:$0xff] %vm2026, %v3316
      %3586 = vst.msk [vmem:[%s3531 + $0x1b0] sm:$0xff] %vm2026, %v3318
      %3587 = vst.msk [vmem:[%s3531 + $0x1b8] sm:$0x1f] %vm2030, %v3317
      %3588 = vst.msk [vmem:[%s3531 + $0x1c0] sm:$0xff] %vm2026, %v3329
      %3589 = vst.msk [vmem:[%s3531 + $0x1c8] sm:$0xff] %vm2026, %v3331
      %3590 = vst.msk [vmem:[%s3531 + $0x1d0] sm:$0xff] %vm2026, %v3333
      %3591 = vst.msk [vmem:[%s3531 + $0x1d8] sm:$0x1f] %vm2030, %v3335
      %3592 = vst.msk [vmem:[%s3531 + $0x1e0] sm:$0xff] %vm2026, %v3345
      %3593 = vst.msk [vmem:[%s3531 + $0x1e8] sm:$0xff] %vm2026, %v3347
      %3594 = vst.msk [vmem:[%s3531 + $0x1f0] sm:$0xff] %vm2026, %v3349
      %3595 = vst.msk [vmem:[%s3531 + $0x1f8] sm:$0x1f] %vm2030, %v3348
      %3596 = vst.msk [vmem:[%s3531 + $0x200] sm:$0xff] %vm2026, %v3084
      %3597 = vst.msk [vmem:[%s3531 + $0x208] sm:$0xff] %vm2026, %v3085
      %3598 = vst.msk [vmem:[%s3531 + $0x210] sm:$0xff] %vm2026, %v3086
      %3599 = vst.msk [vmem:[%s3531 + $0x218] sm:$0x1f] %vm2030, %v3087
      %3600 = vst.msk [vmem:[%s3531 + $0x220] sm:$0xff] %vm2026, %v3361
      %3601 = vst.msk [vmem:[%s3531 + $0x228] sm:$0xff] %vm2026, %v3363
      %3602 = vst.msk [vmem:[%s3531 + $0x230] sm:$0xff] %vm2026, %v3365
      %3603 = vst.msk [vmem:[%s3531 + $0x238] sm:$0x1f] %vm2030, %v3367
      %3604 = vst.msk [vmem:[%s3531 + $0x240] sm:$0xff] %vm2026, %v3377
      %3605 = vst.msk [vmem:[%s3531 + $0x248] sm:$0xff] %vm2026, %v3379
      %3606 = vst.msk [vmem:[%s3531 + $0x250] sm:$0xff] %vm2026, %v3381
      %3607 = vst.msk [vmem:[%s3531 + $0x258] sm:$0x1f] %vm2030, %v3380
      %3608 = vst.msk [vmem:[%s3531 + $0x260] sm:$0xff] %vm2026, %v3392
      %3609 = vst.msk [vmem:[%s3531 + $0x268] sm:$0xff] %vm2026, %v3394
      %3610 = vst.msk [vmem:[%s3531 + $0x270] sm:$0xff] %vm2026, %v3396
      %3611 = vst.msk [vmem:[%s3531 + $0x278] sm:$0x1f] %vm2030, %v3398
      %3612 = vst.msk [vmem:[%s3531 + $0x280] sm:$0xff] %vm2026, %v3409
      %3613 = vst.msk [vmem:[%s3531 + $0x288] sm:$0xff] %vm2026, %v3411
      %3614 = vst.msk [vmem:[%s3531 + $0x290] sm:$0xff] %vm2026, %v3413
      %3615 = vst.msk [vmem:[%s3531 + $0x298] sm:$0x1f] %vm2030, %v3415
      %3616 = vst.msk [vmem:[%s3531 + $0x2a0] sm:$0xff] %vm2026, %v3425
      %3617 = vst.msk [vmem:[%s3531 + $0x2a8] sm:$0xff] %vm2026, %v3427
      %3618 = vst.msk [vmem:[%s3531 + $0x2b0] sm:$0xff] %vm2026, %v3429
      %3619 = vst.msk [vmem:[%s3531 + $0x2b8] sm:$0x1f] %vm2030, %v3428
      %3620 = vst.msk [vmem:[%s3531 + $0x2c0] sm:$0xff] %vm2026, %v3440
      %3621 = vst.msk [vmem:[%s3531 + $0x2c8] sm:$0xff] %vm2026, %v3442
      %3622 = vst.msk [vmem:[%s3531 + $0x2d0] sm:$0xff] %vm2026, %v3444
      %3623 = vst.msk [vmem:[%s3531 + $0x2d8] sm:$0x1f] %vm2030, %v3446
      %3624 = vst.msk [vmem:[%s3531 + $0x2e0] sm:$0xff] %vm2026, %v3456
      %3625 = vst.msk [vmem:[%s3531 + $0x2e8] sm:$0xff] %vm2026, %v3458
      %3626 = vst.msk [vmem:[%s3531 + $0x2f0] sm:$0xff] %vm2026, %v3460
      %3627 = vst.msk [vmem:[%s3531 + $0x2f8] sm:$0x1f] %vm2030, %v3459
      %3628 = vst.msk [vmem:[%s3531 + $0x300] sm:$0xff] %vm2026, %v3113
      %3629 = vst.msk [vmem:[%s3531 + $0x308] sm:$0xff] %vm2026, %v3114
      %3630 = vst.msk [vmem:[%s3531 + $0x310] sm:$0xff] %vm2026, %v3115
      %3631 = vst.msk [vmem:[%s3531 + $0x318] sm:$0x1f] %vm2030, %v3116
      %3632 = vst.msk [vmem:[%s3531 + $0x320] sm:$0xff] %vm2026, %v3472
      %3633 = vst.msk [vmem:[%s3531 + $0x328] sm:$0xff] %vm2026, %v3474
      %3634 = vst.msk [vmem:[%s3531 + $0x330] sm:$0xff] %vm2026, %v3476
      %3635 = vst.msk [vmem:[%s3531 + $0x338] sm:$0x1f] %vm2030, %v3478
      %3636 = vst.msk [vmem:[%s3531 + $0x340] sm:$0xff] %vm2026, %v3488
      %3637 = vst.msk [vmem:[%s3531 + $0x348] sm:$0xff] %vm2026, %v3490
      %3638 = vst.msk [vmem:[%s3531 + $0x350] sm:$0xff] %vm2026, %v3492
      %3639 = vst.msk [vmem:[%s3531 + $0x358] sm:$0x1f] %vm2030, %v3491
      %3640 = vst.msk [vmem:[%s3531 + $0x360] sm:$0xff] %vm2026, %v3503
      %3641 = vst.msk [vmem:[%s3531 + $0x368] sm:$0xff] %vm2026, %v3505
      %3642 = vst.msk [vmem:[%s3531 + $0x370] sm:$0xff] %vm2026, %v3507
      %3643 = vst.msk [vmem:[%s3531 + $0x378] sm:$0x1f] %vm2030, %v3509
      %3644 = vst.msk [vmem:[%s3531 + $0x380] sm:$0xff] %vm2026, %v3520
      %3645 = vst.msk [vmem:[%s3531 + $0x388] sm:$0xff] %vm2026, %v3522
      %3646 = vst.msk [vmem:[%s3531 + $0x390] sm:$0xff] %vm2026, %v3524
      %3647 = vst.msk [vmem:[%s3531 + $0x398] sm:$0x1f] %vm2030, %v3526
      %v3648 = vld [vmem:[#allocation2] sm:$0xff]
      %v3649 = vld [vmem:[#allocation2 + $0x8] sm:$0xff]
      %v3650 = vld [vmem:[#allocation2 + $0x10] sm:$0xff]
      %v3651 = vld [vmem:[#allocation2 + $0x18] sm:$0x1f]
      %v3652 = vld [vmem:[#allocation2 + $0x20] sm:$0xff]
      %v3653 = vld [vmem:[#allocation2 + $0x28] sm:$0xff]
      %v3654 = vld [vmem:[#allocation2 + $0x30] sm:$0xff]
      %v3655 = vld [vmem:[#allocation2 + $0x38] sm:$0x1f]
      %v3656 = vld [vmem:[#allocation2 + $0x40] sm:$0xff]
      %v3657 = vld [vmem:[#allocation2 + $0x48] sm:$0xff]
      %v3658 = vld [vmem:[#allocation2 + $0x50] sm:$0xff]
      %v3659 = vld [vmem:[#allocation2 + $0x58] sm:$0x1f]
      %v3660 = vld [vmem:[#allocation2 + $0x60] sm:$0xff]
      %v3661 = vld [vmem:[#allocation2 + $0x68] sm:$0xff]
      %v3662 = vld [vmem:[#allocation2 + $0x70] sm:$0xff]
      %v3663 = vld [vmem:[#allocation2 + $0x78] sm:$0x1f]
      %v3664 = vld [vmem:[#allocation2 + $0x80] sm:$0xff]
      %v3665 = vld [vmem:[#allocation2 + $0x88] sm:$0xff]
      %v3666 = vld [vmem:[#allocation2 + $0x90] sm:$0xff]
      %v3667 = vld [vmem:[#allocation2 + $0x98] sm:$0x1f]
      %v3668 = vld [vmem:[#allocation2 + $0xa0] sm:$0xff]
      %v3669 = vld [vmem:[#allocation2 + $0xa8] sm:$0xff]
      %v3670 = vld [vmem:[#allocation2 + $0xb0] sm:$0xff]
      %v3671 = vld [vmem:[#allocation2 + $0xb8] sm:$0x1f]
      %v3672 = vld [vmem:[#allocation2 + $0xc0] sm:$0xff]
      %v3673 = vld [vmem:[#allocation2 + $0xc8] sm:$0xff]
      %v3674 = vld [vmem:[#allocation2 + $0xd0] sm:$0xff]
      %v3675 = vld [vmem:[#allocation2 + $0xd8] sm:$0x1f]
      %v3676 = vld [vmem:[#allocation2 + $0xe0] sm:$0xff]
      %v3677 = vld [vmem:[#allocation2 + $0xe8] sm:$0xff]
      %v3678 = vld [vmem:[#allocation2 + $0xf0] sm:$0xff]
      %v3679 = vld [vmem:[#allocation2 + $0xf8] sm:$0x1f]
      %v3680 = vld [vmem:[#allocation2 + $0x100] sm:$0xff]
      %v3681 = vld [vmem:[#allocation2 + $0x108] sm:$0xff]
      %v3682 = vld [vmem:[#allocation2 + $0x110] sm:$0xff]
      %v3683 = vld [vmem:[#allocation2 + $0x118] sm:$0x1f]
      %v3684 = vld [vmem:[#allocation2 + $0x120] sm:$0xff]
      %v3685 = vld [vmem:[#allocation2 + $0x128] sm:$0xff]
      %v3686 = vld [vmem:[#allocation2 + $0x130] sm:$0xff]
      %v3687 = vld [vmem:[#allocation2 + $0x138] sm:$0x1f]
      %v3688 = vld [vmem:[#allocation2 + $0x140] sm:$0xff]
      %v3689 = vld [vmem:[#allocation2 + $0x148] sm:$0xff]
      %v3690 = vld [vmem:[#allocation2 + $0x150] sm:$0xff]
      %v3691 = vld [vmem:[#allocation2 + $0x158] sm:$0x1f]
      %v3692 = vld [vmem:[#allocation2 + $0x160] sm:$0xff]
      %v3693 = vld [vmem:[#allocation2 + $0x168] sm:$0xff]
      %v3694 = vld [vmem:[#allocation2 + $0x170] sm:$0xff]
      %v3695 = vld [vmem:[#allocation2 + $0x178] sm:$0x1f]
      %v3696 = vld [vmem:[#allocation2 + $0x180] sm:$0xff]
      %v3697 = vld [vmem:[#allocation2 + $0x188] sm:$0xff]
      %v3698 = vld [vmem:[#allocation2 + $0x190] sm:$0xff]
      %v3699 = vld [vmem:[#allocation2 + $0x198] sm:$0x1f]
      %v3700 = vld [vmem:[#allocation2 + $0x1a0] sm:$0xff]
      %v3701 = vld [vmem:[#allocation2 + $0x1a8] sm:$0xff]
      %v3702 = vld [vmem:[#allocation2 + $0x1b0] sm:$0xff]
      %v3703 = vld [vmem:[#allocation2 + $0x1b8] sm:$0x1f]
      %v3704 = vld [vmem:[#allocation2 + $0x1c0] sm:$0xff]
      %v3705 = vld [vmem:[#allocation2 + $0x1c8] sm:$0xff]
      %v3706 = vld [vmem:[#allocation2 + $0x1d0] sm:$0xff]
      %v3707 = vld [vmem:[#allocation2 + $0x1d8] sm:$0x1f]
      %v3708 = vld [vmem:[#allocation2 + $0x1e0] sm:$0xff]
      %v3709 = vld [vmem:[#allocation2 + $0x1e8] sm:$0xff]
      %v3710 = vld [vmem:[#allocation2 + $0x1f0] sm:$0xff]
      %v3711 = vld [vmem:[#allocation2 + $0x1f8] sm:$0x1f]
      %v3712 = vld [vmem:[#allocation2 + $0x200] sm:$0xff]
      %v3713 = vld [vmem:[#allocation2 + $0x208] sm:$0xff]
      %v3714 = vld [vmem:[#allocation2 + $0x210] sm:$0xff]
      %v3715 = vld [vmem:[#allocation2 + $0x218] sm:$0x1f]
      %v3716 = vld [vmem:[#allocation2 + $0x220] sm:$0xff]
      %v3717 = vld [vmem:[#allocation2 + $0x228] sm:$0xff]
      %v3718 = vld [vmem:[#allocation2 + $0x230] sm:$0xff]
      %v3719 = vld [vmem:[#allocation2 + $0x238] sm:$0x1f]
      %v3720 = vld [vmem:[#allocation2 + $0x240] sm:$0xff]
      %v3721 = vld [vmem:[#allocation2 + $0x248] sm:$0xff]
      %v3722 = vld [vmem:[#allocation2 + $0x250] sm:$0xff]
      %v3723 = vld [vmem:[#allocation2 + $0x258] sm:$0x1f]
      %v3724 = vld [vmem:[#allocation2 + $0x260] sm:$0xff]
      %v3725 = vld [vmem:[#allocation2 + $0x268] sm:$0xff]
      %v3726 = vld [vmem:[#allocation2 + $0x270] sm:$0xff]
      %v3727 = vld [vmem:[#allocation2 + $0x278] sm:$0x1f]
      %v3728 = vld [vmem:[#allocation2 + $0x280] sm:$0xff]
      %v3729 = vld [vmem:[#allocation2 + $0x288] sm:$0xff]
      %v3730 = vld [vmem:[#allocation2 + $0x290] sm:$0xff]
      %v3731 = vld [vmem:[#allocation2 + $0x298] sm:$0x1f]
      %v3732 = vld [vmem:[#allocation2 + $0x2a0] sm:$0xff]
      %v3733 = vld [vmem:[#allocation2 + $0x2a8] sm:$0xff]
      %v3734 = vld [vmem:[#allocation2 + $0x2b0] sm:$0xff]
      %v3735 = vld [vmem:[#allocation2 + $0x2b8] sm:$0x1f]
      %v3736 = vld [vmem:[#allocation2 + $0x2c0] sm:$0xff]
      %v3737 = vld [vmem:[#allocation2 + $0x2c8] sm:$0xff]
      %v3738 = vld [vmem:[#allocation2 + $0x2d0] sm:$0xff]
      %v3739 = vld [vmem:[#allocation2 + $0x2d8] sm:$0x1f]
      %v3740 = vld [vmem:[#allocation2 + $0x2e0] sm:$0xff]
      %v3741 = vld [vmem:[#allocation2 + $0x2e8] sm:$0xff]
      %v3742 = vld [vmem:[#allocation2 + $0x2f0] sm:$0xff]
      %v3743 = vld [vmem:[#allocation2 + $0x2f8] sm:$0x1f]
      %v3744 = vld [vmem:[#allocation2 + $0x300] sm:$0xff]
      %v3745 = vld [vmem:[#allocation2 + $0x308] sm:$0xff]
      %v3746 = vld [vmem:[#allocation2 + $0x310] sm:$0xff]
      %v3747 = vld [vmem:[#allocation2 + $0x318] sm:$0x1f]
      %v3748 = vld [vmem:[#allocation2 + $0x320] sm:$0xff]
      %v3749 = vld [vmem:[#allocation2 + $0x328] sm:$0xff]
      %v3750 = vld [vmem:[#allocation2 + $0x330] sm:$0xff]
      %v3751 = vld [vmem:[#allocation2 + $0x338] sm:$0x1f]
      %v3752 = vld [vmem:[#allocation2 + $0x340] sm:$0xff]
      %v3753 = vld [vmem:[#allocation2 + $0x348] sm:$0xff]
      %v3754 = vld [vmem:[#allocation2 + $0x350] sm:$0xff]
      %v3755 = vld [vmem:[#allocation2 + $0x358] sm:$0x1f]
      %v3756 = vld [vmem:[#allocation2 + $0x360] sm:$0xff]
      %v3757 = vld [vmem:[#allocation2 + $0x368] sm:$0xff]
      %v3758 = vld [vmem:[#allocation2 + $0x370] sm:$0xff]
      %v3759 = vld [vmem:[#allocation2 + $0x378] sm:$0x1f]
      %v3760 = vld [vmem:[#allocation2 + $0x380] sm:$0xff]
      %v3761 = vld [vmem:[#allocation2 + $0x388] sm:$0xff]
      %v3762 = vld [vmem:[#allocation2 + $0x390] sm:$0xff]
      %v3763 = vld [vmem:[#allocation2 + $0x398] sm:$0x1f]
      %v3764 = vld [vmem:[#allocation2 + $0x3a0] sm:$0xff]
      %v3765 = vld [vmem:[#allocation2 + $0x3a8] sm:$0xff]
      %v3766 = vld [vmem:[#allocation2 + $0x3b0] sm:$0xff]
      %v3767 = vld [vmem:[#allocation2 + $0x3b8] sm:$0x1f]
      %v3768 = vld [vmem:[#allocation2 + $0x3c0] sm:$0xff]
      %v3769 = vld [vmem:[#allocation2 + $0x3c8] sm:$0xff]
      %v3770 = vld [vmem:[#allocation2 + $0x3d0] sm:$0xff]
      %v3771 = vld [vmem:[#allocation2 + $0x3d8] sm:$0x1f]
      %v3772 = vld [vmem:[#allocation2 + $0x3e0] sm:$0xff]
      %v3773 = vld [vmem:[#allocation2 + $0x3e8] sm:$0xff]
      %v3774 = vld [vmem:[#allocation2 + $0x3f0] sm:$0xff]
      %v3775 = vld [vmem:[#allocation2 + $0x3f8] sm:$0x1f]
      %v3776 = vld [vmem:[#allocation2 + $0x400] sm:$0xff]
      %v3777 = vld [vmem:[#allocation2 + $0x408] sm:$0xff]
      %v3778 = vld [vmem:[#allocation2 + $0x410] sm:$0xff]
      %v3779 = vld [vmem:[#allocation2 + $0x418] sm:$0x1f]
      %v3780 = vld [vmem:[#allocation2 + $0x420] sm:$0xff]
      %v3781 = vld [vmem:[#allocation2 + $0x428] sm:$0xff]
      %v3782 = vld [vmem:[#allocation2 + $0x430] sm:$0xff]
      %v3783 = vld [vmem:[#allocation2 + $0x438] sm:$0x1f]
      %v3784 = vld [vmem:[#allocation2 + $0x440] sm:$0xff]
      %v3785 = vld [vmem:[#allocation2 + $0x448] sm:$0xff]
      %v3786 = vld [vmem:[#allocation2 + $0x450] sm:$0xff]
      %v3787 = vld [vmem:[#allocation2 + $0x458] sm:$0x1f]
      %v3788 = vld [vmem:[#allocation2 + $0x460] sm:$0xff]
      %v3789 = vld [vmem:[#allocation2 + $0x468] sm:$0xff]
      %v3790 = vld [vmem:[#allocation2 + $0x470] sm:$0xff]
      %v3791 = vld [vmem:[#allocation2 + $0x478] sm:$0x1f]
      %v3792 = vld [vmem:[#allocation2 + $0x480] sm:$0xff]
      %v3793 = vld [vmem:[#allocation2 + $0x488] sm:$0xff]
      %v3794 = vld [vmem:[#allocation2 + $0x490] sm:$0xff]
      %v3795 = vld [vmem:[#allocation2 + $0x498] sm:$0x1f]
      %v3796 = vld [vmem:[#allocation2 + $0x4a0] sm:$0xff]
      %v3797 = vld [vmem:[#allocation2 + $0x4a8] sm:$0xff]
      %v3798 = vld [vmem:[#allocation2 + $0x4b0] sm:$0xff]
      %v3799 = vld [vmem:[#allocation2 + $0x4b8] sm:$0x1f]
      %v3800 = vld [vmem:[#allocation2 + $0x4c0] sm:$0xff]
      %v3801 = vld [vmem:[#allocation2 + $0x4c8] sm:$0xff]
      %v3802 = vld [vmem:[#allocation2 + $0x4d0] sm:$0xff]
      %v3803 = vld [vmem:[#allocation2 + $0x4d8] sm:$0x1f]
      %v3804 = vld [vmem:[#allocation2 + $0x4e0] sm:$0xff]
      %v3805 = vld [vmem:[#allocation2 + $0x4e8] sm:$0xff]
      %v3806 = vld [vmem:[#allocation2 + $0x4f0] sm:$0xff]
      %v3807 = vld [vmem:[#allocation2 + $0x4f8] sm:$0x1f]
      %v3808 = vld [vmem:[#allocation2 + $0x500] sm:$0xff]
      %v3809 = vld [vmem:[#allocation2 + $0x508] sm:$0xff]
      %v3810 = vld [vmem:[#allocation2 + $0x510] sm:$0xff]
      %v3811 = vld [vmem:[#allocation2 + $0x518] sm:$0x1f]
      %v3812 = vld [vmem:[#allocation2 + $0x520] sm:$0xff]
      %v3813 = vld [vmem:[#allocation2 + $0x528] sm:$0xff]
      %v3814 = vld [vmem:[#allocation2 + $0x530] sm:$0xff]
      %v3815 = vld [vmem:[#allocation2 + $0x538] sm:$0x1f]
      %v3816 = vld [vmem:[#allocation2 + $0x540] sm:$0xff]
      %v3817 = vld [vmem:[#allocation2 + $0x548] sm:$0xff]
      %v3818 = vld [vmem:[#allocation2 + $0x550] sm:$0xff]
      %v3819 = vld [vmem:[#allocation2 + $0x558] sm:$0x1f]
      %v3820 = vld [vmem:[#allocation2 + $0x560] sm:$0xff]
      %v3821 = vld [vmem:[#allocation2 + $0x568] sm:$0xff]
      %v3822 = vld [vmem:[#allocation2 + $0x570] sm:$0xff]
      %v3823 = vld [vmem:[#allocation2 + $0x578] sm:$0x1f]
      %v3824 = vld [vmem:[#allocation2 + $0x580] sm:$0xff]
      %v3825 = vld [vmem:[#allocation2 + $0x588] sm:$0xff]
      %v3826 = vld [vmem:[#allocation2 + $0x590] sm:$0xff]
      %v3827 = vld [vmem:[#allocation2 + $0x598] sm:$0x1f]
      %v3828 = vld [vmem:[#allocation2 + $0x5a0] sm:$0xff]
      %v3829 = vld [vmem:[#allocation2 + $0x5a8] sm:$0xff]
      %v3830 = vld [vmem:[#allocation2 + $0x5b0] sm:$0xff]
      %v3831 = vld [vmem:[#allocation2 + $0x5b8] sm:$0x1f]
      %v3832 = vld [vmem:[#allocation2 + $0x5c0] sm:$0xff]
      %v3833 = vld [vmem:[#allocation2 + $0x5c8] sm:$0xff]
      %v3834 = vld [vmem:[#allocation2 + $0x5d0] sm:$0xff]
      %v3835 = vld [vmem:[#allocation2 + $0x5d8] sm:$0x1f]
      %v3836 = vld [vmem:[#allocation2 + $0x5e0] sm:$0xff]
      %v3837 = vld [vmem:[#allocation2 + $0x5e8] sm:$0xff]
      %v3838 = vld [vmem:[#allocation2 + $0x5f0] sm:$0xff]
      %v3839 = vld [vmem:[#allocation2 + $0x5f8] sm:$0x1f]
      %v3840 = vld [vmem:[#allocation2 + $0x600] sm:$0xff]
      %v3841 = vld [vmem:[#allocation2 + $0x608] sm:$0xff]
      %v3842 = vld [vmem:[#allocation2 + $0x610] sm:$0xff]
      %v3843 = vld [vmem:[#allocation2 + $0x618] sm:$0x1f]
      %v3844 = vld [vmem:[#allocation2 + $0x620] sm:$0xff]
      %v3845 = vld [vmem:[#allocation2 + $0x628] sm:$0xff]
      %v3846 = vld [vmem:[#allocation2 + $0x630] sm:$0xff]
      %v3847 = vld [vmem:[#allocation2 + $0x638] sm:$0x1f]
      %v3848 = vld [vmem:[#allocation2 + $0x640] sm:$0xff]
      %v3849 = vld [vmem:[#allocation2 + $0x648] sm:$0xff]
      %v3850 = vld [vmem:[#allocation2 + $0x650] sm:$0xff]
      %v3851 = vld [vmem:[#allocation2 + $0x658] sm:$0x1f]
      %v3852 = vld [vmem:[#allocation2 + $0x660] sm:$0xff]
      %v3853 = vld [vmem:[#allocation2 + $0x668] sm:$0xff]
      %v3854 = vld [vmem:[#allocation2 + $0x670] sm:$0xff]
      %v3855 = vld [vmem:[#allocation2 + $0x678] sm:$0x1f]
      %v3856 = vld [vmem:[#allocation2 + $0x680] sm:$0xff]
      %v3857 = vld [vmem:[#allocation2 + $0x688] sm:$0xff]
      %v3858 = vld [vmem:[#allocation2 + $0x690] sm:$0xff]
      %v3859 = vld [vmem:[#allocation2 + $0x698] sm:$0x1f]
      %v3860 = vld [vmem:[#allocation2 + $0x6a0] sm:$0xff]
      %v3861 = vld [vmem:[#allocation2 + $0x6a8] sm:$0xff]
      %v3862 = vld [vmem:[#allocation2 + $0x6b0] sm:$0xff]
      %v3863 = vld [vmem:[#allocation2 + $0x6b8] sm:$0x1f]
      %v3864 = vld [vmem:[#allocation2 + $0x6c0] sm:$0xff]
      %v3865 = vld [vmem:[#allocation2 + $0x6c8] sm:$0xff]
      %v3866 = vld [vmem:[#allocation2 + $0x6d0] sm:$0xff]
      %v3867 = vld [vmem:[#allocation2 + $0x6d8] sm:$0x1f]
      %v3868 = vld [vmem:[#allocation2 + $0x6e0] sm:$0xff]
      %v3869 = vld [vmem:[#allocation2 + $0x6e8] sm:$0xff]
      %v3870 = vld [vmem:[#allocation2 + $0x6f0] sm:$0xff]
      %v3871 = vld [vmem:[#allocation2 + $0x6f8] sm:$0x1f]
      %v3872 = vld [vmem:[#allocation2 + $0x700] sm:$0xff]
      %v3873 = vld [vmem:[#allocation2 + $0x708] sm:$0xff]
      %v3874 = vld [vmem:[#allocation2 + $0x710] sm:$0xff]
      %v3875 = vld [vmem:[#allocation2 + $0x718] sm:$0x1f]
      %v3876 = vld [vmem:[#allocation2 + $0x720] sm:$0xff]
      %v3877 = vld [vmem:[#allocation2 + $0x728] sm:$0xff]
      %v3878 = vld [vmem:[#allocation2 + $0x730] sm:$0xff]
      %v3879 = vld [vmem:[#allocation2 + $0x738] sm:$0x1f]
      %v3880 = vmax.f32 %v3648, %v3652
      %v3881 = vmax.f32 %v3649, %v3653
      %v3882 = vmax.f32 %v3650, %v3654
      %v3883 = vmax.f32 %v3651, %v3655
      %v3884 = vmax.f32 %v3656, %v3660
      %v3885 = vmax.f32 %v3657, %v3661
      %v3886 = vmax.f32 %v3658, %v3662
      %v3887 = vmax.f32 %v3659, %v3663
      %v3888 = vmax.f32 %v3664, %v3668
      %v3889 = vmax.f32 %v3665, %v3669
      %v3890 = vmax.f32 %v3666, %v3670
      %v3891 = vmax.f32 %v3667, %v3671
      %v3892 = vmax.f32 %v3672, %v3676
      %v3893 = vmax.f32 %v3673, %v3677
      %v3894 = vmax.f32 %v3674, %v3678
      %v3895 = vmax.f32 %v3675, %v3679
      %v3896 = vmax.f32 %v3680, %v3684
      %v3897 = vmax.f32 %v3681, %v3685
      %v3898 = vmax.f32 %v3682, %v3686
      %v3899 = vmax.f32 %v3683, %v3687
      %v3900 = vmax.f32 %v3688, %v3692
      %v3901 = vmax.f32 %v3689, %v3693
      %v3902 = vmax.f32 %v3690, %v3694
      %v3903 = vmax.f32 %v3691, %v3695
      %v3904 = vmax.f32 %v3696, %v3700
      %v3905 = vmax.f32 %v3697, %v3701
      %v3906 = vmax.f32 %v3698, %v3702
      %v3907 = vmax.f32 %v3699, %v3703
      %v3908 = vmax.f32 %v3704, %v3708
      %v3909 = vmax.f32 %v3705, %v3709
      %v3910 = vmax.f32 %v3706, %v3710
      %v3911 = vmax.f32 %v3707, %v3711
      %v3912 = vmax.f32 %v3712, %v3716
      %v3913 = vmax.f32 %v3713, %v3717
      %v3914 = vmax.f32 %v3714, %v3718
      %v3915 = vmax.f32 %v3715, %v3719
      %v3916 = vmax.f32 %v3720, %v3724
      %v3917 = vmax.f32 %v3721, %v3725
      %v3918 = vmax.f32 %v3722, %v3726
      %v3919 = vmax.f32 %v3723, %v3727
      %v3920 = vmax.f32 %v3728, %v3732
      %v3921 = vmax.f32 %v3729, %v3733
      %v3922 = vmax.f32 %v3730, %v3734
      %v3923 = vmax.f32 %v3731, %v3735
      %v3924 = vmax.f32 %v3736, %v3740
      %v3925 = vmax.f32 %v3737, %v3741
      %v3926 = vmax.f32 %v3738, %v3742
      %v3927 = vmax.f32 %v3739, %v3743
      %v3928 = vmax.f32 %v3744, %v3748
      %v3929 = vmax.f32 %v3745, %v3749
      %v3930 = vmax.f32 %v3746, %v3750
      %v3931 = vmax.f32 %v3747, %v3751
      %v3932 = vmax.f32 %v3752, %v3756
      %v3933 = vmax.f32 %v3753, %v3757
      %v3934 = vmax.f32 %v3754, %v3758
      %v3935 = vmax.f32 %v3755, %v3759
      %v3936 = vmax.f32 %v3764, %v3768
      %v3937 = vmax.f32 %v3765, %v3769
      %v3938 = vmax.f32 %v3766, %v3770
      %v3939 = vmax.f32 %v3767, %v3771
      %v3940 = vmax.f32 %v3772, %v3776
      %v3941 = vmax.f32 %v3773, %v3777
      %v3942 = vmax.f32 %v3774, %v3778
      %v3943 = vmax.f32 %v3775, %v3779
      %v3944 = vmax.f32 %v3780, %v3784
      %v3945 = vmax.f32 %v3781, %v3785
      %v3946 = vmax.f32 %v3782, %v3786
      %v3947 = vmax.f32 %v3783, %v3787
      %v3948 = vmax.f32 %v3788, %v3792
      %v3949 = vmax.f32 %v3789, %v3793
      %v3950 = vmax.f32 %v3790, %v3794
      %v3951 = vmax.f32 %v3791, %v3795
      %v3952 = vmax.f32 %v3796, %v3800
      %v3953 = vmax.f32 %v3797, %v3801
      %v3954 = vmax.f32 %v3798, %v3802
      %v3955 = vmax.f32 %v3799, %v3803
      %v3956 = vmax.f32 %v3804, %v3808
      %v3957 = vmax.f32 %v3805, %v3809
      %v3958 = vmax.f32 %v3806, %v3810
      %v3959 = vmax.f32 %v3807, %v3811
      %v3960 = vmax.f32 %v3812, %v3816
      %v3961 = vmax.f32 %v3813, %v3817
      %v3962 = vmax.f32 %v3814, %v3818
      %v3963 = vmax.f32 %v3815, %v3819
      %v3964 = vmax.f32 %v3820, %v3824
      %v3965 = vmax.f32 %v3821, %v3825
      %v3966 = vmax.f32 %v3822, %v3826
      %v3967 = vmax.f32 %v3823, %v3827
      %v3968 = vmax.f32 %v3828, %v3832
      %v3969 = vmax.f32 %v3829, %v3833
      %v3970 = vmax.f32 %v3830, %v3834
      %v3971 = vmax.f32 %v3831, %v3835
      %v3972 = vmax.f32 %v3836, %v3840
      %v3973 = vmax.f32 %v3837, %v3841
      %v3974 = vmax.f32 %v3838, %v3842
      %v3975 = vmax.f32 %v3839, %v3843
      %v3976 = vmax.f32 %v3844, %v3848
      %v3977 = vmax.f32 %v3845, %v3849
      %v3978 = vmax.f32 %v3846, %v3850
      %v3979 = vmax.f32 %v3847, %v3851
      %v3980 = vmax.f32 %v3852, %v3856
      %v3981 = vmax.f32 %v3853, %v3857
      %v3982 = vmax.f32 %v3854, %v3858
      %v3983 = vmax.f32 %v3855, %v3859
      %v3984 = vmax.f32 %v3860, %v3864
      %v3985 = vmax.f32 %v3861, %v3865
      %v3986 = vmax.f32 %v3862, %v3866
      %v3987 = vmax.f32 %v3863, %v3867
      %v3988 = vmax.f32 %v3868, %v3872
      %v3989 = vmax.f32 %v3869, %v3873
      %v3990 = vmax.f32 %v3870, %v3874
      %v3991 = vmax.f32 %v3871, %v3875
      %v3992 = vmax.f32 %v3880, %v3656
      %v3993 = vmax.f32 %v3881, %v3657
      %v3994 = vmax.f32 %v3882, %v3658
      %v3995 = vmax.f32 %v3883, %v3659
      %v3996 = vmax.f32 %v3884, %v3664
      %v3997 = vmax.f32 %v3885, %v3665
      %v3998 = vmax.f32 %v3886, %v3666
      %v3999 = vmax.f32 %v3887, %v3667
      %v4000 = vmax.f32 %v3888, %v3672
      %v4001 = vmax.f32 %v3889, %v3673
      %v4002 = vmax.f32 %v3890, %v3674
      %v4003 = vmax.f32 %v3891, %v3675
      %v4004 = vmax.f32 %v3892, %v3680
      %v4005 = vmax.f32 %v3893, %v3681
      %v4006 = vmax.f32 %v3894, %v3682
      %v4007 = vmax.f32 %v3895, %v3683
      %v4008 = vmax.f32 %v3896, %v3688
      %v4009 = vmax.f32 %v3897, %v3689
      %v4010 = vmax.f32 %v3898, %v3690
      %v4011 = vmax.f32 %v3899, %v3691
      %v4012 = vmax.f32 %v3900, %v3696
      %v4013 = vmax.f32 %v3901, %v3697
      %v4014 = vmax.f32 %v3902, %v3698
      %v4015 = vmax.f32 %v3903, %v3699
      %v4016 = vmax.f32 %v3904, %v3704
      %v4017 = vmax.f32 %v3905, %v3705
      %v4018 = vmax.f32 %v3906, %v3706
      %v4019 = vmax.f32 %v3907, %v3707
      %v4020 = vmax.f32 %v3908, %v3712
      %v4021 = vmax.f32 %v3909, %v3713
      %v4022 = vmax.f32 %v3910, %v3714
      %v4023 = vmax.f32 %v3911, %v3715
      %v4024 = vmax.f32 %v3912, %v3720
      %v4025 = vmax.f32 %v3913, %v3721
      %v4026 = vmax.f32 %v3914, %v3722
      %v4027 = vmax.f32 %v3915, %v3723
      %v4028 = vmax.f32 %v3916, %v3728
      %v4029 = vmax.f32 %v3917, %v3729
      %v4030 = vmax.f32 %v3918, %v3730
      %v4031 = vmax.f32 %v3919, %v3731
      %v4032 = vmax.f32 %v3920, %v3736
      %v4033 = vmax.f32 %v3921, %v3737
      %v4034 = vmax.f32 %v3922, %v3738
      %v4035 = vmax.f32 %v3923, %v3739
      %v4036 = vmax.f32 %v3924, %v3744
      %v4037 = vmax.f32 %v3925, %v3745
      %v4038 = vmax.f32 %v3926, %v3746
      %v4039 = vmax.f32 %v3927, %v3747
      %v4040 = vmax.f32 %v3928, %v3752
      %v4041 = vmax.f32 %v3929, %v3753
      %v4042 = vmax.f32 %v3930, %v3754
      %v4043 = vmax.f32 %v3931, %v3755
      %v4044 = vmax.f32 %v3932, %v3760
      %v4045 = vmax.f32 %v3933, %v3761
      %v4046 = vmax.f32 %v3934, %v3762
      %v4047 = vmax.f32 %v3935, %v3763
      %v4048 = vmax.f32 %v3936, %v3772
      %v4049 = vmax.f32 %v3937, %v3773
      %v4050 = vmax.f32 %v3938, %v3774
      %v4051 = vmax.f32 %v3939, %v3775
      %v4052 = vmax.f32 %v3940, %v3780
      %v4053 = vmax.f32 %v3941, %v3781
      %v4054 = vmax.f32 %v3942, %v3782
      %v4055 = vmax.f32 %v3943, %v3783
      %v4056 = vmax.f32 %v3944, %v3788
      %v4057 = vmax.f32 %v3945, %v3789
      %v4058 = vmax.f32 %v3946, %v3790
      %v4059 = vmax.f32 %v3947, %v3791
      %v4060 = vmax.f32 %v3948, %v3796
      %v4061 = vmax.f32 %v3949, %v3797
      %v4062 = vmax.f32 %v3950, %v3798
      %v4063 = vmax.f32 %v3951, %v3799
      %v4064 = vmax.f32 %v3952, %v3804
      %v4065 = vmax.f32 %v3953, %v3805
      %v4066 = vmax.f32 %v3954, %v3806
      %v4067 = vmax.f32 %v3955, %v3807
      %v4068 = vmax.f32 %v3956, %v3812
      %v4069 = vmax.f32 %v3957, %v3813
      %v4070 = vmax.f32 %v3958, %v3814
      %v4071 = vmax.f32 %v3959, %v3815
      %v4072 = vmax.f32 %v3960, %v3820
      %v4073 = vmax.f32 %v3961, %v3821
      %v4074 = vmax.f32 %v3962, %v3822
      %v4075 = vmax.f32 %v3963, %v3823
      %v4076 = vmax.f32 %v3964, %v3828
      %v4077 = vmax.f32 %v3965, %v3829
      %v4078 = vmax.f32 %v3966, %v3830
      %v4079 = vmax.f32 %v3967, %v3831
      %v4080 = vmax.f32 %v3968, %v3836
      %v4081 = vmax.f32 %v3969, %v3837
      %v4082 = vmax.f32 %v3970, %v3838
      %v4083 = vmax.f32 %v3971, %v3839
      %v4084 = vmax.f32 %v3972, %v3844
      %v4085 = vmax.f32 %v3973, %v3845
      %v4086 = vmax.f32 %v3974, %v3846
      %v4087 = vmax.f32 %v3975, %v3847
      %v4088 = vmax.f32 %v3976, %v3852
      %v4089 = vmax.f32 %v3977, %v3853
      %v4090 = vmax.f32 %v3978, %v3854
      %v4091 = vmax.f32 %v3979, %v3855
      %v4092 = vmax.f32 %v3980, %v3860
      %v4093 = vmax.f32 %v3981, %v3861
      %v4094 = vmax.f32 %v3982, %v3862
      %v4095 = vmax.f32 %v3983, %v3863
      %v4096 = vmax.f32 %v3984, %v3868
      %v4097 = vmax.f32 %v3985, %v3869
      %v4098 = vmax.f32 %v3986, %v3870
      %v4099 = vmax.f32 %v3987, %v3871
      %v4100 = vmax.f32 %v3988, %v3876
      %v4101 = vmax.f32 %v3989, %v3877
      %v4102 = vmax.f32 %v3990, %v3878
      %v4103 = vmax.f32 %v3991, %v3879
      %v4216 = vrot.slane %v3992, 1
      %v4217 = vrot.slane %v3993, 1
      %v4218 = vsel %vm1693, %v4216, %v4217
      %v4219 = vrot.slane %v3994, 1
      %v4220 = vsel %vm1693, %v4217, %v4219
      %v4221 = vrot.slane %v3995, 1
      %v4222 = vsel %vm1693, %v4219, %v4221
      %v4223 = vrot.slane %v3996, 1
      %v4224 = vrot.slane %v3997, 1
      %v4225 = vsel %vm1693, %v4223, %v4224
      %v4226 = vrot.slane %v3998, 1
      %v4227 = vsel %vm1693, %v4224, %v4226
      %v4228 = vrot.slane %v3999, 1
      %v4229 = vsel %vm1693, %v4226, %v4228
      %v4230 = vrot.slane %v4000, 1
      %v4231 = vrot.slane %v4001, 1
      %v4232 = vsel %vm1693, %v4230, %v4231
      %v4233 = vrot.slane %v4002, 1
      %v4234 = vsel %vm1693, %v4231, %v4233
      %v4235 = vrot.slane %v4003, 1
      %v4236 = vsel %vm1693, %v4233, %v4235
      %v4237 = vrot.slane %v4004, 1
      %v4238 = vrot.slane %v4005, 1
      %v4239 = vsel %vm1693, %v4237, %v4238
      %v4240 = vrot.slane %v4006, 1
      %v4241 = vsel %vm1693, %v4238, %v4240
      %v4242 = vrot.slane %v4007, 1
      %v4243 = vsel %vm1693, %v4240, %v4242
      %v4244 = vrot.slane %v4008, 1
      %v4245 = vrot.slane %v4009, 1
      %v4246 = vsel %vm1693, %v4244, %v4245
      %v4247 = vrot.slane %v4010, 1
      %v4248 = vsel %vm1693, %v4245, %v4247
      %v4249 = vrot.slane %v4011, 1
      %v4250 = vsel %vm1693, %v4247, %v4249
      %v4251 = vrot.slane %v4012, 1
      %v4252 = vrot.slane %v4013, 1
      %v4253 = vsel %vm1693, %v4251, %v4252
      %v4254 = vrot.slane %v4014, 1
      %v4255 = vsel %vm1693, %v4252, %v4254
      %v4256 = vrot.slane %v4015, 1
      %v4257 = vsel %vm1693, %v4254, %v4256
      %v4258 = vrot.slane %v4016, 1
      %v4259 = vrot.slane %v4017, 1
      %v4260 = vsel %vm1693, %v4258, %v4259
      %v4261 = vrot.slane %v4018, 1
      %v4262 = vsel %vm1693, %v4259, %v4261
      %v4263 = vrot.slane %v4019, 1
      %v4264 = vsel %vm1693, %v4261, %v4263
      %v4265 = vrot.slane %v4020, 1
      %v4266 = vrot.slane %v4021, 1
      %v4267 = vsel %vm1693, %v4265, %v4266
      %v4268 = vrot.slane %v4022, 1
      %v4269 = vsel %vm1693, %v4266, %v4268
      %v4270 = vrot.slane %v4023, 1
      %v4271 = vsel %vm1693, %v4268, %v4270
      %v4272 = vrot.slane %v4024, 1
      %v4273 = vrot.slane %v4025, 1
      %v4274 = vsel %vm1693, %v4272, %v4273
      %v4275 = vrot.slane %v4026, 1
      %v4276 = vsel %vm1693, %v4273, %v4275
      %v4277 = vrot.slane %v4027, 1
      %v4278 = vsel %vm1693, %v4275, %v4277
      %v4279 = vrot.slane %v4028, 1
      %v4280 = vrot.slane %v4029, 1
      %v4281 = vsel %vm1693, %v4279, %v4280
      %v4282 = vrot.slane %v4030, 1
      %v4283 = vsel %vm1693, %v4280, %v4282
      %v4284 = vrot.slane %v4031, 1
      %v4285 = vsel %vm1693, %v4282, %v4284
      %v4286 = vrot.slane %v4032, 1
      %v4287 = vrot.slane %v4033, 1
      %v4288 = vsel %vm1693, %v4286, %v4287
      %v4289 = vrot.slane %v4034, 1
      %v4290 = vsel %vm1693, %v4287, %v4289
      %v4291 = vrot.slane %v4035, 1
      %v4292 = vsel %vm1693, %v4289, %v4291
      %v4293 = vrot.slane %v4036, 1
      %v4294 = vrot.slane %v4037, 1
      %v4295 = vsel %vm1693, %v4293, %v4294
      %v4296 = vrot.slane %v4038, 1
      %v4297 = vsel %vm1693, %v4294, %v4296
      %v4298 = vrot.slane %v4039, 1
      %v4299 = vsel %vm1693, %v4296, %v4298
      %v4300 = vrot.slane %v4040, 1
      %v4301 = vrot.slane %v4041, 1
      %v4302 = vsel %vm1693, %v4300, %v4301
      %v4303 = vrot.slane %v4042, 1
      %v4304 = vsel %vm1693, %v4301, %v4303
      %v4305 = vrot.slane %v4043, 1
      %v4306 = vsel %vm1693, %v4303, %v4305
      %v4307 = vrot.slane %v4044, 1
      %v4308 = vrot.slane %v4045, 1
      %v4309 = vsel %vm1693, %v4307, %v4308
      %v4310 = vrot.slane %v4046, 1
      %v4311 = vsel %vm1693, %v4308, %v4310
      %v4312 = vrot.slane %v4047, 1
      %v4313 = vsel %vm1693, %v4310, %v4312
      %v4314 = vrot.slane %v4048, 1
      %v4315 = vrot.slane %v4049, 1
      %v4316 = vsel %vm1693, %v4314, %v4315
      %v4317 = vrot.slane %v4050, 1
      %v4318 = vsel %vm1693, %v4315, %v4317
      %v4319 = vrot.slane %v4051, 1
      %v4320 = vsel %vm1693, %v4317, %v4319
      %v4321 = vrot.slane %v4052, 1
      %v4322 = vrot.slane %v4053, 1
      %v4323 = vsel %vm1693, %v4321, %v4322
      %v4324 = vrot.slane %v4054, 1
      %v4325 = vsel %vm1693, %v4322, %v4324
      %v4326 = vrot.slane %v4055, 1
      %v4327 = vsel %vm1693, %v4324, %v4326
      %v4328 = vrot.slane %v4056, 1
      %v4329 = vrot.slane %v4057, 1
      %v4330 = vsel %vm1693, %v4328, %v4329
      %v4331 = vrot.slane %v4058, 1
      %v4332 = vsel %vm1693, %v4329, %v4331
      %v4333 = vrot.slane %v4059, 1
      %v4334 = vsel %vm1693, %v4331, %v4333
      %v4335 = vrot.slane %v4060, 1
      %v4336 = vrot.slane %v4061, 1
      %v4337 = vsel %vm1693, %v4335, %v4336
      %v4338 = vrot.slane %v4062, 1
      %v4339 = vsel %vm1693, %v4336, %v4338
      %v4340 = vrot.slane %v4063, 1
      %v4341 = vsel %vm1693, %v4338, %v4340
      %v4342 = vrot.slane %v4064, 1
      %v4343 = vrot.slane %v4065, 1
      %v4344 = vsel %vm1693, %v4342, %v4343
      %v4345 = vrot.slane %v4066, 1
      %v4346 = vsel %vm1693, %v4343, %v4345
      %v4347 = vrot.slane %v4067, 1
      %v4348 = vsel %vm1693, %v4345, %v4347
      %v4349 = vrot.slane %v4068, 1
      %v4350 = vrot.slane %v4069, 1
      %v4351 = vsel %vm1693, %v4349, %v4350
      %v4352 = vrot.slane %v4070, 1
      %v4353 = vsel %vm1693, %v4350, %v4352
      %v4354 = vrot.slane %v4071, 1
      %v4355 = vsel %vm1693, %v4352, %v4354
      %v4356 = vrot.slane %v4072, 1
      %v4357 = vrot.slane %v4073, 1
      %v4358 = vsel %vm1693, %v4356, %v4357
      %v4359 = vrot.slane %v4074, 1
      %v4360 = vsel %vm1693, %v4357, %v4359
      %v4361 = vrot.slane %v4075, 1
      %v4362 = vsel %vm1693, %v4359, %v4361
      %v4363 = vrot.slane %v4076, 1
      %v4364 = vrot.slane %v4077, 1
      %v4365 = vsel %vm1693, %v4363, %v4364
      %v4366 = vrot.slane %v4078, 1
      %v4367 = vsel %vm1693, %v4364, %v4366
      %v4368 = vrot.slane %v4079, 1
      %v4369 = vsel %vm1693, %v4366, %v4368
      %v4370 = vrot.slane %v4080, 1
      %v4371 = vrot.slane %v4081, 1
      %v4372 = vsel %vm1693, %v4370, %v4371
      %v4373 = vrot.slane %v4082, 1
      %v4374 = vsel %vm1693, %v4371, %v4373
      %v4375 = vrot.slane %v4083, 1
      %v4376 = vsel %vm1693, %v4373, %v4375
      %v4377 = vrot.slane %v4084, 1
      %v4378 = vrot.slane %v4085, 1
      %v4379 = vsel %vm1693, %v4377, %v4378
      %v4380 = vrot.slane %v4086, 1
      %v4381 = vsel %vm1693, %v4378, %v4380
      %v4382 = vrot.slane %v4087, 1
      %v4383 = vsel %vm1693, %v4380, %v4382
      %v4384 = vrot.slane %v4088, 1
      %v4385 = vrot.slane %v4089, 1
      %v4386 = vsel %vm1693, %v4384, %v4385
      %v4387 = vrot.slane %v4090, 1
      %v4388 = vsel %vm1693, %v4385, %v4387
      %v4389 = vrot.slane %v4091, 1
      %v4390 = vsel %vm1693, %v4387, %v4389
      %v4391 = vrot.slane %v4092, 1
      %v4392 = vrot.slane %v4093, 1
      %v4393 = vsel %vm1693, %v4391, %v4392
      %v4394 = vrot.slane %v4094, 1
      %v4395 = vsel %vm1693, %v4392, %v4394
      %v4396 = vrot.slane %v4095, 1
      %v4397 = vsel %vm1693, %v4394, %v4396
      %v4398 = vrot.slane %v4096, 1
      %v4399 = vrot.slane %v4097, 1
      %v4400 = vsel %vm1693, %v4398, %v4399
      %v4401 = vrot.slane %v4098, 1
      %v4402 = vsel %vm1693, %v4399, %v4401
      %v4403 = vrot.slane %v4099, 1
      %v4404 = vsel %vm1693, %v4401, %v4403
      %v4405 = vrot.slane %v4100, 1
      %v4406 = vrot.slane %v4101, 1
      %v4407 = vsel %vm1693, %v4405, %v4406
      %v4408 = vrot.slane %v4102, 1
      %v4409 = vsel %vm1693, %v4406, %v4408
      %v4410 = vrot.slane %v4103, 1
      %v4411 = vsel %vm1693, %v4408, %v4410
      %v4524 = vmax.f32 %v3992, %v4218
      %v4525 = vmax.f32 %v3993, %v4220
      %v4526 = vmax.f32 %v3994, %v4222
      %v4527 = vmax.f32 %v3995, %v4221
      %v4528 = vmax.f32 %v3996, %v4225
      %v4529 = vmax.f32 %v3997, %v4227
      %v4530 = vmax.f32 %v3998, %v4229
      %v4531 = vmax.f32 %v3999, %v4228
      %v4532 = vmax.f32 %v4000, %v4232
      %v4533 = vmax.f32 %v4001, %v4234
      %v4534 = vmax.f32 %v4002, %v4236
      %v4535 = vmax.f32 %v4003, %v4235
      %v4536 = vmax.f32 %v4004, %v4239
      %v4537 = vmax.f32 %v4005, %v4241
      %v4538 = vmax.f32 %v4006, %v4243
      %v4539 = vmax.f32 %v4007, %v4242
      %v4540 = vmax.f32 %v4008, %v4246
      %v4541 = vmax.f32 %v4009, %v4248
      %v4542 = vmax.f32 %v4010, %v4250
      %v4543 = vmax.f32 %v4011, %v4249
      %v4544 = vmax.f32 %v4012, %v4253
      %v4545 = vmax.f32 %v4013, %v4255
      %v4546 = vmax.f32 %v4014, %v4257
      %v4547 = vmax.f32 %v4015, %v4256
      %v4548 = vmax.f32 %v4016, %v4260
      %v4549 = vmax.f32 %v4017, %v4262
      %v4550 = vmax.f32 %v4018, %v4264
      %v4551 = vmax.f32 %v4019, %v4263
      %v4552 = vmax.f32 %v4020, %v4267
      %v4553 = vmax.f32 %v4021, %v4269
      %v4554 = vmax.f32 %v4022, %v4271
      %v4555 = vmax.f32 %v4023, %v4270
      %v4556 = vmax.f32 %v4024, %v4274
      %v4557 = vmax.f32 %v4025, %v4276
      %v4558 = vmax.f32 %v4026, %v4278
      %v4559 = vmax.f32 %v4027, %v4277
      %v4560 = vmax.f32 %v4028, %v4281
      %v4561 = vmax.f32 %v4029, %v4283
      %v4562 = vmax.f32 %v4030, %v4285
      %v4563 = vmax.f32 %v4031, %v4284
      %v4564 = vmax.f32 %v4032, %v4288
      %v4565 = vmax.f32 %v4033, %v4290
      %v4566 = vmax.f32 %v4034, %v4292
      %v4567 = vmax.f32 %v4035, %v4291
      %v4568 = vmax.f32 %v4036, %v4295
      %v4569 = vmax.f32 %v4037, %v4297
      %v4570 = vmax.f32 %v4038, %v4299
      %v4571 = vmax.f32 %v4039, %v4298
      %v4572 = vmax.f32 %v4040, %v4302
      %v4573 = vmax.f32 %v4041, %v4304
      %v4574 = vmax.f32 %v4042, %v4306
      %v4575 = vmax.f32 %v4043, %v4305
      %v4576 = vmax.f32 %v4044, %v4309
      %v4577 = vmax.f32 %v4045, %v4311
      %v4578 = vmax.f32 %v4046, %v4313
      %v4579 = vmax.f32 %v4047, %v4312
      %v4580 = vmax.f32 %v4048, %v4316
      %v4581 = vmax.f32 %v4049, %v4318
      %v4582 = vmax.f32 %v4050, %v4320
      %v4583 = vmax.f32 %v4051, %v4319
      %v4584 = vmax.f32 %v4052, %v4323
      %v4585 = vmax.f32 %v4053, %v4325
      %v4586 = vmax.f32 %v4054, %v4327
      %v4587 = vmax.f32 %v4055, %v4326
      %v4588 = vmax.f32 %v4056, %v4330
      %v4589 = vmax.f32 %v4057, %v4332
      %v4590 = vmax.f32 %v4058, %v4334
      %v4591 = vmax.f32 %v4059, %v4333
      %v4592 = vmax.f32 %v4060, %v4337
      %v4593 = vmax.f32 %v4061, %v4339
      %v4594 = vmax.f32 %v4062, %v4341
      %v4595 = vmax.f32 %v4063, %v4340
      %v4596 = vmax.f32 %v4064, %v4344
      %v4597 = vmax.f32 %v4065, %v4346
      %v4598 = vmax.f32 %v4066, %v4348
      %v4599 = vmax.f32 %v4067, %v4347
      %v4600 = vmax.f32 %v4068, %v4351
      %v4601 = vmax.f32 %v4069, %v4353
      %v4602 = vmax.f32 %v4070, %v4355
      %v4603 = vmax.f32 %v4071, %v4354
      %v4604 = vmax.f32 %v4072, %v4358
      %v4605 = vmax.f32 %v4073, %v4360
      %v4606 = vmax.f32 %v4074, %v4362
      %v4607 = vmax.f32 %v4075, %v4361
      %v4608 = vmax.f32 %v4076, %v4365
      %v4609 = vmax.f32 %v4077, %v4367
      %v4610 = vmax.f32 %v4078, %v4369
      %v4611 = vmax.f32 %v4079, %v4368
      %v4612 = vmax.f32 %v4080, %v4372
      %v4613 = vmax.f32 %v4081, %v4374
      %v4614 = vmax.f32 %v4082, %v4376
      %v4615 = vmax.f32 %v4083, %v4375
      %v4616 = vmax.f32 %v4084, %v4379
      %v4617 = vmax.f32 %v4085, %v4381
      %v4618 = vmax.f32 %v4086, %v4383
      %v4619 = vmax.f32 %v4087, %v4382
      %v4620 = vmax.f32 %v4088, %v4386
      %v4621 = vmax.f32 %v4089, %v4388
      %v4622 = vmax.f32 %v4090, %v4390
      %v4623 = vmax.f32 %v4091, %v4389
      %v4624 = vmax.f32 %v4092, %v4393
      %v4625 = vmax.f32 %v4093, %v4395
      %v4626 = vmax.f32 %v4094, %v4397
      %v4627 = vmax.f32 %v4095, %v4396
      %v4628 = vmax.f32 %v4096, %v4400
      %v4629 = vmax.f32 %v4097, %v4402
      %v4630 = vmax.f32 %v4098, %v4404
      %v4631 = vmax.f32 %v4099, %v4403
      %v4632 = vmax.f32 %v4100, %v4407
      %v4633 = vmax.f32 %v4101, %v4409
      %v4634 = vmax.f32 %v4102, %v4411
      %v4635 = vmax.f32 %v4103, %v4410
      %v4636 = vrot.slane %v3992, 2
      %v4637 = vrot.slane %v3993, 2
      %v4638 = vsel %vm1642, %v4636, %v4637
      %v4639 = vrot.slane %v3994, 2
      %v4640 = vsel %vm1642, %v4637, %v4639
      %v4641 = vrot.slane %v3995, 2
      %v4642 = vsel %vm1642, %v4639, %v4641
      %v4643 = vrot.slane %v3996, 2
      %v4644 = vrot.slane %v3997, 2
      %v4645 = vsel %vm1642, %v4643, %v4644
      %v4646 = vrot.slane %v3998, 2
      %v4647 = vsel %vm1642, %v4644, %v4646
      %v4648 = vrot.slane %v3999, 2
      %v4649 = vsel %vm1642, %v4646, %v4648
      %v4650 = vrot.slane %v4000, 2
      %v4651 = vrot.slane %v4001, 2
      %v4652 = vsel %vm1642, %v4650, %v4651
      %v4653 = vrot.slane %v4002, 2
      %v4654 = vsel %vm1642, %v4651, %v4653
      %v4655 = vrot.slane %v4003, 2
      %v4656 = vsel %vm1642, %v4653, %v4655
      %v4657 = vrot.slane %v4004, 2
      %v4658 = vrot.slane %v4005, 2
      %v4659 = vsel %vm1642, %v4657, %v4658
      %v4660 = vrot.slane %v4006, 2
      %v4661 = vsel %vm1642, %v4658, %v4660
      %v4662 = vrot.slane %v4007, 2
      %v4663 = vsel %vm1642, %v4660, %v4662
      %v4664 = vrot.slane %v4008, 2
      %v4665 = vrot.slane %v4009, 2
      %v4666 = vsel %vm1642, %v4664, %v4665
      %v4667 = vrot.slane %v4010, 2
      %v4668 = vsel %vm1642, %v4665, %v4667
      %v4669 = vrot.slane %v4011, 2
      %v4670 = vsel %vm1642, %v4667, %v4669
      %v4671 = vrot.slane %v4012, 2
      %v4672 = vrot.slane %v4013, 2
      %v4673 = vsel %vm1642, %v4671, %v4672
      %v4674 = vrot.slane %v4014, 2
      %v4675 = vsel %vm1642, %v4672, %v4674
      %v4676 = vrot.slane %v4015, 2
      %v4677 = vsel %vm1642, %v4674, %v4676
      %v4678 = vrot.slane %v4016, 2
      %v4679 = vrot.slane %v4017, 2
      %v4680 = vsel %vm1642, %v4678, %v4679
      %v4681 = vrot.slane %v4018, 2
      %v4682 = vsel %vm1642, %v4679, %v4681
      %v4683 = vrot.slane %v4019, 2
      %v4684 = vsel %vm1642, %v4681, %v4683
      %v4685 = vrot.slane %v4020, 2
      %v4686 = vrot.slane %v4021, 2
      %v4687 = vsel %vm1642, %v4685, %v4686
      %v4688 = vrot.slane %v4022, 2
      %v4689 = vsel %vm1642, %v4686, %v4688
      %v4690 = vrot.slane %v4023, 2
      %v4691 = vsel %vm1642, %v4688, %v4690
      %v4692 = vrot.slane %v4024, 2
      %v4693 = vrot.slane %v4025, 2
      %v4694 = vsel %vm1642, %v4692, %v4693
      %v4695 = vrot.slane %v4026, 2
      %v4696 = vsel %vm1642, %v4693, %v4695
      %v4697 = vrot.slane %v4027, 2
      %v4698 = vsel %vm1642, %v4695, %v4697
      %v4699 = vrot.slane %v4028, 2
      %v4700 = vrot.slane %v4029, 2
      %v4701 = vsel %vm1642, %v4699, %v4700
      %v4702 = vrot.slane %v4030, 2
      %v4703 = vsel %vm1642, %v4700, %v4702
      %v4704 = vrot.slane %v4031, 2
      %v4705 = vsel %vm1642, %v4702, %v4704
      %v4706 = vrot.slane %v4032, 2
      %v4707 = vrot.slane %v4033, 2
      %v4708 = vsel %vm1642, %v4706, %v4707
      %v4709 = vrot.slane %v4034, 2
      %v4710 = vsel %vm1642, %v4707, %v4709
      %v4711 = vrot.slane %v4035, 2
      %v4712 = vsel %vm1642, %v4709, %v4711
      %v4713 = vrot.slane %v4036, 2
      %v4714 = vrot.slane %v4037, 2
      %v4715 = vsel %vm1642, %v4713, %v4714
      %v4716 = vrot.slane %v4038, 2
      %v4717 = vsel %vm1642, %v4714, %v4716
      %v4718 = vrot.slane %v4039, 2
      %v4719 = vsel %vm1642, %v4716, %v4718
      %v4720 = vrot.slane %v4040, 2
      %v4721 = vrot.slane %v4041, 2
      %v4722 = vsel %vm1642, %v4720, %v4721
      %v4723 = vrot.slane %v4042, 2
      %v4724 = vsel %vm1642, %v4721, %v4723
      %v4725 = vrot.slane %v4043, 2
      %v4726 = vsel %vm1642, %v4723, %v4725
      %v4727 = vrot.slane %v4044, 2
      %v4728 = vrot.slane %v4045, 2
      %v4729 = vsel %vm1642, %v4727, %v4728
      %v4730 = vrot.slane %v4046, 2
      %v4731 = vsel %vm1642, %v4728, %v4730
      %v4732 = vrot.slane %v4047, 2
      %v4733 = vsel %vm1642, %v4730, %v4732
      %v4734 = vrot.slane %v4048, 2
      %v4735 = vrot.slane %v4049, 2
      %v4736 = vsel %vm1642, %v4734, %v4735
      %v4737 = vrot.slane %v4050, 2
      %v4738 = vsel %vm1642, %v4735, %v4737
      %v4739 = vrot.slane %v4051, 2
      %v4740 = vsel %vm1642, %v4737, %v4739
      %v4741 = vrot.slane %v4052, 2
      %v4742 = vrot.slane %v4053, 2
      %v4743 = vsel %vm1642, %v4741, %v4742
      %v4744 = vrot.slane %v4054, 2
      %v4745 = vsel %vm1642, %v4742, %v4744
      %v4746 = vrot.slane %v4055, 2
      %v4747 = vsel %vm1642, %v4744, %v4746
      %v4748 = vrot.slane %v4056, 2
      %v4749 = vrot.slane %v4057, 2
      %v4750 = vsel %vm1642, %v4748, %v4749
      %v4751 = vrot.slane %v4058, 2
      %v4752 = vsel %vm1642, %v4749, %v4751
      %v4753 = vrot.slane %v4059, 2
      %v4754 = vsel %vm1642, %v4751, %v4753
      %v4755 = vrot.slane %v4060, 2
      %v4756 = vrot.slane %v4061, 2
      %v4757 = vsel %vm1642, %v4755, %v4756
      %v4758 = vrot.slane %v4062, 2
      %v4759 = vsel %vm1642, %v4756, %v4758
      %v4760 = vrot.slane %v4063, 2
      %v4761 = vsel %vm1642, %v4758, %v4760
      %v4762 = vrot.slane %v4064, 2
      %v4763 = vrot.slane %v4065, 2
      %v4764 = vsel %vm1642, %v4762, %v4763
      %v4765 = vrot.slane %v4066, 2
      %v4766 = vsel %vm1642, %v4763, %v4765
      %v4767 = vrot.slane %v4067, 2
      %v4768 = vsel %vm1642, %v4765, %v4767
      %v4769 = vrot.slane %v4068, 2
      %v4770 = vrot.slane %v4069, 2
      %v4771 = vsel %vm1642, %v4769, %v4770
      %v4772 = vrot.slane %v4070, 2
      %v4773 = vsel %vm1642, %v4770, %v4772
      %v4774 = vrot.slane %v4071, 2
      %v4775 = vsel %vm1642, %v4772, %v4774
      %v4776 = vrot.slane %v4072, 2
      %v4777 = vrot.slane %v4073, 2
      %v4778 = vsel %vm1642, %v4776, %v4777
      %v4779 = vrot.slane %v4074, 2
      %v4780 = vsel %vm1642, %v4777, %v4779
      %v4781 = vrot.slane %v4075, 2
      %v4782 = vsel %vm1642, %v4779, %v4781
      %v4783 = vrot.slane %v4076, 2
      %v4784 = vrot.slane %v4077, 2
      %v4785 = vsel %vm1642, %v4783, %v4784
      %v4786 = vrot.slane %v4078, 2
      %v4787 = vsel %vm1642, %v4784, %v4786
      %v4788 = vrot.slane %v4079, 2
      %v4789 = vsel %vm1642, %v4786, %v4788
      %v4790 = vrot.slane %v4080, 2
      %v4791 = vrot.slane %v4081, 2
      %v4792 = vsel %vm1642, %v4790, %v4791
      %v4793 = vrot.slane %v4082, 2
      %v4794 = vsel %vm1642, %v4791, %v4793
      %v4795 = vrot.slane %v4083, 2
      %v4796 = vsel %vm1642, %v4793, %v4795
      %v4797 = vrot.slane %v4084, 2
      %v4798 = vrot.slane %v4085, 2
      %v4799 = vsel %vm1642, %v4797, %v4798
      %v4800 = vrot.slane %v4086, 2
      %v4801 = vsel %vm1642, %v4798, %v4800
      %v4802 = vrot.slane %v4087, 2
      %v4803 = vsel %vm1642, %v4800, %v4802
      %v4804 = vrot.slane %v4088, 2
      %v4805 = vrot.slane %v4089, 2
      %v4806 = vsel %vm1642, %v4804, %v4805
      %v4807 = vrot.slane %v4090, 2
      %v4808 = vsel %vm1642, %v4805, %v4807
      %v4809 = vrot.slane %v4091, 2
      %v4810 = vsel %vm1642, %v4807, %v4809
      %v4811 = vrot.slane %v4092, 2
      %v4812 = vrot.slane %v4093, 2
      %v4813 = vsel %vm1642, %v4811, %v4812
      %v4814 = vrot.slane %v4094, 2
      %v4815 = vsel %vm1642, %v4812, %v4814
      %v4816 = vrot.slane %v4095, 2
      %v4817 = vsel %vm1642, %v4814, %v4816
      %v4818 = vrot.slane %v4096, 2
      %v4819 = vrot.slane %v4097, 2
      %v4820 = vsel %vm1642, %v4818, %v4819
      %v4821 = vrot.slane %v4098, 2
      %v4822 = vsel %vm1642, %v4819, %v4821
      %v4823 = vrot.slane %v4099, 2
      %v4824 = vsel %vm1642, %v4821, %v4823
      %v4825 = vrot.slane %v4100, 2
      %v4826 = vrot.slane %v4101, 2
      %v4827 = vsel %vm1642, %v4825, %v4826
      %v4828 = vrot.slane %v4102, 2
      %v4829 = vsel %vm1642, %v4826, %v4828
      %v4830 = vrot.slane %v4103, 2
      %v4831 = vsel %vm1642, %v4828, %v4830
      %v4944 = vmax.f32 %v4524, %v4638
      %v4945 = vmax.f32 %v4525, %v4640
      %v4946 = vmax.f32 %v4526, %v4642
      %v4947 = vmax.f32 %v4527, %v4641
      %v4948 = vmax.f32 %v4528, %v4645
      %v4949 = vmax.f32 %v4529, %v4647
      %v4950 = vmax.f32 %v4530, %v4649
      %v4951 = vmax.f32 %v4531, %v4648
      %v4952 = vmax.f32 %v4532, %v4652
      %v4953 = vmax.f32 %v4533, %v4654
      %v4954 = vmax.f32 %v4534, %v4656
      %v4955 = vmax.f32 %v4535, %v4655
      %v4956 = vmax.f32 %v4536, %v4659
      %v4957 = vmax.f32 %v4537, %v4661
      %v4958 = vmax.f32 %v4538, %v4663
      %v4959 = vmax.f32 %v4539, %v4662
      %v4960 = vmax.f32 %v4540, %v4666
      %v4961 = vmax.f32 %v4541, %v4668
      %v4962 = vmax.f32 %v4542, %v4670
      %v4963 = vmax.f32 %v4543, %v4669
      %v4964 = vmax.f32 %v4544, %v4673
      %v4965 = vmax.f32 %v4545, %v4675
      %v4966 = vmax.f32 %v4546, %v4677
      %v4967 = vmax.f32 %v4547, %v4676
      %v4968 = vmax.f32 %v4548, %v4680
      %v4969 = vmax.f32 %v4549, %v4682
      %v4970 = vmax.f32 %v4550, %v4684
      %v4971 = vmax.f32 %v4551, %v4683
      %v4972 = vmax.f32 %v4552, %v4687
      %v4973 = vmax.f32 %v4553, %v4689
      %v4974 = vmax.f32 %v4554, %v4691
      %v4975 = vmax.f32 %v4555, %v4690
      %v4976 = vmax.f32 %v4556, %v4694
      %v4977 = vmax.f32 %v4557, %v4696
      %v4978 = vmax.f32 %v4558, %v4698
      %v4979 = vmax.f32 %v4559, %v4697
      %v4980 = vmax.f32 %v4560, %v4701
      %v4981 = vmax.f32 %v4561, %v4703
      %v4982 = vmax.f32 %v4562, %v4705
      %v4983 = vmax.f32 %v4563, %v4704
      %v4984 = vmax.f32 %v4564, %v4708
      %v4985 = vmax.f32 %v4565, %v4710
      %v4986 = vmax.f32 %v4566, %v4712
      %v4987 = vmax.f32 %v4567, %v4711
      %v4988 = vmax.f32 %v4568, %v4715
      %v4989 = vmax.f32 %v4569, %v4717
      %v4990 = vmax.f32 %v4570, %v4719
      %v4991 = vmax.f32 %v4571, %v4718
      %v4992 = vmax.f32 %v4572, %v4722
      %v4993 = vmax.f32 %v4573, %v4724
      %v4994 = vmax.f32 %v4574, %v4726
      %v4995 = vmax.f32 %v4575, %v4725
      %v4996 = vmax.f32 %v4576, %v4729
      %v4997 = vmax.f32 %v4577, %v4731
      %v4998 = vmax.f32 %v4578, %v4733
      %v4999 = vmax.f32 %v4579, %v4732
      %v5000 = vmax.f32 %v4580, %v4736
      %v5001 = vmax.f32 %v4581, %v4738
      %v5002 = vmax.f32 %v4582, %v4740
      %v5003 = vmax.f32 %v4583, %v4739
      %v5004 = vmax.f32 %v4584, %v4743
      %v5005 = vmax.f32 %v4585, %v4745
      %v5006 = vmax.f32 %v4586, %v4747
      %v5007 = vmax.f32 %v4587, %v4746
      %v5008 = vmax.f32 %v4588, %v4750
      %v5009 = vmax.f32 %v4589, %v4752
      %v5010 = vmax.f32 %v4590, %v4754
      %v5011 = vmax.f32 %v4591, %v4753
      %v5012 = vmax.f32 %v4592, %v4757
      %v5013 = vmax.f32 %v4593, %v4759
      %v5014 = vmax.f32 %v4594, %v4761
      %v5015 = vmax.f32 %v4595, %v4760
      %v5016 = vmax.f32 %v4596, %v4764
      %v5017 = vmax.f32 %v4597, %v4766
      %v5018 = vmax.f32 %v4598, %v4768
      %v5019 = vmax.f32 %v4599, %v4767
      %v5020 = vmax.f32 %v4600, %v4771
      %v5021 = vmax.f32 %v4601, %v4773
      %v5022 = vmax.f32 %v4602, %v4775
      %v5023 = vmax.f32 %v4603, %v4774
      %v5024 = vmax.f32 %v4604, %v4778
      %v5025 = vmax.f32 %v4605, %v4780
      %v5026 = vmax.f32 %v4606, %v4782
      %v5027 = vmax.f32 %v4607, %v4781
      %v5028 = vmax.f32 %v4608, %v4785
      %v5029 = vmax.f32 %v4609, %v4787
      %v5030 = vmax.f32 %v4610, %v4789
      %v5031 = vmax.f32 %v4611, %v4788
      %v5032 = vmax.f32 %v4612, %v4792
      %v5033 = vmax.f32 %v4613, %v4794
      %v5034 = vmax.f32 %v4614, %v4796
      %v5035 = vmax.f32 %v4615, %v4795
      %v5036 = vmax.f32 %v4616, %v4799
      %v5037 = vmax.f32 %v4617, %v4801
      %v5038 = vmax.f32 %v4618, %v4803
      %v5039 = vmax.f32 %v4619, %v4802
      %v5040 = vmax.f32 %v4620, %v4806
      %v5041 = vmax.f32 %v4621, %v4808
      %v5042 = vmax.f32 %v4622, %v4810
      %v5043 = vmax.f32 %v4623, %v4809
      %v5044 = vmax.f32 %v4624, %v4813
      %v5045 = vmax.f32 %v4625, %v4815
      %v5046 = vmax.f32 %v4626, %v4817
      %v5047 = vmax.f32 %v4627, %v4816
      %v5048 = vmax.f32 %v4628, %v4820
      %v5049 = vmax.f32 %v4629, %v4822
      %v5050 = vmax.f32 %v4630, %v4824
      %v5051 = vmax.f32 %v4631, %v4823
      %v5052 = vmax.f32 %v4632, %v4827
      %v5053 = vmax.f32 %v4633, %v4829
      %v5054 = vmax.f32 %v4634, %v4831
      %v5055 = vmax.f32 %v4635, %v4830
      %v5084 = vrot.slane %v4944, 1
      %v5085 = vrot.slane %v4948, 1
      %v5086 = vrot.slane %v4952, 1
      %v5087 = vrot.slane %v4956, 1
      %v5088 = vrot.slane %v4960, 1
      %v5089 = vrot.slane %v4964, 1
      %v5090 = vrot.slane %v4968, 1
      %v5091 = vrot.slane %v4972, 1
      %v5092 = vrot.slane %v4976, 1
      %v5093 = vrot.slane %v4980, 1
      %v5094 = vrot.slane %v4984, 1
      %v5095 = vrot.slane %v4988, 1
      %v5096 = vrot.slane %v4992, 1
      %v5097 = vrot.slane %v4996, 1
      %v5098 = vrot.slane %v5000, 1
      %v5099 = vrot.slane %v5004, 1
      %v5100 = vrot.slane %v5008, 1
      %v5101 = vrot.slane %v5012, 1
      %v5102 = vrot.slane %v5016, 1
      %v5103 = vrot.slane %v5020, 1
      %v5104 = vrot.slane %v5024, 1
      %v5105 = vrot.slane %v5028, 1
      %v5106 = vrot.slane %v5032, 1
      %v5107 = vrot.slane %v5036, 1
      %v5108 = vrot.slane %v5040, 1
      %v5109 = vrot.slane %v5044, 1
      %v5110 = vrot.slane %v5048, 1
      %v5111 = vrot.slane %v5052, 1
      %v5140 = vrot.slane %v4944, 2
      %v5141 = vrot.slane %v4948, 2
      %v5142 = vrot.slane %v4952, 2
      %v5143 = vrot.slane %v4956, 2
      %v5144 = vrot.slane %v4960, 2
      %v5145 = vrot.slane %v4964, 2
      %v5146 = vrot.slane %v4968, 2
      %v5147 = vrot.slane %v4972, 2
      %v5148 = vrot.slane %v4976, 2
      %v5149 = vrot.slane %v4980, 2
      %v5150 = vrot.slane %v4984, 2
      %v5151 = vrot.slane %v4988, 2
      %v5152 = vrot.slane %v4992, 2
      %v5153 = vrot.slane %v4996, 2
      %v5154 = vrot.slane %v5000, 2
      %v5155 = vrot.slane %v5004, 2
      %v5156 = vrot.slane %v5008, 2
      %v5157 = vrot.slane %v5012, 2
      %v5158 = vrot.slane %v5016, 2
      %v5159 = vrot.slane %v5020, 2
      %v5160 = vrot.slane %v5024, 2
      %v5161 = vrot.slane %v5028, 2
      %v5162 = vrot.slane %v5032, 2
      %v5163 = vrot.slane %v5036, 2
      %v5164 = vrot.slane %v5040, 2
      %v5165 = vrot.slane %v5044, 2
      %v5166 = vrot.slane %v5048, 2
      %v5167 = vrot.slane %v5052, 2
      %v5196 = vrot.slane %v4944, 3
      %v5197 = vrot.slane %v4948, 3
      %v5198 = vrot.slane %v4952, 3
      %v5199 = vrot.slane %v4956, 3
      %v5200 = vrot.slane %v4960, 3
      %v5201 = vrot.slane %v4964, 3
      %v5202 = vrot.slane %v4968, 3
      %v5203 = vrot.slane %v4972, 3
      %v5204 = vrot.slane %v4976, 3
      %v5205 = vrot.slane %v4980, 3
      %v5206 = vrot.slane %v4984, 3
      %v5207 = vrot.slane %v4988, 3
      %v5208 = vrot.slane %v4992, 3
      %v5209 = vrot.slane %v4996, 3
      %v5210 = vrot.slane %v5000, 3
      %v5211 = vrot.slane %v5004, 3
      %v5212 = vrot.slane %v5008, 3
      %v5213 = vrot.slane %v5012, 3
      %v5214 = vrot.slane %v5016, 3
      %v5215 = vrot.slane %v5020, 3
      %v5216 = vrot.slane %v5024, 3
      %v5217 = vrot.slane %v5028, 3
      %v5218 = vrot.slane %v5032, 3
      %v5219 = vrot.slane %v5036, 3
      %v5220 = vrot.slane %v5040, 3
      %v5221 = vrot.slane %v5044, 3
      %v5222 = vrot.slane %v5048, 3
      %v5223 = vrot.slane %v5052, 3
      %v5280 = vrot.slane %v4945, 4
      %v5281 = vrot.slane %v4949, 4
      %v5282 = vrot.slane %v4953, 4
      %v5283 = vrot.slane %v4957, 4
      %v5284 = vrot.slane %v4961, 4
      %v5285 = vrot.slane %v4965, 4
      %v5286 = vrot.slane %v4969, 4
      %v5287 = vrot.slane %v4973, 4
      %v5288 = vrot.slane %v4977, 4
      %v5289 = vrot.slane %v4981, 4
      %v5290 = vrot.slane %v4985, 4
      %v5291 = vrot.slane %v4989, 4
      %v5292 = vrot.slane %v4993, 4
      %v5293 = vrot.slane %v4997, 4
      %v5294 = vrot.slane %v5001, 4
      %v5295 = vrot.slane %v5005, 4
      %v5296 = vrot.slane %v5009, 4
      %v5297 = vrot.slane %v5013, 4
      %v5298 = vrot.slane %v5017, 4
      %v5299 = vrot.slane %v5021, 4
      %v5300 = vrot.slane %v5025, 4
      %v5301 = vrot.slane %v5029, 4
      %v5302 = vrot.slane %v5033, 4
      %v5303 = vrot.slane %v5037, 4
      %v5304 = vrot.slane %v5041, 4
      %v5305 = vrot.slane %v5045, 4
      %v5306 = vrot.slane %v5049, 4
      %v5307 = vrot.slane %v5053, 4
      %v5336 = vrot.slane %v4945, 5
      %v5337 = vrot.slane %v4949, 5
      %v5338 = vrot.slane %v4953, 5
      %v5339 = vrot.slane %v4957, 5
      %v5340 = vrot.slane %v4961, 5
      %v5341 = vrot.slane %v4965, 5
      %v5342 = vrot.slane %v4969, 5
      %v5343 = vrot.slane %v4973, 5
      %v5344 = vrot.slane %v4977, 5
      %v5345 = vrot.slane %v4981, 5
      %v5346 = vrot.slane %v4985, 5
      %v5347 = vrot.slane %v4989, 5
      %v5348 = vrot.slane %v4993, 5
      %v5349 = vrot.slane %v4997, 5
      %v5350 = vrot.slane %v5001, 5
      %v5351 = vrot.slane %v5005, 5
      %v5352 = vrot.slane %v5009, 5
      %v5353 = vrot.slane %v5013, 5
      %v5354 = vrot.slane %v5017, 5
      %v5355 = vrot.slane %v5021, 5
      %v5356 = vrot.slane %v5025, 5
      %v5357 = vrot.slane %v5029, 5
      %v5358 = vrot.slane %v5033, 5
      %v5359 = vrot.slane %v5037, 5
      %v5360 = vrot.slane %v5041, 5
      %v5361 = vrot.slane %v5045, 5
      %v5362 = vrot.slane %v5049, 5
      %v5363 = vrot.slane %v5053, 5
      %v5392 = vrot.slane %v4945, 6
      %v5393 = vrot.slane %v4949, 6
      %v5394 = vrot.slane %v4953, 6
      %v5395 = vrot.slane %v4957, 6
      %v5396 = vrot.slane %v4961, 6
      %v5397 = vrot.slane %v4965, 6
      %v5398 = vrot.slane %v4969, 6
      %v5399 = vrot.slane %v4973, 6
      %v5400 = vrot.slane %v4977, 6
      %v5401 = vrot.slane %v4981, 6
      %v5402 = vrot.slane %v4985, 6
      %v5403 = vrot.slane %v4989, 6
      %v5404 = vrot.slane %v4993, 6
      %v5405 = vrot.slane %v4997, 6
      %v5406 = vrot.slane %v5001, 6
      %v5407 = vrot.slane %v5005, 6
      %v5408 = vrot.slane %v5009, 6
      %v5409 = vrot.slane %v5013, 6
      %v5410 = vrot.slane %v5017, 6
      %v5411 = vrot.slane %v5021, 6
      %v5412 = vrot.slane %v5025, 6
      %v5413 = vrot.slane %v5029, 6
      %v5414 = vrot.slane %v5033, 6
      %v5415 = vrot.slane %v5037, 6
      %v5416 = vrot.slane %v5041, 6
      %v5417 = vrot.slane %v5045, 6
      %v5418 = vrot.slane %v5049, 6
      %v5419 = vrot.slane %v5053, 6
      %v5448 = vrot.slane %v4945, 7
      %v5449 = vrot.slane %v4949, 7
      %v5450 = vrot.slane %v4953, 7
      %v5451 = vrot.slane %v4957, 7
      %v5452 = vrot.slane %v4961, 7
      %v5453 = vrot.slane %v4965, 7
      %v5454 = vrot.slane %v4969, 7
      %v5455 = vrot.slane %v4973, 7
      %v5456 = vrot.slane %v4977, 7
      %v5457 = vrot.slane %v4981, 7
      %v5458 = vrot.slane %v4985, 7
      %v5459 = vrot.slane %v4989, 7
      %v5460 = vrot.slane %v4993, 7
      %v5461 = vrot.slane %v4997, 7
      %v5462 = vrot.slane %v5001, 7
      %v5463 = vrot.slane %v5005, 7
      %v5464 = vrot.slane %v5009, 7
      %v5465 = vrot.slane %v5013, 7
      %v5466 = vrot.slane %v5017, 7
      %v5467 = vrot.slane %v5021, 7
      %v5468 = vrot.slane %v5025, 7
      %v5469 = vrot.slane %v5029, 7
      %v5470 = vrot.slane %v5033, 7
      %v5471 = vrot.slane %v5037, 7
      %v5472 = vrot.slane %v5041, 7
      %v5473 = vrot.slane %v5045, 7
      %v5474 = vrot.slane %v5049, 7
      %v5475 = vrot.slane %v5053, 7
      %v5532 = vrot.slane %v4946, 1
      %v5533 = vrot.slane %v4950, 1
      %v5534 = vrot.slane %v4954, 1
      %v5535 = vrot.slane %v4958, 1
      %v5536 = vrot.slane %v4962, 1
      %v5537 = vrot.slane %v4966, 1
      %v5538 = vrot.slane %v4970, 1
      %v5539 = vrot.slane %v4974, 1
      %v5540 = vrot.slane %v4978, 1
      %v5541 = vrot.slane %v4982, 1
      %v5542 = vrot.slane %v4986, 1
      %v5543 = vrot.slane %v4990, 1
      %v5544 = vrot.slane %v4994, 1
      %v5545 = vrot.slane %v4998, 1
      %v5546 = vrot.slane %v5002, 1
      %v5547 = vrot.slane %v5006, 1
      %v5548 = vrot.slane %v5010, 1
      %v5549 = vrot.slane %v5014, 1
      %v5550 = vrot.slane %v5018, 1
      %v5551 = vrot.slane %v5022, 1
      %v5552 = vrot.slane %v5026, 1
      %v5553 = vrot.slane %v5030, 1
      %v5554 = vrot.slane %v5034, 1
      %v5555 = vrot.slane %v5038, 1
      %v5556 = vrot.slane %v5042, 1
      %v5557 = vrot.slane %v5046, 1
      %v5558 = vrot.slane %v5050, 1
      %v5559 = vrot.slane %v5054, 1
      %v5588 = vrot.slane %v4946, 2
      %v5589 = vrot.slane %v4950, 2
      %v5590 = vrot.slane %v4954, 2
      %v5591 = vrot.slane %v4958, 2
      %v5592 = vrot.slane %v4962, 2
      %v5593 = vrot.slane %v4966, 2
      %v5594 = vrot.slane %v4970, 2
      %v5595 = vrot.slane %v4974, 2
      %v5596 = vrot.slane %v4978, 2
      %v5597 = vrot.slane %v4982, 2
      %v5598 = vrot.slane %v4986, 2
      %v5599 = vrot.slane %v4990, 2
      %v5600 = vrot.slane %v4994, 2
      %v5601 = vrot.slane %v4998, 2
      %v5602 = vrot.slane %v5002, 2
      %v5603 = vrot.slane %v5006, 2
      %v5604 = vrot.slane %v5010, 2
      %v5605 = vrot.slane %v5014, 2
      %v5606 = vrot.slane %v5018, 2
      %v5607 = vrot.slane %v5022, 2
      %v5608 = vrot.slane %v5026, 2
      %v5609 = vrot.slane %v5030, 2
      %v5610 = vrot.slane %v5034, 2
      %v5611 = vrot.slane %v5038, 2
      %v5612 = vrot.slane %v5042, 2
      %v5613 = vrot.slane %v5046, 2
      %v5614 = vrot.slane %v5050, 2
      %v5615 = vrot.slane %v5054, 2
      %v5644 = vrot.slane %v4946, 3
      %v5645 = vrot.slane %v4950, 3
      %v5646 = vrot.slane %v4954, 3
      %v5647 = vrot.slane %v4958, 3
      %v5648 = vrot.slane %v4962, 3
      %v5649 = vrot.slane %v4966, 3
      %v5650 = vrot.slane %v4970, 3
      %v5651 = vrot.slane %v4974, 3
      %v5652 = vrot.slane %v4978, 3
      %v5653 = vrot.slane %v4982, 3
      %v5654 = vrot.slane %v4986, 3
      %v5655 = vrot.slane %v4990, 3
      %v5656 = vrot.slane %v4994, 3
      %v5657 = vrot.slane %v4998, 3
      %v5658 = vrot.slane %v5002, 3
      %v5659 = vrot.slane %v5006, 3
      %v5660 = vrot.slane %v5010, 3
      %v5661 = vrot.slane %v5014, 3
      %v5662 = vrot.slane %v5018, 3
      %v5663 = vrot.slane %v5022, 3
      %v5664 = vrot.slane %v5026, 3
      %v5665 = vrot.slane %v5030, 3
      %v5666 = vrot.slane %v5034, 3
      %v5667 = vrot.slane %v5038, 3
      %v5668 = vrot.slane %v5042, 3
      %v5669 = vrot.slane %v5046, 3
      %v5670 = vrot.slane %v5050, 3
      %v5671 = vrot.slane %v5054, 3
      %v5728 = vrot.slane %v4947, 4
      %v5729 = vrot.slane %v4951, 4
      %v5730 = vrot.slane %v4955, 4
      %v5731 = vrot.slane %v4959, 4
      %v5732 = vrot.slane %v4963, 4
      %v5733 = vrot.slane %v4967, 4
      %v5734 = vrot.slane %v4971, 4
      %v5735 = vrot.slane %v4975, 4
      %v5736 = vrot.slane %v4979, 4
      %v5737 = vrot.slane %v4983, 4
      %v5738 = vrot.slane %v4987, 4
      %v5739 = vrot.slane %v4991, 4
      %v5740 = vrot.slane %v4995, 4
      %v5741 = vrot.slane %v4999, 4
      %v5742 = vrot.slane %v5003, 4
      %v5743 = vrot.slane %v5007, 4
      %v5744 = vrot.slane %v5011, 4
      %v5745 = vrot.slane %v5015, 4
      %v5746 = vrot.slane %v5019, 4
      %v5747 = vrot.slane %v5023, 4
      %v5748 = vrot.slane %v5027, 4
      %v5749 = vrot.slane %v5031, 4
      %v5750 = vrot.slane %v5035, 4
      %v5751 = vrot.slane %v5039, 4
      %v5752 = vrot.slane %v5043, 4
      %v5753 = vrot.slane %v5047, 4
      %v5754 = vrot.slane %v5051, 4
      %v5755 = vrot.slane %v5055, 4
      %v5784 = vrot.slane %v4947, 5
      %v5785 = vrot.slane %v4951, 5
      %v5786 = vrot.slane %v4955, 5
      %v5787 = vrot.slane %v4959, 5
      %v5788 = vrot.slane %v4963, 5
      %v5789 = vrot.slane %v4967, 5
      %v5790 = vrot.slane %v4971, 5
      %v5791 = vrot.slane %v4975, 5
      %v5792 = vrot.slane %v4979, 5
      %v5793 = vrot.slane %v4983, 5
      %v5794 = vrot.slane %v4987, 5
      %v5795 = vrot.slane %v4991, 5
      %v5796 = vrot.slane %v4995, 5
      %v5797 = vrot.slane %v4999, 5
      %v5798 = vrot.slane %v5003, 5
      %v5799 = vrot.slane %v5007, 5
      %v5800 = vrot.slane %v5011, 5
      %v5801 = vrot.slane %v5015, 5
      %v5802 = vrot.slane %v5019, 5
      %v5803 = vrot.slane %v5023, 5
      %v5804 = vrot.slane %v5027, 5
      %v5805 = vrot.slane %v5031, 5
      %v5806 = vrot.slane %v5035, 5
      %v5807 = vrot.slane %v5039, 5
      %v5808 = vrot.slane %v5043, 5
      %v5809 = vrot.slane %v5047, 5
      %v5810 = vrot.slane %v5051, 5
      %v5811 = vrot.slane %v5055, 5
      %v5840 = vsel %vm1658, %v4944, %v5084
      %v5841 = vsel %vm1658, %v4948, %v5085
      %v5842 = vsel %vm1658, %v4952, %v5086
      %v5843 = vsel %vm1658, %v4956, %v5087
      %v5844 = vsel %vm1658, %v4960, %v5088
      %v5845 = vsel %vm1658, %v4964, %v5089
      %v5846 = vsel %vm1658, %v4968, %v5090
      %v5847 = vsel %vm1658, %v4972, %v5091
      %v5848 = vsel %vm1658, %v4976, %v5092
      %v5849 = vsel %vm1658, %v4980, %v5093
      %v5850 = vsel %vm1658, %v4984, %v5094
      %v5851 = vsel %vm1658, %v4988, %v5095
      %v5852 = vsel %vm1658, %v4992, %v5096
      %v5853 = vsel %vm1658, %v4996, %v5097
      %v5854 = vsel %vm1658, %v5000, %v5098
      %v5855 = vsel %vm1658, %v5004, %v5099
      %v5856 = vsel %vm1658, %v5008, %v5100
      %v5857 = vsel %vm1658, %v5012, %v5101
      %v5858 = vsel %vm1658, %v5016, %v5102
      %v5859 = vsel %vm1658, %v5020, %v5103
      %v5860 = vsel %vm1658, %v5024, %v5104
      %v5861 = vsel %vm1658, %v5028, %v5105
      %v5862 = vsel %vm1658, %v5032, %v5106
      %v5863 = vsel %vm1658, %v5036, %v5107
      %v5864 = vsel %vm1658, %v5040, %v5108
      %v5865 = vsel %vm1658, %v5044, %v5109
      %v5866 = vsel %vm1658, %v5048, %v5110
      %v5867 = vsel %vm1658, %v5052, %v5111
      %v5868 = vsel %vm1709, %v5840, %v5140
      %v5869 = vsel %vm1709, %v5841, %v5141
      %v5870 = vsel %vm1709, %v5842, %v5142
      %v5871 = vsel %vm1709, %v5843, %v5143
      %v5872 = vsel %vm1709, %v5844, %v5144
      %v5873 = vsel %vm1709, %v5845, %v5145
      %v5874 = vsel %vm1709, %v5846, %v5146
      %v5875 = vsel %vm1709, %v5847, %v5147
      %v5876 = vsel %vm1709, %v5848, %v5148
      %v5877 = vsel %vm1709, %v5849, %v5149
      %v5878 = vsel %vm1709, %v5850, %v5150
      %v5879 = vsel %vm1709, %v5851, %v5151
      %v5880 = vsel %vm1709, %v5852, %v5152
      %v5881 = vsel %vm1709, %v5853, %v5153
      %v5882 = vsel %vm1709, %v5854, %v5154
      %v5883 = vsel %vm1709, %v5855, %v5155
      %v5884 = vsel %vm1709, %v5856, %v5156
      %v5885 = vsel %vm1709, %v5857, %v5157
      %v5886 = vsel %vm1709, %v5858, %v5158
      %v5887 = vsel %vm1709, %v5859, %v5159
      %v5888 = vsel %vm1709, %v5860, %v5160
      %v5889 = vsel %vm1709, %v5861, %v5161
      %v5890 = vsel %vm1709, %v5862, %v5162
      %v5891 = vsel %vm1709, %v5863, %v5163
      %v5892 = vsel %vm1709, %v5864, %v5164
      %v5893 = vsel %vm1709, %v5865, %v5165
      %v5894 = vsel %vm1709, %v5866, %v5166
      %v5895 = vsel %vm1709, %v5867, %v5167
      %v5896 = vsel %vm1625, %v5868, %v5196
      %v5897 = vsel %vm1625, %v5869, %v5197
      %v5898 = vsel %vm1625, %v5870, %v5198
      %v5899 = vsel %vm1625, %v5871, %v5199
      %v5900 = vsel %vm1625, %v5872, %v5200
      %v5901 = vsel %vm1625, %v5873, %v5201
      %v5902 = vsel %vm1625, %v5874, %v5202
      %v5903 = vsel %vm1625, %v5875, %v5203
      %v5904 = vsel %vm1625, %v5876, %v5204
      %v5905 = vsel %vm1625, %v5877, %v5205
      %v5906 = vsel %vm1625, %v5878, %v5206
      %v5907 = vsel %vm1625, %v5879, %v5207
      %v5908 = vsel %vm1625, %v5880, %v5208
      %v5909 = vsel %vm1625, %v5881, %v5209
      %v5910 = vsel %vm1625, %v5882, %v5210
      %v5911 = vsel %vm1625, %v5883, %v5211
      %v5912 = vsel %vm1625, %v5884, %v5212
      %v5913 = vsel %vm1625, %v5885, %v5213
      %v5914 = vsel %vm1625, %v5886, %v5214
      %v5915 = vsel %vm1625, %v5887, %v5215
      %v5916 = vsel %vm1625, %v5888, %v5216
      %v5917 = vsel %vm1625, %v5889, %v5217
      %v5918 = vsel %vm1625, %v5890, %v5218
      %v5919 = vsel %vm1625, %v5891, %v5219
      %v5920 = vsel %vm1625, %v5892, %v5220
      %v5921 = vsel %vm1625, %v5893, %v5221
      %v5922 = vsel %vm1625, %v5894, %v5222
      %v5923 = vsel %vm1625, %v5895, %v5223
      %v5924 = vsel %vm1676, %v5896, %v5280
      %v5925 = vsel %vm1676, %v5897, %v5281
      %v5926 = vsel %vm1676, %v5898, %v5282
      %v5927 = vsel %vm1676, %v5899, %v5283
      %v5928 = vsel %vm1676, %v5900, %v5284
      %v5929 = vsel %vm1676, %v5901, %v5285
      %v5930 = vsel %vm1676, %v5902, %v5286
      %v5931 = vsel %vm1676, %v5903, %v5287
      %v5932 = vsel %vm1676, %v5904, %v5288
      %v5933 = vsel %vm1676, %v5905, %v5289
      %v5934 = vsel %vm1676, %v5906, %v5290
      %v5935 = vsel %vm1676, %v5907, %v5291
      %v5936 = vsel %vm1676, %v5908, %v5292
      %v5937 = vsel %vm1676, %v5909, %v5293
      %v5938 = vsel %vm1676, %v5910, %v5294
      %v5939 = vsel %vm1676, %v5911, %v5295
      %v5940 = vsel %vm1676, %v5912, %v5296
      %v5941 = vsel %vm1676, %v5913, %v5297
      %v5942 = vsel %vm1676, %v5914, %v5298
      %v5943 = vsel %vm1676, %v5915, %v5299
      %v5944 = vsel %vm1676, %v5916, %v5300
      %v5945 = vsel %vm1676, %v5917, %v5301
      %v5946 = vsel %vm1676, %v5918, %v5302
      %v5947 = vsel %vm1676, %v5919, %v5303
      %v5948 = vsel %vm1676, %v5920, %v5304
      %v5949 = vsel %vm1676, %v5921, %v5305
      %v5950 = vsel %vm1676, %v5922, %v5306
      %v5951 = vsel %vm1676, %v5923, %v5307
      %v5952 = vsel %vm1726, %v5924, %v5336
      %v5953 = vsel %vm1726, %v5925, %v5337
      %v5954 = vsel %vm1726, %v5926, %v5338
      %v5955 = vsel %vm1726, %v5927, %v5339
      %v5956 = vsel %vm1726, %v5928, %v5340
      %v5957 = vsel %vm1726, %v5929, %v5341
      %v5958 = vsel %vm1726, %v5930, %v5342
      %v5959 = vsel %vm1726, %v5931, %v5343
      %v5960 = vsel %vm1726, %v5932, %v5344
      %v5961 = vsel %vm1726, %v5933, %v5345
      %v5962 = vsel %vm1726, %v5934, %v5346
      %v5963 = vsel %vm1726, %v5935, %v5347
      %v5964 = vsel %vm1726, %v5936, %v5348
      %v5965 = vsel %vm1726, %v5937, %v5349
      %v5966 = vsel %vm1726, %v5938, %v5350
      %v5967 = vsel %vm1726, %v5939, %v5351
      %v5968 = vsel %vm1726, %v5940, %v5352
      %v5969 = vsel %vm1726, %v5941, %v5353
      %v5970 = vsel %vm1726, %v5942, %v5354
      %v5971 = vsel %vm1726, %v5943, %v5355
      %v5972 = vsel %vm1726, %v5944, %v5356
      %v5973 = vsel %vm1726, %v5945, %v5357
      %v5974 = vsel %vm1726, %v5946, %v5358
      %v5975 = vsel %vm1726, %v5947, %v5359
      %v5976 = vsel %vm1726, %v5948, %v5360
      %v5977 = vsel %vm1726, %v5949, %v5361
      %v5978 = vsel %vm1726, %v5950, %v5362
      %v5979 = vsel %vm1726, %v5951, %v5363
      %v5980 = vsel %vm1642, %v5952, %v5392
      %v5981 = vsel %vm1642, %v5953, %v5393
      %v5982 = vsel %vm1642, %v5954, %v5394
      %v5983 = vsel %vm1642, %v5955, %v5395
      %v5984 = vsel %vm1642, %v5956, %v5396
      %v5985 = vsel %vm1642, %v5957, %v5397
      %v5986 = vsel %vm1642, %v5958, %v5398
      %v5987 = vsel %vm1642, %v5959, %v5399
      %v5988 = vsel %vm1642, %v5960, %v5400
      %v5989 = vsel %vm1642, %v5961, %v5401
      %v5990 = vsel %vm1642, %v5962, %v5402
      %v5991 = vsel %vm1642, %v5963, %v5403
      %v5992 = vsel %vm1642, %v5964, %v5404
      %v5993 = vsel %vm1642, %v5965, %v5405
      %v5994 = vsel %vm1642, %v5966, %v5406
      %v5995 = vsel %vm1642, %v5967, %v5407
      %v5996 = vsel %vm1642, %v5968, %v5408
      %v5997 = vsel %vm1642, %v5969, %v5409
      %v5998 = vsel %vm1642, %v5970, %v5410
      %v5999 = vsel %vm1642, %v5971, %v5411
      %v6000 = vsel %vm1642, %v5972, %v5412
      %v6001 = vsel %vm1642, %v5973, %v5413
      %v6002 = vsel %vm1642, %v5974, %v5414
      %v6003 = vsel %vm1642, %v5975, %v5415
      %v6004 = vsel %vm1642, %v5976, %v5416
      %v6005 = vsel %vm1642, %v5977, %v5417
      %v6006 = vsel %vm1642, %v5978, %v5418
      %v6007 = vsel %vm1642, %v5979, %v5419
      %v6008 = vsel %vm1693, %v5980, %v5448
      %v6009 = vsel %vm1693, %v5981, %v5449
      %v6010 = vsel %vm1693, %v5982, %v5450
      %v6011 = vsel %vm1693, %v5983, %v5451
      %v6012 = vsel %vm1693, %v5984, %v5452
      %v6013 = vsel %vm1693, %v5985, %v5453
      %v6014 = vsel %vm1693, %v5986, %v5454
      %v6015 = vsel %vm1693, %v5987, %v5455
      %v6016 = vsel %vm1693, %v5988, %v5456
      %v6017 = vsel %vm1693, %v5989, %v5457
      %v6018 = vsel %vm1693, %v5990, %v5458
      %v6019 = vsel %vm1693, %v5991, %v5459
      %v6020 = vsel %vm1693, %v5992, %v5460
      %v6021 = vsel %vm1693, %v5993, %v5461
      %v6022 = vsel %vm1693, %v5994, %v5462
      %v6023 = vsel %vm1693, %v5995, %v5463
      %v6024 = vsel %vm1693, %v5996, %v5464
      %v6025 = vsel %vm1693, %v5997, %v5465
      %v6026 = vsel %vm1693, %v5998, %v5466
      %v6027 = vsel %vm1693, %v5999, %v5467
      %v6028 = vsel %vm1693, %v6000, %v5468
      %v6029 = vsel %vm1693, %v6001, %v5469
      %v6030 = vsel %vm1693, %v6002, %v5470
      %v6031 = vsel %vm1693, %v6003, %v5471
      %v6032 = vsel %vm1693, %v6004, %v5472
      %v6033 = vsel %vm1693, %v6005, %v5473
      %v6034 = vsel %vm1693, %v6006, %v5474
      %v6035 = vsel %vm1693, %v6007, %v5475
      %v6036 = vsel %vm1658, %v4946, %v5532
      %v6037 = vsel %vm1658, %v4950, %v5533
      %v6038 = vsel %vm1658, %v4954, %v5534
      %v6039 = vsel %vm1658, %v4958, %v5535
      %v6040 = vsel %vm1658, %v4962, %v5536
      %v6041 = vsel %vm1658, %v4966, %v5537
      %v6042 = vsel %vm1658, %v4970, %v5538
      %v6043 = vsel %vm1658, %v4974, %v5539
      %v6044 = vsel %vm1658, %v4978, %v5540
      %v6045 = vsel %vm1658, %v4982, %v5541
      %v6046 = vsel %vm1658, %v4986, %v5542
      %v6047 = vsel %vm1658, %v4990, %v5543
      %v6048 = vsel %vm1658, %v4994, %v5544
      %v6049 = vsel %vm1658, %v4998, %v5545
      %v6050 = vsel %vm1658, %v5002, %v5546
      %v6051 = vsel %vm1658, %v5006, %v5547
      %v6052 = vsel %vm1658, %v5010, %v5548
      %v6053 = vsel %vm1658, %v5014, %v5549
      %v6054 = vsel %vm1658, %v5018, %v5550
      %v6055 = vsel %vm1658, %v5022, %v5551
      %v6056 = vsel %vm1658, %v5026, %v5552
      %v6057 = vsel %vm1658, %v5030, %v5553
      %v6058 = vsel %vm1658, %v5034, %v5554
      %v6059 = vsel %vm1658, %v5038, %v5555
      %v6060 = vsel %vm1658, %v5042, %v5556
      %v6061 = vsel %vm1658, %v5046, %v5557
      %v6062 = vsel %vm1658, %v5050, %v5558
      %v6063 = vsel %vm1658, %v5054, %v5559
      %v6064 = vsel %vm1709, %v6036, %v5588
      %v6065 = vsel %vm1709, %v6037, %v5589
      %v6066 = vsel %vm1709, %v6038, %v5590
      %v6067 = vsel %vm1709, %v6039, %v5591
      %v6068 = vsel %vm1709, %v6040, %v5592
      %v6069 = vsel %vm1709, %v6041, %v5593
      %v6070 = vsel %vm1709, %v6042, %v5594
      %v6071 = vsel %vm1709, %v6043, %v5595
      %v6072 = vsel %vm1709, %v6044, %v5596
      %v6073 = vsel %vm1709, %v6045, %v5597
      %v6074 = vsel %vm1709, %v6046, %v5598
      %v6075 = vsel %vm1709, %v6047, %v5599
      %v6076 = vsel %vm1709, %v6048, %v5600
      %v6077 = vsel %vm1709, %v6049, %v5601
      %v6078 = vsel %vm1709, %v6050, %v5602
      %v6079 = vsel %vm1709, %v6051, %v5603
      %v6080 = vsel %vm1709, %v6052, %v5604
      %v6081 = vsel %vm1709, %v6053, %v5605
      %v6082 = vsel %vm1709, %v6054, %v5606
      %v6083 = vsel %vm1709, %v6055, %v5607
      %v6084 = vsel %vm1709, %v6056, %v5608
      %v6085 = vsel %vm1709, %v6057, %v5609
      %v6086 = vsel %vm1709, %v6058, %v5610
      %v6087 = vsel %vm1709, %v6059, %v5611
      %v6088 = vsel %vm1709, %v6060, %v5612
      %v6089 = vsel %vm1709, %v6061, %v5613
      %v6090 = vsel %vm1709, %v6062, %v5614
      %v6091 = vsel %vm1709, %v6063, %v5615
      %v6092 = vsel %vm1625, %v6064, %v5644
      %v6093 = vsel %vm1625, %v6065, %v5645
      %v6094 = vsel %vm1625, %v6066, %v5646
      %v6095 = vsel %vm1625, %v6067, %v5647
      %v6096 = vsel %vm1625, %v6068, %v5648
      %v6097 = vsel %vm1625, %v6069, %v5649
      %v6098 = vsel %vm1625, %v6070, %v5650
      %v6099 = vsel %vm1625, %v6071, %v5651
      %v6100 = vsel %vm1625, %v6072, %v5652
      %v6101 = vsel %vm1625, %v6073, %v5653
      %v6102 = vsel %vm1625, %v6074, %v5654
      %v6103 = vsel %vm1625, %v6075, %v5655
      %v6104 = vsel %vm1625, %v6076, %v5656
      %v6105 = vsel %vm1625, %v6077, %v5657
      %v6106 = vsel %vm1625, %v6078, %v5658
      %v6107 = vsel %vm1625, %v6079, %v5659
      %v6108 = vsel %vm1625, %v6080, %v5660
      %v6109 = vsel %vm1625, %v6081, %v5661
      %v6110 = vsel %vm1625, %v6082, %v5662
      %v6111 = vsel %vm1625, %v6083, %v5663
      %v6112 = vsel %vm1625, %v6084, %v5664
      %v6113 = vsel %vm1625, %v6085, %v5665
      %v6114 = vsel %vm1625, %v6086, %v5666
      %v6115 = vsel %vm1625, %v6087, %v5667
      %v6116 = vsel %vm1625, %v6088, %v5668
      %v6117 = vsel %vm1625, %v6089, %v5669
      %v6118 = vsel %vm1625, %v6090, %v5670
      %v6119 = vsel %vm1625, %v6091, %v5671
      %v6120 = vsel %vm1676, %v6092, %v5728
      %v6121 = vsel %vm1676, %v6093, %v5729
      %v6122 = vsel %vm1676, %v6094, %v5730
      %v6123 = vsel %vm1676, %v6095, %v5731
      %v6124 = vsel %vm1676, %v6096, %v5732
      %v6125 = vsel %vm1676, %v6097, %v5733
      %v6126 = vsel %vm1676, %v6098, %v5734
      %v6127 = vsel %vm1676, %v6099, %v5735
      %v6128 = vsel %vm1676, %v6100, %v5736
      %v6129 = vsel %vm1676, %v6101, %v5737
      %v6130 = vsel %vm1676, %v6102, %v5738
      %v6131 = vsel %vm1676, %v6103, %v5739
      %v6132 = vsel %vm1676, %v6104, %v5740
      %v6133 = vsel %vm1676, %v6105, %v5741
      %v6134 = vsel %vm1676, %v6106, %v5742
      %v6135 = vsel %vm1676, %v6107, %v5743
      %v6136 = vsel %vm1676, %v6108, %v5744
      %v6137 = vsel %vm1676, %v6109, %v5745
      %v6138 = vsel %vm1676, %v6110, %v5746
      %v6139 = vsel %vm1676, %v6111, %v5747
      %v6140 = vsel %vm1676, %v6112, %v5748
      %v6141 = vsel %vm1676, %v6113, %v5749
      %v6142 = vsel %vm1676, %v6114, %v5750
      %v6143 = vsel %vm1676, %v6115, %v5751
      %v6144 = vsel %vm1676, %v6116, %v5752
      %v6145 = vsel %vm1676, %v6117, %v5753
      %v6146 = vsel %vm1676, %v6118, %v5754
      %v6147 = vsel %vm1676, %v6119, %v5755
      %v6148 = vsel %vm1726, %v6120, %v5784
      %v6149 = vsel %vm1726, %v6121, %v5785
      %v6150 = vsel %vm1726, %v6122, %v5786
      %v6151 = vsel %vm1726, %v6123, %v5787
      %v6152 = vsel %vm1726, %v6124, %v5788
      %v6153 = vsel %vm1726, %v6125, %v5789
      %v6154 = vsel %vm1726, %v6126, %v5790
      %v6155 = vsel %vm1726, %v6127, %v5791
      %v6156 = vsel %vm1726, %v6128, %v5792
      %v6157 = vsel %vm1726, %v6129, %v5793
      %v6158 = vsel %vm1726, %v6130, %v5794
      %v6159 = vsel %vm1726, %v6131, %v5795
      %v6160 = vsel %vm1726, %v6132, %v5796
      %v6161 = vsel %vm1726, %v6133, %v5797
      %v6162 = vsel %vm1726, %v6134, %v5798
      %v6163 = vsel %vm1726, %v6135, %v5799
      %v6164 = vsel %vm1726, %v6136, %v5800
      %v6165 = vsel %vm1726, %v6137, %v5801
      %v6166 = vsel %vm1726, %v6138, %v5802
      %v6167 = vsel %vm1726, %v6139, %v5803
      %v6168 = vsel %vm1726, %v6140, %v5804
      %v6169 = vsel %vm1726, %v6141, %v5805
      %v6170 = vsel %vm1726, %v6142, %v5806
      %v6171 = vsel %vm1726, %v6143, %v5807
      %v6172 = vsel %vm1726, %v6144, %v5808
      %v6173 = vsel %vm1726, %v6145, %v5809
      %v6174 = vsel %vm1726, %v6146, %v5810
      %v6175 = vsel %vm1726, %v6147, %v5811
      %6176 = vst.msk [vmem:[#allocation3] sm:$0xff] %vm2026, %v6008
      %vm6177 = vcmask 521216
      %6178 = vst.msk [vmem:[#allocation3 + $0x8] sm:$0x3f] %vm6177, %v6148
      %6179 = vst.msk [vmem:[#allocation3 + $0x10] sm:$0xff] %vm2026, %v6009
      %6180 = vst.msk [vmem:[#allocation3 + $0x18] sm:$0x3f] %vm6177, %v6149
      %6181 = vst.msk [vmem:[#allocation3 + $0x20] sm:$0xff] %vm2026, %v6010
      %6182 = vst.msk [vmem:[#allocation3 + $0x28] sm:$0x3f] %vm6177, %v6150
      %6183 = vst.msk [vmem:[#allocation3 + $0x30] sm:$0xff] %vm2026, %v6011
      %6184 = vst.msk [vmem:[#allocation3 + $0x38] sm:$0x3f] %vm6177, %v6151
      %6185 = vst.msk [vmem:[#allocation3 + $0x40] sm:$0xff] %vm2026, %v6012
      %6186 = vst.msk [vmem:[#allocation3 + $0x48] sm:$0x3f] %vm6177, %v6152
      %6187 = vst.msk [vmem:[#allocation3 + $0x50] sm:$0xff] %vm2026, %v6013
      %6188 = vst.msk [vmem:[#allocation3 + $0x58] sm:$0x3f] %vm6177, %v6153
      %6189 = vst.msk [vmem:[#allocation3 + $0x60] sm:$0xff] %vm2026, %v6014
      %6190 = vst.msk [vmem:[#allocation3 + $0x68] sm:$0x3f] %vm6177, %v6154
      %6191 = vst.msk [vmem:[#allocation3 + $0x70] sm:$0xff] %vm2026, %v6015
      %6192 = vst.msk [vmem:[#allocation3 + $0x78] sm:$0x3f] %vm6177, %v6155
      %6193 = vst.msk [vmem:[#allocation3 + $0x80] sm:$0xff] %vm2026, %v6016
      %6194 = vst.msk [vmem:[#allocation3 + $0x88] sm:$0x3f] %vm6177, %v6156
      %6195 = vst.msk [vmem:[#allocation3 + $0x90] sm:$0xff] %vm2026, %v6017
      %6196 = vst.msk [vmem:[#allocation3 + $0x98] sm:$0x3f] %vm6177, %v6157
      %6197 = vst.msk [vmem:[#allocation3 + $0xa0] sm:$0xff] %vm2026, %v6018
      %6198 = vst.msk [vmem:[#allocation3 + $0xa8] sm:$0x3f] %vm6177, %v6158
      %6199 = vst.msk [vmem:[#allocation3 + $0xb0] sm:$0xff] %vm2026, %v6019
      %6200 = vst.msk [vmem:[#allocation3 + $0xb8] sm:$0x3f] %vm6177, %v6159
      %6201 = vst.msk [vmem:[#allocation3 + $0xc0] sm:$0xff] %vm2026, %v6020
      %6202 = vst.msk [vmem:[#allocation3 + $0xc8] sm:$0x3f] %vm6177, %v6160
      %6203 = vst.msk [vmem:[#allocation3 + $0xd0] sm:$0xff] %vm2026, %v6021
      %6204 = vst.msk [vmem:[#allocation3 + $0xd8] sm:$0x3f] %vm6177, %v6161
      %6205 = vst.msk [vmem:[#allocation3 + $0xe0] sm:$0xff] %vm2026, %v6022
      %6206 = vst.msk [vmem:[#allocation3 + $0xe8] sm:$0x3f] %vm6177, %v6162
      %6207 = vst.msk [vmem:[#allocation3 + $0xf0] sm:$0xff] %vm2026, %v6023
      %6208 = vst.msk [vmem:[#allocation3 + $0xf8] sm:$0x3f] %vm6177, %v6163
      %6209 = vst.msk [vmem:[#allocation3 + $0x100] sm:$0xff] %vm2026, %v6024
      %6210 = vst.msk [vmem:[#allocation3 + $0x108] sm:$0x3f] %vm6177, %v6164
      %6211 = vst.msk [vmem:[#allocation3 + $0x110] sm:$0xff] %vm2026, %v6025
      %6212 = vst.msk [vmem:[#allocation3 + $0x118] sm:$0x3f] %vm6177, %v6165
      %6213 = vst.msk [vmem:[#allocation3 + $0x120] sm:$0xff] %vm2026, %v6026
      %6214 = vst.msk [vmem:[#allocation3 + $0x128] sm:$0x3f] %vm6177, %v6166
      %6215 = vst.msk [vmem:[#allocation3 + $0x130] sm:$0xff] %vm2026, %v6027
      %6216 = vst.msk [vmem:[#allocation3 + $0x138] sm:$0x3f] %vm6177, %v6167
      %6217 = vst.msk [vmem:[#allocation3 + $0x140] sm:$0xff] %vm2026, %v6028
      %6218 = vst.msk [vmem:[#allocation3 + $0x148] sm:$0x3f] %vm6177, %v6168
      %6219 = vst.msk [vmem:[#allocation3 + $0x150] sm:$0xff] %vm2026, %v6029
      %6220 = vst.msk [vmem:[#allocation3 + $0x158] sm:$0x3f] %vm6177, %v6169
      %6221 = vst.msk [vmem:[#allocation3 + $0x160] sm:$0xff] %vm2026, %v6030
      %6222 = vst.msk [vmem:[#allocation3 + $0x168] sm:$0x3f] %vm6177, %v6170
      %6223 = vst.msk [vmem:[#allocation3 + $0x170] sm:$0xff] %vm2026, %v6031
      %6224 = vst.msk [vmem:[#allocation3 + $0x178] sm:$0x3f] %vm6177, %v6171
      %6225 = vst.msk [vmem:[#allocation3 + $0x180] sm:$0xff] %vm2026, %v6032
      %6226 = vst.msk [vmem:[#allocation3 + $0x188] sm:$0x3f] %vm6177, %v6172
      %6227 = vst.msk [vmem:[#allocation3 + $0x190] sm:$0xff] %vm2026, %v6033
      %6228 = vst.msk [vmem:[#allocation3 + $0x198] sm:$0x3f] %vm6177, %v6173
      %6229 = vst.msk [vmem:[#allocation3 + $0x1a0] sm:$0xff] %vm2026, %v6034
      %6230 = vst.msk [vmem:[#allocation3 + $0x1a8] sm:$0x3f] %vm6177, %v6174
      %6231 = vst.msk [vmem:[#allocation3 + $0x1b0] sm:$0xff] %vm2026, %v6035
      %6232 = vst.msk [vmem:[#allocation3 + $0x1b8] sm:$0x3f] %vm6177, %v6175
      %v6233 = vld [vmem:[#allocation3] sm:$0xff]
      %v6234 = vld [vmem:[#allocation3 + $0x8] sm:$0x3f]
      %v6235 = vld [vmem:[#allocation3 + $0x10] sm:$0xff]
      %v6236 = vld [vmem:[#allocation3 + $0x18] sm:$0x3f]
      %v6237 = vld [vmem:[#allocation3 + $0x20] sm:$0xff]
      %v6238 = vld [vmem:[#allocation3 + $0x28] sm:$0x3f]
      %v6239 = vld [vmem:[#allocation3 + $0x30] sm:$0xff]
      %v6240 = vld [vmem:[#allocation3 + $0x38] sm:$0x3f]
      %v6241 = vld [vmem:[#allocation3 + $0x40] sm:$0xff]
      %v6242 = vld [vmem:[#allocation3 + $0x48] sm:$0x3f]
      %v6243 = vld [vmem:[#allocation3 + $0x50] sm:$0xff]
      %v6244 = vld [vmem:[#allocation3 + $0x58] sm:$0x3f]
      %v6245 = vld [vmem:[#allocation3 + $0x60] sm:$0xff]
      %v6246 = vld [vmem:[#allocation3 + $0x68] sm:$0x3f]
      %v6247 = vld [vmem:[#allocation3 + $0x70] sm:$0xff]
      %v6248 = vld [vmem:[#allocation3 + $0x78] sm:$0x3f]
      %v6249 = vld [vmem:[#allocation3 + $0x80] sm:$0xff]
      %v6250 = vld [vmem:[#allocation3 + $0x88] sm:$0x3f]
      %v6251 = vld [vmem:[#allocation3 + $0x90] sm:$0xff]
      %v6252 = vld [vmem:[#allocation3 + $0x98] sm:$0x3f]
      %v6253 = vld [vmem:[#allocation3 + $0xa0] sm:$0xff]
      %v6254 = vld [vmem:[#allocation3 + $0xa8] sm:$0x3f]
      %v6255 = vld [vmem:[#allocation3 + $0xb0] sm:$0xff]
      %v6256 = vld [vmem:[#allocation3 + $0xb8] sm:$0x3f]
      %v6257 = vld [vmem:[#allocation3 + $0xc0] sm:$0xff]
      %v6258 = vld [vmem:[#allocation3 + $0xc8] sm:$0x3f]
      %v6259 = vld [vmem:[#allocation3 + $0xd0] sm:$0xff]
      %v6260 = vld [vmem:[#allocation3 + $0xd8] sm:$0x3f]
      %v6261 = vld [vmem:[#allocation3 + $0xe0] sm:$0xff]
      %v6262 = vld [vmem:[#allocation3 + $0xe8] sm:$0x3f]
      %v6263 = vld [vmem:[#allocation3 + $0xf0] sm:$0xff]
      %v6264 = vld [vmem:[#allocation3 + $0xf8] sm:$0x3f]
      %v6265 = vld [vmem:[#allocation3 + $0x100] sm:$0xff]
      %v6266 = vld [vmem:[#allocation3 + $0x108] sm:$0x3f]
      %v6267 = vld [vmem:[#allocation3 + $0x110] sm:$0xff]
      %v6268 = vld [vmem:[#allocation3 + $0x118] sm:$0x3f]
      %v6269 = vld [vmem:[#allocation3 + $0x120] sm:$0xff]
      %v6270 = vld [vmem:[#allocation3 + $0x128] sm:$0x3f]
      %v6271 = vld [vmem:[#allocation3 + $0x130] sm:$0xff]
      %v6272 = vld [vmem:[#allocation3 + $0x138] sm:$0x3f]
      %v6273 = vld [vmem:[#allocation3 + $0x140] sm:$0xff]
      %v6274 = vld [vmem:[#allocation3 + $0x148] sm:$0x3f]
      %v6275 = vld [vmem:[#allocation3 + $0x150] sm:$0xff]
      %v6276 = vld [vmem:[#allocation3 + $0x158] sm:$0x3f]
      %v6277 = vld [vmem:[#allocation3 + $0x160] sm:$0xff]
      %v6278 = vld [vmem:[#allocation3 + $0x168] sm:$0x3f]
      %v6279 = vld [vmem:[#allocation3 + $0x170] sm:$0xff]
      %v6280 = vld [vmem:[#allocation3 + $0x178] sm:$0x3f]
      %v6281 = vld [vmem:[#allocation3 + $0x180] sm:$0xff]
      %v6282 = vld [vmem:[#allocation3 + $0x188] sm:$0x3f]
      %v6283 = vld [vmem:[#allocation3 + $0x190] sm:$0xff]
      %v6284 = vld [vmem:[#allocation3 + $0x198] sm:$0x3f]
      %v6285 = vld [vmem:[#allocation3 + $0x1a0] sm:$0xff]
      %v6286 = vld [vmem:[#allocation3 + $0x1a8] sm:$0x3f]
      %v6287 = vld [vmem:[#allocation3 + $0x1b0] sm:$0xff]
      %v6288 = vld [vmem:[#allocation3 + $0x1b8] sm:$0x3f]
      %v6289 = vpack.c.bf16 %v6234, %v6233
      %v6290 = vpack.c.bf16 %v6236, %v6235
      %v6291 = vpack.c.bf16 %v6238, %v6237
      %v6292 = vpack.c.bf16 %v6240, %v6239
      %v6293 = vpack.c.bf16 %v6242, %v6241
      %v6294 = vpack.c.bf16 %v6244, %v6243
      %v6295 = vpack.c.bf16 %v6246, %v6245
      %v6296 = vpack.c.bf16 %v6248, %v6247
      %v6297 = vpack.c.bf16 %v6250, %v6249
      %v6298 = vpack.c.bf16 %v6252, %v6251
      %v6299 = vpack.c.bf16 %v6254, %v6253
      %v6300 = vpack.c.bf16 %v6256, %v6255
      %v6301 = vpack.c.bf16 %v6258, %v6257
      %v6302 = vpack.c.bf16 %v6260, %v6259
      %v6303 = vpack.c.bf16 %v6262, %v6261
      %v6304 = vpack.c.bf16 %v6264, %v6263
      %v6305 = vpack.c.bf16 %v6266, %v6265
      %v6306 = vpack.c.bf16 %v6268, %v6267
      %v6307 = vpack.c.bf16 %v6270, %v6269
      %v6308 = vpack.c.bf16 %v6272, %v6271
      %v6309 = vpack.c.bf16 %v6274, %v6273
      %v6310 = vpack.c.bf16 %v6276, %v6275
      %v6311 = vpack.c.bf16 %v6278, %v6277
      %v6312 = vpack.c.bf16 %v6280, %v6279
      %v6313 = vpack.c.bf16 %v6282, %v6281
      %v6314 = vpack.c.bf16 %v6284, %v6283
      %v6315 = vpack.c.bf16 %v6286, %v6285
      %v6316 = vpack.c.bf16 %v6288, %v6287
      %6337 = vrot.lane.b32.xlu0 %v6290, 64
      %v6338 = vpop.permute.xlu0 %6337
      %6339 = vrot.lane.b32.xlu0 %v6291, 64
      %v6340 = vpop.permute.xlu0 %6339
      %6341 = vrot.lane.b32.xlu0 %v6292, 64
      %v6342 = vpop.permute.xlu0 %6341
      %6343 = vrot.lane.b32.xlu0 %v6293, 64
      %v6344 = vpop.permute.xlu0 %6343
      %6345 = vrot.lane.b32.xlu0 %v6294, 64
      %v6346 = vpop.permute.xlu0 %6345
      %6347 = vrot.lane.b32.xlu0 %v6295, 64
      %v6348 = vpop.permute.xlu0 %6347
      %6349 = vrot.lane.b32.xlu0 %v6296, 64
      %v6350 = vpop.permute.xlu0 %6349
      %6351 = vrot.lane.b32.xlu0 %v6297, 64
      %v6352 = vpop.permute.xlu0 %6351
      %6353 = vrot.lane.b32.xlu0 %v6298, 64
      %v6354 = vpop.permute.xlu0 %6353
      %6355 = vrot.lane.b32.xlu0 %v6299, 64
      %v6356 = vpop.permute.xlu0 %6355
      %6357 = vrot.lane.b32.xlu0 %v6304, 64
      %v6358 = vpop.permute.xlu0 %6357
      %6359 = vrot.lane.b32.xlu0 %v6305, 64
      %v6360 = vpop.permute.xlu0 %6359
      %6361 = vrot.lane.b32.xlu0 %v6306, 64
      %v6362 = vpop.permute.xlu0 %6361
      %6363 = vrot.lane.b32.xlu0 %v6307, 64
      %v6364 = vpop.permute.xlu0 %6363
      %6365 = vrot.lane.b32.xlu0 %v6308, 64
      %v6366 = vpop.permute.xlu0 %6365
      %6367 = vrot.lane.b32.xlu0 %v6309, 64
      %v6368 = vpop.permute.xlu0 %6367
      %6369 = vrot.lane.b32.xlu0 %v6310, 64
      %v6370 = vpop.permute.xlu0 %6369
      %6371 = vrot.lane.b32.xlu0 %v6311, 64
      %v6372 = vpop.permute.xlu0 %6371
      %6373 = vrot.lane.b32.xlu0 %v6312, 64
      %v6374 = vpop.permute.xlu0 %6373
      %6375 = vrot.lane.b32.xlu0 %v6313, 64
      %v6376 = vpop.permute.xlu0 %6375
      %6381 = vrot.lane.b32.xlu0 %v6300, 64
      %v6382 = vpop.permute.xlu0 %6381
      %6383 = vrot.lane.b32.xlu0 %v6301, 64
      %v6384 = vpop.permute.xlu0 %6383
      %6385 = vrot.lane.b32.xlu0 %v6314, 64
      %v6386 = vpop.permute.xlu0 %6385
      %6387 = vrot.lane.b32.xlu0 %v6315, 64
      %v6388 = vpop.permute.xlu0 %6387
      %v6391 = vsel %vm2026, %v6289, %v6338
      %v6394 = vsel %vm2026, %v6290, %v6340
      %v6397 = vsel %vm2026, %v6291, %v6342
      %v6400 = vsel %vm2026, %v6292, %v6344
      %v6403 = vsel %vm2026, %v6293, %v6346
      %v6406 = vsel %vm2026, %v6294, %v6348
      %v6409 = vsel %vm2026, %v6295, %v6350
      %v6412 = vsel %vm2026, %v6296, %v6352
      %v6415 = vsel %vm2026, %v6297, %v6354
      %v6418 = vsel %vm2026, %v6298, %v6356
      %v6421 = vsel %vm2026, %v6303, %v6358
      %v6424 = vsel %vm2026, %v6304, %v6360
      %v6427 = vsel %vm2026, %v6305, %v6362
      %v6430 = vsel %vm2026, %v6306, %v6364
      %v6433 = vsel %vm2026, %v6307, %v6366
      %v6436 = vsel %vm2026, %v6308, %v6368
      %v6439 = vsel %vm2026, %v6309, %v6370
      %v6442 = vsel %vm2026, %v6310, %v6372
      %v6445 = vsel %vm2026, %v6311, %v6374
      %v6448 = vsel %vm2026, %v6312, %v6376
      %v6451 = vsel %vm2026, %v6299, %v6382
      %v6454 = vsel %vm2026, %v6300, %v6384
      %v6457 = vsel %vm2026, %v6313, %v6386
      %v6460 = vsel %vm2026, %v6314, %v6388
      %v6461 = vshrl.u32 %v6391, 16
      %v6463 = vshll.u32 %v6391, 16
      %v6465 = vrot.slane %v6463, 1
      %v6466 = vor.u32 %v6461, %v6465
      %v6467 = vshrl.u32 %v6397, 16
      %v6469 = vshll.u32 %v6397, 16
      %v6471 = vrot.slane %v6469, 1
      %v6472 = vor.u32 %v6467, %v6471
      %v6473 = vshrl.u32 %v6293, 16
      %v6475 = vshll.u32 %v6293, 16
      %v6477 = vrot.slane %v6475, 1
      %v6478 = vor.u32 %v6473, %v6477
      %v6479 = vshrl.u32 %v6394, 16
      %v6481 = vshll.u32 %v6394, 16
      %v6483 = vrot.slane %v6481, 1
      %v6484 = vor.u32 %v6479, %v6483
      %v6485 = vshrl.u32 %v6400, 16
      %v6487 = vshll.u32 %v6400, 16
      %v6489 = vrot.slane %v6487, 1
      %v6490 = vor.u32 %v6485, %v6489
      %v6491 = vshrl.u32 %v6294, 16
      %v6493 = vshll.u32 %v6294, 16
      %v6495 = vrot.slane %v6493, 1
      %v6496 = vor.u32 %v6491, %v6495
      %v6497 = vshrl.u32 %v6403, 16
      %v6499 = vshll.u32 %v6403, 16
      %v6501 = vrot.slane %v6499, 1
      %v6502 = vor.u32 %v6497, %v6501
      %v6503 = vshrl.u32 %v6295, 16
      %v6505 = vshll.u32 %v6295, 16
      %v6507 = vrot.slane %v6505, 1
      %v6508 = vor.u32 %v6503, %v6507
      %v6509 = vshrl.u32 %v6406, 16
      %v6511 = vshll.u32 %v6406, 16
      %v6513 = vrot.slane %v6511, 1
      %v6514 = vor.u32 %v6509, %v6513
      %v6515 = vshrl.u32 %v6296, 16
      %v6517 = vshll.u32 %v6296, 16
      %v6519 = vrot.slane %v6517, 1
      %v6520 = vor.u32 %v6515, %v6519
      %v6521 = vshrl.u32 %v6409, 16
      %v6523 = vshll.u32 %v6409, 16
      %v6525 = vrot.slane %v6523, 1
      %v6526 = vor.u32 %v6521, %v6525
      %v6527 = vshrl.u32 %v6297, 16
      %v6529 = vshll.u32 %v6297, 16
      %v6531 = vrot.slane %v6529, 1
      %v6532 = vor.u32 %v6527, %v6531
      %v6533 = vshrl.u32 %v6412, 16
      %v6535 = vshll.u32 %v6412, 16
      %v6537 = vrot.slane %v6535, 1
      %v6538 = vor.u32 %v6533, %v6537
      %v6539 = vshrl.u32 %v6298, 16
      %v6541 = vshll.u32 %v6298, 16
      %v6543 = vrot.slane %v6541, 1
      %v6544 = vor.u32 %v6539, %v6543
      %v6545 = vshrl.u32 %v6415, 16
      %v6547 = vshll.u32 %v6415, 16
      %v6549 = vrot.slane %v6547, 1
      %v6550 = vor.u32 %v6545, %v6549
      %v6551 = vshrl.u32 %v6299, 16
      %v6553 = vshll.u32 %v6299, 16
      %v6555 = vrot.slane %v6553, 1
      %v6556 = vor.u32 %v6551, %v6555
      %v6557 = vshrl.u32 %v6418, 16
      %v6559 = vshll.u32 %v6418, 16
      %v6561 = vrot.slane %v6559, 1
      %v6562 = vor.u32 %v6557, %v6561
      %v6563 = vshrl.u32 %v6300, 16
      %v6565 = vshll.u32 %v6300, 16
      %v6567 = vrot.slane %v6565, 1
      %v6568 = vor.u32 %v6563, %v6567
      %v6569 = vshrl.u32 %v6451, 16
      %v6571 = vshll.u32 %v6451, 16
      %v6573 = vrot.slane %v6571, 1
      %v6574 = vor.u32 %v6569, %v6573
      %v6576 = vshrl.u32 %v6301, 16
      %v6578 = vshll.u32 %v6301, 16
      %v6580 = vrot.slane %v6578, 1
      %v6581 = vor.u32 %v6576, %v6580
      %v6582 = vshrl.u32 %v6454, 16
      %v6584 = vshll.u32 %v6454, 16
      %v6586 = vrot.slane %v6584, 1
      %v6587 = vor.u32 %v6582, %v6586
      %v6589 = vshrl.u32 %v6302, 16
      %v6591 = vshll.u32 %v6302, 16
      %v6593 = vrot.slane %v6591, 1
      %v6594 = vor.u32 %v6589, %v6593
      %v6595 = vshrl.u32 %v6421, 16
      %v6597 = vshll.u32 %v6421, 16
      %v6599 = vrot.slane %v6597, 1
      %v6600 = vor.u32 %v6595, %v6599
      %v6601 = vshrl.u32 %v6427, 16
      %v6603 = vshll.u32 %v6427, 16
      %v6605 = vrot.slane %v6603, 1
      %v6606 = vor.u32 %v6601, %v6605
      %v6607 = vshrl.u32 %v6307, 16
      %v6609 = vshll.u32 %v6307, 16
      %v6611 = vrot.slane %v6609, 1
      %v6612 = vor.u32 %v6607, %v6611
      %v6613 = vshrl.u32 %v6424, 16
      %v6615 = vshll.u32 %v6424, 16
      %v6617 = vrot.slane %v6615, 1
      %v6618 = vor.u32 %v6613, %v6617
      %v6619 = vshrl.u32 %v6430, 16
      %v6621 = vshll.u32 %v6430, 16
      %v6623 = vrot.slane %v6621, 1
      %v6624 = vor.u32 %v6619, %v6623
      %v6625 = vshrl.u32 %v6308, 16
      %v6627 = vshll.u32 %v6308, 16
      %v6629 = vrot.slane %v6627, 1
      %v6630 = vor.u32 %v6625, %v6629
      %v6631 = vshrl.u32 %v6433, 16
      %v6633 = vshll.u32 %v6433, 16
      %v6635 = vrot.slane %v6633, 1
      %v6636 = vor.u32 %v6631, %v6635
      %v6637 = vshrl.u32 %v6309, 16
      %v6639 = vshll.u32 %v6309, 16
      %v6641 = vrot.slane %v6639, 1
      %v6642 = vor.u32 %v6637, %v6641
      %v6643 = vshrl.u32 %v6436, 16
      %v6645 = vshll.u32 %v6436, 16
      %v6647 = vrot.slane %v6645, 1
      %v6648 = vor.u32 %v6643, %v6647
      %v6649 = vshrl.u32 %v6310, 16
      %v6651 = vshll.u32 %v6310, 16
      %v6653 = vrot.slane %v6651, 1
      %v6654 = vor.u32 %v6649, %v6653
      %v6655 = vshrl.u32 %v6439, 16
      %v6657 = vshll.u32 %v6439, 16
      %v6659 = vrot.slane %v6657, 1
      %v6660 = vor.u32 %v6655, %v6659
      %v6661 = vshrl.u32 %v6311, 16
      %v6663 = vshll.u32 %v6311, 16
      %v6665 = vrot.slane %v6663, 1
      %v6666 = vor.u32 %v6661, %v6665
      %v6667 = vshrl.u32 %v6442, 16
      %v6669 = vshll.u32 %v6442, 16
      %v6671 = vrot.slane %v6669, 1
      %v6672 = vor.u32 %v6667, %v6671
      %v6673 = vshrl.u32 %v6312, 16
      %v6675 = vshll.u32 %v6312, 16
      %v6677 = vrot.slane %v6675, 1
      %v6678 = vor.u32 %v6673, %v6677
      %v6679 = vshrl.u32 %v6445, 16
      %v6681 = vshll.u32 %v6445, 16
      %v6683 = vrot.slane %v6681, 1
      %v6684 = vor.u32 %v6679, %v6683
      %v6685 = vshrl.u32 %v6313, 16
      %v6687 = vshll.u32 %v6313, 16
      %v6689 = vrot.slane %v6687, 1
      %v6690 = vor.u32 %v6685, %v6689
      %v6691 = vshrl.u32 %v6448, 16
      %v6693 = vshll.u32 %v6448, 16
      %v6695 = vrot.slane %v6693, 1
      %v6696 = vor.u32 %v6691, %v6695
      %v6697 = vshrl.u32 %v6314, 16
      %v6699 = vshll.u32 %v6314, 16
      %v6701 = vrot.slane %v6699, 1
      %v6702 = vor.u32 %v6697, %v6701
      %v6703 = vshrl.u32 %v6457, 16
      %v6705 = vshll.u32 %v6457, 16
      %v6707 = vrot.slane %v6705, 1
      %v6708 = vor.u32 %v6703, %v6707
      %v6710 = vshrl.u32 %v6315, 16
      %v6712 = vshll.u32 %v6315, 16
      %v6714 = vrot.slane %v6712, 1
      %v6715 = vor.u32 %v6710, %v6714
      %v6716 = vshrl.u32 %v6460, 16
      %v6718 = vshll.u32 %v6460, 16
      %v6720 = vrot.slane %v6718, 1
      %v6721 = vor.u32 %v6716, %v6720
      %v6723 = vshrl.u32 %v6316, 16
      %v6725 = vshll.u32 %v6316, 16
      %v6727 = vrot.slane %v6725, 1
      %v6728 = vor.u32 %v6723, %v6727
      %6729 = vrot.lane.b32.xlu0 %v6466, 64
      %v6730 = vpop.permute.xlu0 %6729
      %6731 = vrot.lane.b32.xlu0 %v6472, 64
      %v6732 = vpop.permute.xlu0 %6731
      %6733 = vrot.lane.b32.xlu0 %v6478, 64
      %v6734 = vpop.permute.xlu0 %6733
      %6735 = vrot.lane.b32.xlu0 %v6484, 64
      %v6736 = vpop.permute.xlu0 %6735
      %6737 = vrot.lane.b32.xlu0 %v6490, 64
      %v6738 = vpop.permute.xlu0 %6737
      %6739 = vrot.lane.b32.xlu0 %v6496, 64
      %v6740 = vpop.permute.xlu0 %6739
      %6741 = vrot.lane.b32.xlu0 %v6502, 64
      %v6742 = vpop.permute.xlu0 %6741
      %6743 = vrot.lane.b32.xlu0 %v6508, 64
      %v6744 = vpop.permute.xlu0 %6743
      %6745 = vrot.lane.b32.xlu0 %v6514, 64
      %v6746 = vpop.permute.xlu0 %6745
      %6747 = vrot.lane.b32.xlu0 %v6520, 64
      %v6748 = vpop.permute.xlu0 %6747
      %6749 = vrot.lane.b32.xlu0 %v6526, 64
      %v6750 = vpop.permute.xlu0 %6749
      %6751 = vrot.lane.b32.xlu0 %v6532, 64
      %v6752 = vpop.permute.xlu0 %6751
      %6753 = vrot.lane.b32.xlu0 %v6538, 64
      %v6754 = vpop.permute.xlu0 %6753
      %6755 = vrot.lane.b32.xlu0 %v6544, 64
      %v6756 = vpop.permute.xlu0 %6755
      %6757 = vrot.lane.b32.xlu0 %v6550, 64
      %v6758 = vpop.permute.xlu0 %6757
      %6759 = vrot.lane.b32.xlu0 %v6556, 64
      %v6760 = vpop.permute.xlu0 %6759
      %6761 = vrot.lane.b32.xlu0 %v6562, 64
      %v6762 = vpop.permute.xlu0 %6761
      %6763 = vrot.lane.b32.xlu0 %v6568, 64
      %v6764 = vpop.permute.xlu0 %6763
      %6765 = vrot.lane.b32.xlu0 %v6574, 64
      %v6766 = vpop.permute.xlu0 %6765
      %6767 = vrot.lane.b32.xlu0 %v6581, 64
      %v6768 = vpop.permute.xlu0 %6767
      %6769 = vrot.lane.b32.xlu0 %v6587, 64
      %v6770 = vpop.permute.xlu0 %6769
      %6771 = vrot.lane.b32.xlu0 %v6594, 64
      %v6772 = vpop.permute.xlu0 %6771
      %6773 = vrot.lane.b32.xlu0 %v6600, 64
      %v6774 = vpop.permute.xlu0 %6773
      %6775 = vrot.lane.b32.xlu0 %v6606, 64
      %v6776 = vpop.permute.xlu0 %6775
      %6777 = vrot.lane.b32.xlu0 %v6612, 64
      %v6778 = vpop.permute.xlu0 %6777
      %6779 = vrot.lane.b32.xlu0 %v6618, 64
      %v6780 = vpop.permute.xlu0 %6779
      %6781 = vrot.lane.b32.xlu0 %v6624, 64
      %v6782 = vpop.permute.xlu0 %6781
      %6783 = vrot.lane.b32.xlu0 %v6630, 64
      %v6784 = vpop.permute.xlu0 %6783
      %6785 = vrot.lane.b32.xlu0 %v6636, 64
      %v6786 = vpop.permute.xlu0 %6785
      %6787 = vrot.lane.b32.xlu0 %v6642, 64
      %v6788 = vpop.permute.xlu0 %6787
      %6789 = vrot.lane.b32.xlu0 %v6648, 64
      %v6790 = vpop.permute.xlu0 %6789
      %6791 = vrot.lane.b32.xlu0 %v6654, 64
      %v6792 = vpop.permute.xlu0 %6791
      %6793 = vrot.lane.b32.xlu0 %v6660, 64
      %v6794 = vpop.permute.xlu0 %6793
      %6795 = vrot.lane.b32.xlu0 %v6666, 64
      %v6796 = vpop.permute.xlu0 %6795
      %6797 = vrot.lane.b32.xlu0 %v6672, 64
      %v6798 = vpop.permute.xlu0 %6797
      %6799 = vrot.lane.b32.xlu0 %v6678, 64
      %v6800 = vpop.permute.xlu0 %6799
      %6801 = vrot.lane.b32.xlu0 %v6684, 64
      %v6802 = vpop.permute.xlu0 %6801
      %6803 = vrot.lane.b32.xlu0 %v6690, 64
      %v6804 = vpop.permute.xlu0 %6803
      %6805 = vrot.lane.b32.xlu0 %v6696, 64
      %v6806 = vpop.permute.xlu0 %6805
      %6807 = vrot.lane.b32.xlu0 %v6702, 64
      %v6808 = vpop.permute.xlu0 %6807
      %6809 = vrot.lane.b32.xlu0 %v6708, 64
      %v6810 = vpop.permute.xlu0 %6809
      %6811 = vrot.lane.b32.xlu0 %v6715, 64
      %v6812 = vpop.permute.xlu0 %6811
      %6813 = vrot.lane.b32.xlu0 %v6721, 64
      %v6814 = vpop.permute.xlu0 %6813
      %6815 = vrot.lane.b32.xlu0 %v6728, 64
      %v6816 = vpop.permute.xlu0 %6815
      %vm6817 = vcmask 523264
      %v6818 = vsel %vm6817, %v6730, %v6732
      %v6819 = vsel %vm6817, %v6732, %v6734
      %v6820 = vsel %vm6817, %v6736, %v6738
      %v6821 = vsel %vm6817, %v6738, %v6740
      %v6822 = vsel %vm6817, %v6732, %v6742
      %v6823 = vsel %vm6817, %v6742, %v6744
      %v6824 = vsel %vm6817, %v6738, %v6746
      %v6825 = vsel %vm6817, %v6746, %v6748
      %v6826 = vsel %vm6817, %v6742, %v6750
      %v6827 = vsel %vm6817, %v6750, %v6752
      %v6828 = vsel %vm6817, %v6746, %v6754
      %v6829 = vsel %vm6817, %v6754, %v6756
      %v6830 = vsel %vm6817, %v6750, %v6758
      %v6831 = vsel %vm6817, %v6758, %v6760
      %v6832 = vsel %vm6817, %v6754, %v6762
      %v6833 = vsel %vm6817, %v6762, %v6764
      %v6834 = vsel %vm6817, %v6758, %v6766
      %v6835 = vsel %vm6817, %v6766, %v6768
      %v6836 = vsel %vm6817, %v6762, %v6770
      %v6837 = vsel %vm6817, %v6770, %v6772
      %v6838 = vsel %vm6817, %v6774, %v6776
      %v6839 = vsel %vm6817, %v6776, %v6778
      %v6840 = vsel %vm6817, %v6780, %v6782
      %v6841 = vsel %vm6817, %v6782, %v6784
      %v6842 = vsel %vm6817, %v6776, %v6786
      %v6843 = vsel %vm6817, %v6786, %v6788
      %v6844 = vsel %vm6817, %v6782, %v6790
      %v6845 = vsel %vm6817, %v6790, %v6792
      %v6846 = vsel %vm6817, %v6786, %v6794
      %v6847 = vsel %vm6817, %v6794, %v6796
      %v6848 = vsel %vm6817, %v6790, %v6798
      %v6849 = vsel %vm6817, %v6798, %v6800
      %v6850 = vsel %vm6817, %v6794, %v6802
      %v6851 = vsel %vm6817, %v6802, %v6804
      %v6852 = vsel %vm6817, %v6798, %v6806
      %v6853 = vsel %vm6817, %v6806, %v6808
      %v6854 = vsel %vm6817, %v6802, %v6810
      %v6855 = vsel %vm6817, %v6810, %v6812
      %v6856 = vsel %vm6817, %v6806, %v6814
      %v6857 = vsel %vm6817, %v6814, %v6816
      %v6884 = vrot.slane %v6391, 1
      %v6885 = vrot.slane %v6397, 1
      %v6886 = vrot.slane %v6293, 1
      %v6887 = vrot.slane %v6394, 1
      %v6888 = vrot.slane %v6400, 1
      %v6889 = vrot.slane %v6294, 1
      %v6890 = vrot.slane %v6403, 1
      %v6891 = vrot.slane %v6295, 1
      %v6892 = vrot.slane %v6406, 1
      %v6893 = vrot.slane %v6296, 1
      %v6894 = vrot.slane %v6409, 1
      %v6895 = vrot.slane %v6297, 1
      %v6896 = vrot.slane %v6412, 1
      %v6897 = vrot.slane %v6298, 1
      %v6898 = vrot.slane %v6415, 1
      %v6899 = vrot.slane %v6299, 1
      %v6900 = vrot.slane %v6418, 1
      %v6901 = vrot.slane %v6300, 1
      %v6902 = vrot.slane %v6451, 1
      %v6903 = vrot.slane %v6301, 1
      %v6904 = vrot.slane %v6454, 1
      %v6905 = vrot.slane %v6302, 1
      %v6906 = vrot.slane %v6421, 1
      %v6907 = vrot.slane %v6427, 1
      %v6908 = vrot.slane %v6307, 1
      %v6909 = vrot.slane %v6424, 1
      %v6910 = vrot.slane %v6430, 1
      %v6911 = vrot.slane %v6308, 1
      %v6912 = vrot.slane %v6433, 1
      %v6913 = vrot.slane %v6309, 1
      %v6914 = vrot.slane %v6436, 1
      %v6915 = vrot.slane %v6310, 1
      %v6916 = vrot.slane %v6439, 1
      %v6917 = vrot.slane %v6311, 1
      %v6918 = vrot.slane %v6442, 1
      %v6919 = vrot.slane %v6312, 1
      %v6920 = vrot.slane %v6445, 1
      %v6921 = vrot.slane %v6313, 1
      %v6922 = vrot.slane %v6448, 1
      %v6923 = vrot.slane %v6314, 1
      %v6924 = vrot.slane %v6457, 1
      %v6925 = vrot.slane %v6315, 1
      %v6926 = vrot.slane %v6460, 1
      %v6927 = vrot.slane %v6316, 1
      %v6928 = vrot.slane %v6461, 1
      %v6929 = vrot.slane %v6463, 2
      %v6930 = vor.u32 %v6928, %v6929
      %v6931 = vrot.slane %v6467, 1
      %v6932 = vrot.slane %v6469, 2
      %v6933 = vor.u32 %v6931, %v6932
      %v6934 = vrot.slane %v6473, 1
      %v6935 = vrot.slane %v6475, 2
      %v6936 = vor.u32 %v6934, %v6935
      %v6937 = vrot.slane %v6479, 1
      %v6938 = vrot.slane %v6481, 2
      %v6939 = vor.u32 %v6937, %v6938
      %v6940 = vrot.slane %v6485, 1
      %v6941 = vrot.slane %v6487, 2
      %v6942 = vor.u32 %v6940, %v6941
      %v6943 = vrot.slane %v6491, 1
      %v6944 = vrot.slane %v6493, 2
      %v6945 = vor.u32 %v6943, %v6944
      %v6946 = vrot.slane %v6497, 1
      %v6947 = vrot.slane %v6499, 2
      %v6948 = vor.u32 %v6946, %v6947
      %v6949 = vrot.slane %v6503, 1
      %v6950 = vrot.slane %v6505, 2
      %v6951 = vor.u32 %v6949, %v6950
      %v6952 = vrot.slane %v6509, 1
      %v6953 = vrot.slane %v6511, 2
      %v6954 = vor.u32 %v6952, %v6953
      %v6955 = vrot.slane %v6515, 1
      %v6956 = vrot.slane %v6517, 2
      %v6957 = vor.u32 %v6955, %v6956
      %v6958 = vrot.slane %v6521, 1
      %v6959 = vrot.slane %v6523, 2
      %v6960 = vor.u32 %v6958, %v6959
      %v6961 = vrot.slane %v6527, 1
      %v6962 = vrot.slane %v6529, 2
      %v6963 = vor.u32 %v6961, %v6962
      %v6964 = vrot.slane %v6533, 1
      %v6965 = vrot.slane %v6535, 2
      %v6966 = vor.u32 %v6964, %v6965
      %v6967 = vrot.slane %v6539, 1
      %v6968 = vrot.slane %v6541, 2
      %v6969 = vor.u32 %v6967, %v6968
      %v6970 = vrot.slane %v6545, 1
      %v6971 = vrot.slane %v6547, 2
      %v6972 = vor.u32 %v6970, %v6971
      %v6973 = vrot.slane %v6551, 1
      %v6974 = vrot.slane %v6553, 2
      %v6975 = vor.u32 %v6973, %v6974
      %v6976 = vrot.slane %v6557, 1
      %v6977 = vrot.slane %v6559, 2
      %v6978 = vor.u32 %v6976, %v6977
      %v6979 = vrot.slane %v6563, 1
      %v6980 = vrot.slane %v6565, 2
      %v6981 = vor.u32 %v6979, %v6980
      %v6982 = vrot.slane %v6569, 1
      %v6983 = vrot.slane %v6571, 2
      %v6984 = vor.u32 %v6982, %v6983
      %v6985 = vrot.slane %v6576, 1
      %v6986 = vrot.slane %v6578, 2
      %v6987 = vor.u32 %v6985, %v6986
      %v6988 = vrot.slane %v6582, 1
      %v6989 = vrot.slane %v6584, 2
      %v6990 = vor.u32 %v6988, %v6989
      %v6991 = vrot.slane %v6589, 1
      %v6992 = vrot.slane %v6591, 2
      %v6993 = vor.u32 %v6991, %v6992
      %v6994 = vrot.slane %v6595, 1
      %v6995 = vrot.slane %v6597, 2
      %v6996 = vor.u32 %v6994, %v6995
      %v6997 = vrot.slane %v6601, 1
      %v6998 = vrot.slane %v6603, 2
      %v6999 = vor.u32 %v6997, %v6998
      %v7000 = vrot.slane %v6607, 1
      %v7001 = vrot.slane %v6609, 2
      %v7002 = vor.u32 %v7000, %v7001
      %v7003 = vrot.slane %v6613, 1
      %v7004 = vrot.slane %v6615, 2
      %v7005 = vor.u32 %v7003, %v7004
      %v7006 = vrot.slane %v6619, 1
      %v7007 = vrot.slane %v6621, 2
      %v7008 = vor.u32 %v7006, %v7007
      %v7009 = vrot.slane %v6625, 1
      %v7010 = vrot.slane %v6627, 2
      %v7011 = vor.u32 %v7009, %v7010
      %v7012 = vrot.slane %v6631, 1
      %v7013 = vrot.slane %v6633, 2
      %v7014 = vor.u32 %v7012, %v7013
      %v7015 = vrot.slane %v6637, 1
      %v7016 = vrot.slane %v6639, 2
      %v7017 = vor.u32 %v7015, %v7016
      %v7018 = vrot.slane %v6643, 1
      %v7019 = vrot.slane %v6645, 2
      %v7020 = vor.u32 %v7018, %v7019
      %v7021 = vrot.slane %v6649, 1
      %v7022 = vrot.slane %v6651, 2
      %v7023 = vor.u32 %v7021, %v7022
      %v7024 = vrot.slane %v6655, 1
      %v7025 = vrot.slane %v6657, 2
      %v7026 = vor.u32 %v7024, %v7025
      %v7027 = vrot.slane %v6661, 1
      %v7028 = vrot.slane %v6663, 2
      %v7029 = vor.u32 %v7027, %v7028
      %v7030 = vrot.slane %v6667, 1
      %v7031 = vrot.slane %v6669, 2
      %v7032 = vor.u32 %v7030, %v7031
      %v7033 = vrot.slane %v6673, 1
      %v7034 = vrot.slane %v6675, 2
      %v7035 = vor.u32 %v7033, %v7034
      %v7036 = vrot.slane %v6679, 1
      %v7037 = vrot.slane %v6681, 2
      %v7038 = vor.u32 %v7036, %v7037
      %v7039 = vrot.slane %v6685, 1
      %v7040 = vrot.slane %v6687, 2
      %v7041 = vor.u32 %v7039, %v7040
      %v7042 = vrot.slane %v6691, 1
      %v7043 = vrot.slane %v6693, 2
      %v7044 = vor.u32 %v7042, %v7043
      %v7045 = vrot.slane %v6697, 1
      %v7046 = vrot.slane %v6699, 2
      %v7047 = vor.u32 %v7045, %v7046
      %v7048 = vrot.slane %v6703, 1
      %v7049 = vrot.slane %v6705, 2
      %v7050 = vor.u32 %v7048, %v7049
      %v7051 = vrot.slane %v6710, 1
      %v7052 = vrot.slane %v6712, 2
      %v7053 = vor.u32 %v7051, %v7052
      %v7054 = vrot.slane %v6716, 1
      %v7055 = vrot.slane %v6718, 2
      %v7056 = vor.u32 %v7054, %v7055
      %v7057 = vrot.slane %v6723, 1
      %v7058 = vrot.slane %v6725, 2
      %v7059 = vor.u32 %v7057, %v7058
      %7060 = vrot.lane.b32.xlu0 %v6930, 64
      %v7061 = vpop.permute.xlu0 %7060
      %7062 = vrot.lane.b32.xlu0 %v6933, 64
      %v7063 = vpop.permute.xlu0 %7062
      %7064 = vrot.lane.b32.xlu0 %v6936, 64
      %v7065 = vpop.permute.xlu0 %7064
      %7066 = vrot.lane.b32.xlu0 %v6939, 64
      %v7067 = vpop.permute.xlu0 %7066
      %7068 = vrot.lane.b32.xlu0 %v6942, 64
      %v7069 = vpop.permute.xlu0 %7068
      %7070 = vrot.lane.b32.xlu0 %v6945, 64
      %v7071 = vpop.permute.xlu0 %7070
      %7072 = vrot.lane.b32.xlu0 %v6948, 64
      %v7073 = vpop.permute.xlu0 %7072
      %7074 = vrot.lane.b32.xlu0 %v6951, 64
      %v7075 = vpop.permute.xlu0 %7074
      %7076 = vrot.lane.b32.xlu0 %v6954, 64
      %v7077 = vpop.permute.xlu0 %7076
      %7078 = vrot.lane.b32.xlu0 %v6957, 64
      %v7079 = vpop.permute.xlu0 %7078
      %7080 = vrot.lane.b32.xlu0 %v6960, 64
      %v7081 = vpop.permute.xlu0 %7080
      %7082 = vrot.lane.b32.xlu0 %v6963, 64
      %v7083 = vpop.permute.xlu0 %7082
      %7084 = vrot.lane.b32.xlu0 %v6966, 64
      %v7085 = vpop.permute.xlu0 %7084
      %7086 = vrot.lane.b32.xlu0 %v6969, 64
      %v7087 = vpop.permute.xlu0 %7086
      %7088 = vrot.lane.b32.xlu0 %v6972, 64
      %v7089 = vpop.permute.xlu0 %7088
      %7090 = vrot.lane.b32.xlu0 %v6975, 64
      %v7091 = vpop.permute.xlu0 %7090
      %7092 = vrot.lane.b32.xlu0 %v6978, 64
      %v7093 = vpop.permute.xlu0 %7092
      %7094 = vrot.lane.b32.xlu0 %v6981, 64
      %v7095 = vpop.permute.xlu0 %7094
      %7096 = vrot.lane.b32.xlu0 %v6984, 64
      %v7097 = vpop.permute.xlu0 %7096
      %7098 = vrot.lane.b32.xlu0 %v6987, 64
      %v7099 = vpop.permute.xlu0 %7098
      %7100 = vrot.lane.b32.xlu0 %v6990, 64
      %v7101 = vpop.permute.xlu0 %7100
      %7102 = vrot.lane.b32.xlu0 %v6993, 64
      %v7103 = vpop.permute.xlu0 %7102
      %7104 = vrot.lane.b32.xlu0 %v6996, 64
      %v7105 = vpop.permute.xlu0 %7104
      %7106 = vrot.lane.b32.xlu0 %v6999, 64
      %v7107 = vpop.permute.xlu0 %7106
      %7108 = vrot.lane.b32.xlu0 %v7002, 64
      %v7109 = vpop.permute.xlu0 %7108
      %7110 = vrot.lane.b32.xlu0 %v7005, 64
      %v7111 = vpop.permute.xlu0 %7110
      %7112 = vrot.lane.b32.xlu0 %v7008, 64
      %v7113 = vpop.permute.xlu0 %7112
      %7114 = vrot.lane.b32.xlu0 %v7011, 64
      %v7115 = vpop.permute.xlu0 %7114
      %7116 = vrot.lane.b32.xlu0 %v7014, 64
      %v7117 = vpop.permute.xlu0 %7116
      %7118 = vrot.lane.b32.xlu0 %v7017, 64
      %v7119 = vpop.permute.xlu0 %7118
      %7120 = vrot.lane.b32.xlu0 %v7020, 64
      %v7121 = vpop.permute.xlu0 %7120
      %7122 = vrot.lane.b32.xlu0 %v7023, 64
      %v7123 = vpop.permute.xlu0 %7122
      %7124 = vrot.lane.b32.xlu0 %v7026, 64
      %v7125 = vpop.permute.xlu0 %7124
      %7126 = vrot.lane.b32.xlu0 %v7029, 64
      %v7127 = vpop.permute.xlu0 %7126
      %7128 = vrot.lane.b32.xlu0 %v7032, 64
      %v7129 = vpop.permute.xlu0 %7128
      %7130 = vrot.lane.b32.xlu0 %v7035, 64
      %v7131 = vpop.permute.xlu0 %7130
      %7132 = vrot.lane.b32.xlu0 %v7038, 64
      %v7133 = vpop.permute.xlu0 %7132
      %7134 = vrot.lane.b32.xlu0 %v7041, 64
      %v7135 = vpop.permute.xlu0 %7134
      %7136 = vrot.lane.b32.xlu0 %v7044, 64
      %v7137 = vpop.permute.xlu0 %7136
      %7138 = vrot.lane.b32.xlu0 %v7047, 64
      %v7139 = vpop.permute.xlu0 %7138
      %7140 = vrot.lane.b32.xlu0 %v7050, 64
      %v7141 = vpop.permute.xlu0 %7140
      %7142 = vrot.lane.b32.xlu0 %v7053, 64
      %v7143 = vpop.permute.xlu0 %7142
      %7144 = vrot.lane.b32.xlu0 %v7056, 64
      %v7145 = vpop.permute.xlu0 %7144
      %7146 = vrot.lane.b32.xlu0 %v7059, 64
      %v7147 = vpop.permute.xlu0 %7146
      %v7148 = vsel %vm6817, %v7061, %v7063
      %v7149 = vsel %vm6817, %v7063, %v7065
      %v7150 = vsel %vm6817, %v7067, %v7069
      %v7151 = vsel %vm6817, %v7069, %v7071
      %v7152 = vsel %vm6817, %v7063, %v7073
      %v7153 = vsel %vm6817, %v7073, %v7075
      %v7154 = vsel %vm6817, %v7069, %v7077
      %v7155 = vsel %vm6817, %v7077, %v7079
      %v7156 = vsel %vm6817, %v7073, %v7081
      %v7157 = vsel %vm6817, %v7081, %v7083
      %v7158 = vsel %vm6817, %v7077, %v7085
      %v7159 = vsel %vm6817, %v7085, %v7087
      %v7160 = vsel %vm6817, %v7081, %v7089
      %v7161 = vsel %vm6817, %v7089, %v7091
      %v7162 = vsel %vm6817, %v7085, %v7093
      %v7163 = vsel %vm6817, %v7093, %v7095
      %v7164 = vsel %vm6817, %v7089, %v7097
      %v7165 = vsel %vm6817, %v7097, %v7099
      %v7166 = vsel %vm6817, %v7093, %v7101
      %v7167 = vsel %vm6817, %v7101, %v7103
      %v7168 = vsel %vm6817, %v7105, %v7107
      %v7169 = vsel %vm6817, %v7107, %v7109
      %v7170 = vsel %vm6817, %v7111, %v7113
      %v7171 = vsel %vm6817, %v7113, %v7115
      %v7172 = vsel %vm6817, %v7107, %v7117
      %v7173 = vsel %vm6817, %v7117, %v7119
      %v7174 = vsel %vm6817, %v7113, %v7121
      %v7175 = vsel %vm6817, %v7121, %v7123
      %v7176 = vsel %vm6817, %v7117, %v7125
      %v7177 = vsel %vm6817, %v7125, %v7127
      %v7178 = vsel %vm6817, %v7121, %v7129
      %v7179 = vsel %vm6817, %v7129, %v7131
      %v7180 = vsel %vm6817, %v7125, %v7133
      %v7181 = vsel %vm6817, %v7133, %v7135
      %v7182 = vsel %vm6817, %v7129, %v7137
      %v7183 = vsel %vm6817, %v7137, %v7139
      %v7184 = vsel %vm6817, %v7133, %v7141
      %v7185 = vsel %vm6817, %v7141, %v7143
      %v7186 = vsel %vm6817, %v7137, %v7145
      %v7187 = vsel %vm6817, %v7145, %v7147
      %v7188 = vrot.slane %v6391, 2
      %v7189 = vrot.slane %v6397, 2
      %v7190 = vrot.slane %v6293, 2
      %v7191 = vrot.slane %v6394, 2
      %v7192 = vrot.slane %v6400, 2
      %v7193 = vrot.slane %v6294, 2
      %v7194 = vrot.slane %v6403, 2
      %v7195 = vrot.slane %v6295, 2
      %v7196 = vrot.slane %v6406, 2
      %v7197 = vrot.slane %v6296, 2
      %v7198 = vrot.slane %v6409, 2
      %v7199 = vrot.slane %v6297, 2
      %v7200 = vrot.slane %v6412, 2
      %v7201 = vrot.slane %v6298, 2
      %v7202 = vrot.slane %v6415, 2
      %v7203 = vrot.slane %v6299, 2
      %v7204 = vrot.slane %v6418, 2
      %v7205 = vrot.slane %v6300, 2
      %v7206 = vrot.slane %v6451, 2
      %v7207 = vrot.slane %v6301, 2
      %v7208 = vrot.slane %v6454, 2
      %v7209 = vrot.slane %v6302, 2
      %v7210 = vrot.slane %v6421, 2
      %v7211 = vrot.slane %v6427, 2
      %v7212 = vrot.slane %v6307, 2
      %v7213 = vrot.slane %v6424, 2
      %v7214 = vrot.slane %v6430, 2
      %v7215 = vrot.slane %v6308, 2
      %v7216 = vrot.slane %v6433, 2
      %v7217 = vrot.slane %v6309, 2
      %v7218 = vrot.slane %v6436, 2
      %v7219 = vrot.slane %v6310, 2
      %v7220 = vrot.slane %v6439, 2
      %v7221 = vrot.slane %v6311, 2
      %v7222 = vrot.slane %v6442, 2
      %v7223 = vrot.slane %v6312, 2
      %v7224 = vrot.slane %v6445, 2
      %v7225 = vrot.slane %v6313, 2
      %v7226 = vrot.slane %v6448, 2
      %v7227 = vrot.slane %v6314, 2
      %v7228 = vrot.slane %v6457, 2
      %v7229 = vrot.slane %v6315, 2
      %v7230 = vrot.slane %v6460, 2
      %v7231 = vrot.slane %v6316, 2
      %v7233 = vsel %vm2026, %v6293, %v6730
      %v7235 = vsel %vm2026, %v6294, %v6736
      %v7237 = vsel %vm2026, %v6295, %v6732
      %v7239 = vsel %vm2026, %v6296, %v6738
      %v7241 = vsel %vm2026, %v6297, %v6742
      %v7243 = vsel %vm2026, %v6298, %v6746
      %v7245 = vsel %vm2026, %v6299, %v6750
      %v7247 = vsel %vm2026, %v6300, %v6754
      %v7249 = vsel %vm2026, %v6301, %v6758
      %v7251 = vsel %vm2026, %v6302, %v6762
      %v7253 = vsel %vm2026, %v6307, %v6774
      %v7255 = vsel %vm2026, %v6308, %v6780
      %v7257 = vsel %vm2026, %v6309, %v6776
      %v7259 = vsel %vm2026, %v6310, %v6782
      %v7261 = vsel %vm2026, %v6311, %v6786
      %v7263 = vsel %vm2026, %v6312, %v6790
      %v7265 = vsel %vm2026, %v6313, %v6794
      %v7267 = vsel %vm2026, %v6314, %v6798
      %v7269 = vsel %vm2026, %v6315, %v6802
      %v7271 = vsel %vm2026, %v6316, %v6806
      %v7274 = vsel %vm2026, %v6886, %v7061
      %v7277 = vsel %vm2026, %v6889, %v7067
      %v7280 = vsel %vm2026, %v6891, %v7063
      %v7283 = vsel %vm2026, %v6893, %v7069
      %v7286 = vsel %vm2026, %v6895, %v7073
      %v7289 = vsel %vm2026, %v6897, %v7077
      %v7292 = vsel %vm2026, %v6899, %v7081
      %v7295 = vsel %vm2026, %v6901, %v7085
      %v7298 = vsel %vm2026, %v6903, %v7089
      %v7301 = vsel %vm2026, %v6905, %v7093
      %v7304 = vsel %vm2026, %v6908, %v7105
      %v7307 = vsel %vm2026, %v6911, %v7111
      %v7310 = vsel %vm2026, %v6913, %v7107
      %v7313 = vsel %vm2026, %v6915, %v7113
      %v7316 = vsel %vm2026, %v6917, %v7117
      %v7319 = vsel %vm2026, %v6919, %v7121
      %v7322 = vsel %vm2026, %v6921, %v7125
      %v7325 = vsel %vm2026, %v6923, %v7129
      %v7328 = vsel %vm2026, %v6925, %v7133
      %v7331 = vsel %vm2026, %v6927, %v7137
      %v7334 = vrot.slane %v6394, 3
      %v7335 = vrot.slane %v6400, 3
      %v7336 = vrot.slane %v7235, 3
      %v7337 = vrot.slane %v6820, 3
      %v7338 = vrot.slane %v6821, 3
      %v7339 = vrot.slane %v6887, 3
      %v7340 = vrot.slane %v6888, 3
      %v7341 = vrot.slane %v7277, 3
      %v7342 = vrot.slane %v7150, 3
      %v7343 = vrot.slane %v7151, 3
      %v7344 = vrot.slane %v7191, 3
      %v7345 = vrot.slane %v7192, 3
      %v7346 = vrot.slane %v7193, 3
      %v7349 = vrot.slane %v6397, 6
      %v7350 = vrot.slane %v6403, 6
      %v7351 = vrot.slane %v7237, 6
      %v7352 = vrot.slane %v6822, 6
      %v7353 = vrot.slane %v6823, 6
      %v7354 = vrot.slane %v6885, 6
      %v7355 = vrot.slane %v6890, 6
      %v7356 = vrot.slane %v7280, 6
      %v7357 = vrot.slane %v7152, 6
      %v7358 = vrot.slane %v7153, 6
      %v7359 = vrot.slane %v7189, 6
      %v7360 = vrot.slane %v7194, 6
      %v7361 = vrot.slane %v7195, 6
      %v7364 = vrot.slane %v7239, 1
      %v7365 = vrot.slane %v6824, 1
      %v7366 = vrot.slane %v6825, 1
      %v7367 = vrot.slane %v6888, 1
      %v7368 = vrot.slane %v6892, 1
      %v7369 = vrot.slane %v7283, 1
      %v7370 = vrot.slane %v7154, 1
      %v7371 = vrot.slane %v7155, 1
      %v7372 = vrot.slane %v7192, 1
      %v7373 = vrot.slane %v7196, 1
      %v7374 = vrot.slane %v7197, 1
      %v7377 = vrot.slane %v6403, 4
      %v7378 = vrot.slane %v6409, 4
      %v7379 = vrot.slane %v7241, 4
      %v7380 = vrot.slane %v6826, 4
      %v7381 = vrot.slane %v6827, 4
      %v7382 = vrot.slane %v6890, 4
      %v7383 = vrot.slane %v6894, 4
      %v7384 = vrot.slane %v7286, 4
      %v7385 = vrot.slane %v7156, 4
      %v7386 = vrot.slane %v7157, 4
      %v7387 = vrot.slane %v7194, 4
      %v7388 = vrot.slane %v7198, 4
      %v7389 = vrot.slane %v7199, 4
      %v7392 = vrot.slane %v6406, 7
      %v7393 = vrot.slane %v6412, 7
      %v7394 = vrot.slane %v7243, 7
      %v7395 = vrot.slane %v6828, 7
      %v7396 = vrot.slane %v6829, 7
      %v7397 = vrot.slane %v6892, 7
      %v7398 = vrot.slane %v6896, 7
      %v7399 = vrot.slane %v7289, 7
      %v7400 = vrot.slane %v7158, 7
      %v7401 = vrot.slane %v7159, 7
      %v7402 = vrot.slane %v7196, 7
      %v7403 = vrot.slane %v7200, 7
      %v7404 = vrot.slane %v7201, 7
      %v7407 = vrot.slane %v7245, 2
      %v7408 = vrot.slane %v6830, 2
      %v7409 = vrot.slane %v6831, 2
      %v7410 = vrot.slane %v6894, 2
      %v7411 = vrot.slane %v6898, 2
      %v7412 = vrot.slane %v7292, 2
      %v7413 = vrot.slane %v7160, 2
      %v7414 = vrot.slane %v7161, 2
      %v7415 = vrot.slane %v7198, 2
      %v7416 = vrot.slane %v7202, 2
      %v7417 = vrot.slane %v7203, 2
      %v7420 = vrot.slane %v6412, 5
      %v7421 = vrot.slane %v6418, 5
      %v7422 = vrot.slane %v7247, 5
      %v7423 = vrot.slane %v6832, 5
      %v7424 = vrot.slane %v6833, 5
      %v7425 = vrot.slane %v6896, 5
      %v7426 = vrot.slane %v6900, 5
      %v7427 = vrot.slane %v7295, 5
      %v7428 = vrot.slane %v7162, 5
      %v7429 = vrot.slane %v7163, 5
      %v7430 = vrot.slane %v7200, 5
      %v7431 = vrot.slane %v7204, 5
      %v7432 = vrot.slane %v7205, 5
      %v7435 = vrot.slane %v6418, 3
      %v7436 = vrot.slane %v6454, 3
      %v7437 = vrot.slane %v7251, 3
      %v7438 = vrot.slane %v6836, 3
      %v7439 = vrot.slane %v6837, 3
      %v7440 = vrot.slane %v6900, 3
      %v7441 = vrot.slane %v6904, 3
      %v7442 = vrot.slane %v7301, 3
      %v7443 = vrot.slane %v7166, 3
      %v7444 = vrot.slane %v7167, 3
      %v7445 = vrot.slane %v7204, 3
      %v7446 = vrot.slane %v7208, 3
      %v7447 = vrot.slane %v7209, 3
      %v7450 = vrot.slane %v6421, 6
      %v7451 = vrot.slane %v6427, 6
      %v7452 = vrot.slane %v7253, 6
      %v7453 = vrot.slane %v6838, 6
      %v7454 = vrot.slane %v6839, 6
      %v7455 = vrot.slane %v6906, 6
      %v7456 = vrot.slane %v6907, 6
      %v7457 = vrot.slane %v7304, 6
      %v7458 = vrot.slane %v7168, 6
      %v7459 = vrot.slane %v7169, 6
      %v7460 = vrot.slane %v7210, 6
      %v7461 = vrot.slane %v7211, 6
      %v7462 = vrot.slane %v7212, 6
      %v7465 = vrot.slane %v7255, 1
      %v7466 = vrot.slane %v6840, 1
      %v7467 = vrot.slane %v6841, 1
      %v7468 = vrot.slane %v6909, 1
      %v7469 = vrot.slane %v6910, 1
      %v7470 = vrot.slane %v7307, 1
      %v7471 = vrot.slane %v7170, 1
      %v7472 = vrot.slane %v7171, 1
      %v7473 = vrot.slane %v7213, 1
      %v7474 = vrot.slane %v7214, 1
      %v7475 = vrot.slane %v7215, 1
      %v7478 = vrot.slane %v6427, 4
      %v7479 = vrot.slane %v6433, 4
      %v7480 = vrot.slane %v7257, 4
      %v7481 = vrot.slane %v6842, 4
      %v7482 = vrot.slane %v6843, 4
      %v7483 = vrot.slane %v6907, 4
      %v7484 = vrot.slane %v6912, 4
      %v7485 = vrot.slane %v7310, 4
      %v7486 = vrot.slane %v7172, 4
      %v7487 = vrot.slane %v7173, 4
      %v7488 = vrot.slane %v7211, 4
      %v7489 = vrot.slane %v7216, 4
      %v7490 = vrot.slane %v7217, 4
      %v7493 = vrot.slane %v6430, 7
      %v7494 = vrot.slane %v6436, 7
      %v7495 = vrot.slane %v7259, 7
      %v7496 = vrot.slane %v6844, 7
      %v7497 = vrot.slane %v6845, 7
      %v7498 = vrot.slane %v6910, 7
      %v7499 = vrot.slane %v6914, 7
      %v7500 = vrot.slane %v7313, 7
      %v7501 = vrot.slane %v7174, 7
      %v7502 = vrot.slane %v7175, 7
      %v7503 = vrot.slane %v7214, 7
      %v7504 = vrot.slane %v7218, 7
      %v7505 = vrot.slane %v7219, 7
      %v7508 = vrot.slane %v7261, 2
      %v7509 = vrot.slane %v6846, 2
      %v7510 = vrot.slane %v6847, 2
      %v7511 = vrot.slane %v6912, 2
      %v7512 = vrot.slane %v6916, 2
      %v7513 = vrot.slane %v7316, 2
      %v7514 = vrot.slane %v7176, 2
      %v7515 = vrot.slane %v7177, 2
      %v7516 = vrot.slane %v7216, 2
      %v7517 = vrot.slane %v7220, 2
      %v7518 = vrot.slane %v7221, 2
      %v7521 = vrot.slane %v6436, 5
      %v7522 = vrot.slane %v6442, 5
      %v7523 = vrot.slane %v7263, 5
      %v7524 = vrot.slane %v6848, 5
      %v7525 = vrot.slane %v6849, 5
      %v7526 = vrot.slane %v6914, 5
      %v7527 = vrot.slane %v6918, 5
      %v7528 = vrot.slane %v7319, 5
      %v7529 = vrot.slane %v7178, 5
      %v7530 = vrot.slane %v7179, 5
      %v7531 = vrot.slane %v7218, 5
      %v7532 = vrot.slane %v7222, 5
      %v7533 = vrot.slane %v7223, 5
      %v7535 = vsel %vm1726, %v6391, %v7334
      %v7538 = vsel %vm1726, %v6397, %v7335
      %v7541 = vsel %vm1726, %v7233, %v7336
      %v7545 = vsel %vm1726, %v6818, %v7337
      %v7549 = vsel %vm1726, %v6819, %v7338
      %v7553 = vsel %vm1726, %v6884, %v7339
      %v7557 = vsel %vm1726, %v6885, %v7340
      %v7560 = vsel %vm1726, %v7274, %v7341
      %v7564 = vsel %vm1726, %v7148, %v7342
      %v7568 = vsel %vm1726, %v7149, %v7343
      %v7572 = vsel %vm1726, %v7188, %v7344
      %v7576 = vsel %vm1726, %v7189, %v7345
      %v7580 = vsel %vm1726, %v7190, %v7346
      %v7582 = vsel %vm1709, %v7334, %v7349
      %v7584 = vsel %vm1709, %v7335, %v7350
      %v7586 = vsel %vm1709, %v7336, %v7351
      %v7588 = vsel %vm1709, %v7337, %v7352
      %v7590 = vsel %vm1709, %v7338, %v7353
      %v7592 = vsel %vm1709, %v7339, %v7354
      %v7594 = vsel %vm1709, %v7340, %v7355
      %v7596 = vsel %vm1709, %v7341, %v7356
      %v7598 = vsel %vm1709, %v7342, %v7357
      %v7600 = vsel %vm1709, %v7343, %v7358
      %v7602 = vsel %vm1709, %v7344, %v7359
      %v7604 = vsel %vm1709, %v7345, %v7360
      %v7606 = vsel %vm1709, %v7346, %v7361
      %v7608 = vsel %vm1693, %v7582, %v6888
      %v7611 = vsel %vm1693, %v7584, %v6892
      %v7614 = vsel %vm1693, %v7586, %v7364
      %v7617 = vsel %vm1693, %v7588, %v7365
      %v7620 = vsel %vm1693, %v7590, %v7366
      %v7623 = vsel %vm1693, %v7592, %v7367
      %v7626 = vsel %vm1693, %v7594, %v7368
      %v7629 = vsel %vm1693, %v7596, %v7369
      %v7632 = vsel %vm1693, %v7598, %v7370
      %v7635 = vsel %vm1693, %v7600, %v7371
      %v7638 = vsel %vm1693, %v7602, %v7372
      %v7641 = vsel %vm1693, %v7604, %v7373
      %v7644 = vsel %vm1693, %v7606, %v7374
      %v7646 = vsel %vm1676, %v6888, %v7377
      %v7649 = vsel %vm1676, %v6892, %v7378
      %v7652 = vsel %vm1676, %v7364, %v7379
      %v7655 = vsel %vm1676, %v7365, %v7380
      %v7658 = vsel %vm1676, %v7366, %v7381
      %v7661 = vsel %vm1676, %v7367, %v7382
      %v7664 = vsel %vm1676, %v7368, %v7383
      %v7667 = vsel %vm1676, %v7369, %v7384
      %v7670 = vsel %vm1676, %v7370, %v7385
      %v7673 = vsel %vm1676, %v7371, %v7386
      %v7676 = vsel %vm1676, %v7372, %v7387
      %v7679 = vsel %vm1676, %v7373, %v7388
      %v7682 = vsel %vm1676, %v7374, %v7389
      %v7684 = vsel %vm1658, %v7377, %v7392
      %v7686 = vsel %vm1658, %v7378, %v7393
      %v7688 = vsel %vm1658, %v7379, %v7394
      %v7690 = vsel %vm1658, %v7380, %v7395
      %v7692 = vsel %vm1658, %v7381, %v7396
      %v7694 = vsel %vm1658, %v7382, %v7397
      %v7696 = vsel %vm1658, %v7383, %v7398
      %v7698 = vsel %vm1658, %v7384, %v7399
      %v7700 = vsel %vm1658, %v7385, %v7400
      %v7702 = vsel %vm1658, %v7386, %v7401
      %v7704 = vsel %vm1658, %v7387, %v7402
      %v7706 = vsel %vm1658, %v7388, %v7403
      %v7708 = vsel %vm1658, %v7389, %v7404
      %v7710 = vsel %vm1642, %v7684, %v7198
      %v7713 = vsel %vm1642, %v7686, %v7202
      %v7716 = vsel %vm1642, %v7688, %v7407
      %v7719 = vsel %vm1642, %v7690, %v7408
      %v7722 = vsel %vm1642, %v7692, %v7409
      %v7725 = vsel %vm1642, %v7694, %v7410
      %v7728 = vsel %vm1642, %v7696, %v7411
      %v7731 = vsel %vm1642, %v7698, %v7412
      %v7734 = vsel %vm1642, %v7700, %v7413
      %v7737 = vsel %vm1642, %v7702, %v7414
      %v7740 = vsel %vm1642, %v7704, %v7415
      %v7743 = vsel %vm1642, %v7706, %v7416
      %v7746 = vsel %vm1642, %v7708, %v7417
      %v7748 = vsel %vm1625, %v7198, %v7420
      %v7751 = vsel %vm1625, %v7202, %v7421
      %v7754 = vsel %vm1625, %v7407, %v7422
      %v7757 = vsel %vm1625, %v7408, %v7423
      %v7760 = vsel %vm1625, %v7409, %v7424
      %v7763 = vsel %vm1625, %v7410, %v7425
      %v7766 = vsel %vm1625, %v7411, %v7426
      %v7769 = vsel %vm1625, %v7412, %v7427
      %v7772 = vsel %vm1625, %v7413, %v7428
      %v7775 = vsel %vm1625, %v7414, %v7429
      %v7778 = vsel %vm1625, %v7415, %v7430
      %v7781 = vsel %vm1625, %v7416, %v7431
      %v7784 = vsel %vm1625, %v7417, %v7432
      %v7786 = vsel %vm1726, %v6415, %v7435
      %v7789 = vsel %vm1726, %v6451, %v7436
      %v7792 = vsel %vm1726, %v7249, %v7437
      %v7796 = vsel %vm1726, %v6834, %v7438
      %v7800 = vsel %vm1726, %v6835, %v7439
      %v7804 = vsel %vm1726, %v6898, %v7440
      %v7808 = vsel %vm1726, %v6902, %v7441
      %v7811 = vsel %vm1726, %v7298, %v7442
      %v7815 = vsel %vm1726, %v7164, %v7443
      %v7819 = vsel %vm1726, %v7165, %v7444
      %v7822 = vsel %vm1726, %v7202, %v7445
      %v7826 = vsel %vm1726, %v7206, %v7446
      %v7830 = vsel %vm1726, %v7207, %v7447
      %v7832 = vsel %vm1709, %v7435, %v7450
      %v7834 = vsel %vm1709, %v7436, %v7451
      %v7836 = vsel %vm1709, %v7437, %v7452
      %v7838 = vsel %vm1709, %v7438, %v7453
      %v7840 = vsel %vm1709, %v7439, %v7454
      %v7842 = vsel %vm1709, %v7440, %v7455
      %v7844 = vsel %vm1709, %v7441, %v7456
      %v7846 = vsel %vm1709, %v7442, %v7457
      %v7848 = vsel %vm1709, %v7443, %v7458
      %v7850 = vsel %vm1709, %v7444, %v7459
      %v7852 = vsel %vm1709, %v7445, %v7460
      %v7854 = vsel %vm1709, %v7446, %v7461
      %v7856 = vsel %vm1709, %v7447, %v7462
      %v7858 = vsel %vm1693, %v7832, %v6909
      %v7861 = vsel %vm1693, %v7834, %v6910
      %v7864 = vsel %vm1693, %v7836, %v7465
      %v7867 = vsel %vm1693, %v7838, %v7466
      %v7870 = vsel %vm1693, %v7840, %v7467
      %v7873 = vsel %vm1693, %v7842, %v7468
      %v7876 = vsel %vm1693, %v7844, %v7469
      %v7879 = vsel %vm1693, %v7846, %v7470
      %v7882 = vsel %vm1693, %v7848, %v7471
      %v7885 = vsel %vm1693, %v7850, %v7472
      %v7888 = vsel %vm1693, %v7852, %v7473
      %v7891 = vsel %vm1693, %v7854, %v7474
      %v7894 = vsel %vm1693, %v7856, %v7475
      %v7896 = vsel %vm1676, %v6909, %v7478
      %v7899 = vsel %vm1676, %v6910, %v7479
      %v7902 = vsel %vm1676, %v7465, %v7480
      %v7905 = vsel %vm1676, %v7466, %v7481
      %v7908 = vsel %vm1676, %v7467, %v7482
      %v7911 = vsel %vm1676, %v7468, %v7483
      %v7914 = vsel %vm1676, %v7469, %v7484
      %v7917 = vsel %vm1676, %v7470, %v7485
      %v7920 = vsel %vm1676, %v7471, %v7486
      %v7923 = vsel %vm1676, %v7472, %v7487
      %v7926 = vsel %vm1676, %v7473, %v7488
      %v7929 = vsel %vm1676, %v7474, %v7489
      %v7932 = vsel %vm1676, %v7475, %v7490
      %v7934 = vsel %vm1658, %v7478, %v7493
      %v7936 = vsel %vm1658, %v7479, %v7494
      %v7938 = vsel %vm1658, %v7480, %v7495
      %v7940 = vsel %vm1658, %v7481, %v7496
      %v7942 = vsel %vm1658, %v7482, %v7497
      %v7944 = vsel %vm1658, %v7483, %v7498
      %v7946 = vsel %vm1658, %v7484, %v7499
      %v7948 = vsel %vm1658, %v7485, %v7500
      %v7950 = vsel %vm1658, %v7486, %v7501
      %v7952 = vsel %vm1658, %v7487, %v7502
      %v7954 = vsel %vm1658, %v7488, %v7503
      %v7956 = vsel %vm1658, %v7489, %v7504
      %v7958 = vsel %vm1658, %v7490, %v7505
      %v7960 = vsel %vm1642, %v7934, %v7216
      %v7963 = vsel %vm1642, %v7936, %v7220
      %v7966 = vsel %vm1642, %v7938, %v7508
      %v7969 = vsel %vm1642, %v7940, %v7509
      %v7972 = vsel %vm1642, %v7942, %v7510
      %v7975 = vsel %vm1642, %v7944, %v7511
      %v7978 = vsel %vm1642, %v7946, %v7512
      %v7981 = vsel %vm1642, %v7948, %v7513
      %v7984 = vsel %vm1642, %v7950, %v7514
      %v7987 = vsel %vm1642, %v7952, %v7515
      %v7990 = vsel %vm1642, %v7954, %v7516
      %v7993 = vsel %vm1642, %v7956, %v7517
      %v7996 = vsel %vm1642, %v7958, %v7518
      %v7998 = vsel %vm1625, %v7216, %v7521
      %v8001 = vsel %vm1625, %v7220, %v7522
      %v8004 = vsel %vm1625, %v7508, %v7523
      %v8007 = vsel %vm1625, %v7509, %v7524
      %v8010 = vsel %vm1625, %v7510, %v7525
      %v8013 = vsel %vm1625, %v7511, %v7526
      %v8016 = vsel %vm1625, %v7512, %v7527
      %v8019 = vsel %vm1625, %v7513, %v7528
      %v8022 = vsel %vm1625, %v7514, %v7529
      %v8025 = vsel %vm1625, %v7515, %v7530
      %v8028 = vsel %vm1625, %v7516, %v7531
      %v8031 = vsel %vm1625, %v7517, %v7532
      %v8034 = vsel %vm1625, %v7518, %v7533
      %v8037 = vrot.slane %v6442, 3
      %v8038 = vrot.slane %v6448, 3
      %v8039 = vrot.slane %v7267, 3
      %v8040 = vrot.slane %v6852, 3
      %v8041 = vrot.slane %v6853, 3
      %v8042 = vrot.slane %v6918, 3
      %v8043 = vrot.slane %v6922, 3
      %v8044 = vrot.slane %v7325, 3
      %v8045 = vrot.slane %v7182, 3
      %v8046 = vrot.slane %v7183, 3
      %v8047 = vrot.slane %v7222, 3
      %v8048 = vrot.slane %v7226, 3
      %v8049 = vrot.slane %v7227, 3
      %v8052 = vrot.slane %v6445, 6
      %v8053 = vrot.slane %v6457, 6
      %v8054 = vrot.slane %v7269, 6
      %v8055 = vrot.slane %v6854, 6
      %v8056 = vrot.slane %v6855, 6
      %v8057 = vrot.slane %v6920, 6
      %v8058 = vrot.slane %v6924, 6
      %v8059 = vrot.slane %v7328, 6
      %v8060 = vrot.slane %v7184, 6
      %v8061 = vrot.slane %v7185, 6
      %v8062 = vrot.slane %v7224, 6
      %v8063 = vrot.slane %v7228, 6
      %v8064 = vrot.slane %v7229, 6
      %v8067 = vrot.slane %v7271, 1
      %v8068 = vrot.slane %v6856, 1
      %v8069 = vrot.slane %v6857, 1
      %v8070 = vrot.slane %v6922, 1
      %v8071 = vrot.slane %v6926, 1
      %v8072 = vrot.slane %v7331, 1
      %v8073 = vrot.slane %v7186, 1
      %v8074 = vrot.slane %v7187, 1
      %v8075 = vrot.slane %v7226, 1
      %v8076 = vrot.slane %v7230, 1
      %v8077 = vrot.slane %v7231, 1
      %v8091 = vsel %vm1726, %v6439, %v8037
      %v8094 = vsel %vm1726, %v6445, %v8038
      %v8097 = vsel %vm1726, %v7265, %v8039
      %v8101 = vsel %vm1726, %v6850, %v8040
      %v8105 = vsel %vm1726, %v6851, %v8041
      %v8109 = vsel %vm1726, %v6916, %v8042
      %v8113 = vsel %vm1726, %v6920, %v8043
      %v8116 = vsel %vm1726, %v7322, %v8044
      %v8120 = vsel %vm1726, %v7180, %v8045
      %v8124 = vsel %vm1726, %v7181, %v8046
      %v8127 = vsel %vm1726, %v7220, %v8047
      %v8131 = vsel %vm1726, %v7224, %v8048
      %v8135 = vsel %vm1726, %v7225, %v8049
      %v8137 = vsel %vm1709, %v8037, %v8052
      %v8139 = vsel %vm1709, %v8038, %v8053
      %v8141 = vsel %vm1709, %v8039, %v8054
      %v8143 = vsel %vm1709, %v8040, %v8055
      %v8145 = vsel %vm1709, %v8041, %v8056
      %v8147 = vsel %vm1709, %v8042, %v8057
      %v8149 = vsel %vm1709, %v8043, %v8058
      %v8151 = vsel %vm1709, %v8044, %v8059
      %v8153 = vsel %vm1709, %v8045, %v8060
      %v8155 = vsel %vm1709, %v8046, %v8061
      %v8157 = vsel %vm1709, %v8047, %v8062
      %v8159 = vsel %vm1709, %v8048, %v8063
      %v8161 = vsel %vm1709, %v8049, %v8064
      %v8163 = vsel %vm1693, %v8137, %v6922
      %v8166 = vsel %vm1693, %v8139, %v6926
      %v8169 = vsel %vm1693, %v8141, %v8067
      %v8172 = vsel %vm1693, %v8143, %v8068
      %v8175 = vsel %vm1693, %v8145, %v8069
      %v8178 = vsel %vm1693, %v8147, %v8070
      %v8181 = vsel %vm1693, %v8149, %v8071
      %v8184 = vsel %vm1693, %v8151, %v8072
      %v8187 = vsel %vm1693, %v8153, %v8073
      %v8190 = vsel %vm1693, %v8155, %v8074
      %v8193 = vsel %vm1693, %v8157, %v8075
      %v8196 = vsel %vm1693, %v8159, %v8076
      %v8199 = vsel %vm1693, %v8161, %v8077
      %v8201 = vlaneseq
      %v8202 = vshrl.u32 %v8201, 7
      %v8203 = vsub.s32 0, %v8202
      %v8204 = vrot.slane %v577, %v8203
      %v8406 = vunpack.c.l.b16 %v304
      %v8407 = vunpack.c.l.b16 %v305
      %v8408 = vunpack.c.l.b16 %v306
      %v8409 = vunpack.c.l.b16 %v307
      %v8410 = vunpack.c.l.b16 %v308
      %v8411 = vunpack.c.l.b16 %v309
      %v8412 = vunpack.c.l.b16 %v310
      %v8413 = vunpack.c.l.b16 %v311
      %v8414 = vunpack.c.l.b16 %v312
      %v8415 = vunpack.c.l.b16 %v313
      %v8416 = vunpack.c.l.b16 %v314
      %v8417 = vunpack.c.l.b16 %v315
      %v8418 = vunpack.c.l.b16 %v316
      %v8419 = vunpack.c.l.b16 %v317
      %v8420 = vunpack.c.l.b16 %v318
      %v8421 = vunpack.c.l.b16 %v319
      %v8422 = vunpack.c.l.b16 %v320
      %v8423 = vunpack.c.l.b16 %v321
      %v8424 = vunpack.c.l.b16 %v322
      %v8425 = vunpack.c.l.b16 %v323
      %v8426 = vunpack.c.l.b16 %v324
      %v8427 = vunpack.c.l.b16 %v325
      %v8428 = vunpack.c.l.b16 %v326
      %v8429 = vunpack.c.l.b16 %v327
      %v8430 = vunpack.c.l.b16 %v328
      %v8431 = vunpack.c.l.b16 %v329
      %v8432 = vunpack.c.l.b16 %v330
      %v8433 = vunpack.c.l.b16 %v331
      %v8434 = vunpack.c.l.b16 %v332
      %v8435 = vunpack.c.l.b16 %v333
      %v8436 = vunpack.c.l.b16 %v334
      %v8437 = vunpack.c.l.b16 %v335
      %v8438 = vunpack.c.l.b16 %v336
      %v8439 = vunpack.c.l.b16 %v337
      %v8440 = vunpack.c.l.b16 %v338
      %v8441 = vunpack.c.l.b16 %v339
      %v8442 = vunpack.c.l.b16 %v340
      %v8443 = vunpack.c.l.b16 %v341
      %v8444 = vunpack.c.l.b16 %v342
      %v8445 = vunpack.c.l.b16 %v343
      %v8446 = vunpack.c.l.b16 %v344
      %v8447 = vunpack.c.l.b16 %v345
      %v8448 = vunpack.c.l.b16 %v346
      %v8449 = vunpack.c.l.b16 %v347
      %v8450 = vunpack.c.l.b16 %v348
      %v8451 = vunpack.c.l.b16 %v349
      %v8452 = vunpack.c.l.b16 %v350
      %v8453 = vunpack.c.l.b16 %v351
      %v8454 = vunpack.c.l.b16 %v352
      %v8455 = vunpack.c.l.b16 %v353
      %v8456 = vunpack.c.l.b16 %v354
      %v8457 = vunpack.c.l.b16 %v355
      %v8458 = vunpack.c.l.b16 %v356
      %v8459 = vunpack.c.l.b16 %v357
      %v8460 = vunpack.c.l.b16 %v358
      %v8461 = vunpack.c.l.b16 %v359
      %v8462 = vunpack.c.l.b16 %v360
      %v8463 = vunpack.c.l.b16 %v361
      %v8464 = vunpack.c.l.b16 %v362
      %v8465 = vunpack.c.l.b16 %v363
      %v8466 = vunpack.c.l.b16 %v364
      %v8467 = vunpack.c.l.b16 %v365
      %v8468 = vunpack.c.l.b16 %v366
      %v8469 = vunpack.c.l.b16 %v367
      %v8470 = vunpack.c.l.b16 %v368
      %v8471 = vunpack.c.l.b16 %v369
      %v8472 = vunpack.c.l.b16 %v370
      %v8473 = vunpack.c.l.b16 %v371
      %v8474 = vunpack.c.l.b16 %v372
      %v8475 = vunpack.c.l.b16 %v373
      %v8476 = vunpack.c.l.b16 %v374
      %v8477 = vunpack.c.l.b16 %v375
      %v8478 = vunpack.c.l.b16 %v376
      %v8479 = vunpack.c.l.b16 %v377
      %v8480 = vunpack.c.l.b16 %v378
      %v8481 = vunpack.c.l.b16 %v379
      %v8482 = vunpack.c.l.b16 %v380
      %v8483 = vunpack.c.l.b16 %v381
      %v8484 = vunpack.c.l.b16 %v382
      %v8485 = vunpack.c.l.b16 %v383
      %v8486 = vunpack.c.l.b16 %v384
      %v8487 = vunpack.c.l.b16 %v385
      %v8488 = vunpack.c.l.b16 %v386
      %v8489 = vunpack.c.l.b16 %v387
      %v8490 = vunpack.c.l.b16 %v388
      %v8491 = vunpack.c.l.b16 %v389
      %v8492 = vunpack.c.l.b16 %v390
      %v8493 = vunpack.c.l.b16 %v391
      %v8494 = vunpack.c.l.b16 %v392
      %v8495 = vunpack.c.l.b16 %v393
      %v8496 = vunpack.c.l.b16 %v394
      %v8497 = vunpack.c.l.b16 %v395
      %v8498 = vunpack.c.l.b16 %v396
      %v8499 = vunpack.c.l.b16 %v397
      %v8500 = vunpack.c.l.b16 %v398
      %v8501 = vunpack.c.l.b16 %v399
      %v8502 = vunpack.c.l.b16 %v400
      %v8503 = vunpack.c.l.b16 %v401
      %v8504 = vunpack.c.l.b16 %v402
      %v8505 = vunpack.c.l.b16 %v403
      %v8506 = vunpack.c.l.b16 %v404
      %v8507 = vunpack.c.l.b16 %v405
      %v8508 = vunpack.c.l.b16 %v406
      %v8509 = vunpack.c.l.b16 %v407
      %v8510 = vunpack.c.l.b16 %v408
      %v8511 = vunpack.c.l.b16 %v409
      %v8512 = vunpack.c.l.b16 %v410
      %v8513 = vunpack.c.l.b16 %v411
      %v8514 = vunpack.c.l.b16 %v412
      %v8515 = vunpack.c.l.b16 %v413
      %v8516 = vunpack.c.l.b16 %v414
      %v8517 = vunpack.c.l.b16 %v415
      %v8518 = vunpack.c.l.b16 %v416
      %v8519 = vunpack.c.l.b16 %v417
      %v8520 = vunpack.c.l.b16 %v418
      %v8521 = vunpack.c.l.b16 %v419
      %v8522 = vunpack.c.l.b16 %v420
      %v8523 = vunpack.c.l.b16 %v421
      %v8524 = vunpack.c.l.b16 %v422
      %v8525 = vunpack.c.l.b16 %v423
      %v8526 = vunpack.c.l.b16 %v424
      %v8527 = vunpack.c.l.b16 %v425
      %v8528 = vunpack.c.l.b16 %v426
      %v8529 = vunpack.c.l.b16 %v427
      %v8530 = vunpack.c.l.b16 %v428
      %v8531 = vunpack.c.l.b16 %v429
      %v8532 = vunpack.c.l.b16 %v430
      %v8533 = vunpack.c.l.b16 %v431
      %v8534 = vunpack.c.l.b16 %v432
      %v8535 = vunpack.c.l.b16 %v433
      %v8536 = vunpack.c.l.b16 %v434
      %v8537 = vunpack.c.l.b16 %v435
      %v8538 = vunpack.c.l.b16 %v436
      %v8539 = vunpack.c.l.b16 %v437
      %v8540 = vunpack.c.l.b16 %v438
      %v8541 = vunpack.c.l.b16 %v439
      %v8542 = vunpack.c.l.b16 %v440
      %v8543 = vunpack.c.l.b16 %v441
      %v8544 = vunpack.c.l.b16 %v442
      %v8545 = vunpack.c.l.b16 %v443
      %v8546 = vunpack.c.l.b16 %v444
      %v8547 = vunpack.c.l.b16 %v445
      %v8548 = vunpack.c.l.b16 %v446
      %v8549 = vunpack.c.l.b16 %v447
      %v8550 = vunpack.c.l.b16 %v448
      %v8551 = vunpack.c.l.b16 %v449
      %v8552 = vunpack.c.l.b16 %v450
      %v8553 = vunpack.c.l.b16 %v451
      %v8554 = vunpack.c.l.b16 %v452
      %v8555 = vunpack.c.l.b16 %v453
      %v8556 = vunpack.c.l.b16 %v454
      %v8557 = vunpack.c.l.b16 %v455
      %v8558 = vunpack.c.l.b16 %v456
      %v8559 = vunpack.c.l.b16 %v457
      %v8560 = vunpack.c.l.b16 %v458
      %v8561 = vunpack.c.l.b16 %v459
      %v8562 = vunpack.c.l.b16 %v460
      %v8563 = vunpack.c.l.b16 %v461
      %v8564 = vunpack.c.l.b16 %v462
      %v8565 = vunpack.c.l.b16 %v463
      %v8566 = vunpack.c.l.b16 %v464
      %v8567 = vunpack.c.l.b16 %v465
      %v8568 = vunpack.c.l.b16 %v466
      %v8569 = vunpack.c.l.b16 %v467
      %v8570 = vunpack.c.l.b16 %v468
      %v8571 = vunpack.c.l.b16 %v469
      %v8572 = vunpack.c.l.b16 %v470
      %v8573 = vunpack.c.l.b16 %v471
      %v8574 = vunpack.c.l.b16 %v472
      %v8575 = vunpack.c.l.b16 %v473
      %v8576 = vunpack.c.l.b16 %v474
      %v8577 = vunpack.c.l.b16 %v475
      %v8578 = vunpack.c.l.b16 %v476
      %v8579 = vunpack.c.l.b16 %v477
      %v8580 = vunpack.c.l.b16 %v478
      %v8581 = vunpack.c.l.b16 %v479
      %v8582 = vunpack.c.l.b16 %v480
      %v8583 = vunpack.c.l.b16 %v481
      %v8584 = vunpack.c.l.b16 %v482
      %v8585 = vunpack.c.l.b16 %v483
      %v8586 = vunpack.c.l.b16 %v484
      %v8587 = vunpack.c.l.b16 %v485
      %v8588 = vunpack.c.l.b16 %v486
      %v8589 = vunpack.c.l.b16 %v487
      %v8590 = vunpack.c.l.b16 %v488
      %v8591 = vunpack.c.l.b16 %v489
      %v8592 = vunpack.c.l.b16 %v490
      %v8593 = vunpack.c.l.b16 %v491
      %v8594 = vunpack.c.l.b16 %v492
      %v8595 = vunpack.c.l.b16 %v493
      %v8596 = vunpack.c.l.b16 %v494
      %v8597 = vunpack.c.l.b16 %v495
      %v8598 = vunpack.c.l.b16 %v496
      %v8599 = vunpack.c.l.b16 %v497
      %v8600 = vunpack.c.l.b16 %v498
      %v8601 = vunpack.c.l.b16 %v499
      %v8602 = vunpack.c.l.b16 %v500
      %v8603 = vunpack.c.l.b16 %v501
      %v8604 = vunpack.c.l.b16 %v502
      %v8605 = vunpack.c.l.b16 %v503
      %v8606 = vpack.c.b16 %v8407, %v8406
      %v8607 = vpack.c.b16 %v8409, %v8408
      %v8608 = vpack.c.b16 %v8411, %v8410
      %v8609 = vpack.c.b16 %v8413, %v8412
      %v8610 = vpack.c.b16 %v8415, %v8414
      %v8611 = vpack.c.b16 %v8417, %v8416
      %v8612 = vpack.c.b16 %v8419, %v8418
      %v8613 = vpack.c.b16 %v8421, %v8420
      %v8614 = vpack.c.b16 %v8423, %v8422
      %v8615 = vpack.c.b16 %v8425, %v8424
      %v8616 = vpack.c.b16 %v8427, %v8426
      %v8617 = vpack.c.b16 %v8429, %v8428
      %v8618 = vpack.c.b16 %v8431, %v8430
      %v8619 = vpack.c.b16 %v8433, %v8432
      %v8620 = vpack.c.b16 %v8435, %v8434
      %v8621 = vpack.c.b16 %v8437, %v8436
      %v8622 = vpack.c.b16 %v8439, %v8438
      %v8623 = vpack.c.b16 %v8441, %v8440
      %v8624 = vpack.c.b16 %v8443, %v8442
      %v8625 = vpack.c.b16 %v8445, %v8444
      %v8626 = vpack.c.b16 %v8447, %v8446
      %v8627 = vpack.c.b16 %v8449, %v8448
      %v8628 = vpack.c.b16 %v8451, %v8450
      %v8629 = vpack.c.b16 %v8453, %v8452
      %v8630 = vpack.c.b16 %v8455, %v8454
      %v8631 = vpack.c.b16 %v8457, %v8456
      %v8632 = vpack.c.b16 %v8459, %v8458
      %v8633 = vpack.c.b16 %v8461, %v8460
      %v8634 = vpack.c.b16 %v8463, %v8462
      %v8635 = vpack.c.b16 %v8465, %v8464
      %v8636 = vpack.c.b16 %v8467, %v8466
      %v8637 = vpack.c.b16 %v8469, %v8468
      %v8638 = vpack.c.b16 %v8471, %v8470
      %v8639 = vpack.c.b16 %v8473, %v8472
      %v8640 = vpack.c.b16 %v8475, %v8474
      %v8641 = vpack.c.b16 %v8477, %v8476
      %v8642 = vpack.c.b16 %v8479, %v8478
      %v8643 = vpack.c.b16 %v8481, %v8480
      %v8644 = vpack.c.b16 %v8483, %v8482
      %v8645 = vpack.c.b16 %v8485, %v8484
      %v8646 = vpack.c.b16 %v8487, %v8486
      %v8647 = vpack.c.b16 %v8489, %v8488
      %v8648 = vpack.c.b16 %v8491, %v8490
      %v8649 = vpack.c.b16 %v8493, %v8492
      %v8650 = vpack.c.b16 %v8495, %v8494
      %v8651 = vpack.c.b16 %v8497, %v8496
      %v8652 = vpack.c.b16 %v8499, %v8498
      %v8653 = vpack.c.b16 %v8501, %v8500
      %v8654 = vpack.c.b16 %v8503, %v8502
      %v8655 = vpack.c.b16 %v8505, %v8504
      %v8656 = vpack.c.b16 %v8507, %v8506
      %v8657 = vpack.c.b16 %v8509, %v8508
      %v8658 = vpack.c.b16 %v8511, %v8510
      %v8659 = vpack.c.b16 %v8513, %v8512
      %v8660 = vpack.c.b16 %v8515, %v8514
      %v8661 = vpack.c.b16 %v8517, %v8516
      %v8662 = vpack.c.b16 %v8519, %v8518
      %v8663 = vpack.c.b16 %v8521, %v8520
      %v8664 = vpack.c.b16 %v8523, %v8522
      %v8665 = vpack.c.b16 %v8525, %v8524
      %v8666 = vpack.c.b16 %v8527, %v8526
      %v8667 = vpack.c.b16 %v8529, %v8528
      %v8668 = vpack.c.b16 %v8531, %v8530
      %v8669 = vpack.c.b16 %v8533, %v8532
      %v8670 = vpack.c.b16 %v8535, %v8534
      %v8671 = vpack.c.b16 %v8537, %v8536
      %v8672 = vpack.c.b16 %v8539, %v8538
      %v8673 = vpack.c.b16 %v8541, %v8540
      %v8674 = vpack.c.b16 %v8543, %v8542
      %v8675 = vpack.c.b16 %v8545, %v8544
      %v8676 = vpack.c.b16 %v8547, %v8546
      %v8677 = vpack.c.b16 %v8549, %v8548
      %v8678 = vpack.c.b16 %v8551, %v8550
      %v8679 = vpack.c.b16 %v8553, %v8552
      %v8680 = vpack.c.b16 %v8555, %v8554
      %v8681 = vpack.c.b16 %v8557, %v8556
      %v8682 = vpack.c.b16 %v8559, %v8558
      %v8683 = vpack.c.b16 %v8561, %v8560
      %v8684 = vpack.c.b16 %v8563, %v8562
      %v8685 = vpack.c.b16 %v8565, %v8564
      %v8686 = vpack.c.b16 %v8567, %v8566
      %v8687 = vpack.c.b16 %v8569, %v8568
      %v8688 = vpack.c.b16 %v8571, %v8570
      %v8689 = vpack.c.b16 %v8573, %v8572
      %v8690 = vpack.c.b16 %v8575, %v8574
      %v8691 = vpack.c.b16 %v8577, %v8576
      %v8692 = vpack.c.b16 %v8579, %v8578
      %v8693 = vpack.c.b16 %v8581, %v8580
      %v8694 = vpack.c.b16 %v8583, %v8582
      %v8695 = vpack.c.b16 %v8585, %v8584
      %v8696 = vpack.c.b16 %v8587, %v8586
      %v8697 = vpack.c.b16 %v8589, %v8588
      %v8698 = vpack.c.b16 %v8591, %v8590
      %v8699 = vpack.c.b16 %v8593, %v8592
      %v8700 = vpack.c.b16 %v8595, %v8594
      %v8701 = vpack.c.b16 %v8597, %v8596
      %v8702 = vpack.c.b16 %v8599, %v8598
      %v8703 = vpack.c.b16 %v8601, %v8600
      %v8704 = vpack.c.b16 %v8603, %v8602
      %v8705 = vpack.c.b16 %v8605, %v8604
      %v8806 = vsel %vm2026, %v7580, 0
      %v8808 = vsel %vm2026, %v7644, 0
      %v8810 = vsel %vm2026, %v7682, 0
      %v8812 = vsel %vm2026, %v7746, 0
      %v8814 = vsel %vm2026, %v7784, 0
      %v8816 = vsel %vm2026, %v7830, 0
      %v8818 = vsel %vm2026, %v7894, 0
      %v8820 = vsel %vm2026, %v7932, 0
      %v8822 = vsel %vm2026, %v7996, 0
      %v8824 = vsel %vm2026, %v8034, 0
      %v8826 = vsel %vm2026, %v8135, 0
      %v8828 = vsel %vm2026, %v8199, 0
      %v8830 = vsel %vm2026, %v8077, 0
      %8832 = vmatprep.subr.bf16.mxu0 0
      %8833 = vmatpush1.bf16.msra.mxu0 %v8606
      %8834 = vmatprep.subr.bf16.mxu0 0
      %8835 = vmatpush1.bf16.msra.mxu0 %v8607
      %8836 = vmatprep.subr.bf16.mxu0 0
      %8837 = vmatpush1.bf16.msra.mxu0 %v8608
      %8838 = vmatprep.subr.bf16.mxu0 0
      %8839 = vmatpush1.bf16.msra.mxu0 %v8609
      %8840 = vmatprep.subr.bf16.mxu0 0
      %8841 = vmatpush1.bf16.msra.mxu0 %v8610
      %8842 = vmatprep.subr.bf16.mxu0 0
      %8843 = vmatpush1.bf16.msra.mxu0 %v8611
      %8844 = vmatprep.subr.bf16.mxu0 0
      %8845 = vmatpush1.bf16.msra.mxu0 %v8612
      %8846 = vmatprep.subr.bf16.mxu0 0
      %8847 = vmatpush1.bf16.msra.mxu0 %v8613
      %8848 = vmatprep.subr.bf16.mxu0 0
      %8849 = vmatpush1.bf16.msra.mxu0 %v8614
      %8850 = vmatprep.subr.bf16.mxu0 0
      %8851 = vmatpush1.bf16.msra.mxu0 %v8615
      %8852 = vmatprep.subr.bf16.mxu0 0
      %8853 = vmatpush1.bf16.msra.mxu0 %v8616
      %8854 = vmatprep.subr.bf16.mxu0 0
      %8855 = vmatpush1.bf16.msra.mxu0 %v8617
      %8856 = vmatprep.subr.bf16.mxu0 0
      %8857 = vmatpush1.bf16.msra.mxu0 %v8618
      %8858 = vmatprep.subr.bf16.mxu0 0
      %8859 = vmatpush1.bf16.msra.mxu0 %v8619
      %8860 = vmatprep.subr.bf16.mxu0 0
      %8861 = vmatpush1.bf16.msra.mxu0 %v8620
      %8862 = vmatprep.subr.bf16.mxu0 0
      %8863 = vmatpush1.bf16.msra.mxu0 %v8621
      %8864 = vmatprep.mubr.bf16.mxu0 %v7538
      %8865 = vmatmul.mubr.bf16.gmra.mrb[0].mxu0 %v7535
      %v8866 = vpop.f32.mrb[0].mxu0
      %v8867 = vadd.f32 %v8204, %v8866
      %v8868 = vpop.f32.mrb[0].mxu0
      %v8869 = vpop.f32.mrb[0].mxu0
      %v8870 = vadd.f32 %v8204, %v8869
      %v8871 = vpop.f32.mrb[0].mxu0
      %8872 = vmatprep.mubr.bf16.mxu0 %v7611
      %8873 = vmatmul.mubr.bf16.gmra.mrb[0].mxu0 %v7608
      %v8874 = vpop.f32.mrb[0].mxu0
      %v8875 = vadd.f32 %v8204, %v8874
      %v8876 = vpop.f32.mrb[0].mxu0
      %v8877 = vpop.f32.mrb[0].mxu0
      %v8878 = vadd.f32 %v8204, %v8877
      %v8879 = vpop.f32.mrb[0].mxu0
      %8880 = vmatprep.mubr.bf16.mxu0 %v7649
      %8881 = vmatmul.mubr.bf16.gmra.mrb[0].mxu0 %v7646
      %v8882 = vpop.f32.mrb[0].mxu0
      %v8883 = vadd.f32 %v8204, %v8882
      %v8884 = vpop.f32.mrb[0].mxu0
      %v8885 = vpop.f32.mrb[0].mxu0
      %v8886 = vadd.f32 %v8204, %v8885
      %v8887 = vpop.f32.mrb[0].mxu0
      %8888 = vmatprep.mubr.bf16.mxu0 %v7713
      %8889 = vmatmul.mubr.bf16.gmra.mrb[0].mxu0 %v7710
      %v8890 = vpop.f32.mrb[0].mxu0
      %v8891 = vadd.f32 %v8204, %v8890
      %v8892 = vpop.f32.mrb[0].mxu0
      %v8893 = vpop.f32.mrb[0].mxu0
      %v8894 = vadd.f32 %v8204, %v8893
      %v8895 = vpop.f32.mrb[0].mxu0
      %8896 = vmatprep.mubr.bf16.mxu0 %v7751
      %8897 = vmatmul.mubr.bf16.gmra.mrb[0].mxu0 %v7748
      %v8898 = vpop.f32.mrb[0].mxu0
      %v8899 = vadd.f32 %v8204, %v8898
      %v8900 = vpop.f32.mrb[0].mxu0
      %v8901 = vpop.f32.mrb[0].mxu0
      %v8902 = vadd.f32 %v8204, %v8901
      %v8903 = vpop.f32.mrb[0].mxu0
      %8904 = vmatprep.mubr.bf16.mxu0 %v7789
      %8905 = vmatmul.mubr.bf16.gmra.mrb[0].mxu0 %v7786
      %v8906 = vpop.f32.mrb[0].mxu0
      %v8907 = vadd.f32 %v8204, %v8906
      %v8908 = vpop.f32.mrb[0].mxu0
      %v8909 = vpop.f32.mrb[0].mxu0
      %v8910 = vadd.f32 %v8204, %v8909
      %v8911 = vpop.f32.mrb[0].mxu0
      %8912 = vmatprep.mubr.bf16.mxu0 %v7861
      %8913 = vmatmul.mubr.bf16.gmra.mrb[0].mxu0 %v7858
      %v8914 = vpop.f32.mrb[0].mxu0
      %v8915 = vadd.f32 %v8204, %v8914
      %v8916 = vpop.f32.mrb[0].mxu0
      %v8917 = vpop.f32.mrb[0].mxu0
      %v8918 = vadd.f32 %v8204, %v8917
      %v8919 = vpop.f32.mrb[0].mxu0
      %8920 = vmatprep.mubr.bf16.mxu0 %v7899
      %8921 = vmatmul.mubr.bf16.gmra.mrb[0].mxu0 %v7896
      %v8922 = vpop.f32.mrb[0].mxu0
      %v8923 = vadd.f32 %v8204, %v8922
      %v8924 = vpop.f32.mrb[0].mxu0
      %v8925 = vpop.f32.mrb[0].mxu0
      %v8926 = vadd.f32 %v8204, %v8925
      %v8927 = vpop.f32.mrb[0].mxu0
      %8928 = vmatprep.mubr.bf16.mxu0 %v7963
      %8929 = vmatmul.mubr.bf16.gmra.mrb[0].mxu0 %v7960
      %v8930 = vpop.f32.mrb[0].mxu0
      %v8931 = vadd.f32 %v8204, %v8930
      %v8932 = vpop.f32.mrb[0].mxu0
      %v8933 = vpop.f32.mrb[0].mxu0
      %v8934 = vadd.f32 %v8204, %v8933
      %v8935 = vpop.f32.mrb[0].mxu0
      %8936 = vmatprep.mubr.bf16.mxu0 %v8001
      %8937 = vmatmul.mubr.bf16.gmra.mrb[0].mxu0 %v7998
      %v8938 = vpop.f32.mrb[0].mxu0
      %v8939 = vadd.f32 %v8204, %v8938
      %v8940 = vpop.f32.mrb[0].mxu0
      %v8941 = vpop.f32.mrb[0].mxu0
      %v8942 = vadd.f32 %v8204, %v8941
      %v8943 = vpop.f32.mrb[0].mxu0
      %8944 = vmatprep.mubr.bf16.mxu0 %v8094
      %8945 = vmatmul.mubr.bf16.gmra.mrb[0].mxu0 %v8091
      %v8946 = vpop.f32.mrb[0].mxu0
      %v8947 = vadd.f32 %v8204, %v8946
      %v8948 = vpop.f32.mrb[0].mxu0
      %v8949 = vpop.f32.mrb[0].mxu0
      %v8950 = vadd.f32 %v8204, %v8949
      %v8951 = vpop.f32.mrb[0].mxu0
      %8952 = vmatprep.mubr.bf16.mxu0 %v8166
      %8953 = vmatmul.mubr.bf16.gmra.mrb[0].mxu0 %v8163
      %v8954 = vpop.f32.mrb[0].mxu0
      %v8955 = vadd.f32 %v8204, %v8954
      %v8956 = vpop.f32.mrb[0].mxu0
      %v8957 = vpop.f32.mrb[0].mxu0
      %v8958 = vadd.f32 %v8204, %v8957
      %v8959 = vpop.f32.mrb[0].mxu0
      %8960 = vmatprep.mubr.bf16.mxu0 %v6926
      %8961 = vmatmul.mubr.bf16.gmra.mrb[0].mxu0 %v6922
      %v8962 = vpop.f32.mrb[0].mxu0
      %v8963 = vadd.f32 %v8204, %v8962
      %v8964 = vpop.f32.mrb[0].mxu0
      %v8965 = vpop.f32.mrb[0].mxu0
      %v8966 = vpop.f32.mrb[0].mxu0
      %8967 = vdwg.mxu0
      %8968 = vmatprep.subr.bf16.mxu0 0
      %8969 = vmatpush1.bf16.msra.mxu0 %v8622
      %8970 = vmatprep.subr.bf16.mxu0 0
      %8971 = vmatpush1.bf16.msra.mxu0 %v8623
      %8972 = vmatprep.subr.bf16.mxu0 0
      %8973 = vmatpush1.bf16.msra.mxu0 %v8624
      %8974 = vmatprep.subr.bf16.mxu0 0
      %8975 = vmatpush1.bf16.msra.mxu0 %v8625
      %8976 = vmatprep.subr.bf16.mxu0 0
      %8977 = vmatpush1.bf16.msra.mxu0 %v8626
      %8978 = vmatprep.subr.bf16.mxu0 0
      %8979 = vmatpush1.bf16.msra.mxu0 %v8627
      %8980 = vmatprep.subr.bf16.mxu0 0
      %8981 = vmatpush1.bf16.msra.mxu0 %v8628
      %8982 = vmatprep.subr.bf16.mxu0 0
      %8983 = vmatpush1.bf16.msra.mxu0 %v8629
      %8984 = vmatprep.subr.bf16.mxu0 0
      %8985 = vmatpush1.bf16.msra.mxu0 %v8630
      %8986 = vmatprep.subr.bf16.mxu0 0
      %8987 = vmatpush1.bf16.msra.mxu0 %v8631
      %8988 = vmatprep.subr.bf16.mxu0 0
      %8989 = vmatpush1.bf16.msra.mxu0 %v8632
      %8990 = vmatprep.subr.bf16.mxu0 0
      %8991 = vmatpush1.bf16.msra.mxu0 %v8633
      %8992 = vmatprep.subr.bf16.mxu0 0
      %8993 = vmatpush1.bf16.msra.mxu0 %v8634
      %8994 = vmatprep.subr.bf16.mxu0 0
      %8995 = vmatpush1.bf16.msra.mxu0 %v8635
      %8996 = vmatprep.subr.bf16.mxu0 0
      %8997 = vmatpush1.bf16.msra.mxu0 %v8636
      %8998 = vmatprep.subr.bf16.mxu0 0
      %8999 = vmatpush1.bf16.msra.mxu0 %v8637
      %9000 = vmatprep.mubr.bf16.mxu0 %v7545
      %9001 = vmatmul.mubr.bf16.gmra.mrb[0].mxu0 %v7541
      %v9002 = vpop.f32.mrb[0].mxu0
      %v9003 = vadd.f32 %v8867, %v9002
      %v9004 = vpop.f32.mrb[0].mxu0
      %v9005 = vpop.f32.mrb[0].mxu0
      %v9006 = vadd.f32 %v8870, %v9005
      %v9007 = vpop.f32.mrb[0].mxu0
      %9008 = vmatprep.mubr.bf16.mxu0 %v7617
      %9009 = vmatmul.mubr.bf16.gmra.mrb[0].mxu0 %v7614
      %v9010 = vpop.f32.mrb[0].mxu0
      %v9011 = vadd.f32 %v8875, %v9010
      %v9012 = vpop.f32.mrb[0].mxu0
      %v9013 = vpop.f32.mrb[0].mxu0
      %v9014 = vadd.f32 %v8878, %v9013
      %v9015 = vpop.f32.mrb[0].mxu0
      %9016 = vmatprep.mubr.bf16.mxu0 %v7655
      %9017 = vmatmul.mubr.bf16.gmra.mrb[0].mxu0 %v7652
      %v9018 = vpop.f32.mrb[0].mxu0
      %v9019 = vadd.f32 %v8883, %v9018
      %v9020 = vpop.f32.mrb[0].mxu0
      %v9021 = vpop.f32.mrb[0].mxu0
      %v9022 = vadd.f32 %v8886, %v9021
      %v9023 = vpop.f32.mrb[0].mxu0
      %9024 = vmatprep.mubr.bf16.mxu0 %v7719
      %9025 = vmatmul.mubr.bf16.gmra.mrb[0].mxu0 %v7716
      %v9026 = vpop.f32.mrb[0].mxu0
      %v9027 = vadd.f32 %v8891, %v9026
      %v9028 = vpop.f32.mrb[0].mxu0
      %v9029 = vpop.f32.mrb[0].mxu0
      %v9030 = vadd.f32 %v8894, %v9029
      %v9031 = vpop.f32.mrb[0].mxu0
      %9032 = vmatprep.mubr.bf16.mxu0 %v7757
      %9033 = vmatmul.mubr.bf16.gmra.mrb[0].mxu0 %v7754
      %v9034 = vpop.f32.mrb[0].mxu0
      %v9035 = vadd.f32 %v8899, %v9034
      %v9036 = vpop.f32.mrb[0].mxu0
      %v9037 = vpop.f32.mrb[0].mxu0
      %v9038 = vadd.f32 %v8902, %v9037
      %v9039 = vpop.f32.mrb[0].mxu0
      %9040 = vmatprep.mubr.bf16.mxu0 %v7796
      %9041 = vmatmul.mubr.bf16.gmra.mrb[0].mxu0 %v7792
      %v9042 = vpop.f32.mrb[0].mxu0
      %v9043 = vadd.f32 %v8907, %v9042
      %v9044 = vpop.f32.mrb[0].mxu0
      %v9045 = vpop.f32.mrb[0].mxu0
      %v9046 = vadd.f32 %v8910, %v9045
      %v9047 = vpop.f32.mrb[0].mxu0
      %9048 = vmatprep.mubr.bf16.mxu0 %v7867
      %9049 = vmatmul.mubr.bf16.gmra.mrb[0].mxu0 %v7864
      %v9050 = vpop.f32.mrb[0].mxu0
      %v9051 = vadd.f32 %v8915, %v9050
      %v9052 = vpop.f32.mrb[0].mxu0
      %v9053 = vpop.f32.mrb[0].mxu0
      %v9054 = vadd.f32 %v8918, %v9053
      %v9055 = vpop.f32.mrb[0].mxu0
      %9056 = vmatprep.mubr.bf16.mxu0 %v7905
      %9057 = vmatmul.mubr.bf16.gmra.mrb[0].mxu0 %v7902
      %v9058 = vpop.f32.mrb[0].mxu0
      %v9059 = vadd.f32 %v8923, %v9058
      %v9060 = vpop.f32.mrb[0].mxu0
      %v9061 = vpop.f32.mrb[0].mxu0
      %v9062 = vadd.f32 %v8926, %v9061
      %v9063 = vpop.f32.mrb[0].mxu0
      %9064 = vmatprep.mubr.bf16.mxu0 %v7969
      %9065 = vmatmul.mubr.bf16.gmra.mrb[0].mxu0 %v7966
      %v9066 = vpop.f32.mrb[0].mxu0
      %v9067 = vadd.f32 %v8931, %v9066
      %v9068 = vpop.f32.mrb[0].mxu0
      %v9069 = vpop.f32.mrb[0].mxu0
      %v9070 = vadd.f32 %v8934, %v9069
      %v9071 = vpop.f32.mrb[0].mxu0
      %9072 = vmatprep.mubr.bf16.mxu0 %v8007
      %9073 = vmatmul.mubr.bf16.gmra.mrb[0].mxu0 %v8004
      %v9074 = vpop.f32.mrb[0].mxu0
      %v9075 = vadd.f32 %v8939, %v9074
      %v9076 = vpop.f32.mrb[0].mxu0
      %v9077 = vpop.f32.mrb[0].mxu0
      %v9078 = vadd.f32 %v8942, %v9077
      %v9079 = vpop.f32.mrb[0].mxu0
      %9080 = vmatprep.mubr.bf16.mxu0 %v8101
      %9081 = vmatmul.mubr.bf16.gmra.mrb[0].mxu0 %v8097
      %v9082 = vpop.f32.mrb[0].mxu0
      %v9083 = vadd.f32 %v8947, %v9082
      %v9084 = vpop.f32.mrb[0].mxu0
      %v9085 = vpop.f32.mrb[0].mxu0
      %v9086 = vadd.f32 %v8950, %v9085
      %v9087 = vpop.f32.mrb[0].mxu0
      %9088 = vmatprep.mubr.bf16.mxu0 %v8172
      %9089 = vmatmul.mubr.bf16.gmra.mrb[0].mxu0 %v8169
      %v9090 = vpop.f32.mrb[0].mxu0
      %v9091 = vadd.f32 %v8955, %v9090
      %v9092 = vpop.f32.mrb[0].mxu0
      %v9093 = vpop.f32.mrb[0].mxu0
      %v9094 = vadd.f32 %v8958, %v9093
      %v9095 = vpop.f32.mrb[0].mxu0
      %9096 = vmatprep.mubr.bf16.mxu0 %v8068
      %9097 = vmatmul.mubr.bf16.gmra.mrb[0].mxu0 %v8067
      %v9098 = vpop.f32.mrb[0].mxu0
      %v9099 = vadd.f32 %v8963, %v9098
      %v9100 = vpop.f32.mrb[0].mxu0
      %v9101 = vpop.f32.mrb[0].mxu0
      %v9102 = vpop.f32.mrb[0].mxu0
      %9103 = vdwg.mxu0
      %9104 = vmatprep.subr.bf16.mxu0 0
      %9105 = vmatpush1.bf16.msra.mxu0 %v8638
      %9106 = vmatprep.subr.bf16.mxu0 0
      %9107 = vmatpush1.bf16.msra.mxu0 %v8639
      %9108 = vmatprep.subr.bf16.mxu0 0
      %9109 = vmatpush1.bf16.msra.mxu0 %v8640
      %9110 = vmatprep.subr.bf16.mxu0 0
      %9111 = vmatpush1.bf16.msra.mxu0 %v8641
      %9112 = vmatprep.subr.bf16.mxu0 0
      %9113 = vmatpush1.bf16.msra.mxu0 %v8642
      %9114 = vmatprep.subr.bf16.mxu0 0
      %9115 = vmatpush1.bf16.msra.mxu0 %v8643
      %9116 = vmatprep.subr.bf16.mxu0 0
      %9117 = vmatpush1.bf16.msra.mxu0 %v8644
      %9118 = vmatprep.subr.bf16.mxu0 0
      %9119 = vmatpush1.bf16.msra.mxu0 %v8645
      %9120 = vmatprep.subr.bf16.mxu0 0
      %9121 = vmatpush1.bf16.msra.mxu0 %v8646
      %9122 = vmatprep.subr.bf16.mxu0 0
      %9123 = vmatpush1.bf16.msra.mxu0 %v8647
      %9124 = vmatprep.subr.bf16.mxu0 0
      %9125 = vmatpush1.bf16.msra.mxu0 %v8648
      %9126 = vmatprep.subr.bf16.mxu0 0
      %9127 = vmatpush1.bf16.msra.mxu0 %v8649
      %9128 = vmatprep.subr.bf16.mxu0 0
      %9129 = vmatpush1.bf16.msra.mxu0 %v8650
      %9130 = vmatprep.subr.bf16.mxu0 0
      %9131 = vmatpush1.bf16.msra.mxu0 %v8651
      %9132 = vmatprep.subr.bf16.mxu0 0
      %9133 = vmatpush1.bf16.msra.mxu0 %v8652
      %9134 = vmatprep.subr.bf16.mxu0 0
      %9135 = vmatpush1.bf16.msra.mxu0 %v8653
      %9136 = vmatprep.mubr.bf16.mxu0 %v7553
      %9137 = vmatmul.mubr.bf16.gmra.mrb[0].mxu0 %v7549
      %v9138 = vpop.f32.mrb[0].mxu0
      %v9139 = vadd.f32 %v9003, %v9138
      %v9140 = vpop.f32.mrb[0].mxu0
      %v9141 = vpop.f32.mrb[0].mxu0
      %v9142 = vadd.f32 %v9006, %v9141
      %v9143 = vpop.f32.mrb[0].mxu0
      %9144 = vmatprep.mubr.bf16.mxu0 %v7623
      %9145 = vmatmul.mubr.bf16.gmra.mrb[0].mxu0 %v7620
      %v9146 = vpop.f32.mrb[0].mxu0
      %v9147 = vadd.f32 %v9011, %v9146
      %v9148 = vpop.f32.mrb[0].mxu0
      %v9149 = vpop.f32.mrb[0].mxu0
      %v9150 = vadd.f32 %v9014, %v9149
      %v9151 = vpop.f32.mrb[0].mxu0
      %9152 = vmatprep.mubr.bf16.mxu0 %v7661
      %9153 = vmatmul.mubr.bf16.gmra.mrb[0].mxu0 %v7658
      %v9154 = vpop.f32.mrb[0].mxu0
      %v9155 = vadd.f32 %v9019, %v9154
      %v9156 = vpop.f32.mrb[0].mxu0
      %v9157 = vpop.f32.mrb[0].mxu0
      %v9158 = vadd.f32 %v9022, %v9157
      %v9159 = vpop.f32.mrb[0].mxu0
      %9160 = vmatprep.mubr.bf16.mxu0 %v7725
      %9161 = vmatmul.mubr.bf16.gmra.mrb[0].mxu0 %v7722
      %v9162 = vpop.f32.mrb[0].mxu0
      %v9163 = vadd.f32 %v9027, %v9162
      %v9164 = vpop.f32.mrb[0].mxu0
      %v9165 = vpop.f32.mrb[0].mxu0
      %v9166 = vadd.f32 %v9030, %v9165
      %v9167 = vpop.f32.mrb[0].mxu0
      %9168 = vmatprep.mubr.bf16.mxu0 %v7763
      %9169 = vmatmul.mubr.bf16.gmra.mrb[0].mxu0 %v7760
      %v9170 = vpop.f32.mrb[0].mxu0
      %v9171 = vadd.f32 %v9035, %v9170
      %v9172 = vpop.f32.mrb[0].mxu0
      %v9173 = vpop.f32.mrb[0].mxu0
      %v9174 = vadd.f32 %v9038, %v9173
      %v9175 = vpop.f32.mrb[0].mxu0
      %9176 = vmatprep.mubr.bf16.mxu0 %v7804
      %9177 = vmatmul.mubr.bf16.gmra.mrb[0].mxu0 %v7800
      %v9178 = vpop.f32.mrb[0].mxu0
      %v9179 = vadd.f32 %v9043, %v9178
      %v9180 = vpop.f32.mrb[0].mxu0
      %v9181 = vpop.f32.mrb[0].mxu0
      %v9182 = vadd.f32 %v9046, %v9181
      %v9183 = vpop.f32.mrb[0].mxu0
      %9184 = vmatprep.mubr.bf16.mxu0 %v7873
      %9185 = vmatmul.mubr.bf16.gmra.mrb[0].mxu0 %v7870
      %v9186 = vpop.f32.mrb[0].mxu0
      %v9187 = vadd.f32 %v9051, %v9186
      %v9188 = vpop.f32.mrb[0].mxu0
      %v9189 = vpop.f32.mrb[0].mxu0
      %v9190 = vadd.f32 %v9054, %v9189
      %v9191 = vpop.f32.mrb[0].mxu0
      %9192 = vmatprep.mubr.bf16.mxu0 %v7911
      %9193 = vmatmul.mubr.bf16.gmra.mrb[0].mxu0 %v7908
      %v9194 = vpop.f32.mrb[0].mxu0
      %v9195 = vadd.f32 %v9059, %v9194
      %v9196 = vpop.f32.mrb[0].mxu0
      %v9197 = vpop.f32.mrb[0].mxu0
      %v9198 = vadd.f32 %v9062, %v9197
      %v9199 = vpop.f32.mrb[0].mxu0
      %9200 = vmatprep.mubr.bf16.mxu0 %v7975
      %9201 = vmatmul.mubr.bf16.gmra.mrb[0].mxu0 %v7972
      %v9202 = vpop.f32.mrb[0].mxu0
      %v9203 = vadd.f32 %v9067, %v9202
      %v9204 = vpop.f32.mrb[0].mxu0
      %v9205 = vpop.f32.mrb[0].mxu0
      %v9206 = vadd.f32 %v9070, %v9205
      %v9207 = vpop.f32.mrb[0].mxu0
      %9208 = vmatprep.mubr.bf16.mxu0 %v8013
      %9209 = vmatmul.mubr.bf16.gmra.mrb[0].mxu0 %v8010
      %v9210 = vpop.f32.mrb[0].mxu0
      %v9211 = vadd.f32 %v9075, %v9210
      %v9212 = vpop.f32.mrb[0].mxu0
      %v9213 = vpop.f32.mrb[0].mxu0
      %v9214 = vadd.f32 %v9078, %v9213
      %v9215 = vpop.f32.mrb[0].mxu0
      %9216 = vmatprep.mubr.bf16.mxu0 %v8109
      %9217 = vmatmul.mubr.bf16.gmra.mrb[0].mxu0 %v8105
      %v9218 = vpop.f32.mrb[0].mxu0
      %v9219 = vadd.f32 %v9083, %v9218
      %v9220 = vpop.f32.mrb[0].mxu0
      %v9221 = vpop.f32.mrb[0].mxu0
      %v9222 = vadd.f32 %v9086, %v9221
      %v9223 = vpop.f32.mrb[0].mxu0
      %9224 = vmatprep.mubr.bf16.mxu0 %v8178
      %9225 = vmatmul.mubr.bf16.gmra.mrb[0].mxu0 %v8175
      %v9226 = vpop.f32.mrb[0].mxu0
      %v9227 = vadd.f32 %v9091, %v9226
      %v9228 = vpop.f32.mrb[0].mxu0
      %v9229 = vpop.f32.mrb[0].mxu0
      %v9230 = vadd.f32 %v9094, %v9229
      %v9231 = vpop.f32.mrb[0].mxu0
      %9232 = vmatprep.mubr.bf16.mxu0 %v8070
      %9233 = vmatmul.mubr.bf16.gmra.mrb[0].mxu0 %v8069
      %v9234 = vpop.f32.mrb[0].mxu0
      %v9235 = vadd.f32 %v9099, %v9234
      %v9236 = vpop.f32.mrb[0].mxu0
      %v9237 = vpop.f32.mrb[0].mxu0
      %v9238 = vpop.f32.mrb[0].mxu0
      %9239 = vdwg.mxu0
      %9240 = vmatprep.subr.bf16.mxu0 0
      %9241 = vmatpush1.bf16.msra.mxu0 %v8654
      %9242 = vmatprep.subr.bf16.mxu0 0
      %9243 = vmatpush1.bf16.msra.mxu0 %v8655
      %9244 = vmatprep.subr.bf16.mxu0 0
      %9245 = vmatpush1.bf16.msra.mxu0 %v8656
      %9246 = vmatprep.subr.bf16.mxu0 0
      %9247 = vmatpush1.bf16.msra.mxu0 %v8657
      %9248 = vmatprep.subr.bf16.mxu0 0
      %9249 = vmatpush1.bf16.msra.mxu0 %v8658
      %9250 = vmatprep.subr.bf16.mxu0 0
      %9251 = vmatpush1.bf16.msra.mxu0 %v8659
      %9252 = vmatprep.subr.bf16.mxu0 0
      %9253 = vmatpush1.bf16.msra.mxu0 %v8660
      %9254 = vmatprep.subr.bf16.mxu0 0
      %9255 = vmatpush1.bf16.msra.mxu0 %v8661
      %9256 = vmatprep.subr.bf16.mxu0 0
      %9257 = vmatpush1.bf16.msra.mxu0 %v8662
      %9258 = vmatprep.subr.bf16.mxu0 0
      %9259 = vmatpush1.bf16.msra.mxu0 %v8663
      %9260 = vmatprep.subr.bf16.mxu0 0
      %9261 = vmatpush1.bf16.msra.mxu0 %v8664
      %9262 = vmatprep.subr.bf16.mxu0 0
      %9263 = vmatpush1.bf16.msra.mxu0 %v8665
      %9264 = vmatprep.subr.bf16.mxu0 0
      %9265 = vmatpush1.bf16.msra.mxu0 %v8666
      %9266 = vmatprep.subr.bf16.mxu0 0
      %9267 = vmatpush1.bf16.msra.mxu0 %v8667
      %9268 = vmatprep.subr.bf16.mxu0 0
      %9269 = vmatpush1.bf16.msra.mxu0 %v8668
      %9270 = vmatprep.subr.bf16.mxu0 0
      %9271 = vmatpush1.bf16.msra.mxu0 %v8669
      %9272 = vmatprep.mubr.bf16.mxu0 %v7560
      %9273 = vmatmul.mubr.bf16.gmra.mrb[0].mxu0 %v7557
      %v9274 = vpop.f32.mrb[0].mxu0
      %v9275 = vadd.f32 %v9139, %v9274
      %v9276 = vpop.f32.mrb[0].mxu0
      %v9277 = vpop.f32.mrb[0].mxu0
      %v9278 = vadd.f32 %v9142, %v9277
      %v9279 = vpop.f32.mrb[0].mxu0
      %9280 = vmatprep.mubr.bf16.mxu0 %v7629
      %9281 = vmatmul.mubr.bf16.gmra.mrb[0].mxu0 %v7626
      %v9282 = vpop.f32.mrb[0].mxu0
      %v9283 = vadd.f32 %v9147, %v9282
      %v9284 = vpop.f32.mrb[0].mxu0
      %v9285 = vpop.f32.mrb[0].mxu0
      %v9286 = vadd.f32 %v9150, %v9285
      %v9287 = vpop.f32.mrb[0].mxu0
      %9288 = vmatprep.mubr.bf16.mxu0 %v7667
      %9289 = vmatmul.mubr.bf16.gmra.mrb[0].mxu0 %v7664
      %v9290 = vpop.f32.mrb[0].mxu0
      %v9291 = vadd.f32 %v9155, %v9290
      %v9292 = vpop.f32.mrb[0].mxu0
      %v9293 = vpop.f32.mrb[0].mxu0
      %v9294 = vadd.f32 %v9158, %v9293
      %v9295 = vpop.f32.mrb[0].mxu0
      %9296 = vmatprep.mubr.bf16.mxu0 %v7731
      %9297 = vmatmul.mubr.bf16.gmra.mrb[0].mxu0 %v7728
      %v9298 = vpop.f32.mrb[0].mxu0
      %v9299 = vadd.f32 %v9163, %v9298
      %v9300 = vpop.f32.mrb[0].mxu0
      %v9301 = vpop.f32.mrb[0].mxu0
      %v9302 = vadd.f32 %v9166, %v9301
      %v9303 = vpop.f32.mrb[0].mxu0
      %9304 = vmatprep.mubr.bf16.mxu0 %v7769
      %9305 = vmatmul.mubr.bf16.gmra.mrb[0].mxu0 %v7766
      %v9306 = vpop.f32.mrb[0].mxu0
      %v9307 = vadd.f32 %v9171, %v9306
      %v9308 = vpop.f32.mrb[0].mxu0
      %v9309 = vpop.f32.mrb[0].mxu0
      %v9310 = vadd.f32 %v9174, %v9309
      %v9311 = vpop.f32.mrb[0].mxu0
      %9312 = vmatprep.mubr.bf16.mxu0 %v7811
      %9313 = vmatmul.mubr.bf16.gmra.mrb[0].mxu0 %v7808
      %v9314 = vpop.f32.mrb[0].mxu0
      %v9315 = vadd.f32 %v9179, %v9314
      %v9316 = vpop.f32.mrb[0].mxu0
      %v9317 = vpop.f32.mrb[0].mxu0
      %v9318 = vadd.f32 %v9182, %v9317
      %v9319 = vpop.f32.mrb[0].mxu0
      %9320 = vmatprep.mubr.bf16.mxu0 %v7879
      %9321 = vmatmul.mubr.bf16.gmra.mrb[0].mxu0 %v7876
      %v9322 = vpop.f32.mrb[0].mxu0
      %v9323 = vadd.f32 %v9187, %v9322
      %v9324 = vpop.f32.mrb[0].mxu0
      %v9325 = vpop.f32.mrb[0].mxu0
      %v9326 = vadd.f32 %v9190, %v9325
      %v9327 = vpop.f32.mrb[0].mxu0
      %9328 = vmatprep.mubr.bf16.mxu0 %v7917
      %9329 = vmatmul.mubr.bf16.gmra.mrb[0].mxu0 %v7914
      %v9330 = vpop.f32.mrb[0].mxu0
      %v9331 = vadd.f32 %v9195, %v9330
      %v9332 = vpop.f32.mrb[0].mxu0
      %v9333 = vpop.f32.mrb[0].mxu0
      %v9334 = vadd.f32 %v9198, %v9333
      %v9335 = vpop.f32.mrb[0].mxu0
      %9336 = vmatprep.mubr.bf16.mxu0 %v7981
      %9337 = vmatmul.mubr.bf16.gmra.mrb[0].mxu0 %v7978
      %v9338 = vpop.f32.mrb[0].mxu0
      %v9339 = vadd.f32 %v9203, %v9338
      %v9340 = vpop.f32.mrb[0].mxu0
      %v9341 = vpop.f32.mrb[0].mxu0
      %v9342 = vadd.f32 %v9206, %v9341
      %v9343 = vpop.f32.mrb[0].mxu0
      %9344 = vmatprep.mubr.bf16.mxu0 %v8019
      %9345 = vmatmul.mubr.bf16.gmra.mrb[0].mxu0 %v8016
      %v9346 = vpop.f32.mrb[0].mxu0
      %v9347 = vadd.f32 %v9211, %v9346
      %v9348 = vpop.f32.mrb[0].mxu0
      %v9349 = vpop.f32.mrb[0].mxu0
      %v9350 = vadd.f32 %v9214, %v9349
      %v9351 = vpop.f32.mrb[0].mxu0
      %9352 = vmatprep.mubr.bf16.mxu0 %v8116
      %9353 = vmatmul.mubr.bf16.gmra.mrb[0].mxu0 %v8113
      %v9354 = vpop.f32.mrb[0].mxu0
      %v9355 = vadd.f32 %v9219, %v9354
      %v9356 = vpop.f32.mrb[0].mxu0
      %v9357 = vpop.f32.mrb[0].mxu0
      %v9358 = vadd.f32 %v9222, %v9357
      %v9359 = vpop.f32.mrb[0].mxu0
      %9360 = vmatprep.mubr.bf16.mxu0 %v8184
      %9361 = vmatmul.mubr.bf16.gmra.mrb[0].mxu0 %v8181
      %v9362 = vpop.f32.mrb[0].mxu0
      %v9363 = vadd.f32 %v9227, %v9362
      %v9364 = vpop.f32.mrb[0].mxu0
      %v9365 = vpop.f32.mrb[0].mxu0
      %v9366 = vadd.f32 %v9230, %v9365
      %v9367 = vpop.f32.mrb[0].mxu0
      %9368 = vmatprep.mubr.bf16.mxu0 %v8072
      %9369 = vmatmul.mubr.bf16.gmra.mrb[0].mxu0 %v8071
      %v9370 = vpop.f32.mrb[0].mxu0
      %v9371 = vadd.f32 %v9235, %v9370
      %v9372 = vpop.f32.mrb[0].mxu0
      %v9373 = vpop.f32.mrb[0].mxu0
      %v9374 = vpop.f32.mrb[0].mxu0
      %9375 = vdwg.mxu0
      %9376 = vmatprep.subr.bf16.mxu0 0
      %9377 = vmatpush1.bf16.msra.mxu0 %v8670
      %9378 = vmatprep.subr.bf16.mxu0 0
      %9379 = vmatpush1.bf16.msra.mxu0 %v8671
      %9380 = vmatprep.subr.bf16.mxu0 0
      %9381 = vmatpush1.bf16.msra.mxu0 %v8672
      %9382 = vmatprep.subr.bf16.mxu0 0
      %9383 = vmatpush1.bf16.msra.mxu0 %v8673
      %9384 = vmatprep.subr.bf16.mxu0 0
      %9385 = vmatpush1.bf16.msra.mxu0 %v8674
      %9386 = vmatprep.subr.bf16.mxu0 0
      %9387 = vmatpush1.bf16.msra.mxu0 %v8675
      %9388 = vmatprep.subr.bf16.mxu0 0
      %9389 = vmatpush1.bf16.msra.mxu0 %v8676
      %9390 = vmatprep.subr.bf16.mxu0 0
      %9391 = vmatpush1.bf16.msra.mxu0 %v8677
      %9392 = vmatprep.subr.bf16.mxu0 0
      %9393 = vmatpush1.bf16.msra.mxu0 %v8678
      %9394 = vmatprep.subr.bf16.mxu0 0
      %9395 = vmatpush1.bf16.msra.mxu0 %v8679
      %9396 = vmatprep.subr.bf16.mxu0 0
      %9397 = vmatpush1.bf16.msra.mxu0 %v8680
      %9398 = vmatprep.subr.bf16.mxu0 0
      %9399 = vmatpush1.bf16.msra.mxu0 %v8681
      %9400 = vmatprep.subr.bf16.mxu0 0
      %9401 = vmatpush1.bf16.msra.mxu0 %v8682
      %9402 = vmatprep.subr.bf16.mxu0 0
      %9403 = vmatpush1.bf16.msra.mxu0 %v8683
      %9404 = vmatprep.subr.bf16.mxu0 0
      %9405 = vmatpush1.bf16.msra.mxu0 %v8684
      %9406 = vmatprep.subr.bf16.mxu0 0
      %9407 = vmatpush1.bf16.msra.mxu0 %v8685
      %9408 = vmatprep.mubr.bf16.mxu0 %v7568
      %9409 = vmatmul.mubr.bf16.gmra.mrb[0].mxu0 %v7564
      %v9410 = vpop.f32.mrb[0].mxu0
      %v9411 = vadd.f32 %v9275, %v9410
      %v9412 = vpop.f32.mrb[0].mxu0
      %v9413 = vpop.f32.mrb[0].mxu0
      %v9414 = vadd.f32 %v9278, %v9413
      %v9415 = vpop.f32.mrb[0].mxu0
      %9416 = vmatprep.mubr.bf16.mxu0 %v7635
      %9417 = vmatmul.mubr.bf16.gmra.mrb[0].mxu0 %v7632
      %v9418 = vpop.f32.mrb[0].mxu0
      %v9419 = vadd.f32 %v9283, %v9418
      %v9420 = vpop.f32.mrb[0].mxu0
      %v9421 = vpop.f32.mrb[0].mxu0
      %v9422 = vadd.f32 %v9286, %v9421
      %v9423 = vpop.f32.mrb[0].mxu0
      %9424 = vmatprep.mubr.bf16.mxu0 %v7673
      %9425 = vmatmul.mubr.bf16.gmra.mrb[0].mxu0 %v7670
      %v9426 = vpop.f32.mrb[0].mxu0
      %v9427 = vadd.f32 %v9291, %v9426
      %v9428 = vpop.f32.mrb[0].mxu0
      %v9429 = vpop.f32.mrb[0].mxu0
      %v9430 = vadd.f32 %v9294, %v9429
      %v9431 = vpop.f32.mrb[0].mxu0
      %9432 = vmatprep.mubr.bf16.mxu0 %v7737
      %9433 = vmatmul.mubr.bf16.gmra.mrb[0].mxu0 %v7734
      %v9434 = vpop.f32.mrb[0].mxu0
      %v9435 = vadd.f32 %v9299, %v9434
      %v9436 = vpop.f32.mrb[0].mxu0
      %v9437 = vpop.f32.mrb[0].mxu0
      %v9438 = vadd.f32 %v9302, %v9437
      %v9439 = vpop.f32.mrb[0].mxu0
      %9440 = vmatprep.mubr.bf16.mxu0 %v7775
      %9441 = vmatmul.mubr.bf16.gmra.mrb[0].mxu0 %v7772
      %v9442 = vpop.f32.mrb[0].mxu0
      %v9443 = vadd.f32 %v9307, %v9442
      %v9444 = vpop.f32.mrb[0].mxu0
      %v9445 = vpop.f32.mrb[0].mxu0
      %v9446 = vadd.f32 %v9310, %v9445
      %v9447 = vpop.f32.mrb[0].mxu0
      %9448 = vmatprep.mubr.bf16.mxu0 %v7819
      %9449 = vmatmul.mubr.bf16.gmra.mrb[0].mxu0 %v7815
      %v9450 = vpop.f32.mrb[0].mxu0
      %v9451 = vadd.f32 %v9315, %v9450
      %v9452 = vpop.f32.mrb[0].mxu0
      %v9453 = vpop.f32.mrb[0].mxu0
      %v9454 = vadd.f32 %v9318, %v9453
      %v9455 = vpop.f32.mrb[0].mxu0
      %9456 = vmatprep.mubr.bf16.mxu0 %v7885
      %9457 = vmatmul.mubr.bf16.gmra.mrb[0].mxu0 %v7882
      %v9458 = vpop.f32.mrb[0].mxu0
      %v9459 = vadd.f32 %v9323, %v9458
      %v9460 = vpop.f32.mrb[0].mxu0
      %v9461 = vpop.f32.mrb[0].mxu0
      %v9462 = vadd.f32 %v9326, %v9461
      %v9463 = vpop.f32.mrb[0].mxu0
      %9464 = vmatprep.mubr.bf16.mxu0 %v7923
      %9465 = vmatmul.mubr.bf16.gmra.mrb[0].mxu0 %v7920
      %v9466 = vpop.f32.mrb[0].mxu0
      %v9467 = vadd.f32 %v9331, %v9466
      %v9468 = vpop.f32.mrb[0].mxu0
      %v9469 = vpop.f32.mrb[0].mxu0
      %v9470 = vadd.f32 %v9334, %v9469
      %v9471 = vpop.f32.mrb[0].mxu0
      %9472 = vmatprep.mubr.bf16.mxu0 %v7987
      %9473 = vmatmul.mubr.bf16.gmra.mrb[0].mxu0 %v7984
      %v9474 = vpop.f32.mrb[0].mxu0
      %v9475 = vadd.f32 %v9339, %v9474
      %v9476 = vpop.f32.mrb[0].mxu0
      %v9477 = vpop.f32.mrb[0].mxu0
      %v9478 = vadd.f32 %v9342, %v9477
      %v9479 = vpop.f32.mrb[0].mxu0
      %9480 = vmatprep.mubr.bf16.mxu0 %v8025
      %9481 = vmatmul.mubr.bf16.gmra.mrb[0].mxu0 %v8022
      %v9482 = vpop.f32.mrb[0].mxu0
      %v9483 = vadd.f32 %v9347, %v9482
      %v9484 = vpop.f32.mrb[0].mxu0
      %v9485 = vpop.f32.mrb[0].mxu0
      %v9486 = vadd.f32 %v9350, %v9485
      %v9487 = vpop.f32.mrb[0].mxu0
      %9488 = vmatprep.mubr.bf16.mxu0 %v8124
      %9489 = vmatmul.mubr.bf16.gmra.mrb[0].mxu0 %v8120
      %v9490 = vpop.f32.mrb[0].mxu0
      %v9491 = vadd.f32 %v9355, %v9490
      %v9492 = vpop.f32.mrb[0].mxu0
      %v9493 = vpop.f32.mrb[0].mxu0
      %v9494 = vadd.f32 %v9358, %v9493
      %v9495 = vpop.f32.mrb[0].mxu0
      %9496 = vmatprep.mubr.bf16.mxu0 %v8190
      %9497 = vmatmul.mubr.bf16.gmra.mrb[0].mxu0 %v8187
      %v9498 = vpop.f32.mrb[0].mxu0
      %v9499 = vadd.f32 %v9363, %v9498
      %v9500 = vpop.f32.mrb[0].mxu0
      %v9501 = vpop.f32.mrb[0].mxu0
      %v9502 = vadd.f32 %v9366, %v9501
      %v9503 = vpop.f32.mrb[0].mxu0
      %9504 = vmatprep.mubr.bf16.mxu0 %v8074
      %9505 = vmatmul.mubr.bf16.gmra.mrb[0].mxu0 %v8073
      %v9506 = vpop.f32.mrb[0].mxu0
      %v9507 = vadd.f32 %v9371, %v9506
      %v9508 = vpop.f32.mrb[0].mxu0
      %v9509 = vpop.f32.mrb[0].mxu0
      %v9510 = vpop.f32.mrb[0].mxu0
      %9511 = vdwg.mxu0
      %9512 = vmatprep.subr.bf16.mxu0 0
      %9513 = vmatpush1.bf16.msra.mxu0 %v8686
      %9514 = vmatprep.subr.bf16.mxu0 0
      %9515 = vmatpush1.bf16.msra.mxu0 %v8687
      %9516 = vmatprep.subr.bf16.mxu0 0
      %9517 = vmatpush1.bf16.msra.mxu0 %v8688
      %9518 = vmatprep.subr.bf16.mxu0 0
      %9519 = vmatpush1.bf16.msra.mxu0 %v8689
      %9520 = vmatprep.subr.bf16.mxu0 0
      %9521 = vmatpush1.bf16.msra.mxu0 %v8690
      %9522 = vmatprep.subr.bf16.mxu0 0
      %9523 = vmatpush1.bf16.msra.mxu0 %v8691
      %9524 = vmatprep.subr.bf16.mxu0 0
      %9525 = vmatpush1.bf16.msra.mxu0 %v8692
      %9526 = vmatprep.subr.bf16.mxu0 0
      %9527 = vmatpush1.bf16.msra.mxu0 %v8693
      %9528 = vmatprep.subr.bf16.mxu0 0
      %9529 = vmatpush1.bf16.msra.mxu0 %v8694
      %9530 = vmatprep.subr.bf16.mxu0 0
      %9531 = vmatpush1.bf16.msra.mxu0 %v8695
      %9532 = vmatprep.subr.bf16.mxu0 0
      %9533 = vmatpush1.bf16.msra.mxu0 %v8696
      %9534 = vmatprep.subr.bf16.mxu0 0
      %9535 = vmatpush1.bf16.msra.mxu0 %v8697
      %9536 = vmatprep.subr.bf16.mxu0 0
      %9537 = vmatpush1.bf16.msra.mxu0 %v8698
      %9538 = vmatprep.subr.bf16.mxu0 0
      %9539 = vmatpush1.bf16.msra.mxu0 %v8699
      %9540 = vmatprep.subr.bf16.mxu0 0
      %9541 = vmatpush1.bf16.msra.mxu0 %v8700
      %9542 = vmatprep.subr.bf16.mxu0 0
      %9543 = vmatpush1.bf16.msra.mxu0 %v8701
      %9544 = vmatprep.mubr.bf16.mxu0 %v7576
      %9545 = vmatmul.mubr.bf16.gmra.mrb[0].mxu0 %v7572
      %v9546 = vpop.f32.mrb[0].mxu0
      %v9547 = vadd.f32 %v9411, %v9546
      %v9548 = vpop.f32.mrb[0].mxu0
      %v9549 = vpop.f32.mrb[0].mxu0
      %v9550 = vadd.f32 %v9414, %v9549
      %v9551 = vpop.f32.mrb[0].mxu0
      %9552 = vmatprep.mubr.bf16.mxu0 %v7641
      %9553 = vmatmul.mubr.bf16.gmra.mrb[0].mxu0 %v7638
      %v9554 = vpop.f32.mrb[0].mxu0
      %v9555 = vadd.f32 %v9419, %v9554
      %v9556 = vpop.f32.mrb[0].mxu0
      %v9557 = vpop.f32.mrb[0].mxu0
      %v9558 = vadd.f32 %v9422, %v9557
      %v9559 = vpop.f32.mrb[0].mxu0
      %9560 = vmatprep.mubr.bf16.mxu0 %v7679
      %9561 = vmatmul.mubr.bf16.gmra.mrb[0].mxu0 %v7676
      %v9562 = vpop.f32.mrb[0].mxu0
      %v9563 = vadd.f32 %v9427, %v9562
      %v9564 = vpop.f32.mrb[0].mxu0
      %v9565 = vpop.f32.mrb[0].mxu0
      %v9566 = vadd.f32 %v9430, %v9565
      %v9567 = vpop.f32.mrb[0].mxu0
      %9568 = vmatprep.mubr.bf16.mxu0 %v7743
      %9569 = vmatmul.mubr.bf16.gmra.mrb[0].mxu0 %v7740
      %v9570 = vpop.f32.mrb[0].mxu0
      %v9571 = vadd.f32 %v9435, %v9570
      %v9572 = vpop.f32.mrb[0].mxu0
      %v9573 = vpop.f32.mrb[0].mxu0
      %v9574 = vadd.f32 %v9438, %v9573
      %v9575 = vpop.f32.mrb[0].mxu0
      %9576 = vmatprep.mubr.bf16.mxu0 %v7781
      %9577 = vmatmul.mubr.bf16.gmra.mrb[0].mxu0 %v7778
      %v9578 = vpop.f32.mrb[0].mxu0
      %v9579 = vadd.f32 %v9443, %v9578
      %v9580 = vpop.f32.mrb[0].mxu0
      %v9581 = vpop.f32.mrb[0].mxu0
      %v9582 = vadd.f32 %v9446, %v9581
      %v9583 = vpop.f32.mrb[0].mxu0
      %9584 = vmatprep.mubr.bf16.mxu0 %v7826
      %9585 = vmatmul.mubr.bf16.gmra.mrb[0].mxu0 %v7822
      %v9586 = vpop.f32.mrb[0].mxu0
      %v9587 = vadd.f32 %v9451, %v9586
      %v9588 = vpop.f32.mrb[0].mxu0
      %v9589 = vpop.f32.mrb[0].mxu0
      %v9590 = vadd.f32 %v9454, %v9589
      %v9591 = vpop.f32.mrb[0].mxu0
      %9592 = vmatprep.mubr.bf16.mxu0 %v7891
      %9593 = vmatmul.mubr.bf16.gmra.mrb[0].mxu0 %v7888
      %v9594 = vpop.f32.mrb[0].mxu0
      %v9595 = vadd.f32 %v9459, %v9594
      %v9596 = vpop.f32.mrb[0].mxu0
      %v9597 = vpop.f32.mrb[0].mxu0
      %v9598 = vadd.f32 %v9462, %v9597
      %v9599 = vpop.f32.mrb[0].mxu0
      %9600 = vmatprep.mubr.bf16.mxu0 %v7929
      %9601 = vmatmul.mubr.bf16.gmra.mrb[0].mxu0 %v7926
      %v9602 = vpop.f32.mrb[0].mxu0
      %v9603 = vadd.f32 %v9467, %v9602
      %v9604 = vpop.f32.mrb[0].mxu0
      %v9605 = vpop.f32.mrb[0].mxu0
      %v9606 = vadd.f32 %v9470, %v9605
      %v9607 = vpop.f32.mrb[0].mxu0
      %9608 = vmatprep.mubr.bf16.mxu0 %v7993
      %9609 = vmatmul.mubr.bf16.gmra.mrb[0].mxu0 %v7990
      %v9610 = vpop.f32.mrb[0].mxu0
      %v9611 = vadd.f32 %v9475, %v9610
      %v9612 = vpop.f32.mrb[0].mxu0
      %v9613 = vpop.f32.mrb[0].mxu0
      %v9614 = vadd.f32 %v9478, %v9613
      %v9615 = vpop.f32.mrb[0].mxu0
      %9616 = vmatprep.mubr.bf16.mxu0 %v8031
      %9617 = vmatmul.mubr.bf16.gmra.mrb[0].mxu0 %v8028
      %v9618 = vpop.f32.mrb[0].mxu0
      %v9619 = vadd.f32 %v9483, %v9618
      %v9620 = vpop.f32.mrb[0].mxu0
      %v9621 = vpop.f32.mrb[0].mxu0
      %v9622 = vadd.f32 %v9486, %v9621
      %v9623 = vpop.f32.mrb[0].mxu0
      %9624 = vmatprep.mubr.bf16.mxu0 %v8131
      %9625 = vmatmul.mubr.bf16.gmra.mrb[0].mxu0 %v8127
      %v9626 = vpop.f32.mrb[0].mxu0
      %v9627 = vadd.f32 %v9491, %v9626
      %v9628 = vpop.f32.mrb[0].mxu0
      %v9629 = vpop.f32.mrb[0].mxu0
      %v9630 = vadd.f32 %v9494, %v9629
      %v9631 = vpop.f32.mrb[0].mxu0
      %9632 = vmatprep.mubr.bf16.mxu0 %v8196
      %9633 = vmatmul.mubr.bf16.gmra.mrb[0].mxu0 %v8193
      %v9634 = vpop.f32.mrb[0].mxu0
      %v9635 = vadd.f32 %v9499, %v9634
      %v9636 = vpop.f32.mrb[0].mxu0
      %v9637 = vpop.f32.mrb[0].mxu0
      %v9638 = vadd.f32 %v9502, %v9637
      %v9639 = vpop.f32.mrb[0].mxu0
      %9640 = vmatprep.mubr.bf16.mxu0 %v8076
      %9641 = vmatmul.mubr.bf16.gmra.mrb[0].mxu0 %v8075
      %v9642 = vpop.f32.mrb[0].mxu0
      %v9643 = vadd.f32 %v9507, %v9642
      %v9644 = vpop.f32.mrb[0].mxu0
      %v9645 = vpop.f32.mrb[0].mxu0
      %v9646 = vpop.f32.mrb[0].mxu0
      %9647 = vdwg.mxu0
      %9648 = vmatprep.subr.bf16.mxu0 0
      %9649 = vmatpush1.bf16.msra.mxu0 %v8702
      %9650 = vmatprep.subr.bf16.mxu0 0
      %9651 = vmatpush1.bf16.msra.mxu0 %v8703
      %9652 = vmatprep.subr.bf16.mxu0 0
      %9653 = vmatpush1.bf16.msra.mxu0 %v8704
      %9654 = vmatprep.subr.bf16.mxu0 0
      %9655 = vmatpush1.bf16.msra.mxu0 %v8705
      %9656 = vmatprep.subr.bf16.mxu0 0
      %9657 = vmatpush1.bf16.msra.mxu0 0
      %9658 = vmatprep.subr.bf16.mxu0 0
      %9659 = vmatpush1.bf16.msra.mxu0 0
      %9660 = vmatprep.subr.bf16.mxu0 0
      %9661 = vmatpush1.bf16.msra.mxu0 0
      %9662 = vmatprep.subr.bf16.mxu0 0
      %9663 = vmatpush1.bf16.msra.mxu0 0
      %9664 = vmatprep.subr.bf16.mxu0 0
      %9665 = vmatpush1.bf16.msra.mxu0 0
      %9666 = vmatprep.subr.bf16.mxu0 0
      %9667 = vmatpush1.bf16.msra.mxu0 0
      %9668 = vmatprep.subr.bf16.mxu0 0
      %9669 = vmatpush1.bf16.msra.mxu0 0
      %9670 = vmatprep.subr.bf16.mxu0 0
      %9671 = vmatpush1.bf16.msra.mxu0 0
      %9672 = vmatprep.subr.bf16.mxu0 0
      %9673 = vmatpush1.bf16.msra.mxu0 0
      %9674 = vmatprep.subr.bf16.mxu0 0
      %9675 = vmatpush1.bf16.msra.mxu0 0
      %9676 = vmatprep.subr.bf16.mxu0 0
      %9677 = vmatpush1.bf16.msra.mxu0 0
      %9678 = vmatprep.subr.bf16.mxu0 0
      %9679 = vmatpush1.bf16.msra.mxu0 0
      %9680 = vmatprep.mubr.bf16.mxu0 0
      %9681 = vmatmul.mubr.bf16.gmra.mrb[0].mxu0 %v8806
      %v9682 = vpop.f32.mrb[0].mxu0
      %v9683 = vadd.f32 %v9547, %v9682
      %v9684 = vpop.f32.mrb[0].mxu0
      %v9685 = vpop.f32.mrb[0].mxu0
      %v9686 = vadd.f32 %v9550, %v9685
      %v9687 = vpop.f32.mrb[0].mxu0
      %9688 = vmatprep.mubr.bf16.mxu0 0
      %9689 = vmatmul.mubr.bf16.gmra.mrb[0].mxu0 %v8808
      %v9690 = vpop.f32.mrb[0].mxu0
      %v9691 = vadd.f32 %v9555, %v9690
      %v9692 = vpop.f32.mrb[0].mxu0
      %v9693 = vpop.f32.mrb[0].mxu0
      %v9694 = vadd.f32 %v9558, %v9693
      %v9695 = vpop.f32.mrb[0].mxu0
      %9696 = vmatprep.mubr.bf16.mxu0 0
      %9697 = vmatmul.mubr.bf16.gmra.mrb[0].mxu0 %v8810
      %v9698 = vpop.f32.mrb[0].mxu0
      %v9699 = vadd.f32 %v9563, %v9698
      %v9700 = vpop.f32.mrb[0].mxu0
      %v9701 = vpop.f32.mrb[0].mxu0
      %v9702 = vadd.f32 %v9566, %v9701
      %v9703 = vpop.f32.mrb[0].mxu0
      %9704 = vmatprep.mubr.bf16.mxu0 0
      %9705 = vmatmul.mubr.bf16.gmra.mrb[0].mxu0 %v8812
      %v9706 = vpop.f32.mrb[0].mxu0
      %v9707 = vadd.f32 %v9571, %v9706
      %v9708 = vpop.f32.mrb[0].mxu0
      %v9709 = vpop.f32.mrb[0].mxu0
      %v9710 = vadd.f32 %v9574, %v9709
      %v9711 = vpop.f32.mrb[0].mxu0
      %9712 = vmatprep.mubr.bf16.mxu0 0
      %9713 = vmatmul.mubr.bf16.gmra.mrb[0].mxu0 %v8814
      %v9714 = vpop.f32.mrb[0].mxu0
      %v9715 = vadd.f32 %v9579, %v9714
      %v9716 = vpop.f32.mrb[0].mxu0
      %v9717 = vpop.f32.mrb[0].mxu0
      %v9718 = vadd.f32 %v9582, %v9717
      %v9719 = vpop.f32.mrb[0].mxu0
      %9720 = vmatprep.mubr.bf16.mxu0 0
      %9721 = vmatmul.mubr.bf16.gmra.mrb[0].mxu0 %v8816
      %v9722 = vpop.f32.mrb[0].mxu0
      %v9723 = vadd.f32 %v9587, %v9722
      %v9724 = vpop.f32.mrb[0].mxu0
      %v9725 = vpop.f32.mrb[0].mxu0
      %v9726 = vadd.f32 %v9590, %v9725
      %v9727 = vpop.f32.mrb[0].mxu0
      %9728 = vmatprep.mubr.bf16.mxu0 0
      %9729 = vmatmul.mubr.bf16.gmra.mrb[0].mxu0 %v8818
      %v9730 = vpop.f32.mrb[0].mxu0
      %v9731 = vadd.f32 %v9595, %v9730
      %v9732 = vpop.f32.mrb[0].mxu0
      %v9733 = vpop.f32.mrb[0].mxu0
      %v9734 = vadd.f32 %v9598, %v9733
      %v9735 = vpop.f32.mrb[0].mxu0
      %9736 = vmatprep.mubr.bf16.mxu0 0
      %9737 = vmatmul.mubr.bf16.gmra.mrb[0].mxu0 %v8820
      %v9738 = vpop.f32.mrb[0].mxu0
      %v9739 = vadd.f32 %v9603, %v9738
      %v9740 = vpop.f32.mrb[0].mxu0
      %v9741 = vpop.f32.mrb[0].mxu0
      %v9742 = vadd.f32 %v9606, %v9741
      %v9743 = vpop.f32.mrb[0].mxu0
      %9744 = vmatprep.mubr.bf16.mxu0 0
      %9745 = vmatmul.mubr.bf16.gmra.mrb[0].mxu0 %v8822
      %v9746 = vpop.f32.mrb[0].mxu0
      %v9747 = vadd.f32 %v9611, %v9746
      %v9748 = vpop.f32.mrb[0].mxu0
      %v9749 = vpop.f32.mrb[0].mxu0
      %v9750 = vadd.f32 %v9614, %v9749
      %v9751 = vpop.f32.mrb[0].mxu0
      %9752 = vmatprep.mubr.bf16.mxu0 0
      %9753 = vmatmul.mubr.bf16.gmra.mrb[0].mxu0 %v8824
      %v9754 = vpop.f32.mrb[0].mxu0
      %v9755 = vadd.f32 %v9619, %v9754
      %v9756 = vpop.f32.mrb[0].mxu0
      %v9757 = vpop.f32.mrb[0].mxu0
      %v9758 = vadd.f32 %v9622, %v9757
      %v9759 = vpop.f32.mrb[0].mxu0
      %9760 = vmatprep.mubr.bf16.mxu0 0
      %9761 = vmatmul.mubr.bf16.gmra.mrb[0].mxu0 %v8826
      %v9762 = vpop.f32.mrb[0].mxu0
      %v9763 = vadd.f32 %v9627, %v9762
      %v9764 = vpop.f32.mrb[0].mxu0
      %v9765 = vpop.f32.mrb[0].mxu0
      %v9766 = vadd.f32 %v9630, %v9765
      %v9767 = vpop.f32.mrb[0].mxu0
      %9768 = vmatprep.mubr.bf16.mxu0 0
      %9769 = vmatmul.mubr.bf16.gmra.mrb[0].mxu0 %v8828
      %v9770 = vpop.f32.mrb[0].mxu0
      %v9771 = vadd.f32 %v9635, %v9770
      %v9772 = vpop.f32.mrb[0].mxu0
      %v9773 = vpop.f32.mrb[0].mxu0
      %v9774 = vadd.f32 %v9638, %v9773
      %v9775 = vpop.f32.mrb[0].mxu0
      %9776 = vmatprep.mubr.bf16.mxu0 0
      %9777 = vmatmul.mubr.bf16.gmra.mrb[0].mxu0 %v8830
      %v9778 = vpop.f32.mrb[0].mxu0
      %v9779 = vadd.f32 %v9643, %v9778
      %v9780 = vpop.f32.mrb[0].mxu0
      %v9781 = vpop.f32.mrb[0].mxu0
      %v9782 = vpop.f32.mrb[0].mxu0
      %9783 = vdwg.mxu0
      %v9784 = vmax.f32 %v9683, 0.0
      %v9785 = vmax.f32 %v9686, 0.0
      %v9786 = vmax.f32 %v9691, 0.0
      %v9787 = vmax.f32 %v9694, 0.0
      %v9788 = vmax.f32 %v9699, 0.0
      %v9789 = vmax.f32 %v9702, 0.0
      %v9790 = vmax.f32 %v9707, 0.0
      %v9791 = vmax.f32 %v9710, 0.0
      %v9792 = vmax.f32 %v9715, 0.0
      %v9793 = vmax.f32 %v9718, 0.0
      %v9794 = vmax.f32 %v9723, 0.0
      %v9795 = vmax.f32 %v9726, 0.0
      %v9796 = vmax.f32 %v9731, 0.0
      %v9797 = vmax.f32 %v9734, 0.0
      %v9798 = vmax.f32 %v9739, 0.0
      %v9799 = vmax.f32 %v9742, 0.0
      %v9800 = vmax.f32 %v9747, 0.0
      %v9801 = vmax.f32 %v9750, 0.0
      %v9802 = vmax.f32 %v9755, 0.0
      %v9803 = vmax.f32 %v9758, 0.0
      %v9804 = vmax.f32 %v9763, 0.0
      %v9805 = vmax.f32 %v9766, 0.0
      %v9806 = vmax.f32 %v9771, 0.0
      %v9807 = vmax.f32 %v9774, 0.0
      %v9808 = vmax.f32 %v9779, 0.0
      %v9811 = vrot.slane %v9785, 2
      %v9812 = vrot.slane %v9786, 2
      %v9813 = vsel %vm1642, %v9811, %v9812
      %v9817 = vrot.slane %v9786, 4
      %v9818 = vrot.slane %v9787, 4
      %v9819 = vsel %vm1676, %v9817, %v9818
      %v9823 = vrot.slane %v9787, 6
      %v9824 = vrot.slane %v9788, 6
      %v9825 = vsel %vm1709, %v9823, %v9824
      %v9830 = vrot.slane %v9790, 2
      %v9831 = vrot.slane %v9791, 2
      %v9832 = vsel %vm1642, %v9830, %v9831
      %v9836 = vrot.slane %v9791, 4
      %v9837 = vrot.slane %v9792, 4
      %v9838 = vsel %vm1676, %v9836, %v9837
      %v9842 = vrot.slane %v9792, 6
      %v9843 = vrot.slane %v9793, 6
      %v9844 = vsel %vm1709, %v9842, %v9843
      %v9849 = vrot.slane %v9795, 2
      %v9850 = vrot.slane %v9796, 2
      %v9851 = vsel %vm1642, %v9849, %v9850
      %9854 = vst.msk [vmem:[#allocation4] sm:$0xff] %vm2026, %v9784
      %vm9855 = vcmask 517120
      %9856 = vst.msk [vmem:[#allocation4 + $0x8] sm:$0x3] %vm9855, %v9785
      %9857 = vst.msk [vmem:[#allocation4 + $0x10] sm:$0xff] %vm2026, %v9813
      %9858 = vst.msk [vmem:[#allocation4 + $0x18] sm:$0x3] %vm9855, %v9812
      %9859 = vst.msk [vmem:[#allocation4 + $0x20] sm:$0xff] %vm2026, %v9819
      %9860 = vst.msk [vmem:[#allocation4 + $0x28] sm:$0x3] %vm9855, %v9818
      %9861 = vst.msk [vmem:[#allocation4 + $0x30] sm:$0xff] %vm2026, %v9825
      %9862 = vst.msk [vmem:[#allocation4 + $0x38] sm:$0x3] %vm9855, %v9824
      %9863 = vst.msk [vmem:[#allocation4 + $0x40] sm:$0xff] %vm2026, %v9789
      %9864 = vst.msk [vmem:[#allocation4 + $0x48] sm:$0x3] %vm9855, %v9790
      %9865 = vst.msk [vmem:[#allocation4 + $0x50] sm:$0xff] %vm2026, %v9832
      %9866 = vst.msk [vmem:[#allocation4 + $0x58] sm:$0x3] %vm9855, %v9831
      %9867 = vst.msk [vmem:[#allocation4 + $0x60] sm:$0xff] %vm2026, %v9838
      %9868 = vst.msk [vmem:[#allocation4 + $0x68] sm:$0x3] %vm9855, %v9837
      %9869 = vst.msk [vmem:[#allocation4 + $0x70] sm:$0xff] %vm2026, %v9844
      %9870 = vst.msk [vmem:[#allocation4 + $0x78] sm:$0x3] %vm9855, %v9843
      %9871 = vst.msk [vmem:[#allocation4 + $0x80] sm:$0xff] %vm2026, %v9794
      %9872 = vst.msk [vmem:[#allocation4 + $0x88] sm:$0x3] %vm9855, %v9795
      %9873 = vst.msk [vmem:[#allocation4 + $0x90] sm:$0xff] %vm2026, %v9851
      %9874 = vst.msk [vmem:[#allocation4 + $0x98] sm:$0x3] %vm9855, %v9850
      %v9877 = vrot.slane %v9797, 2
      %v9878 = vrot.slane %v9798, 2
      %v9879 = vsel %vm1642, %v9877, %v9878
      %v9884 = vrot.slane %v9799, 4
      %v9885 = vrot.slane %v9800, 4
      %v9886 = vsel %vm1676, %v9884, %v9885
      %v9890 = vrot.slane %v9800, 6
      %v9891 = vrot.slane %v9801, 6
      %v9892 = vsel %vm1709, %v9890, %v9891
      %v9897 = vrot.slane %v9802, 2
      %v9898 = vrot.slane %v9803, 2
      %v9899 = vsel %vm1642, %v9897, %v9898
      %v9904 = vrot.slane %v9804, 4
      %v9905 = vrot.slane %v9805, 4
      %v9906 = vsel %vm1676, %v9904, %v9905
      %v9910 = vrot.slane %v9805, 6
      %v9911 = vrot.slane %v9806, 6
      %v9912 = vsel %vm1709, %v9910, %v9911
      %v9917 = vrot.slane %v9807, 2
      %v9918 = vrot.slane %v9808, 2
      %v9919 = vsel %vm1642, %v9917, %v9918
      %s9922 = scalar_lea.vmem [#allocation4], 160
      %vm9923 = vcmask 523268
      %9924 = vst.msk [vmem:[%s9922 - $0x4] sm:$0xf0] %vm9923, %v9796
      %9925 = vst.msk [vmem:[%s9922 + $0x4] sm:$0x3f] %vm6177, %v9797
      %9926 = vst.msk [vmem:[%s9922 + $0xc] sm:$0xf0] %vm9923, %v9879
      %9927 = vst.msk [vmem:[%s9922 + $0x14] sm:$0x3f] %vm6177, %v9878
      %9928 = vst.msk [vmem:[%s9922 + $0x1c] sm:$0xf0] %vm9923, %v9884
      %9929 = vst.msk [vmem:[%s9922 + $0x24] sm:$0x3f] %vm6177, %v9886
      %9930 = vst.msk [vmem:[%s9922 + $0x2c] sm:$0xf0] %vm9923, %v9890
      %9931 = vst.msk [vmem:[%s9922 + $0x34] sm:$0x3f] %vm6177, %v9892
      %9932 = vst.msk [vmem:[%s9922 + $0x3c] sm:$0xf0] %vm9923, %v9801
      %9933 = vst.msk [vmem:[%s9922 + $0x44] sm:$0x3f] %vm6177, %v9802
      %9934 = vst.msk [vmem:[%s9922 + $0x4c] sm:$0xf0] %vm9923, %v9899
      %9935 = vst.msk [vmem:[%s9922 + $0x54] sm:$0x3f] %vm6177, %v9898
      %9936 = vst.msk [vmem:[%s9922 + $0x5c] sm:$0xf0] %vm9923, %v9904
      %9937 = vst.msk [vmem:[%s9922 + $0x64] sm:$0x3f] %vm6177, %v9906
      %9938 = vst.msk [vmem:[%s9922 + $0x6c] sm:$0xf0] %vm9923, %v9910
      %9939 = vst.msk [vmem:[%s9922 + $0x74] sm:$0x3f] %vm6177, %v9912
      %9940 = vst.msk [vmem:[%s9922 + $0x7c] sm:$0xf0] %vm9923, %v9806
      %9941 = vst.msk [vmem:[%s9922 + $0x84] sm:$0x3f] %vm6177, %v9807
      %9942 = vst.msk [vmem:[%s9922 + $0x8c] sm:$0xf0] %vm9923, %v9919
      %9943 = vst.msk [vmem:[%s9922 + $0x94] sm:$0x3f] %vm6177, %v9918
      %v9944 = vld [vmem:[#allocation4] sm:$0xff]
      %v9945 = vld [vmem:[#allocation4 + $0x8] sm:$0x3]
      %v9946 = vld [vmem:[#allocation4 + $0x10] sm:$0xff]
      %v9947 = vld [vmem:[#allocation4 + $0x18] sm:$0x3]
      %v9948 = vld [vmem:[#allocation4 + $0x20] sm:$0xff]
      %v9949 = vld [vmem:[#allocation4 + $0x28] sm:$0x3]
      %v9950 = vld [vmem:[#allocation4 + $0x30] sm:$0xff]
      %v9951 = vld [vmem:[#allocation4 + $0x38] sm:$0x3]
      %v9952 = vld [vmem:[#allocation4 + $0x40] sm:$0xff]
      %v9953 = vld [vmem:[#allocation4 + $0x48] sm:$0x3]
      %v9954 = vld [vmem:[#allocation4 + $0x50] sm:$0xff]
      %v9955 = vld [vmem:[#allocation4 + $0x58] sm:$0x3]
      %v9956 = vld [vmem:[#allocation4 + $0x60] sm:$0xff]
      %v9957 = vld [vmem:[#allocation4 + $0x68] sm:$0x3]
      %v9958 = vld [vmem:[#allocation4 + $0x70] sm:$0xff]
      %v9959 = vld [vmem:[#allocation4 + $0x78] sm:$0x3]
      %v9960 = vld [vmem:[#allocation4 + $0x80] sm:$0xff]
      %v9961 = vld [vmem:[#allocation4 + $0x88] sm:$0x3]
      %v9962 = vld [vmem:[#allocation4 + $0xa0] sm:$0xff]
      %v9963 = vld [vmem:[#allocation4 + $0xa8] sm:$0x3]
      %v9964 = vld [vmem:[#allocation4 + $0xb0] sm:$0xff]
      %v9965 = vld [vmem:[#allocation4 + $0xb8] sm:$0x3]
      %v9966 = vld [vmem:[#allocation4 + $0xc0] sm:$0xff]
      %v9967 = vld [vmem:[#allocation4 + $0xc8] sm:$0x3]
      %v9968 = vld [vmem:[#allocation4 + $0xd0] sm:$0xff]
      %v9969 = vld [vmem:[#allocation4 + $0xd8] sm:$0x3]
      %v9970 = vld [vmem:[#allocation4 + $0xe0] sm:$0xff]
      %v9971 = vld [vmem:[#allocation4 + $0xe8] sm:$0x3]
      %v9972 = vld [vmem:[#allocation4 + $0xf0] sm:$0xff]
      %v9973 = vld [vmem:[#allocation4 + $0xf8] sm:$0x3]
      %v9974 = vld [vmem:[#allocation4 + $0x100] sm:$0xff]
      %v9975 = vld [vmem:[#allocation4 + $0x108] sm:$0x3]
      %v9976 = vld [vmem:[#allocation4 + $0x110] sm:$0xff]
      %v9977 = vld [vmem:[#allocation4 + $0x118] sm:$0x3]
      %v9978 = vld [vmem:[#allocation4 + $0x120] sm:$0xff]
      %v9979 = vld [vmem:[#allocation4 + $0x128] sm:$0x3]
      %v9980 = vmax.f32 %v9944, %v9946
      %v9981 = vmax.f32 %v9945, %v9947
      %v9982 = vmax.f32 %v9948, %v9950
      %v9983 = vmax.f32 %v9949, %v9951
      %v9984 = vmax.f32 %v9952, %v9954
      %v9985 = vmax.f32 %v9953, %v9955
      %v9986 = vmax.f32 %v9956, %v9958
      %v9987 = vmax.f32 %v9957, %v9959
      %v9988 = vmax.f32 %v9962, %v9964
      %v9989 = vmax.f32 %v9963, %v9965
      %v9990 = vmax.f32 %v9966, %v9968
      %v9991 = vmax.f32 %v9967, %v9969
      %v9992 = vmax.f32 %v9970, %v9972
      %v9993 = vmax.f32 %v9971, %v9973
      %v9994 = vmax.f32 %v9974, %v9976
      %v9995 = vmax.f32 %v9975, %v9977
      %v9996 = vmax.f32 %v9980, %v9948
      %v9997 = vmax.f32 %v9981, %v9949
      %v9998 = vmax.f32 %v9982, %v9952
      %v9999 = vmax.f32 %v9983, %v9953
      %v10000 = vmax.f32 %v9984, %v9956
      %v10001 = vmax.f32 %v9985, %v9957
      %v10002 = vmax.f32 %v9986, %v9960
      %v10003 = vmax.f32 %v9987, %v9961
      %v10004 = vmax.f32 %v9988, %v9966
      %v10005 = vmax.f32 %v9989, %v9967
      %v10006 = vmax.f32 %v9990, %v9970
      %v10007 = vmax.f32 %v9991, %v9971
      %v10008 = vmax.f32 %v9992, %v9974
      %v10009 = vmax.f32 %v9993, %v9975
      %v10010 = vmax.f32 %v9994, %v9978
      %v10011 = vmax.f32 %v9995, %v9979
      %v10028 = vrot.slane %v9996, 1
      %v10029 = vrot.slane %v9997, 1
      %v10030 = vsel %vm1693, %v10028, %v10029
      %v10031 = vrot.slane %v9998, 1
      %v10032 = vrot.slane %v9999, 1
      %v10033 = vsel %vm1693, %v10031, %v10032
      %v10034 = vrot.slane %v10000, 1
      %v10035 = vrot.slane %v10001, 1
      %v10036 = vsel %vm1693, %v10034, %v10035
      %v10037 = vrot.slane %v10002, 1
      %v10038 = vrot.slane %v10003, 1
      %v10039 = vsel %vm1693, %v10037, %v10038
      %v10040 = vrot.slane %v10004, 1
      %v10041 = vrot.slane %v10005, 1
      %v10042 = vsel %vm1693, %v10040, %v10041
      %v10043 = vrot.slane %v10006, 1
      %v10044 = vrot.slane %v10007, 1
      %v10045 = vsel %vm1693, %v10043, %v10044
      %v10046 = vrot.slane %v10008, 1
      %v10047 = vrot.slane %v10009, 1
      %v10048 = vsel %vm1693, %v10046, %v10047
      %v10049 = vrot.slane %v10010, 1
      %v10050 = vrot.slane %v10011, 1
      %v10051 = vsel %vm1693, %v10049, %v10050
      %v10060 = vmax.f32 %v9996, %v10030
      %v10061 = vmax.f32 %v9998, %v10033
      %v10062 = vmax.f32 %v10000, %v10036
      %v10063 = vmax.f32 %v10002, %v10039
      %v10064 = vmax.f32 %v10004, %v10042
      %v10065 = vmax.f32 %v10006, %v10045
      %v10066 = vmax.f32 %v10008, %v10048
      %v10067 = vmax.f32 %v10010, %v10051
      %v10068 = vrot.slane %v9996, 2
      %v10069 = vrot.slane %v9997, 2
      %v10070 = vsel %vm1642, %v10068, %v10069
      %v10071 = vrot.slane %v9998, 2
      %v10072 = vrot.slane %v9999, 2
      %v10073 = vsel %vm1642, %v10071, %v10072
      %v10074 = vrot.slane %v10000, 2
      %v10075 = vrot.slane %v10001, 2
      %v10076 = vsel %vm1642, %v10074, %v10075
      %v10077 = vrot.slane %v10002, 2
      %v10078 = vrot.slane %v10003, 2
      %v10079 = vsel %vm1642, %v10077, %v10078
      %v10080 = vrot.slane %v10004, 2
      %v10081 = vrot.slane %v10005, 2
      %v10082 = vsel %vm1642, %v10080, %v10081
      %v10083 = vrot.slane %v10006, 2
      %v10084 = vrot.slane %v10007, 2
      %v10085 = vsel %vm1642, %v10083, %v10084
      %v10086 = vrot.slane %v10008, 2
      %v10087 = vrot.slane %v10009, 2
      %v10088 = vsel %vm1642, %v10086, %v10087
      %v10089 = vrot.slane %v10010, 2
      %v10090 = vrot.slane %v10011, 2
      %v10091 = vsel %vm1642, %v10089, %v10090
      %v10100 = vmax.f32 %v10060, %v10070
      %v10101 = vmax.f32 %v10061, %v10073
      %v10102 = vmax.f32 %v10062, %v10076
      %v10103 = vmax.f32 %v10063, %v10079
      %v10104 = vmax.f32 %v10064, %v10082
      %v10105 = vmax.f32 %v10065, %v10085
      %v10106 = vmax.f32 %v10066, %v10088
      %v10107 = vmax.f32 %v10067, %v10091
      %v10116 = vrot.slane %v10100, 1
      %v10117 = vrot.slane %v10101, 1
      %v10118 = vrot.slane %v10102, 1
      %v10119 = vrot.slane %v10103, 1
      %v10120 = vrot.slane %v10104, 1
      %v10121 = vrot.slane %v10105, 1
      %v10122 = vrot.slane %v10106, 1
      %v10123 = vrot.slane %v10107, 1
      %v10132 = vrot.slane %v10100, 2
      %v10133 = vrot.slane %v10101, 2
      %v10134 = vrot.slane %v10102, 2
      %v10135 = vrot.slane %v10103, 2
      %v10136 = vrot.slane %v10104, 2
      %v10137 = vrot.slane %v10105, 2
      %v10138 = vrot.slane %v10106, 2
      %v10139 = vrot.slane %v10107, 2
      %v10148 = vrot.slane %v10100, 3
      %v10149 = vrot.slane %v10101, 3
      %v10150 = vrot.slane %v10102, 3
      %v10151 = vrot.slane %v10103, 3
      %v10152 = vrot.slane %v10104, 3
      %v10153 = vrot.slane %v10105, 3
      %v10154 = vrot.slane %v10106, 3
      %v10155 = vrot.slane %v10107, 3
      %v10164 = vsel %vm1658, %v10100, %v10116
      %v10165 = vsel %vm1658, %v10101, %v10117
      %v10166 = vsel %vm1658, %v10102, %v10118
      %v10167 = vsel %vm1658, %v10103, %v10119
      %v10168 = vsel %vm1658, %v10104, %v10120
      %v10169 = vsel %vm1658, %v10105, %v10121
      %v10170 = vsel %vm1658, %v10106, %v10122
      %v10171 = vsel %vm1658, %v10107, %v10123
      %v10172 = vsel %vm1709, %v10164, %v10132
      %v10173 = vsel %vm1709, %v10165, %v10133
      %v10174 = vsel %vm1709, %v10166, %v10134
      %v10175 = vsel %vm1709, %v10167, %v10135
      %v10176 = vsel %vm1709, %v10168, %v10136
      %v10177 = vsel %vm1709, %v10169, %v10137
      %v10178 = vsel %vm1709, %v10170, %v10138
      %v10179 = vsel %vm1709, %v10171, %v10139
      %v10180 = vsel %vm1625, %v10172, %v10148
      %v10181 = vsel %vm1625, %v10173, %v10149
      %v10182 = vsel %vm1625, %v10174, %v10150
      %v10183 = vsel %vm1625, %v10175, %v10151
      %v10184 = vsel %vm1625, %v10176, %v10152
      %v10185 = vsel %vm1625, %v10177, %v10153
      %v10186 = vsel %vm1625, %v10178, %v10154
      %v10187 = vsel %vm1625, %v10179, %v10155
      %vm10188 = vcmask 519168
      %10189 = vst.msk [vmem:[#allocation5] sm:$0xf] %vm10188, %v10180
      %10190 = vst.msk [vmem:[#allocation5 + $0x4] sm:$0xf] %vm10188, %v10181
      %10191 = vst.msk [vmem:[#allocation5 + $0x8] sm:$0xf] %vm10188, %v10182
      %10192 = vst.msk [vmem:[#allocation5 + $0xc] sm:$0xf] %vm10188, %v10183
      %10193 = vst.msk [vmem:[#allocation5 + $0x10] sm:$0xf] %vm10188, %v10184
      %10194 = vst.msk [vmem:[#allocation5 + $0x14] sm:$0xf] %vm10188, %v10185
      %10195 = vst.msk [vmem:[#allocation5 + $0x18] sm:$0xf] %vm10188, %v10186
      %10196 = vst.msk [vmem:[#allocation5 + $0x1c] sm:$0xf] %vm10188, %v10187
      %v10197 = vld [vmem:[#allocation5] sm:$0xf]
      %v10198 = vld [vmem:[#allocation5 + $0x4] sm:$0xf]
      %v10199 = vld [vmem:[#allocation5 + $0x8] sm:$0xf]
      %v10200 = vld [vmem:[#allocation5 + $0xc] sm:$0xf]
      %v10201 = vld [vmem:[#allocation5 + $0x10] sm:$0xf]
      %v10202 = vld [vmem:[#allocation5 + $0x14] sm:$0xf]
      %v10203 = vld [vmem:[#allocation5 + $0x18] sm:$0xf]
      %v10204 = vld [vmem:[#allocation5 + $0x1c] sm:$0xf]
      %v10205 = vpack.c.bf16 %v10197, %v10197
      %v10206 = vpack.c.bf16 %v10198, %v10198
      %v10207 = vpack.c.bf16 %v10199, %v10199
      %v10208 = vpack.c.bf16 %v10200, %v10200
      %v10209 = vpack.c.bf16 %v10201, %v10201
      %v10210 = vpack.c.bf16 %v10202, %v10202
      %v10211 = vpack.c.bf16 %v10203, %v10203
      %v10212 = vpack.c.bf16 %v10204, %v10204
      %10217 = vrot.lane.b32.xlu0 %v10206, 64
      %v10218 = vpop.permute.xlu0 %10217
      %10219 = vrot.lane.b32.xlu0 %v10207, 64
      %v10220 = vpop.permute.xlu0 %10219
      %10221 = vrot.lane.b32.xlu0 %v10210, 64
      %v10222 = vpop.permute.xlu0 %10221
      %10223 = vrot.lane.b32.xlu0 %v10211, 64
      %v10224 = vpop.permute.xlu0 %10223
      %v10227 = vsel %vm2026, %v10205, %v10218
      %v10230 = vsel %vm2026, %v10206, %v10220
      %v10233 = vsel %vm2026, %v10209, %v10222
      %v10236 = vsel %vm2026, %v10210, %v10224
      %v10237 = vshrl.u32 %v10227, 16
      %v10239 = vshll.u32 %v10227, 16
      %v10241 = vrot.slane %v10239, 1
      %v10242 = vor.u32 %v10237, %v10241
      %v10244 = vshrl.u32 %v10207, 16
      %v10246 = vshll.u32 %v10207, 16
      %v10248 = vrot.slane %v10246, 1
      %v10249 = vor.u32 %v10244, %v10248
      %v10250 = vshrl.u32 %v10230, 16
      %v10252 = vshll.u32 %v10230, 16
      %v10254 = vrot.slane %v10252, 1
      %v10255 = vor.u32 %v10250, %v10254
      %v10257 = vshrl.u32 %v10208, 16
      %v10259 = vshll.u32 %v10208, 16
      %v10261 = vrot.slane %v10259, 1
      %v10262 = vor.u32 %v10257, %v10261
      %v10263 = vshrl.u32 %v10233, 16
      %v10265 = vshll.u32 %v10233, 16
      %v10267 = vrot.slane %v10265, 1
      %v10268 = vor.u32 %v10263, %v10267
      %v10270 = vshrl.u32 %v10211, 16
      %v10272 = vshll.u32 %v10211, 16
      %v10274 = vrot.slane %v10272, 1
      %v10275 = vor.u32 %v10270, %v10274
      %v10276 = vshrl.u32 %v10236, 16
      %v10278 = vshll.u32 %v10236, 16
      %v10280 = vrot.slane %v10278, 1
      %v10281 = vor.u32 %v10276, %v10280
      %v10283 = vshrl.u32 %v10212, 16
      %v10285 = vshll.u32 %v10212, 16
      %v10287 = vrot.slane %v10285, 1
      %v10288 = vor.u32 %v10283, %v10287
      %10289 = vrot.lane.b32.xlu0 %v10242, 64
      %v10290 = vpop.permute.xlu0 %10289
      %10291 = vrot.lane.b32.xlu0 %v10249, 64
      %v10292 = vpop.permute.xlu0 %10291
      %10293 = vrot.lane.b32.xlu0 %v10255, 64
      %v10294 = vpop.permute.xlu0 %10293
      %10295 = vrot.lane.b32.xlu0 %v10262, 64
      %v10296 = vpop.permute.xlu0 %10295
      %10297 = vrot.lane.b32.xlu0 %v10268, 64
      %v10298 = vpop.permute.xlu0 %10297
      %10299 = vrot.lane.b32.xlu0 %v10275, 64
      %v10300 = vpop.permute.xlu0 %10299
      %10301 = vrot.lane.b32.xlu0 %v10281, 64
      %v10302 = vpop.permute.xlu0 %10301
      %10303 = vrot.lane.b32.xlu0 %v10288, 64
      %v10304 = vpop.permute.xlu0 %10303
      %v10305 = vsel %vm6817, %v10290, %v10292
      %v10306 = vsel %vm6817, %v10294, %v10296
      %v10307 = vsel %vm6817, %v10298, %v10300
      %v10308 = vsel %vm6817, %v10302, %v10304
      %v10315 = vrot.slane %v10227, 1
      %v10316 = vrot.slane %v10207, 1
      %v10317 = vrot.slane %v10230, 1
      %v10318 = vrot.slane %v10208, 1
      %v10319 = vrot.slane %v10233, 1
      %v10320 = vrot.slane %v10211, 1
      %v10321 = vrot.slane %v10236, 1
      %v10322 = vrot.slane %v10212, 1
      %v10324 = vsel %vm2026, %v10207, %v10290
      %v10326 = vsel %vm2026, %v10208, %v10294
      %v10328 = vsel %vm2026, %v10211, %v10298
      %v10330 = vsel %vm2026, %v10212, %v10302
      %v10332 = vrot.slane %v10230, 7
      %v10333 = vrot.slane %v10326, 7
      %v10334 = vrot.slane %v10306, 7
      %v10335 = vrot.slane %v10317, 7
      %v10336 = vrot.slane %v10318, 7
      %v10338 = vrot.slane %v10233, 6
      %v10339 = vrot.slane %v10328, 6
      %v10340 = vrot.slane %v10307, 6
      %v10341 = vrot.slane %v10319, 6
      %v10342 = vrot.slane %v10320, 6
      %v10344 = vrot.slane %v10236, 5
      %v10345 = vrot.slane %v10330, 5
      %v10346 = vrot.slane %v10308, 5
      %v10347 = vrot.slane %v10321, 5
      %v10348 = vrot.slane %v10322, 5
      %v10350 = vsel %vm1658, %v10227, %v10332
      %v10352 = vsel %vm1658, %v10324, %v10333
      %v10355 = vsel %vm1658, %v10305, %v10334
      %v10358 = vsel %vm1658, %v10315, %v10335
      %v10361 = vsel %vm1658, %v10316, %v10336
      %v10363 = vsel %vm1709, %v10350, %v10338
      %v10365 = vsel %vm1709, %v10352, %v10339
      %v10367 = vsel %vm1709, %v10355, %v10340
      %v10369 = vsel %vm1709, %v10358, %v10341
      %v10371 = vsel %vm1709, %v10361, %v10342
      %v10373 = vsel %vm1625, %v10363, %v10344
      %v10376 = vsel %vm1625, %v10365, %v10345
      %v10379 = vsel %vm1625, %v10367, %v10346
      %v10382 = vsel %vm1625, %v10369, %v10347
      %v10385 = vsel %vm1625, %v10371, %v10348
      %v10387 = vlaneseq
      %v10388 = vshrl.u32 %v10387, 7
      %v10389 = vsub.s32 0, %v10388
      %v10390 = vrot.slane %v578, %v10389
      %v10464 = vunpack.c.l.b16 %v504
      %v10465 = vunpack.c.l.b16 %v505
      %v10466 = vunpack.c.l.b16 %v506
      %v10467 = vunpack.c.l.b16 %v507
      %v10468 = vunpack.c.l.b16 %v508
      %v10469 = vunpack.c.l.b16 %v509
      %v10470 = vunpack.c.l.b16 %v510
      %v10471 = vunpack.c.l.b16 %v511
      %v10472 = vunpack.c.l.b16 %v512
      %v10473 = vunpack.c.l.b16 %v513
      %v10474 = vunpack.c.l.b16 %v514
      %v10475 = vunpack.c.l.b16 %v515
      %v10476 = vunpack.c.l.b16 %v516
      %v10477 = vunpack.c.l.b16 %v517
      %v10478 = vunpack.c.l.b16 %v518
      %v10479 = vunpack.c.l.b16 %v519
      %v10480 = vunpack.c.l.b16 %v520
      %v10481 = vunpack.c.l.b16 %v521
      %v10482 = vunpack.c.l.b16 %v522
      %v10483 = vunpack.c.l.b16 %v523
      %v10484 = vunpack.c.l.b16 %v524
      %v10485 = vunpack.c.l.b16 %v525
      %v10486 = vunpack.c.l.b16 %v526
      %v10487 = vunpack.c.l.b16 %v527
      %v10488 = vunpack.c.l.b16 %v528
      %v10489 = vunpack.c.l.b16 %v529
      %v10490 = vunpack.c.l.b16 %v530
      %v10491 = vunpack.c.l.b16 %v531
      %v10492 = vunpack.c.l.b16 %v532
      %v10493 = vunpack.c.l.b16 %v533
      %v10494 = vunpack.c.l.b16 %v534
      %v10495 = vunpack.c.l.b16 %v535
      %v10496 = vunpack.c.l.b16 %v536
      %v10497 = vunpack.c.l.b16 %v537
      %v10498 = vunpack.c.l.b16 %v538
      %v10499 = vunpack.c.l.b16 %v539
      %v10500 = vunpack.c.l.b16 %v540
      %v10501 = vunpack.c.l.b16 %v541
      %v10502 = vunpack.c.l.b16 %v542
      %v10503 = vunpack.c.l.b16 %v543
      %v10504 = vunpack.c.l.b16 %v544
      %v10505 = vunpack.c.l.b16 %v545
      %v10506 = vunpack.c.l.b16 %v546
      %v10507 = vunpack.c.l.b16 %v547
      %v10508 = vunpack.c.l.b16 %v548
      %v10509 = vunpack.c.l.b16 %v549
      %v10510 = vunpack.c.l.b16 %v550
      %v10511 = vunpack.c.l.b16 %v551
      %v10512 = vunpack.c.l.b16 %v552
      %v10513 = vunpack.c.l.b16 %v553
      %v10514 = vunpack.c.l.b16 %v554
      %v10515 = vunpack.c.l.b16 %v555
      %v10516 = vunpack.c.l.b16 %v556
      %v10517 = vunpack.c.l.b16 %v557
      %v10518 = vunpack.c.l.b16 %v558
      %v10519 = vunpack.c.l.b16 %v559
      %v10520 = vunpack.c.l.b16 %v560
      %v10521 = vunpack.c.l.b16 %v561
      %v10522 = vunpack.c.l.b16 %v562
      %v10523 = vunpack.c.l.b16 %v563
      %v10524 = vunpack.c.l.b16 %v564
      %v10525 = vunpack.c.l.b16 %v565
      %v10526 = vunpack.c.l.b16 %v566
      %v10527 = vunpack.c.l.b16 %v567
      %v10528 = vunpack.c.l.b16 %v568
      %v10529 = vunpack.c.l.b16 %v569
      %v10530 = vunpack.c.l.b16 %v570
      %v10531 = vunpack.c.l.b16 %v571
      %v10532 = vunpack.c.l.b16 %v572
      %v10533 = vunpack.c.l.b16 %v573
      %v10534 = vunpack.c.l.b16 %v574
      %v10535 = vunpack.c.l.b16 %v575
      %v10536 = vpack.c.b16 %v10465, %v10464
      %v10537 = vpack.c.b16 %v10467, %v10466
      %v10538 = vpack.c.b16 %v10469, %v10468
      %v10539 = vpack.c.b16 %v10471, %v10470
      %v10540 = vpack.c.b16 %v10473, %v10472
      %v10541 = vpack.c.b16 %v10475, %v10474
      %v10542 = vpack.c.b16 %v10477, %v10476
      %v10543 = vpack.c.b16 %v10479, %v10478
      %v10544 = vpack.c.b16 %v10481, %v10480
      %v10545 = vpack.c.b16 %v10483, %v10482
      %v10546 = vpack.c.b16 %v10485, %v10484
      %v10547 = vpack.c.b16 %v10487, %v10486
      %v10548 = vpack.c.b16 %v10489, %v10488
      %v10549 = vpack.c.b16 %v10491, %v10490
      %v10550 = vpack.c.b16 %v10493, %v10492
      %v10551 = vpack.c.b16 %v10495, %v10494
      %v10552 = vpack.c.b16 %v10497, %v10496
      %v10553 = vpack.c.b16 %v10499, %v10498
      %v10554 = vpack.c.b16 %v10501, %v10500
      %v10555 = vpack.c.b16 %v10503, %v10502
      %v10556 = vpack.c.b16 %v10505, %v10504
      %v10557 = vpack.c.b16 %v10507, %v10506
      %v10558 = vpack.c.b16 %v10509, %v10508
      %v10559 = vpack.c.b16 %v10511, %v10510
      %v10560 = vpack.c.b16 %v10513, %v10512
      %v10561 = vpack.c.b16 %v10515, %v10514
      %v10562 = vpack.c.b16 %v10517, %v10516
      %v10563 = vpack.c.b16 %v10519, %v10518
      %v10564 = vpack.c.b16 %v10521, %v10520
      %v10565 = vpack.c.b16 %v10523, %v10522
      %v10566 = vpack.c.b16 %v10525, %v10524
      %v10567 = vpack.c.b16 %v10527, %v10526
      %v10568 = vpack.c.b16 %v10529, %v10528
      %v10569 = vpack.c.b16 %v10531, %v10530
      %v10570 = vpack.c.b16 %v10533, %v10532
      %v10571 = vpack.c.b16 %v10535, %v10534
      %v10608 = vsel %vm2026, %v10385, 0
      %10610 = vmatprep.subr.bf16.mxu0 0
      %10611 = vmatpush1.bf16.msra.mxu0 %v10536
      %10612 = vmatprep.subr.bf16.mxu0 0
      %10613 = vmatpush1.bf16.msra.mxu0 %v10537
      %10614 = vmatprep.subr.bf16.mxu0 0
      %10615 = vmatpush1.bf16.msra.mxu0 %v10538
      %10616 = vmatprep.subr.bf16.mxu0 0
      %10617 = vmatpush1.bf16.msra.mxu0 %v10539
      %10618 = vmatprep.subr.bf16.mxu0 0
      %10619 = vmatpush1.bf16.msra.mxu0 %v10540
      %10620 = vmatprep.subr.bf16.mxu0 0
      %10621 = vmatpush1.bf16.msra.mxu0 %v10541
      %10622 = vmatprep.subr.bf16.mxu0 0
      %10623 = vmatpush1.bf16.msra.mxu0 %v10542
      %10624 = vmatprep.subr.bf16.mxu0 0
      %10625 = vmatpush1.bf16.msra.mxu0 %v10543
      %10626 = vmatprep.subr.bf16.mxu0 0
      %10627 = vmatpush1.bf16.msra.mxu0 %v10544
      %10628 = vmatprep.subr.bf16.mxu0 0
      %10629 = vmatpush1.bf16.msra.mxu0 %v10545
      %10630 = vmatprep.subr.bf16.mxu0 0
      %10631 = vmatpush1.bf16.msra.mxu0 %v10546
      %10632 = vmatprep.subr.bf16.mxu0 0
      %10633 = vmatpush1.bf16.msra.mxu0 %v10547
      %10634 = vmatprep.subr.bf16.mxu0 0
      %10635 = vmatpush1.bf16.msra.mxu0 %v10548
      %10636 = vmatprep.subr.bf16.mxu0 0
      %10637 = vmatpush1.bf16.msra.mxu0 %v10549
      %10638 = vmatprep.subr.bf16.mxu0 0
      %10639 = vmatpush1.bf16.msra.mxu0 %v10550
      %10640 = vmatprep.subr.bf16.mxu0 0
      %10641 = vmatpush1.bf16.msra.mxu0 %v10551
      %10642 = vmatprep.mubr.bf16.mxu0 %v10376
      %10643 = vmatmul.mubr.bf16.gmra.mrb[0].mxu0 %v10373
      %v10644 = vpop.f32.mrb[0].mxu0
      %v10645 = vadd.f32 %v10390, %v10644
      %v10646 = vpop.f32.mrb[0].mxu0
      %v10647 = vpop.f32.mrb[0].mxu0
      %v10648 = vpop.f32.mrb[0].mxu0
      %10649 = vdwg.mxu0
      %10650 = vmatprep.subr.bf16.mxu0 0
      %10651 = vmatpush1.bf16.msra.mxu0 %v10552
      %10652 = vmatprep.subr.bf16.mxu0 0
      %10653 = vmatpush1.bf16.msra.mxu0 %v10553
      %10654 = vmatprep.subr.bf16.mxu0 0
      %10655 = vmatpush1.bf16.msra.mxu0 %v10554
      %10656 = vmatprep.subr.bf16.mxu0 0
      %10657 = vmatpush1.bf16.msra.mxu0 %v10555
      %10658 = vmatprep.subr.bf16.mxu0 0
      %10659 = vmatpush1.bf16.msra.mxu0 %v10556
      %10660 = vmatprep.subr.bf16.mxu0 0
      %10661 = vmatpush1.bf16.msra.mxu0 %v10557
      %10662 = vmatprep.subr.bf16.mxu0 0
      %10663 = vmatpush1.bf16.msra.mxu0 %v10558
      %10664 = vmatprep.subr.bf16.mxu0 0
      %10665 = vmatpush1.bf16.msra.mxu0 %v10559
      %10666 = vmatprep.subr.bf16.mxu0 0
      %10667 = vmatpush1.bf16.msra.mxu0 %v10560
      %10668 = vmatprep.subr.bf16.mxu0 0
      %10669 = vmatpush1.bf16.msra.mxu0 %v10561
      %10670 = vmatprep.subr.bf16.mxu0 0
      %10671 = vmatpush1.bf16.msra.mxu0 %v10562
      %10672 = vmatprep.subr.bf16.mxu0 0
      %10673 = vmatpush1.bf16.msra.mxu0 %v10563
      %10674 = vmatprep.subr.bf16.mxu0 0
      %10675 = vmatpush1.bf16.msra.mxu0 %v10564
      %10676 = vmatprep.subr.bf16.mxu0 0
      %10677 = vmatpush1.bf16.msra.mxu0 %v10565
      %10678 = vmatprep.subr.bf16.mxu0 0
      %10679 = vmatpush1.bf16.msra.mxu0 %v10566
      %10680 = vmatprep.subr.bf16.mxu0 0
      %10681 = vmatpush1.bf16.msra.mxu0 %v10567
      %10682 = vmatprep.mubr.bf16.mxu0 %v10382
      %10683 = vmatmul.mubr.bf16.gmra.mrb[0].mxu0 %v10379
      %v10684 = vpop.f32.mrb[0].mxu0
      %v10685 = vadd.f32 %v10645, %v10684
      %v10686 = vpop.f32.mrb[0].mxu0
      %v10687 = vpop.f32.mrb[0].mxu0
      %v10688 = vpop.f32.mrb[0].mxu0
      %10689 = vdwg.mxu0
      %10690 = vmatprep.subr.bf16.mxu0 0
      %10691 = vmatpush1.bf16.msra.mxu0 %v10568
      %10692 = vmatprep.subr.bf16.mxu0 0
      %10693 = vmatpush1.bf16.msra.mxu0 %v10569
      %10694 = vmatprep.subr.bf16.mxu0 0
      %10695 = vmatpush1.bf16.msra.mxu0 %v10570
      %10696 = vmatprep.subr.bf16.mxu0 0
      %10697 = vmatpush1.bf16.msra.mxu0 %v10571
      %10698 = vmatprep.subr.bf16.mxu0 0
      %10699 = vmatpush1.bf16.msra.mxu0 0
      %10700 = vmatprep.subr.bf16.mxu0 0
      %10701 = vmatpush1.bf16.msra.mxu0 0
      %10702 = vmatprep.subr.bf16.mxu0 0
      %10703 = vmatpush1.bf16.msra.mxu0 0
      %10704 = vmatprep.subr.bf16.mxu0 0
      %10705 = vmatpush1.bf16.msra.mxu0 0
      %10706 = vmatprep.subr.bf16.mxu0 0
      %10707 = vmatpush1.bf16.msra.mxu0 0
      %10708 = vmatprep.subr.bf16.mxu0 0
      %10709 = vmatpush1.bf16.msra.mxu0 0
      %10710 = vmatprep.subr.bf16.mxu0 0
      %10711 = vmatpush1.bf16.msra.mxu0 0
      %10712 = vmatprep.subr.bf16.mxu0 0
      %10713 = vmatpush1.bf16.msra.mxu0 0
      %10714 = vmatprep.subr.bf16.mxu0 0
      %10715 = vmatpush1.bf16.msra.mxu0 0
      %10716 = vmatprep.subr.bf16.mxu0 0
      %10717 = vmatpush1.bf16.msra.mxu0 0
      %10718 = vmatprep.subr.bf16.mxu0 0
      %10719 = vmatpush1.bf16.msra.mxu0 0
      %10720 = vmatprep.subr.bf16.mxu0 0
      %10721 = vmatpush1.bf16.msra.mxu0 0
      %10722 = vmatprep.mubr.bf16.mxu0 0
      %10723 = vmatmul.mubr.bf16.gmra.mrb[0].mxu0 %v10608
      %v10724 = vpop.f32.mrb[0].mxu0
      %v10725 = vadd.f32 %v10685, %v10724
      %v10726 = vpop.f32.mrb[0].mxu0
      %v10727 = vpop.f32.mrb[0].mxu0
      %v10728 = vpop.f32.mrb[0].mxu0
      %10729 = vdwg.mxu0
      %v10731 = vrot.slane %v10725, 2
      %10733 = vst [vmem:[%s285] sm:$0x3] %v10725
      %10734 = vst [vmem:[%s285 + $0x2] sm:$0x3] %v10731
      %s10735 = scalar_lea.vmem %s285, 4
      %10736 = vst [vmem:[%s10735 - $0x4] sm:$0x30] %v10725
      %10737 = vst [vmem:[%s10735 - $0x2] sm:$0x30] %v10731
      %s10738 = smul.u32 2, %s18
      %p10739 = scmp.lt.s32.totalorder %s10738, 3
      %s10740 = scalar_select %p10739, %s10738, 3
      %s10741 = smul.addr %s10740, 2
      %s10742 = smul.addr %s10741, 2
      %s10743 = scalar_lea.vmem %s7, %s10742
      // Predicated region
      $region49: #{feature_extractor_forward.1} parent=47 // pred_check
        %p10744 = pneg %p188
      $region50: #{feature_extractor_forward.1} parent=47 // pred_check_branch
        %10746 = sbr.rel (%p10744) target = $region52
      $region51: #{feature_extractor_forward.1} parent=47 // pred_region
        %s10747 = smul.u32 2, %s18
      $region52: #{feature_extractor_forward.1} parent=47 // pred_fallthru
        _
    $region48: #{feature_extractor_forward.1} parent=5 // pred_fallthru
      _
    %p10748 = scmp.le.s32.totalorder 2, %s13
    // Predicated region
    $region53: #{feature_extractor_forward.1} parent=5 // pred_check
      %p10749 = pneg %p10748
    $region54: #{feature_extractor_forward.1} parent=5 // pred_check_branch
      %10751 = sbr.rel (%p10749) target = $region56
    $region55: #{feature_extractor_forward.1} parent=5 // pred_region
      %s10752 = ssub.s32 %s13, 2
      // Predicated region
      $region57: #{feature_extractor_forward.1} parent=55 // pred_check
        %p10753 = pneg %p194
      $region58: #{feature_extractor_forward.1} parent=55 // pred_check_branch
        %10755 = sbr.rel (%p10753) target = $region60
      $region59: #{feature_extractor_forward.1} parent=55 // pred_region
        %s10756 = smul.u32 2, %s19
        %p10757 = scmp.lt.s32.totalorder %s10756, 3
        %s10758 = scalar_select %p10757, %s10756, 3
        %s10759 = smul.addr %s10758, 2
        %s10760 = smul.addr %s10759, 2
        %s10761 = scalar_lea.vmem %s7, %s10760
      $region60: #{feature_extractor_forward.1} parent=55 // pred_fallthru
        _
    $region56: #{feature_extractor_forward.1} parent=5 // pred_fallthru
      _
  $region6: #{feature_extractor_forward.1} parent=0 // loop_footer
    %s17 = sadd.s32 1, %s13
  $region7: #{feature_extractor_forward.1} parent=0 // loop_footer_branch
    %12 = sbr.rel target = $region3
  $region8: #{feature_extractor_forward.1} parent=0 // loop_exit
    _

</llo_original>
